<compile_context>
chip_gen: v6e
topology: v6e:2x2x1
jax: 0.10.0
libtpu: 0.0.40
codegen_flags: <defaults>
</compile_context>

<pallas_src>
import functools

import jax
import jax.numpy as jnp
from jax import lax
from jax.experimental import pallas as pl
from jax.experimental.pallas import tpu as pltpu

EPS = 1e-5      # torch.nn.LayerNorm default eps
NEG_INF = -1e30


def _layernorm(z, g, b):
    mu = jnp.mean(z, axis=-1, keepdims=True)
    c = z - mu
    var = jnp.mean(c * c, axis=-1, keepdims=True)
    return c * lax.rsqrt(var + EPS) * g + b


def block_kernel(x_ref, bias_ref, g1_ref, b1_ref,
                 wqkv_ref, wp_ref, bp_ref,
                 g2_ref, b2_ref,
                 w1_ref, bf1_ref, w2_ref, bf2_ref,
                 o_ref, *, num_heads):
    bs, T, D = x_ref.shape
    hs = D // num_heads
    npair = num_heads // 2
    pw = 2 * hs                      # lanes per head pair (128 when hs == 64)
    M = bs * T
    R = npair * M                    # stacked rows, ordered (pair, batch, time)
    scale = float(hs) ** -0.5

    # Flatten (bs, T, D) -> (bs*T, D): every dense op runs at M = bs*T rows.
    x = x_ref[...].reshape(M, D)

    # ---- ln1 (f32) ----
    h1 = _layernorm(x, g1_ref[...], b1_ref[...])

    # ---- fused QKV: one (M, D) @ (D, 3D) bf16 matmul, f32 accumulation ----
    qkv = jnp.dot(h1.astype(jnp.bfloat16), wqkv_ref[...],
                  preferred_element_type=jnp.float32)          # (M, 3D) f32

    # Stack head PAIRS along rows: each slice is a full 128-lane tile (no masked
    # sub-tile shuffles), rows ordered (pair, batch, time).
    def stack_pairs(col_off):
        return jnp.concatenate(
            [qkv[:, col_off + p * pw: col_off + (p + 1) * pw] for p in range(npair)],
            axis=0)                                            # (R, 2*hs)

    q = stack_pairs(0)
    k = stack_pairs(D)
    v = stack_pairs(2 * D)

    # Lane masks selecting the even / odd head of each pair.
    lane = lax.broadcasted_iota(jnp.int32, (1, pw), 1)
    even = (lane < hs).astype(jnp.float32)
    odd = 1.0 - even

    bias = bias_ref[...]                                       # (R, R) additive mask

    def attend(lane_mask):
        # Masking one operand's lanes keeps the contraction within a single head;
        # the block-diagonal bias keeps it within the same (pair, batch) and causal.
        s = jnp.einsum("rd,cd->rc", q * lane_mask, k,
                       preferred_element_type=jnp.float32) * scale + bias
        s = s - jnp.max(s, axis=-1, keepdims=True)
        p = jnp.exp(s)                                         # masked entries underflow to 0
        p = p * pl.reciprocal(jnp.sum(p, axis=-1, keepdims=True), approx=False)
        # attention dropout: identity (eval mode)
        return jnp.dot(p, v * lane_mask, preferred_element_type=jnp.float32)

    o = attend(even) + attend(odd)                             # (R, 2*hs): [even head | odd head]

    # Re-assemble heads along lanes (aligned 128-lane concats) -> (M, D), then ONE
    # full-width output projection (bf16 weights, f32 accumulation).
    attn_cat = jnp.concatenate([o[p * M:(p + 1) * M, :] for p in range(npair)],
                               axis=-1)                        # (M, D)
    attn = jnp.dot(attn_cat.astype(jnp.bfloat16), wp_ref[...],
                   preferred_element_type=jnp.float32) + bp_ref[...]
    # proj dropout: identity (eval mode)

    x1 = x + attn                                              # residual 1

    # ---- ln2 + feed-forward (bf16 weights, f32 accumulation / elementwise) ----
    h2 = _layernorm(x1, g2_ref[...], b2_ref[...])
    f = jnp.dot(h2.astype(jnp.bfloat16), w1_ref[...],
                preferred_element_type=jnp.float32) + bf1_ref[...]
    f = jnp.maximum(f, 0.0)                                    # ReLU
    f = jnp.dot(f.astype(jnp.bfloat16), w2_ref[...],
                preferred_element_type=jnp.float32) + bf2_ref[...]
    # FFN dropout: identity (eval mode)

    o_ref[...] = (x1 + f).astype(o_ref.dtype).reshape(bs, T, D)   # residual 2


def make_attention_bias(batch_block, seq_len, num_heads):
    """Additive mask for rows ordered (pair, batch, time): same (pair, batch) and causal."""
    npair = num_heads // 2
    r = jnp.arange(npair * batch_block * seq_len)
    grp = r // seq_len               # combined (pair, batch) group index
    t = r % seq_len
    allow = (grp[:, None] == grp[None, :]) & (t[:, None] >= t[None, :])
    return jnp.where(allow, 0.0, NEG_INF).astype(jnp.float32)


def prepare_block_params(params, *, num_heads, seq_len, batch_block):
    """One-time (init-time) weight fusion + bf16 cast + attention-bias construction."""
    D = params["wp"].shape[0]
    hs = D // num_heads
    assert num_heads % 2 == 0, "head-pair packing needs an even number of heads"
    # TODO(synk): generalize the pair packing for head sizes other than 64 (here 2*hs == 128 lanes).

    def fuse(w):                     # per-head (H, D, hs) -> column-blocked (D, H*hs)
        return jnp.transpose(w, (1, 0, 2)).reshape(D, num_heads * hs)

    wqkv = jnp.concatenate(
        [fuse(params["wq"]), fuse(params["wk"]), fuse(params["wv"])], axis=1)

    return {
        "bias": make_attention_bias(batch_block, seq_len, num_heads),
        "g1": params["g1"], "b1": params["b1"],
        "wqkv": wqkv.astype(jnp.bfloat16),
        "wp": params["wp"].astype(jnp.bfloat16), "bp": params["bp"],
        "g2": params["g2"], "b2": params["b2"],
        "w1": params["w1"].astype(jnp.bfloat16), "bf1": params["bf1"],
        "w2": params["w2"].astype(jnp.bfloat16), "bf2": params["bf2"],
    }


def block_forward(x, prep, *, num_heads, batch_block=None):
    B, T, D = x.shape
    if batch_block is None:
        batch_block = B              # fold the whole batch: single grid step, weights fetched once
    assert B % batch_block == 0
    R = (num_heads // 2) * batch_block * T
    assert prep["bias"].shape == (R, R), "bias was prepared for a different batch_block/seq_len"
    H4 = 4 * D

    def rep(shape):
        # full-array block, same tile for every grid step (grid-invariant -> fetched once)
        n = len(shape)
        return pl.BlockSpec(shape, lambda i, _n=n: (0,) * _n)

    in_specs = [
        pl.BlockSpec((batch_block, T, D), lambda i: (i, 0, 0)),   # x
        rep((R, R)),                                              # attention bias
        rep((1, D)), rep((1, D)),                                 # ln1 gamma/beta
        rep((D, 3 * D)),                                          # fused Wqkv (bf16)
        rep((D, D)), rep((1, D)),                                 # proj W (bf16), b
        rep((1, D)), rep((1, D)),                                 # ln2 gamma/beta
        rep((D, H4)), rep((1, H4)),                               # ffn W1 (bf16), b1
        rep((H4, D)), rep((1, D)),                                # ffn W2 (bf16), b2
    ]
    out_specs = pl.BlockSpec((batch_block, T, D), lambda i: (i, 0, 0))

    kernel = functools.partial(block_kernel, num_heads=num_heads)
    return pl.pallas_call(
        kernel,
        out_shape=jax.ShapeDtypeStruct((B, T, D), x.dtype),
        grid=(B // batch_block,),
        in_specs=in_specs,
        out_specs=out_specs,
        compiler_params=pltpu.CompilerParams(
            # "arbitrary": do NOT shard the batch across v7x's two TensorCores -- that would
            # duplicate the full (bf16) weight DMA on a weight-bandwidth-bound kernel.
            dimension_semantics=("arbitrary",),
            vmem_limit_bytes=32 * 1024 * 1024,   # safe on v7x (64 MiB physical VMEM)
        ),
    )(x, prep["bias"],
      prep["g1"], prep["b1"],
      prep["wqkv"], prep["wp"], prep["bp"],
      prep["g2"], prep["b2"],
      prep["w1"], prep["bf1"], prep["w2"], prep["bf2"])


def block_reference(x, params, *, num_heads):
    """Pure-JAX f32 reference mirroring the PyTorch forward (eval mode)."""
    B, T, D = x.shape
    hs = D // num_heads
    h = _layernorm(x, params["g1"], params["b1"])
    q = jnp.einsum("btd,hde->bhte", h, params["wq"])
    k = jnp.einsum("btd,hde->bhte", h, params["wk"])
    v = jnp.einsum("btd,hde->bhte", h, params["wv"])
    s = jnp.einsum("bhte,bhse->bhts", q, k) * (hs ** -0.5)
    mask = jnp.tril(jnp.ones((T, T), bool))
    s = jnp.where(mask, s, -jnp.inf)
    w = jax.nn.softmax(s, axis=-1)
    o = jnp.einsum("bhts,bhse->bhte", w, v)
    o = o.transpose(0, 2, 1, 3).reshape(B, T, D)
    x1 = x + o @ params["wp"] + params["bp"]
    h2 = _layernorm(x1, params["g2"], params["b2"])
    f = jnp.maximum(h2 @ params["w1"] + params["bf1"], 0.0) @ params["w2"] + params["bf2"]
    return x1 + f


def make_params(key, n_emb, num_heads):
    D = n_emb
    hs = D // num_heads
    H4 = 4 * D
    ks = jax.random.split(key, 9)
    s = 0.02

    def bf16_repr(a):
        # Round-trip through bf16 so the kernel's bf16 weight storage is value-identical
        # to the f32 weights the reference uses (check isolates kernel correctness).
        return a.astype(jnp.bfloat16).astype(jnp.float32)

    return {
        # LayerNorm: PyTorch default init (gamma=1, beta=0)
        "g1": jnp.ones((1, D), jnp.float32),
        "b1": jnp.zeros((1, D), jnp.float32),
        "g2": jnp.ones((1, D), jnp.float32),
        "b2": jnp.zeros((1, D), jnp.float32),
        # per-head K/Q/V projections (Head hard-codes in_features=384=D), bias=False
        "wq": bf16_repr(s * jax.random.normal(ks[0], (num_heads, D, hs))),
        "wk": bf16_repr(s * jax.random.normal(ks[1], (num_heads, D, hs))),
        "wv": bf16_repr(s * jax.random.normal(ks[2], (num_heads, D, hs))),
        # MHA output projection
        "wp": bf16_repr(s * jax.random.normal(ks[3], (D, D))),
        "bp": (s * jax.random.normal(ks[4], (1, D))).astype(jnp.float32),
        # FeedForward
        "w1": bf16_repr(s * jax.random.normal(ks[5], (D, H4))),
        "bf1": (s * jax.random.normal(ks[6], (1, H4))).astype(jnp.float32),
        "w2": bf16_repr(s * jax.random.normal(ks[7], (H4, D))),
        "bf2": (s * jax.random.normal(ks[8], (1, D))).astype(jnp.float32),
    }


if __name__ == "__main__":
    # Head hard-codes n_emb=384 for its projections, so D must be 384 for the module to run.
    B, T = 2, 16            # block_size = 16 (== T here, small)
    n_emb, num_heads = 384, 6
    key = jax.random.PRNGKey(0)
    kp, kx = jax.random.split(key)
    params = make_params(kp, n_emb, num_heads)
    x = jax.random.normal(kx, (B, T, n_emb), jnp.float32)

    # One-time weight fusion / bf16 cast / mask construction (hoisted out of the forward).
    prep = prepare_block_params(params, num_heads=num_heads, seq_len=T, batch_block=B)
    prep = jax.tree_util.tree_map(jax.block_until_ready, prep)

    ref = jax.block_until_ready(block_reference(x, params, num_heads=num_heads))
    out = jax.block_until_ready(block_forward(x, prep, num_heads=num_heads))

    assert out.shape == (B, T, n_emb)
    err = float(jnp.max(jnp.abs(out - ref)))
    # bf16 matmul inputs (f32 accumulation) vs f32 reference -> a few e-3 absolute error.
    assert jnp.allclose(out, ref, rtol=2e-2, atol=2e-2), err

    print("KERNEL_OK")
</pallas_src>

<mosaic_0001>
module attributes {stable_mosaic.version = 11 : i64} {
  func.func @block_kernel(%arg0: i32, %arg1: memref<2x16x384xf32, #tpu.memory_space<vmem>>, %arg2: memref<96x96xf32, #tpu.memory_space<vmem>>, %arg3: memref<1x384xf32, #tpu.memory_space<vmem>>, %arg4: memref<1x384xf32, #tpu.memory_space<vmem>>, %arg5: memref<384x1152xbf16, #tpu.memory_space<vmem>>, %arg6: memref<384x384xbf16, #tpu.memory_space<vmem>>, %arg7: memref<1x384xf32, #tpu.memory_space<vmem>>, %arg8: memref<1x384xf32, #tpu.memory_space<vmem>>, %arg9: memref<1x384xf32, #tpu.memory_space<vmem>>, %arg10: memref<384x1536xbf16, #tpu.memory_space<vmem>>, %arg11: memref<1x1536xf32, #tpu.memory_space<vmem>>, %arg12: memref<1536x384xbf16, #tpu.memory_space<vmem>>, %arg13: memref<1x384xf32, #tpu.memory_space<vmem>>, %arg14: memref<2x16x384xf32, #tpu.memory_space<vmem>>) attributes {dimension_semantics = [#tpu.dimension_semantics<arbitrary>], iteration_bounds = array<i64: 1>, scalar_prefetch = 0 : i64, scratch_operands = 0 : i64, tpu.core_type = #tpu.core_type<tc>, window_params = [{transform_indices = @transform_0, window_bounds = array<i64: 2, 16, 384>}, {pipeline_mode = #tpu.pipeline_mode<synchronous>, transform_indices = @transform_1, window_bounds = array<i64: 96, 96>}, {pipeline_mode = #tpu.pipeline_mode<synchronous>, transform_indices = @transform_2, window_bounds = array<i64: 1, 384>}, {pipeline_mode = #tpu.pipeline_mode<synchronous>, transform_indices = @transform_3, window_bounds = array<i64: 1, 384>}, {pipeline_mode = #tpu.pipeline_mode<synchronous>, transform_indices = @transform_4, window_bounds = array<i64: 384, 1152>}, {pipeline_mode = #tpu.pipeline_mode<synchronous>, transform_indices = @transform_5, window_bounds = array<i64: 384, 384>}, {pipeline_mode = #tpu.pipeline_mode<synchronous>, transform_indices = @transform_6, window_bounds = array<i64: 1, 384>}, {pipeline_mode = #tpu.pipeline_mode<synchronous>, transform_indices = @transform_7, window_bounds = array<i64: 1, 384>}, {pipeline_mode = #tpu.pipeline_mode<synchronous>, transform_indices = @transform_8, window_bounds = array<i64: 1, 384>}, {pipeline_mode = #tpu.pipeline_mode<synchronous>, transform_indices = @transform_9, window_bounds = array<i64: 384, 1536>}, {pipeline_mode = #tpu.pipeline_mode<synchronous>, transform_indices = @transform_10, window_bounds = array<i64: 1, 1536>}, {pipeline_mode = #tpu.pipeline_mode<synchronous>, transform_indices = @transform_11, window_bounds = array<i64: 1536, 384>}, {pipeline_mode = #tpu.pipeline_mode<synchronous>, transform_indices = @transform_12, window_bounds = array<i64: 1, 384>}, {transform_indices = @transform_13, window_bounds = array<i64: 2, 16, 384>}]} {
    %c0 = arith.constant 0 : index
    %c0_0 = arith.constant 0 : index
    %c0_1 = arith.constant 0 : index
    %0 = vector.load %arg1[%c0, %c0_0, %c0_1] : memref<2x16x384xf32, #tpu.memory_space<vmem>>, vector<2x16x384xf32>
    %1 = vector.shape_cast %0 : vector<2x16x384xf32> to vector<32x384xf32>
    %c0_2 = arith.constant 0 : index
    %c0_3 = arith.constant 0 : index
    %2 = vector.load %arg3[%c0_2, %c0_3] : memref<1x384xf32, #tpu.memory_space<vmem>>, vector<1x384xf32>
    %c0_4 = arith.constant 0 : index
    %c0_5 = arith.constant 0 : index
    %3 = vector.load %arg4[%c0_4, %c0_5] : memref<1x384xf32, #tpu.memory_space<vmem>>, vector<1x384xf32>
    %cst = arith.constant dense<0.000000e+00> : vector<32xf32>
    %4 = vector.multi_reduction <add>, %1, %cst [1] : vector<32x384xf32> to vector<32xf32>
    %5 = vector.shape_cast %4 : vector<32xf32> to vector<32x1xf32>
    %cst_6 = arith.constant 3.840000e+02 : f32
    %6 = vector.broadcast %cst_6 : f32 to vector<32x1xf32>
    %7 = arith.divf %5, %6 : vector<32x1xf32>
    %8 = vector.broadcast %7 : vector<32x1xf32> to vector<32x384xf32>
    %9 = arith.subf %1, %8 : vector<32x384xf32>
    %10 = arith.mulf %9, %9 : vector<32x384xf32>
    %cst_7 = arith.constant dense<0.000000e+00> : vector<32xf32>
    %11 = vector.multi_reduction <add>, %10, %cst_7 [1] : vector<32x384xf32> to vector<32xf32>
    %12 = vector.shape_cast %11 : vector<32xf32> to vector<32x1xf32>
    %cst_8 = arith.constant 3.840000e+02 : f32
    %13 = vector.broadcast %cst_8 : f32 to vector<32x1xf32>
    %14 = arith.divf %12, %13 : vector<32x1xf32>
    %cst_9 = arith.constant 9.99999974E-6 : f32
    %15 = vector.broadcast %cst_9 : f32 to vector<32x1xf32>
    %16 = arith.addf %14, %15 : vector<32x1xf32>
    %17 = math.rsqrt %16 : vector<32x1xf32>
    %18 = vector.broadcast %17 : vector<32x1xf32> to vector<32x384xf32>
    %19 = arith.mulf %9, %18 : vector<32x384xf32>
    %20 = vector.broadcast %2 : vector<1x384xf32> to vector<32x384xf32>
    %21 = arith.mulf %19, %20 : vector<32x384xf32>
    %22 = vector.broadcast %3 : vector<1x384xf32> to vector<32x384xf32>
    %23 = arith.addf %21, %22 : vector<32x384xf32>
    %24 = arith.truncf %23 : vector<32x384xf32> to vector<32x384xbf16>
    %c0_10 = arith.constant 0 : index
    %c0_11 = arith.constant 0 : index
    %25 = vector.load %arg5[%c0_10, %c0_11] : memref<384x1152xbf16, #tpu.memory_space<vmem>>, vector<384x1152xbf16>
    %cst_12 = arith.constant dense<0.000000e+00> : vector<32x1152xf32>
    %26 = tpu.matmul %24, %25, %cst_12 {dimension_numbers = #tpu.dot_dimension_numbers<[1], [0], [0], [1], [0, 0, 1, 1], [], []>} : vector<32x384xbf16>, vector<384x1152xbf16>, vector<32x1152xf32> -> vector<32x1152xf32>
    %27 = vector.extract_strided_slice %26 {offsets = [0, 0], sizes = [32, 128], strides = [1, 1]} : vector<32x1152xf32> to vector<32x128xf32>
    %28 = vector.extract_strided_slice %26 {offsets = [0, 128], sizes = [32, 128], strides = [1, 1]} : vector<32x1152xf32> to vector<32x128xf32>
    %29 = vector.extract_strided_slice %26 {offsets = [0, 256], sizes = [32, 128], strides = [1, 1]} : vector<32x1152xf32> to vector<32x128xf32>
    %30 = tpu.concatenate %27, %28, %29 in 0 : vector<32x128xf32>, vector<32x128xf32>, vector<32x128xf32> -> vector<96x128xf32>
    %31 = vector.extract_strided_slice %26 {offsets = [0, 384], sizes = [32, 128], strides = [1, 1]} : vector<32x1152xf32> to vector<32x128xf32>
    %32 = vector.extract_strided_slice %26 {offsets = [0, 512], sizes = [32, 128], strides = [1, 1]} : vector<32x1152xf32> to vector<32x128xf32>
    %33 = vector.extract_strided_slice %26 {offsets = [0, 640], sizes = [32, 128], strides = [1, 1]} : vector<32x1152xf32> to vector<32x128xf32>
    %34 = tpu.concatenate %31, %32, %33 in 0 : vector<32x128xf32>, vector<32x128xf32>, vector<32x128xf32> -> vector<96x128xf32>
    %35 = vector.extract_strided_slice %26 {offsets = [0, 768], sizes = [32, 128], strides = [1, 1]} : vector<32x1152xf32> to vector<32x128xf32>
    %36 = vector.extract_strided_slice %26 {offsets = [0, 896], sizes = [32, 128], strides = [1, 1]} : vector<32x1152xf32> to vector<32x128xf32>
    %37 = vector.extract_strided_slice %26 {offsets = [0, 1024], sizes = [32, 128], strides = [1, 1]} : vector<32x1152xf32> to vector<32x128xf32>
    %38 = tpu.concatenate %35, %36, %37 in 0 : vector<32x128xf32>, vector<32x128xf32>, vector<32x128xf32> -> vector<96x128xf32>
    %39 = tpu.iota {dimensions = array<i32: 1>} : vector<1x128xi32>
    %c64_i32 = arith.constant 64 : i32
    %40 = vector.broadcast %c64_i32 : i32 to vector<1x128xi32>
    %41 = arith.cmpi slt, %39, %40 : vector<1x128xi32>
    %42 = arith.extui %41 : vector<1x128xi1> to vector<1x128xi32>
    %43 = arith.sitofp %42 : vector<1x128xi32> to vector<1x128xf32>
    %cst_13 = arith.constant 1.000000e+00 : f32
    %44 = vector.broadcast %cst_13 : f32 to vector<1x128xf32>
    %45 = arith.subf %44, %43 : vector<1x128xf32>
    %c0_14 = arith.constant 0 : index
    %c0_15 = arith.constant 0 : index
    %46 = vector.load %arg2[%c0_14, %c0_15] : memref<96x96xf32, #tpu.memory_space<vmem>>, vector<96x96xf32>
    %47 = vector.broadcast %43 : vector<1x128xf32> to vector<96x128xf32>
    %48 = arith.mulf %30, %47 : vector<96x128xf32>
    "tpu.trace_start"() <{level = 10 : i32, message = "rd,cd->rc"}> : () -> ()
    %cst_16 = arith.constant dense<0.000000e+00> : vector<96x96xf32>
    %49 = tpu.matmul %48, %34, %cst_16 {dimension_numbers = #tpu.dot_dimension_numbers<[1], [1], [0], [0], [0, 0, 1, 0], [], []>} : vector<96x128xf32>, vector<96x128xf32>, vector<96x96xf32> -> vector<96x96xf32>
    "tpu.trace_stop"() : () -> ()
    %cst_17 = arith.constant 1.250000e-01 : f32
    %50 = vector.broadcast %cst_17 : f32 to vector<96x96xf32>
    %51 = arith.mulf %49, %50 : vector<96x96xf32>
    %52 = arith.addf %51, %46 : vector<96x96xf32>
    %cst_18 = arith.constant dense<0xFF800000> : vector<96xf32>
    %53 = vector.multi_reduction <maximumf>, %52, %cst_18 [1] : vector<96x96xf32> to vector<96xf32>
    %54 = vector.shape_cast %53 : vector<96xf32> to vector<96x1xf32>
    %55 = vector.broadcast %54 : vector<96x1xf32> to vector<96x96xf32>
    %56 = arith.subf %52, %55 : vector<96x96xf32>
    %57 = math.exp %56 : vector<96x96xf32>
    %cst_19 = arith.constant dense<0.000000e+00> : vector<96xf32>
    %58 = vector.multi_reduction <add>, %57, %cst_19 [1] : vector<96x96xf32> to vector<96xf32>
    %59 = vector.shape_cast %58 : vector<96xf32> to vector<96x1xf32>
    %60 = tpu.reciprocal %59 : vector<96x1xf32> -> vector<96x1xf32>
    %61 = vector.broadcast %60 : vector<96x1xf32> to vector<96x96xf32>
    %62 = arith.mulf %57, %61 : vector<96x96xf32>
    %63 = vector.broadcast %43 : vector<1x128xf32> to vector<96x128xf32>
    %64 = arith.mulf %38, %63 : vector<96x128xf32>
    %cst_20 = arith.constant dense<0.000000e+00> : vector<96x128xf32>
    %65 = tpu.matmul %62, %64, %cst_20 {dimension_numbers = #tpu.dot_dimension_numbers<[1], [0], [0], [1], [0, 0, 1, 1], [], []>} : vector<96x96xf32>, vector<96x128xf32>, vector<96x128xf32> -> vector<96x128xf32>
    %66 = vector.broadcast %45 : vector<1x128xf32> to vector<96x128xf32>
    %67 = arith.mulf %30, %66 : vector<96x128xf32>
    "tpu.trace_start"() <{level = 10 : i32, message = "rd,cd->rc"}> : () -> ()
    %cst_21 = arith.constant dense<0.000000e+00> : vector<96x96xf32>
    %68 = tpu.matmul %67, %34, %cst_21 {dimension_numbers = #tpu.dot_dimension_numbers<[1], [1], [0], [0], [0, 0, 1, 0], [], []>} : vector<96x128xf32>, vector<96x128xf32>, vector<96x96xf32> -> vector<96x96xf32>
    "tpu.trace_stop"() : () -> ()
    %cst_22 = arith.constant 1.250000e-01 : f32
    %69 = vector.broadcast %cst_22 : f32 to vector<96x96xf32>
    %70 = arith.mulf %68, %69 : vector<96x96xf32>
    %71 = arith.addf %70, %46 : vector<96x96xf32>
    %cst_23 = arith.constant dense<0xFF800000> : vector<96xf32>
    %72 = vector.multi_reduction <maximumf>, %71, %cst_23 [1] : vector<96x96xf32> to vector<96xf32>
    %73 = vector.shape_cast %72 : vector<96xf32> to vector<96x1xf32>
    %74 = vector.broadcast %73 : vector<96x1xf32> to vector<96x96xf32>
    %75 = arith.subf %71, %74 : vector<96x96xf32>
    %76 = math.exp %75 : vector<96x96xf32>
    %cst_24 = arith.constant dense<0.000000e+00> : vector<96xf32>
    %77 = vector.multi_reduction <add>, %76, %cst_24 [1] : vector<96x96xf32> to vector<96xf32>
    %78 = vector.shape_cast %77 : vector<96xf32> to vector<96x1xf32>
    %79 = tpu.reciprocal %78 : vector<96x1xf32> -> vector<96x1xf32>
    %80 = vector.broadcast %79 : vector<96x1xf32> to vector<96x96xf32>
    %81 = arith.mulf %76, %80 : vector<96x96xf32>
    %82 = vector.broadcast %45 : vector<1x128xf32> to vector<96x128xf32>
    %83 = arith.mulf %38, %82 : vector<96x128xf32>
    %cst_25 = arith.constant dense<0.000000e+00> : vector<96x128xf32>
    %84 = tpu.matmul %81, %83, %cst_25 {dimension_numbers = #tpu.dot_dimension_numbers<[1], [0], [0], [1], [0, 0, 1, 1], [], []>} : vector<96x96xf32>, vector<96x128xf32>, vector<96x128xf32> -> vector<96x128xf32>
    %85 = arith.addf %65, %84 : vector<96x128xf32>
    %86 = vector.extract_strided_slice %85 {offsets = [0, 0], sizes = [32, 128], strides = [1, 1]} : vector<96x128xf32> to vector<32x128xf32>
    %87 = vector.extract_strided_slice %85 {offsets = [32, 0], sizes = [32, 128], strides = [1, 1]} : vector<96x128xf32> to vector<32x128xf32>
    %88 = vector.extract_strided_slice %85 {offsets = [64, 0], sizes = [32, 128], strides = [1, 1]} : vector<96x128xf32> to vector<32x128xf32>
    %89 = tpu.concatenate %86, %87, %88 in 1 : vector<32x128xf32>, vector<32x128xf32>, vector<32x128xf32> -> vector<32x384xf32>
    %90 = arith.truncf %89 : vector<32x384xf32> to vector<32x384xbf16>
    %c0_26 = arith.constant 0 : index
    %c0_27 = arith.constant 0 : index
    %91 = vector.load %arg6[%c0_26, %c0_27] : memref<384x384xbf16, #tpu.memory_space<vmem>>, vector<384x384xbf16>
    %cst_28 = arith.constant dense<0.000000e+00> : vector<32x384xf32>
    %92 = tpu.matmul %90, %91, %cst_28 {dimension_numbers = #tpu.dot_dimension_numbers<[1], [0], [0], [1], [0, 0, 1, 1], [], []>} : vector<32x384xbf16>, vector<384x384xbf16>, vector<32x384xf32> -> vector<32x384xf32>
    %c0_29 = arith.constant 0 : index
    %c0_30 = arith.constant 0 : index
    %93 = vector.load %arg7[%c0_29, %c0_30] : memref<1x384xf32, #tpu.memory_space<vmem>>, vector<1x384xf32>
    %94 = vector.broadcast %93 : vector<1x384xf32> to vector<32x384xf32>
    %95 = arith.addf %92, %94 : vector<32x384xf32>
    %96 = arith.addf %1, %95 : vector<32x384xf32>
    %c0_31 = arith.constant 0 : index
    %c0_32 = arith.constant 0 : index
    %97 = vector.load %arg8[%c0_31, %c0_32] : memref<1x384xf32, #tpu.memory_space<vmem>>, vector<1x384xf32>
    %c0_33 = arith.constant 0 : index
    %c0_34 = arith.constant 0 : index
    %98 = vector.load %arg9[%c0_33, %c0_34] : memref<1x384xf32, #tpu.memory_space<vmem>>, vector<1x384xf32>
    %cst_35 = arith.constant dense<0.000000e+00> : vector<32xf32>
    %99 = vector.multi_reduction <add>, %96, %cst_35 [1] : vector<32x384xf32> to vector<32xf32>
    %100 = vector.shape_cast %99 : vector<32xf32> to vector<32x1xf32>
    %cst_36 = arith.constant 3.840000e+02 : f32
    %101 = vector.broadcast %cst_36 : f32 to vector<32x1xf32>
    %102 = arith.divf %100, %101 : vector<32x1xf32>
    %103 = vector.broadcast %102 : vector<32x1xf32> to vector<32x384xf32>
    %104 = arith.subf %96, %103 : vector<32x384xf32>
    %105 = arith.mulf %104, %104 : vector<32x384xf32>
    %cst_37 = arith.constant dense<0.000000e+00> : vector<32xf32>
    %106 = vector.multi_reduction <add>, %105, %cst_37 [1] : vector<32x384xf32> to vector<32xf32>
    %107 = vector.shape_cast %106 : vector<32xf32> to vector<32x1xf32>
    %cst_38 = arith.constant 3.840000e+02 : f32
    %108 = vector.broadcast %cst_38 : f32 to vector<32x1xf32>
    %109 = arith.divf %107, %108 : vector<32x1xf32>
    %cst_39 = arith.constant 9.99999974E-6 : f32
    %110 = vector.broadcast %cst_39 : f32 to vector<32x1xf32>
    %111 = arith.addf %109, %110 : vector<32x1xf32>
    %112 = math.rsqrt %111 : vector<32x1xf32>
    %113 = vector.broadcast %112 : vector<32x1xf32> to vector<32x384xf32>
    %114 = arith.mulf %104, %113 : vector<32x384xf32>
    %115 = vector.broadcast %97 : vector<1x384xf32> to vector<32x384xf32>
    %116 = arith.mulf %114, %115 : vector<32x384xf32>
    %117 = vector.broadcast %98 : vector<1x384xf32> to vector<32x384xf32>
    %118 = arith.addf %116, %117 : vector<32x384xf32>
    %119 = arith.truncf %118 : vector<32x384xf32> to vector<32x384xbf16>
    %c0_40 = arith.constant 0 : index
    %c0_41 = arith.constant 0 : index
    %120 = vector.load %arg10[%c0_40, %c0_41] : memref<384x1536xbf16, #tpu.memory_space<vmem>>, vector<384x1536xbf16>
    %cst_42 = arith.constant dense<0.000000e+00> : vector<32x1536xf32>
    %121 = tpu.matmul %119, %120, %cst_42 {dimension_numbers = #tpu.dot_dimension_numbers<[1], [0], [0], [1], [0, 0, 1, 1], [], []>} : vector<32x384xbf16>, vector<384x1536xbf16>, vector<32x1536xf32> -> vector<32x1536xf32>
    %c0_43 = arith.constant 0 : index
    %c0_44 = arith.constant 0 : index
    %122 = vector.load %arg11[%c0_43, %c0_44] : memref<1x1536xf32, #tpu.memory_space<vmem>>, vector<1x1536xf32>
    %123 = vector.broadcast %122 : vector<1x1536xf32> to vector<32x1536xf32>
    %124 = arith.addf %121, %123 : vector<32x1536xf32>
    %cst_45 = arith.constant 0.000000e+00 : f32
    %125 = vector.broadcast %cst_45 : f32 to vector<32x1536xf32>
    %126 = arith.maximumf %124, %125 : vector<32x1536xf32>
    %127 = arith.truncf %126 : vector<32x1536xf32> to vector<32x1536xbf16>
    %c0_46 = arith.constant 0 : index
    %c0_47 = arith.constant 0 : index
    %128 = vector.load %arg12[%c0_46, %c0_47] : memref<1536x384xbf16, #tpu.memory_space<vmem>>, vector<1536x384xbf16>
    %cst_48 = arith.constant dense<0.000000e+00> : vector<32x384xf32>
    %129 = tpu.matmul %127, %128, %cst_48 {dimension_numbers = #tpu.dot_dimension_numbers<[1], [0], [0], [1], [0, 0, 1, 1], [], []>} : vector<32x1536xbf16>, vector<1536x384xbf16>, vector<32x384xf32> -> vector<32x384xf32>
    %c0_49 = arith.constant 0 : index
    %c0_50 = arith.constant 0 : index
    %130 = vector.load %arg13[%c0_49, %c0_50] : memref<1x384xf32, #tpu.memory_space<vmem>>, vector<1x384xf32>
    %131 = vector.broadcast %130 : vector<1x384xf32> to vector<32x384xf32>
    %132 = arith.addf %129, %131 : vector<32x384xf32>
    %133 = arith.addf %96, %132 : vector<32x384xf32>
    %134 = vector.shape_cast %133 : vector<32x384xf32> to vector<2x16x384xf32>
    %c0_51 = arith.constant 0 : index
    %c0_52 = arith.constant 0 : index
    %c0_53 = arith.constant 0 : index
    %135 = vector.load %arg14[%c0_51, %c0_52, %c0_53] : memref<2x16x384xf32, #tpu.memory_space<vmem>>, vector<2x16x384xf32>
    tpu.vector_store %arg14[%c0_51, %c0_52, %c0_53], %134 {strides = array<i32>} : memref<2x16x384xf32, #tpu.memory_space<vmem>>, vector<2x16x384xf32>,
    return
  }
  func.func @transform_0(%arg0: i32) -> (i32, i32, i32) {
    %c0_i32 = arith.constant 0 : i32
    %c0_i32_0 = arith.constant 0 : i32
    %c0_i32_1 = arith.constant 0 : i32
    return %arg0, %c0_i32, %c0_i32_0 : i32, i32, i32
  }
  func.func @transform_1(%arg0: i32) -> (i32, i32) {
    %c0_i32 = arith.constant 0 : i32
    %c0_i32_0 = arith.constant 0 : i32
    %c0_i32_1 = arith.constant 0 : i32
    return %c0_i32, %c0_i32_0 : i32, i32
  }
  func.func @transform_2(%arg0: i32) -> (i32, i32) {
    %c0_i32 = arith.constant 0 : i32
    %c0_i32_0 = arith.constant 0 : i32
    %c0_i32_1 = arith.constant 0 : i32
    return %c0_i32, %c0_i32_0 : i32, i32
  }
  func.func @transform_3(%arg0: i32) -> (i32, i32) {
    %c0_i32 = arith.constant 0 : i32
    %c0_i32_0 = arith.constant 0 : i32
    %c0_i32_1 = arith.constant 0 : i32
    return %c0_i32, %c0_i32_0 : i32, i32
  }
  func.func @transform_4(%arg0: i32) -> (i32, i32) {
    %c0_i32 = arith.constant 0 : i32
    %c0_i32_0 = arith.constant 0 : i32
    %c0_i32_1 = arith.constant 0 : i32
    return %c0_i32, %c0_i32_0 : i32, i32
  }
  func.func @transform_5(%arg0: i32) -> (i32, i32) {
    %c0_i32 = arith.constant 0 : i32
    %c0_i32_0 = arith.constant 0 : i32
    %c0_i32_1 = arith.constant 0 : i32
    return %c0_i32, %c0_i32_0 : i32, i32
  }
  func.func @transform_6(%arg0: i32) -> (i32, i32) {
    %c0_i32 = arith.constant 0 : i32
    %c0_i32_0 = arith.constant 0 : i32
    %c0_i32_1 = arith.constant 0 : i32
    return %c0_i32, %c0_i32_0 : i32, i32
  }
  func.func @transform_7(%arg0: i32) -> (i32, i32) {
    %c0_i32 = arith.constant 0 : i32
    %c0_i32_0 = arith.constant 0 : i32
    %c0_i32_1 = arith.constant 0 : i32
    return %c0_i32, %c0_i32_0 : i32, i32
  }
  func.func @transform_8(%arg0: i32) -> (i32, i32) {
    %c0_i32 = arith.constant 0 : i32
    %c0_i32_0 = arith.constant 0 : i32
    %c0_i32_1 = arith.constant 0 : i32
    return %c0_i32, %c0_i32_0 : i32, i32
  }
  func.func @transform_9(%arg0: i32) -> (i32, i32) {
    %c0_i32 = arith.constant 0 : i32
    %c0_i32_0 = arith.constant 0 : i32
    %c0_i32_1 = arith.constant 0 : i32
    return %c0_i32, %c0_i32_0 : i32, i32
  }
  func.func @transform_10(%arg0: i32) -> (i32, i32) {
    %c0_i32 = arith.constant 0 : i32
    %c0_i32_0 = arith.constant 0 : i32
    %c0_i32_1 = arith.constant 0 : i32
    return %c0_i32, %c0_i32_0 : i32, i32
  }
  func.func @transform_11(%arg0: i32) -> (i32, i32) {
    %c0_i32 = arith.constant 0 : i32
    %c0_i32_0 = arith.constant 0 : i32
    %c0_i32_1 = arith.constant 0 : i32
    return %c0_i32, %c0_i32_0 : i32, i32
  }
  func.func @transform_12(%arg0: i32) -> (i32, i32) {
    %c0_i32 = arith.constant 0 : i32
    %c0_i32_0 = arith.constant 0 : i32
    %c0_i32_1 = arith.constant 0 : i32
    return %c0_i32, %c0_i32_0 : i32, i32
  }
  func.func @transform_13(%arg0: i32) -> (i32, i32, i32) {
    %c0_i32 = arith.constant 0 : i32
    %c0_i32_0 = arith.constant 0 : i32
    %c0_i32_1 = arith.constant 0 : i32
    return %arg0, %c0_i32, %c0_i32_0 : i32, i32, i32
  }
}

</mosaic_0001>

<llo_original>
// kernel: tpu_custom_call.1
$region0: #{tpu_custom_call.1}
  #allocation0 [shape = 'u32[]', space=smem, size = 0x4, offset = 0x4, fixed_abs, tag = 'smem constant byte address 0x4 - core index']
  #allocation1 [shape = 'u32[144,128]{1,0:T(1,128)}', space=vmem, size = 0x12000, scoped, tag = 'internal scratch']
  %s0 = inlined_call_operand.hbm [shape: f32[2,16,384], index: 0, kind: input, shape index: {}]
  %s1 = inlined_call_operand.hbm [shape: f32[96,96], index: 1, kind: input, shape index: {}]
  %s2 = inlined_call_operand.hbm [shape: f32[1,384], index: 2, kind: input, shape index: {}]
  %s3 = inlined_call_operand.hbm [shape: f32[1,384], index: 3, kind: input, shape index: {}]
  %s4 = inlined_call_operand.hbm [shape: bf16[384,1152], index: 4, kind: input, shape index: {}]
  %s5 = inlined_call_operand.hbm [shape: bf16[384,384], index: 5, kind: input, shape index: {}]
  %s6 = inlined_call_operand.hbm [shape: f32[1,384], index: 6, kind: input, shape index: {}]
  %s7 = inlined_call_operand.hbm [shape: f32[1,384], index: 7, kind: input, shape index: {}]
  %s8 = inlined_call_operand.hbm [shape: f32[1,384], index: 8, kind: input, shape index: {}]
  %s9 = inlined_call_operand.hbm [shape: bf16[384,1536], index: 9, kind: input, shape index: {}]
  %s10 = inlined_call_operand.hbm [shape: f32[1,1536], index: 10, kind: input, shape index: {}]
  %s11 = inlined_call_operand.hbm [shape: bf16[1536,384], index: 11, kind: input, shape index: {}]
  %s12 = inlined_call_operand.hbm [shape: f32[1,384], index: 12, kind: input, shape index: {}]
  %s13 = inlined_call_operand.hbm [shape: f32[2,16,384], index: 13, kind: output, shape index: {}]
  %s14 = sld [smem:[#allocation0]]
  $region114: #{tpu_custom_call.1} parent=0
    _
  %s16 = ssub.s32 1, %s14
  %s17 = scalar_select 0, %s16, %s14
  $region1: #{tpu_custom_call.1} parent=0
    #allocation2 [shape = 'u8[49152]{0}', space=vmem, size = 0xc000, scoped, tag = 'input window, operand 0, single buffered']
    #allocation3 [shape = 's32[1]{0}', space=sflag, size = 0x4, scoped, tag = 'scoped memory for tpu_custom_call.1']
    #allocation4 [shape = 's32[1]{0}', space=sflag, size = 0x4, scoped, tag = 'scoped memory for tpu_custom_call.1']
    #allocation5 [shape = 'u8[49152]{0}', space=vmem, size = 0xc000, scoped, tag = 'input window, operand 1, single buffered']
    #allocation6 [shape = 's32[1]{0}', space=sflag, size = 0x4, scoped, tag = 'scoped memory for tpu_custom_call.1']
    #allocation7 [shape = 'u8[1536]{0}', space=vmem, size = 0x800, scoped, tag = 'input window, operand 2, single buffered']
    #allocation8 [shape = 'u8[1536]{0}', space=vmem, size = 0x800, scoped, tag = 'input window, operand 3, single buffered']
    #allocation9 [shape = 's32[1]{0}', space=sflag, size = 0x4, scoped, tag = 'scoped memory for tpu_custom_call.1']
    #allocation10 [shape = 'u8[884736]{0}', space=vmem, size = 0xd8000, scoped, tag = 'input window, operand 4, single buffered']
    #allocation11 [shape = 'u8[294912]{0}', space=vmem, size = 0x48000, scoped, tag = 'input window, operand 5, single buffered']
    #allocation12 [shape = 's32[1]{0}', space=sflag, size = 0x4, scoped, tag = 'scoped memory for tpu_custom_call.1']
    #allocation13 [shape = 'u8[1536]{0}', space=vmem, size = 0x800, scoped, tag = 'input window, operand 6, single buffered']
    #allocation14 [shape = 'u8[1536]{0}', space=vmem, size = 0x800, scoped, tag = 'input window, operand 7, single buffered']
    #allocation15 [shape = 's32[1]{0}', space=sflag, size = 0x4, scoped, tag = 'scoped memory for tpu_custom_call.1']
    #allocation16 [shape = 'u8[1536]{0}', space=vmem, size = 0x800, scoped, tag = 'input window, operand 8, single buffered']
    #allocation17 [shape = 'u8[1179648]{0}', space=vmem, size = 0x120000, scoped, tag = 'input window, operand 9, single buffered']
    #allocation18 [shape = 's32[1]{0}', space=sflag, size = 0x4, scoped, tag = 'scoped memory for tpu_custom_call.1']
    #allocation19 [shape = 'u8[6144]{0}', space=vmem, size = 0x1800, scoped, tag = 'input window, operand 10, single buffered']
    #allocation20 [shape = 'u8[1179648]{0}', space=vmem, size = 0x120000, scoped, tag = 'input window, operand 11, single buffered']
    #allocation21 [shape = 's32[1]{0}', space=sflag, size = 0x4, scoped, tag = 'scoped memory for tpu_custom_call.1']
    #allocation22 [shape = 'u8[1536]{0}', space=vmem, size = 0x800, scoped, tag = 'input window, operand 12, single buffered']
    #allocation23 [shape = 'u8[49152]{0}', space=vmem, size = 0xc000, scoped, tag = 'output window, operand 0, single buffered']
    %18 = vsyncpa [#allocation3], 0
    %19 = vsyncpa [#allocation6], 0
    %20 = vsyncpa [#allocation9], 0
    %21 = vsyncpa [#allocation12], 0
    %22 = vsyncpa [#allocation15], 0
    %23 = vsyncpa [#allocation18], 0
    %24 = vsyncpa [#allocation21], 0
    %25 = vsyncpa [#allocation4], 0
    // Predicated region
    $region2: #{tpu_custom_call.1} parent=1 // pred_check
      _
    $region3: #{tpu_custom_call.1} parent=1 // pred_check_branch
      %27 = sbr.rel (0) target = $region5
    $region4: #{tpu_custom_call.1} parent=1 // pred_region
      %s29 = ssub.s32 1536, 1536
      %30 = vsyncadd [#allocation3], %s29
      %s31 = sshll.u32 [#allocation2], 4
      %s32 = int_to_ptr.vmem [resolvable:$true] %s31
      %37 = dma.hbm_to_vmem [thread:$0]  %s0, 1536, %s32, [#allocation3], 384, 384, 24
    $region5: #{tpu_custom_call.1} parent=1 // pred_fallthru
      _
    // Predicated region
    $region6: #{tpu_custom_call.1} parent=1 // pred_check
      _
    $region7: #{tpu_custom_call.1} parent=1 // pred_check_branch
      %39 = sbr.rel (0) target = $region9
    $region8: #{tpu_custom_call.1} parent=1 // pred_region
      %s41 = ssub.s32 1536, 1536
      %42 = vsyncadd [#allocation6], %s41
      %s43 = sshll.u32 [#allocation5], 4
      %s44 = int_to_ptr.vmem [resolvable:$true] %s43
      %49 = dma.hbm_to_vmem [thread:$0]  %s1, 1536, %s44, [#allocation6], 128, 128, 8
    $region9: #{tpu_custom_call.1} parent=1 // pred_fallthru
      _
    // Predicated region
    $region10: #{tpu_custom_call.1} parent=1 // pred_check
      _
    $region11: #{tpu_custom_call.1} parent=1 // pred_check_branch
      %51 = sbr.rel (0) target = $region13
    $region12: #{tpu_custom_call.1} parent=1 // pred_region
      %s53 = ssub.s32 48, 48
      %54 = vsyncadd [#allocation6], %s53
      %s56 = sshll.u32 [#allocation7], 4
      %s57 = int_to_ptr.vmem [resolvable:$true] %s56
      %59 = dma.hbm_to_vmem [thread:$0]  %s2, 48, %s57, [#allocation6]
    $region13: #{tpu_custom_call.1} parent=1 // pred_fallthru
      _
    // Predicated region
    $region14: #{tpu_custom_call.1} parent=1 // pred_check
      _
    $region15: #{tpu_custom_call.1} parent=1 // pred_check_branch
      %61 = sbr.rel (0) target = $region17
    $region16: #{tpu_custom_call.1} parent=1 // pred_region
      %s63 = ssub.s32 48, 48
      %64 = vsyncadd [#allocation9], %s63
      %s66 = sshll.u32 [#allocation8], 4
      %s67 = int_to_ptr.vmem [resolvable:$true] %s66
      %69 = dma.hbm_to_vmem [thread:$0]  %s3, 48, %s67, [#allocation9]
    $region17: #{tpu_custom_call.1} parent=1 // pred_fallthru
      _
    // Predicated region
    $region18: #{tpu_custom_call.1} parent=1 // pred_check
      _
    $region19: #{tpu_custom_call.1} parent=1 // pred_check_branch
      %71 = sbr.rel (0) target = $region21
    $region20: #{tpu_custom_call.1} parent=1 // pred_region
      %s73 = ssub.s32 27648, 27648
      %74 = vsyncadd [#allocation9], %s73
      %s75 = sshll.u32 [#allocation10], 4
      %s76 = int_to_ptr.vmem [resolvable:$true] %s75
      %81 = dma.hbm_to_vmem [thread:$0]  %s4, 27648, %s76, [#allocation9], 576, 576, 36
    $region21: #{tpu_custom_call.1} parent=1 // pred_fallthru
      _
    // Predicated region
    $region22: #{tpu_custom_call.1} parent=1 // pred_check
      _
    $region23: #{tpu_custom_call.1} parent=1 // pred_check_branch
      %83 = sbr.rel (0) target = $region25
    $region24: #{tpu_custom_call.1} parent=1 // pred_region
      %s85 = ssub.s32 9216, 9216
      %86 = vsyncadd [#allocation12], %s85
      %s87 = sshll.u32 [#allocation11], 4
      %s88 = int_to_ptr.vmem [resolvable:$true] %s87
      %93 = dma.hbm_to_vmem [thread:$0]  %s5, 9216, %s88, [#allocation12], 192, 192, 12
    $region25: #{tpu_custom_call.1} parent=1 // pred_fallthru
      _
    // Predicated region
    $region26: #{tpu_custom_call.1} parent=1 // pred_check
      _
    $region27: #{tpu_custom_call.1} parent=1 // pred_check_branch
      %95 = sbr.rel (0) target = $region29
    $region28: #{tpu_custom_call.1} parent=1 // pred_region
      %s97 = ssub.s32 48, 48
      %98 = vsyncadd [#allocation12], %s97
      %s100 = sshll.u32 [#allocation13], 4
      %s101 = int_to_ptr.vmem [resolvable:$true] %s100
      %103 = dma.hbm_to_vmem [thread:$0]  %s6, 48, %s101, [#allocation12]
    $region29: #{tpu_custom_call.1} parent=1 // pred_fallthru
      _
    // Predicated region
    $region30: #{tpu_custom_call.1} parent=1 // pred_check
      _
    $region31: #{tpu_custom_call.1} parent=1 // pred_check_branch
      %105 = sbr.rel (0) target = $region33
    $region32: #{tpu_custom_call.1} parent=1 // pred_region
      %s107 = ssub.s32 48, 48
      %108 = vsyncadd [#allocation15], %s107
      %s110 = sshll.u32 [#allocation14], 4
      %s111 = int_to_ptr.vmem [resolvable:$true] %s110
      %113 = dma.hbm_to_vmem [thread:$0]  %s7, 48, %s111, [#allocation15]
    $region33: #{tpu_custom_call.1} parent=1 // pred_fallthru
      _
    // Predicated region
    $region34: #{tpu_custom_call.1} parent=1 // pred_check
      _
    $region35: #{tpu_custom_call.1} parent=1 // pred_check_branch
      %115 = sbr.rel (0) target = $region37
    $region36: #{tpu_custom_call.1} parent=1 // pred_region
      %s117 = ssub.s32 48, 48
      %118 = vsyncadd [#allocation15], %s117
      %s120 = sshll.u32 [#allocation16], 4
      %s121 = int_to_ptr.vmem [resolvable:$true] %s120
      %123 = dma.hbm_to_vmem [thread:$0]  %s8, 48, %s121, [#allocation15]
    $region37: #{tpu_custom_call.1} parent=1 // pred_fallthru
      _
    // Predicated region
    $region38: #{tpu_custom_call.1} parent=1 // pred_check
      _
    $region39: #{tpu_custom_call.1} parent=1 // pred_check_branch
      %125 = sbr.rel (0) target = $region41
    $region40: #{tpu_custom_call.1} parent=1 // pred_region
      %s127 = ssub.s32 36864, 36864
      %128 = vsyncadd [#allocation18], %s127
      %s129 = sshll.u32 [#allocation17], 4
      %s130 = int_to_ptr.vmem [resolvable:$true] %s129
      %135 = dma.hbm_to_vmem [thread:$0]  %s9, 36864, %s130, [#allocation18], 768, 768, 48
    $region41: #{tpu_custom_call.1} parent=1 // pred_fallthru
      _
    // Predicated region
    $region42: #{tpu_custom_call.1} parent=1 // pred_check
      _
    $region43: #{tpu_custom_call.1} parent=1 // pred_check_branch
      %137 = sbr.rel (0) target = $region45
    $region44: #{tpu_custom_call.1} parent=1 // pred_region
      %s139 = ssub.s32 192, 192
      %140 = vsyncadd [#allocation18], %s139
      %s142 = sshll.u32 [#allocation19], 4
      %s143 = int_to_ptr.vmem [resolvable:$true] %s142
      %145 = dma.hbm_to_vmem [thread:$0]  %s10, 192, %s143, [#allocation18]
    $region45: #{tpu_custom_call.1} parent=1 // pred_fallthru
      _
    // Predicated region
    $region46: #{tpu_custom_call.1} parent=1 // pred_check
      _
    $region47: #{tpu_custom_call.1} parent=1 // pred_check_branch
      %147 = sbr.rel (0) target = $region49
    $region48: #{tpu_custom_call.1} parent=1 // pred_region
      %s149 = ssub.s32 36864, 36864
      %150 = vsyncadd [#allocation21], %s149
      %s151 = sshll.u32 [#allocation20], 4
      %s152 = int_to_ptr.vmem [resolvable:$true] %s151
      %157 = dma.hbm_to_vmem [thread:$0]  %s11, 36864, %s152, [#allocation21], 192, 192, 12
    $region49: #{tpu_custom_call.1} parent=1 // pred_fallthru
      _
    // Predicated region
    $region50: #{tpu_custom_call.1} parent=1 // pred_check
      _
    $region51: #{tpu_custom_call.1} parent=1 // pred_check_branch
      %159 = sbr.rel (0) target = $region53
    $region52: #{tpu_custom_call.1} parent=1 // pred_region
      %s161 = ssub.s32 48, 48
      %162 = vsyncadd [#allocation21], %s161
      %s164 = sshll.u32 [#allocation22], 4
      %s165 = int_to_ptr.vmem [resolvable:$true] %s164
      %167 = dma.hbm_to_vmem [thread:$0]  %s12, 48, %s165, [#allocation21]
    $region53: #{tpu_custom_call.1} parent=1 // pred_fallthru
      _
    // Predicated region
    $region54: #{tpu_custom_call.1} parent=1 // pred_check
      _
    $region55: #{tpu_custom_call.1} parent=1 // pred_check_branch
      %169 = sbr.rel (0) target = $region57
    $region56: #{tpu_custom_call.1} parent=1 // pred_region
      %170 = dma.done [#allocation3], 1536
    $region57: #{tpu_custom_call.1} parent=1 // pred_fallthru
      _
    // Predicated region
    $region58: #{tpu_custom_call.1} parent=1 // pred_check
      _
    $region59: #{tpu_custom_call.1} parent=1 // pred_check_branch
      %172 = sbr.rel (0) target = $region61
    $region60: #{tpu_custom_call.1} parent=1 // pred_region
      %173 = dma.done [#allocation6], 1536
    $region61: #{tpu_custom_call.1} parent=1 // pred_fallthru
      _
    // Predicated region
    $region62: #{tpu_custom_call.1} parent=1 // pred_check
      _
    $region63: #{tpu_custom_call.1} parent=1 // pred_check_branch
      %175 = sbr.rel (0) target = $region65
    $region64: #{tpu_custom_call.1} parent=1 // pred_region
      %176 = dma.done [#allocation6], 48
    $region65: #{tpu_custom_call.1} parent=1 // pred_fallthru
      _
    // Predicated region
    $region66: #{tpu_custom_call.1} parent=1 // pred_check
      _
    $region67: #{tpu_custom_call.1} parent=1 // pred_check_branch
      %178 = sbr.rel (0) target = $region69
    $region68: #{tpu_custom_call.1} parent=1 // pred_region
      %179 = dma.done [#allocation9], 48
    $region69: #{tpu_custom_call.1} parent=1 // pred_fallthru
      _
    // Predicated region
    $region70: #{tpu_custom_call.1} parent=1 // pred_check
      _
    $region71: #{tpu_custom_call.1} parent=1 // pred_check_branch
      %181 = sbr.rel (0) target = $region73
    $region72: #{tpu_custom_call.1} parent=1 // pred_region
      %182 = dma.done [#allocation9], 27648
    $region73: #{tpu_custom_call.1} parent=1 // pred_fallthru
      _
    // Predicated region
    $region74: #{tpu_custom_call.1} parent=1 // pred_check
      _
    $region75: #{tpu_custom_call.1} parent=1 // pred_check_branch
      %184 = sbr.rel (0) target = $region77
    $region76: #{tpu_custom_call.1} parent=1 // pred_region
      %185 = dma.done [#allocation12], 9216
    $region77: #{tpu_custom_call.1} parent=1 // pred_fallthru
      _
    // Predicated region
    $region78: #{tpu_custom_call.1} parent=1 // pred_check
      _
    $region79: #{tpu_custom_call.1} parent=1 // pred_check_branch
      %187 = sbr.rel (0) target = $region81
    $region80: #{tpu_custom_call.1} parent=1 // pred_region
      %188 = dma.done [#allocation12], 48
    $region81: #{tpu_custom_call.1} parent=1 // pred_fallthru
      _
    // Predicated region
    $region82: #{tpu_custom_call.1} parent=1 // pred_check
      _
    $region83: #{tpu_custom_call.1} parent=1 // pred_check_branch
      %190 = sbr.rel (0) target = $region85
    $region84: #{tpu_custom_call.1} parent=1 // pred_region
      %191 = dma.done [#allocation15], 48
    $region85: #{tpu_custom_call.1} parent=1 // pred_fallthru
      _
    // Predicated region
    $region86: #{tpu_custom_call.1} parent=1 // pred_check
      _
    $region87: #{tpu_custom_call.1} parent=1 // pred_check_branch
      %193 = sbr.rel (0) target = $region89
    $region88: #{tpu_custom_call.1} parent=1 // pred_region
      %194 = dma.done [#allocation15], 48
    $region89: #{tpu_custom_call.1} parent=1 // pred_fallthru
      _
    // Predicated region
    $region90: #{tpu_custom_call.1} parent=1 // pred_check
      _
    $region91: #{tpu_custom_call.1} parent=1 // pred_check_branch
      %196 = sbr.rel (0) target = $region93
    $region92: #{tpu_custom_call.1} parent=1 // pred_region
      %197 = dma.done [#allocation18], 36864
    $region93: #{tpu_custom_call.1} parent=1 // pred_fallthru
      _
    // Predicated region
    $region94: #{tpu_custom_call.1} parent=1 // pred_check
      _
    $region95: #{tpu_custom_call.1} parent=1 // pred_check_branch
      %199 = sbr.rel (0) target = $region97
    $region96: #{tpu_custom_call.1} parent=1 // pred_region
      %200 = dma.done [#allocation18], 192
    $region97: #{tpu_custom_call.1} parent=1 // pred_fallthru
      _
    // Predicated region
    $region98: #{tpu_custom_call.1} parent=1 // pred_check
      _
    $region99: #{tpu_custom_call.1} parent=1 // pred_check_branch
      %202 = sbr.rel (0) target = $region101
    $region100: #{tpu_custom_call.1} parent=1 // pred_region
      %203 = dma.done [#allocation21], 36864
    $region101: #{tpu_custom_call.1} parent=1 // pred_fallthru
      _
    // Predicated region
    $region102: #{tpu_custom_call.1} parent=1 // pred_check
      _
    $region103: #{tpu_custom_call.1} parent=1 // pred_check_branch
      %205 = sbr.rel (0) target = $region105
    $region104: #{tpu_custom_call.1} parent=1 // pred_region
      %206 = dma.done [#allocation21], 48
    $region105: #{tpu_custom_call.1} parent=1 // pred_fallthru
      _
    %v208 = vld [vmem:[#allocation2] sm:$0xff]
    %v209 = vld [vmem:[#allocation2 + $0x8] sm:$0xff]
    %v210 = vld [vmem:[#allocation2 + $0x10] sm:$0xff]
    %v211 = vld [vmem:[#allocation2 + $0x18] sm:$0xff]
    %v212 = vld [vmem:[#allocation2 + $0x20] sm:$0xff]
    %v213 = vld [vmem:[#allocation2 + $0x28] sm:$0xff]
    %v214 = vld [vmem:[#allocation2 + $0x30] sm:$0xff]
    %v215 = vld [vmem:[#allocation2 + $0x38] sm:$0xff]
    %v216 = vld [vmem:[#allocation2 + $0x40] sm:$0xff]
    %v217 = vld [vmem:[#allocation2 + $0x48] sm:$0xff]
    %v218 = vld [vmem:[#allocation2 + $0x50] sm:$0xff]
    %v219 = vld [vmem:[#allocation2 + $0x58] sm:$0xff]
    %v220 = vld [vmem:[#allocation7] sm:$0x7]
    %v221 = vld [vmem:[#allocation8] sm:$0x7]
    %v222 = vadd.f32 %v208, %v209
    %v223 = vadd.f32 %v222, %v210
    %224 = vadd.xlane.f32.xlu0 %v223
    %v225 = vpop.xlane.xlu0 %224
    %v226 = vadd.f32 %v211, %v212
    %v227 = vadd.f32 %v226, %v213
    %228 = vadd.xlane.f32.xlu0 %v227
    %v229 = vpop.xlane.xlu0 %228
    %v230 = vadd.f32 %v214, %v215
    %v231 = vadd.f32 %v230, %v216
    %232 = vadd.xlane.f32.xlu0 %v231
    %v233 = vpop.xlane.xlu0 %232
    %v234 = vadd.f32 %v217, %v218
    %v235 = vadd.f32 %v234, %v219
    %236 = vadd.xlane.f32.xlu0 %v235
    %v237 = vpop.xlane.xlu0 %236
    %v238 = vrcp.pop 384.0
    %v239 = vmul.f32 %v225, %v238
    %v240 = vmul.f32 %v229, %v238
    %v241 = vmul.f32 %v233, %v238
    %v242 = vmul.f32 %v237, %v238
    %v243 = vsub.f32 %v208, %v239
    %v244 = vsub.f32 %v209, %v239
    %v245 = vsub.f32 %v210, %v239
    %v246 = vsub.f32 %v211, %v240
    %v247 = vsub.f32 %v212, %v240
    %v248 = vsub.f32 %v213, %v240
    %v249 = vsub.f32 %v214, %v241
    %v250 = vsub.f32 %v215, %v241
    %v251 = vsub.f32 %v216, %v241
    %v252 = vsub.f32 %v217, %v242
    %v253 = vsub.f32 %v218, %v242
    %v254 = vsub.f32 %v219, %v242
    %v255 = vmul.f32 %v243, %v243
    %v256 = vmul.f32 %v244, %v244
    %v257 = vmul.f32 %v245, %v245
    %v258 = vmul.f32 %v246, %v246
    %v259 = vmul.f32 %v247, %v247
    %v260 = vmul.f32 %v248, %v248
    %v261 = vmul.f32 %v249, %v249
    %v262 = vmul.f32 %v250, %v250
    %v263 = vmul.f32 %v251, %v251
    %v264 = vmul.f32 %v252, %v252
    %v265 = vmul.f32 %v253, %v253
    %v266 = vmul.f32 %v254, %v254
    %v267 = vadd.f32 %v255, %v256
    %v268 = vadd.f32 %v267, %v257
    %269 = vadd.xlane.f32.xlu0 %v268
    %v270 = vpop.xlane.xlu0 %269
    %v271 = vadd.f32 %v258, %v259
    %v272 = vadd.f32 %v271, %v260
    %273 = vadd.xlane.f32.xlu0 %v272
    %v274 = vpop.xlane.xlu0 %273
    %v275 = vadd.f32 %v261, %v262
    %v276 = vadd.f32 %v275, %v263
    %277 = vadd.xlane.f32.xlu0 %v276
    %v278 = vpop.xlane.xlu0 %277
    %v279 = vadd.f32 %v264, %v265
    %v280 = vadd.f32 %v279, %v266
    %281 = vadd.xlane.f32.xlu0 %v280
    %v282 = vpop.xlane.xlu0 %281
    %v283 = vmul.f32 %v270, %v238
    %v284 = vmul.f32 %v274, %v238
    %v285 = vmul.f32 %v278, %v238
    %v286 = vmul.f32 %v282, %v238
    %v287 = vadd.f32 %v283, 1e-05
    %v288 = vadd.f32 %v284, 1e-05
    %v289 = vadd.f32 %v285, 1e-05
    %v290 = vadd.f32 %v286, 1e-05
    %v291 = vrsqrt.pop %v287
    %v292 = vrsqrt.pop %v288
    %v293 = vrsqrt.pop %v289
    %v294 = vrsqrt.pop %v290
    %v295 = vmul.f32 %v243, %v291
    %v296 = vmul.f32 %v244, %v291
    %v297 = vmul.f32 %v245, %v291
    %v298 = vmul.f32 %v246, %v292
    %v299 = vmul.f32 %v247, %v292
    %v300 = vmul.f32 %v248, %v292
    %v301 = vmul.f32 %v249, %v293
    %v302 = vmul.f32 %v250, %v293
    %v303 = vmul.f32 %v251, %v293
    %v304 = vmul.f32 %v252, %v294
    %v305 = vmul.f32 %v253, %v294
    %v306 = vmul.f32 %v254, %v294
    %v308 = vlaneseq
    %v309 = vshrl.u32 %v308, 7
    %v310 = vsub.s32 0, %v309
    %v311 = vrot.slane %v220, %v310
    %v312 = vlaneseq
    %v313 = vshrl.u32 %v312, 7
    %v314 = vsub.s32 1, %v313
    %v315 = vrot.slane %v220, %v314
    %v316 = vlaneseq
    %v317 = vshrl.u32 %v316, 7
    %v318 = vsub.s32 2, %v317
    %v319 = vrot.slane %v220, %v318
    %v323 = vmul.f32 %v295, %v311
    %v324 = vmul.f32 %v296, %v315
    %v325 = vmul.f32 %v297, %v319
    %v326 = vmul.f32 %v298, %v311
    %v327 = vmul.f32 %v299, %v315
    %v328 = vmul.f32 %v300, %v319
    %v329 = vmul.f32 %v301, %v311
    %v330 = vmul.f32 %v302, %v315
    %v331 = vmul.f32 %v303, %v319
    %v332 = vmul.f32 %v304, %v311
    %v333 = vmul.f32 %v305, %v315
    %v334 = vmul.f32 %v306, %v319
    %v336 = vlaneseq
    %v337 = vshrl.u32 %v336, 7
    %v338 = vsub.s32 0, %v337
    %v339 = vrot.slane %v221, %v338
    %v340 = vlaneseq
    %v341 = vshrl.u32 %v340, 7
    %v342 = vsub.s32 1, %v341
    %v343 = vrot.slane %v221, %v342
    %v344 = vlaneseq
    %v345 = vshrl.u32 %v344, 7
    %v346 = vsub.s32 2, %v345
    %v347 = vrot.slane %v221, %v346
    %v351 = vadd.f32 %v323, %v339
    %v352 = vadd.f32 %v324, %v343
    %v353 = vadd.f32 %v325, %v347
    %v354 = vadd.f32 %v326, %v339
    %v355 = vadd.f32 %v327, %v343
    %v356 = vadd.f32 %v328, %v347
    %v357 = vadd.f32 %v329, %v339
    %v358 = vadd.f32 %v330, %v343
    %v359 = vadd.f32 %v331, %v347
    %v360 = vadd.f32 %v332, %v339
    %v361 = vadd.f32 %v333, %v343
    %v362 = vadd.f32 %v334, %v347
    %v363 = vpack.c.bf16 %v354, %v351
    %v364 = vpack.c.bf16 %v355, %v352
    %v365 = vpack.c.bf16 %v356, %v353
    %v366 = vpack.c.bf16 %v360, %v357
    %v367 = vpack.c.bf16 %v361, %v358
    %v368 = vpack.c.bf16 %v362, %v359
    %v369 = vld [vmem:[#allocation10] sm:$0xff]
    %v370 = vld [vmem:[#allocation10 + $0x8] sm:$0xff]
    %v371 = vld [vmem:[#allocation10 + $0x10] sm:$0xff]
    %v372 = vld [vmem:[#allocation10 + $0x18] sm:$0xff]
    %v373 = vld [vmem:[#allocation10 + $0x20] sm:$0xf]
    %v374 = vld [vmem:[#allocation10 + $0x24] sm:$0xff]
    %v375 = vld [vmem:[#allocation10 + $0x2c] sm:$0xff]
    %v376 = vld [vmem:[#allocation10 + $0x34] sm:$0xff]
    %v377 = vld [vmem:[#allocation10 + $0x3c] sm:$0xff]
    %v378 = vld [vmem:[#allocation10 + $0x44] sm:$0xf]
    %v379 = vld [vmem:[#allocation10 + $0x48] sm:$0xff]
    %v380 = vld [vmem:[#allocation10 + $0x50] sm:$0xff]
    %v381 = vld [vmem:[#allocation10 + $0x58] sm:$0xff]
    %v382 = vld [vmem:[#allocation10 + $0x60] sm:$0xff]
    %v383 = vld [vmem:[#allocation10 + $0x68] sm:$0xf]
    %v384 = vld [vmem:[#allocation10 + $0x6c] sm:$0xff]
    %v385 = vld [vmem:[#allocation10 + $0x74] sm:$0xff]
    %v386 = vld [vmem:[#allocation10 + $0x7c] sm:$0xff]
    %v387 = vld [vmem:[#allocation10 + $0x84] sm:$0xff]
    %v388 = vld [vmem:[#allocation10 + $0x8c] sm:$0xf]
    %v389 = vld [vmem:[#allocation10 + $0x90] sm:$0xff]
    %v390 = vld [vmem:[#allocation10 + $0x98] sm:$0xff]
    %v391 = vld [vmem:[#allocation10 + $0xa0] sm:$0xff]
    %v392 = vld [vmem:[#allocation10 + $0xa8] sm:$0xff]
    %v393 = vld [vmem:[#allocation10 + $0xb0] sm:$0xf]
    %v394 = vld [vmem:[#allocation10 + $0xb4] sm:$0xff]
    %v395 = vld [vmem:[#allocation10 + $0xbc] sm:$0xff]
    %v396 = vld [vmem:[#allocation10 + $0xc4] sm:$0xff]
    %v397 = vld [vmem:[#allocation10 + $0xcc] sm:$0xff]
    %v398 = vld [vmem:[#allocation10 + $0xd4] sm:$0xf]
    %v399 = vld [vmem:[#allocation10 + $0xd8] sm:$0xff]
    %v400 = vld [vmem:[#allocation10 + $0xe0] sm:$0xff]
    %v401 = vld [vmem:[#allocation10 + $0xe8] sm:$0xff]
    %v402 = vld [vmem:[#allocation10 + $0xf0] sm:$0xff]
    %v403 = vld [vmem:[#allocation10 + $0xf8] sm:$0xf]
    %v404 = vld [vmem:[#allocation10 + $0xfc] sm:$0xff]
    %v405 = vld [vmem:[#allocation10 + $0x104] sm:$0xff]
    %v406 = vld [vmem:[#allocation10 + $0x10c] sm:$0xff]
    %v407 = vld [vmem:[#allocation10 + $0x114] sm:$0xff]
    %v408 = vld [vmem:[#allocation10 + $0x11c] sm:$0xf]
    %v409 = vld [vmem:[#allocation10 + $0x120] sm:$0xff]
    %v410 = vld [vmem:[#allocation10 + $0x128] sm:$0xff]
    %v411 = vld [vmem:[#allocation10 + $0x130] sm:$0xff]
    %v412 = vld [vmem:[#allocation10 + $0x138] sm:$0xff]
    %v413 = vld [vmem:[#allocation10 + $0x140] sm:$0xf]
    %v414 = vld [vmem:[#allocation10 + $0x144] sm:$0xff]
    %v415 = vld [vmem:[#allocation10 + $0x14c] sm:$0xff]
    %v416 = vld [vmem:[#allocation10 + $0x154] sm:$0xff]
    %v417 = vld [vmem:[#allocation10 + $0x15c] sm:$0xff]
    %v418 = vld [vmem:[#allocation10 + $0x164] sm:$0xf]
    %v419 = vld [vmem:[#allocation10 + $0x168] sm:$0xff]
    %v420 = vld [vmem:[#allocation10 + $0x170] sm:$0xff]
    %v421 = vld [vmem:[#allocation10 + $0x178] sm:$0xff]
    %v422 = vld [vmem:[#allocation10 + $0x180] sm:$0xff]
    %v423 = vld [vmem:[#allocation10 + $0x188] sm:$0xf]
    %v424 = vld [vmem:[#allocation10 + $0x18c] sm:$0xff]
    %v425 = vld [vmem:[#allocation10 + $0x194] sm:$0xff]
    %v426 = vld [vmem:[#allocation10 + $0x19c] sm:$0xff]
    %v427 = vld [vmem:[#allocation10 + $0x1a4] sm:$0xff]
    %v428 = vld [vmem:[#allocation10 + $0x1ac] sm:$0xf]
    %v429 = vld [vmem:[#allocation10 + $0x1b0] sm:$0xff]
    %v430 = vld [vmem:[#allocation10 + $0x1b8] sm:$0xff]
    %v431 = vld [vmem:[#allocation10 + $0x1c0] sm:$0xff]
    %v432 = vld [vmem:[#allocation10 + $0x1c8] sm:$0xff]
    %v433 = vld [vmem:[#allocation10 + $0x1d0] sm:$0xf]
    %v434 = vld [vmem:[#allocation10 + $0x1d4] sm:$0xff]
    %v435 = vld [vmem:[#allocation10 + $0x1dc] sm:$0xff]
    %v436 = vld [vmem:[#allocation10 + $0x1e4] sm:$0xff]
    %v437 = vld [vmem:[#allocation10 + $0x1ec] sm:$0xff]
    %v438 = vld [vmem:[#allocation10 + $0x1f4] sm:$0xf]
    %v439 = vld [vmem:[#allocation10 + $0x1f8] sm:$0xff]
    %v440 = vld [vmem:[#allocation10 + $0x200] sm:$0xff]
    %v441 = vld [vmem:[#allocation10 + $0x208] sm:$0xff]
    %v442 = vld [vmem:[#allocation10 + $0x210] sm:$0xff]
    %v443 = vld [vmem:[#allocation10 + $0x218] sm:$0xf]
    %v444 = vld [vmem:[#allocation10 + $0x21c] sm:$0xff]
    %v445 = vld [vmem:[#allocation10 + $0x224] sm:$0xff]
    %v446 = vld [vmem:[#allocation10 + $0x22c] sm:$0xff]
    %v447 = vld [vmem:[#allocation10 + $0x234] sm:$0xff]
    %v448 = vld [vmem:[#allocation10 + $0x23c] sm:$0xf]
    %v449 = vld [vmem:[#allocation10 + $0x240] sm:$0xff]
    %v450 = vld [vmem:[#allocation10 + $0x248] sm:$0xff]
    %v451 = vld [vmem:[#allocation10 + $0x250] sm:$0xff]
    %v452 = vld [vmem:[#allocation10 + $0x258] sm:$0xff]
    %v453 = vld [vmem:[#allocation10 + $0x260] sm:$0xf]
    %v454 = vld [vmem:[#allocation10 + $0x264] sm:$0xff]
    %v455 = vld [vmem:[#allocation10 + $0x26c] sm:$0xff]
    %v456 = vld [vmem:[#allocation10 + $0x274] sm:$0xff]
    %v457 = vld [vmem:[#allocation10 + $0x27c] sm:$0xff]
    %v458 = vld [vmem:[#allocation10 + $0x284] sm:$0xf]
    %v459 = vld [vmem:[#allocation10 + $0x288] sm:$0xff]
    %v460 = vld [vmem:[#allocation10 + $0x290] sm:$0xff]
    %v461 = vld [vmem:[#allocation10 + $0x298] sm:$0xff]
    %v462 = vld [vmem:[#allocation10 + $0x2a0] sm:$0xff]
    %v463 = vld [vmem:[#allocation10 + $0x2a8] sm:$0xf]
    %v464 = vld [vmem:[#allocation10 + $0x2ac] sm:$0xff]
    %v465 = vld [vmem:[#allocation10 + $0x2b4] sm:$0xff]
    %v466 = vld [vmem:[#allocation10 + $0x2bc] sm:$0xff]
    %v467 = vld [vmem:[#allocation10 + $0x2c4] sm:$0xff]
    %v468 = vld [vmem:[#allocation10 + $0x2cc] sm:$0xf]
    %v469 = vld [vmem:[#allocation10 + $0x2d0] sm:$0xff]
    %v470 = vld [vmem:[#allocation10 + $0x2d8] sm:$0xff]
    %v471 = vld [vmem:[#allocation10 + $0x2e0] sm:$0xff]
    %v472 = vld [vmem:[#allocation10 + $0x2e8] sm:$0xff]
    %v473 = vld [vmem:[#allocation10 + $0x2f0] sm:$0xf]
    %v474 = vld [vmem:[#allocation10 + $0x2f4] sm:$0xff]
    %v475 = vld [vmem:[#allocation10 + $0x2fc] sm:$0xff]
    %v476 = vld [vmem:[#allocation10 + $0x304] sm:$0xff]
    %v477 = vld [vmem:[#allocation10 + $0x30c] sm:$0xff]
    %v478 = vld [vmem:[#allocation10 + $0x314] sm:$0xf]
    %v479 = vld [vmem:[#allocation10 + $0x318] sm:$0xff]
    %v480 = vld [vmem:[#allocation10 + $0x320] sm:$0xff]
    %v481 = vld [vmem:[#allocation10 + $0x328] sm:$0xff]
    %v482 = vld [vmem:[#allocation10 + $0x330] sm:$0xff]
    %v483 = vld [vmem:[#allocation10 + $0x338] sm:$0xf]
    %v484 = vld [vmem:[#allocation10 + $0x33c] sm:$0xff]
    %v485 = vld [vmem:[#allocation10 + $0x344] sm:$0xff]
    %v486 = vld [vmem:[#allocation10 + $0x34c] sm:$0xff]
    %v487 = vld [vmem:[#allocation10 + $0x354] sm:$0xff]
    %v488 = vld [vmem:[#allocation10 + $0x35c] sm:$0xf]
    %v489 = vld [vmem:[#allocation10 + $0x360] sm:$0xff]
    %v490 = vld [vmem:[#allocation10 + $0x368] sm:$0xff]
    %v491 = vld [vmem:[#allocation10 + $0x370] sm:$0xff]
    %v492 = vld [vmem:[#allocation10 + $0x378] sm:$0xff]
    %v493 = vld [vmem:[#allocation10 + $0x380] sm:$0xf]
    %v494 = vld [vmem:[#allocation10 + $0x384] sm:$0xff]
    %v495 = vld [vmem:[#allocation10 + $0x38c] sm:$0xff]
    %v496 = vld [vmem:[#allocation10 + $0x394] sm:$0xff]
    %v497 = vld [vmem:[#allocation10 + $0x39c] sm:$0xff]
    %v498 = vld [vmem:[#allocation10 + $0x3a4] sm:$0xf]
    %v499 = vld [vmem:[#allocation10 + $0x3a8] sm:$0xff]
    %v500 = vld [vmem:[#allocation10 + $0x3b0] sm:$0xff]
    %v501 = vld [vmem:[#allocation10 + $0x3b8] sm:$0xff]
    %v502 = vld [vmem:[#allocation10 + $0x3c0] sm:$0xff]
    %v503 = vld [vmem:[#allocation10 + $0x3c8] sm:$0xf]
    %v504 = vld [vmem:[#allocation10 + $0x3cc] sm:$0xff]
    %v505 = vld [vmem:[#allocation10 + $0x3d4] sm:$0xff]
    %v506 = vld [vmem:[#allocation10 + $0x3dc] sm:$0xff]
    %v507 = vld [vmem:[#allocation10 + $0x3e4] sm:$0xff]
    %v508 = vld [vmem:[#allocation10 + $0x3ec] sm:$0xf]
    %v509 = vld [vmem:[#allocation10 + $0x3f0] sm:$0xff]
    %v510 = vld [vmem:[#allocation10 + $0x3f8] sm:$0xff]
    %v511 = vld [vmem:[#allocation10 + $0x400] sm:$0xff]
    %v512 = vld [vmem:[#allocation10 + $0x408] sm:$0xff]
    %v513 = vld [vmem:[#allocation10 + $0x410] sm:$0xf]
    %v514 = vld [vmem:[#allocation10 + $0x414] sm:$0xff]
    %v515 = vld [vmem:[#allocation10 + $0x41c] sm:$0xff]
    %v516 = vld [vmem:[#allocation10 + $0x424] sm:$0xff]
    %v517 = vld [vmem:[#allocation10 + $0x42c] sm:$0xff]
    %v518 = vld [vmem:[#allocation10 + $0x434] sm:$0xf]
    %v519 = vld [vmem:[#allocation10 + $0x438] sm:$0xff]
    %v520 = vld [vmem:[#allocation10 + $0x440] sm:$0xff]
    %v521 = vld [vmem:[#allocation10 + $0x448] sm:$0xff]
    %v522 = vld [vmem:[#allocation10 + $0x450] sm:$0xff]
    %v523 = vld [vmem:[#allocation10 + $0x458] sm:$0xf]
    %v524 = vld [vmem:[#allocation10 + $0x45c] sm:$0xff]
    %v525 = vld [vmem:[#allocation10 + $0x464] sm:$0xff]
    %v526 = vld [vmem:[#allocation10 + $0x46c] sm:$0xff]
    %v527 = vld [vmem:[#allocation10 + $0x474] sm:$0xff]
    %v528 = vld [vmem:[#allocation10 + $0x47c] sm:$0xf]
    %v529 = vld [vmem:[#allocation10 + $0x480] sm:$0xff]
    %v530 = vld [vmem:[#allocation10 + $0x488] sm:$0xff]
    %v531 = vld [vmem:[#allocation10 + $0x490] sm:$0xff]
    %v532 = vld [vmem:[#allocation10 + $0x498] sm:$0xff]
    %v533 = vld [vmem:[#allocation10 + $0x4a0] sm:$0xf]
    %v534 = vld [vmem:[#allocation10 + $0x4a4] sm:$0xff]
    %v535 = vld [vmem:[#allocation10 + $0x4ac] sm:$0xff]
    %v536 = vld [vmem:[#allocation10 + $0x4b4] sm:$0xff]
    %v537 = vld [vmem:[#allocation10 + $0x4bc] sm:$0xff]
    %v538 = vld [vmem:[#allocation10 + $0x4c4] sm:$0xf]
    %v539 = vld [vmem:[#allocation10 + $0x4c8] sm:$0xff]
    %v540 = vld [vmem:[#allocation10 + $0x4d0] sm:$0xff]
    %v541 = vld [vmem:[#allocation10 + $0x4d8] sm:$0xff]
    %v542 = vld [vmem:[#allocation10 + $0x4e0] sm:$0xff]
    %v543 = vld [vmem:[#allocation10 + $0x4e8] sm:$0xf]
    %v544 = vld [vmem:[#allocation10 + $0x4ec] sm:$0xff]
    %v545 = vld [vmem:[#allocation10 + $0x4f4] sm:$0xff]
    %v546 = vld [vmem:[#allocation10 + $0x4fc] sm:$0xff]
    %v547 = vld [vmem:[#allocation10 + $0x504] sm:$0xff]
    %v548 = vld [vmem:[#allocation10 + $0x50c] sm:$0xf]
    %v549 = vld [vmem:[#allocation10 + $0x510] sm:$0xff]
    %v550 = vld [vmem:[#allocation10 + $0x518] sm:$0xff]
    %v551 = vld [vmem:[#allocation10 + $0x520] sm:$0xff]
    %v552 = vld [vmem:[#allocation10 + $0x528] sm:$0xff]
    %v553 = vld [vmem:[#allocation10 + $0x530] sm:$0xf]
    %v554 = vld [vmem:[#allocation10 + $0x534] sm:$0xff]
    %v555 = vld [vmem:[#allocation10 + $0x53c] sm:$0xff]
    %v556 = vld [vmem:[#allocation10 + $0x544] sm:$0xff]
    %v557 = vld [vmem:[#allocation10 + $0x54c] sm:$0xff]
    %v558 = vld [vmem:[#allocation10 + $0x554] sm:$0xf]
    %v559 = vld [vmem:[#allocation10 + $0x558] sm:$0xff]
    %v560 = vld [vmem:[#allocation10 + $0x560] sm:$0xff]
    %v561 = vld [vmem:[#allocation10 + $0x568] sm:$0xff]
    %v562 = vld [vmem:[#allocation10 + $0x570] sm:$0xff]
    %v563 = vld [vmem:[#allocation10 + $0x578] sm:$0xf]
    %v564 = vld [vmem:[#allocation10 + $0x57c] sm:$0xff]
    %v565 = vld [vmem:[#allocation10 + $0x584] sm:$0xff]
    %v566 = vld [vmem:[#allocation10 + $0x58c] sm:$0xff]
    %v567 = vld [vmem:[#allocation10 + $0x594] sm:$0xff]
    %v568 = vld [vmem:[#allocation10 + $0x59c] sm:$0xf]
    %v569 = vld [vmem:[#allocation10 + $0x5a0] sm:$0xff]
    %v570 = vld [vmem:[#allocation10 + $0x5a8] sm:$0xff]
    %v571 = vld [vmem:[#allocation10 + $0x5b0] sm:$0xff]
    %v572 = vld [vmem:[#allocation10 + $0x5b8] sm:$0xff]
    %v573 = vld [vmem:[#allocation10 + $0x5c0] sm:$0xf]
    %v574 = vld [vmem:[#allocation10 + $0x5c4] sm:$0xff]
    %v575 = vld [vmem:[#allocation10 + $0x5cc] sm:$0xff]
    %v576 = vld [vmem:[#allocation10 + $0x5d4] sm:$0xff]
    %v577 = vld [vmem:[#allocation10 + $0x5dc] sm:$0xff]
    %v578 = vld [vmem:[#allocation10 + $0x5e4] sm:$0xf]
    %v579 = vld [vmem:[#allocation10 + $0x5e8] sm:$0xff]
    %v580 = vld [vmem:[#allocation10 + $0x5f0] sm:$0xff]
    %v581 = vld [vmem:[#allocation10 + $0x5f8] sm:$0xff]
    %v582 = vld [vmem:[#allocation10 + $0x600] sm:$0xff]
    %v583 = vld [vmem:[#allocation10 + $0x608] sm:$0xf]
    %v584 = vld [vmem:[#allocation10 + $0x60c] sm:$0xff]
    %v585 = vld [vmem:[#allocation10 + $0x614] sm:$0xff]
    %v586 = vld [vmem:[#allocation10 + $0x61c] sm:$0xff]
    %v587 = vld [vmem:[#allocation10 + $0x624] sm:$0xff]
    %v588 = vld [vmem:[#allocation10 + $0x62c] sm:$0xf]
    %v589 = vld [vmem:[#allocation10 + $0x630] sm:$0xff]
    %v590 = vld [vmem:[#allocation10 + $0x638] sm:$0xff]
    %v591 = vld [vmem:[#allocation10 + $0x640] sm:$0xff]
    %v592 = vld [vmem:[#allocation10 + $0x648] sm:$0xff]
    %v593 = vld [vmem:[#allocation10 + $0x650] sm:$0xf]
    %v594 = vld [vmem:[#allocation10 + $0x654] sm:$0xff]
    %v595 = vld [vmem:[#allocation10 + $0x65c] sm:$0xff]
    %v596 = vld [vmem:[#allocation10 + $0x664] sm:$0xff]
    %v597 = vld [vmem:[#allocation10 + $0x66c] sm:$0xff]
    %v598 = vld [vmem:[#allocation10 + $0x674] sm:$0xf]
    %v599 = vld [vmem:[#allocation10 + $0x678] sm:$0xff]
    %v600 = vld [vmem:[#allocation10 + $0x680] sm:$0xff]
    %v601 = vld [vmem:[#allocation10 + $0x688] sm:$0xff]
    %v602 = vld [vmem:[#allocation10 + $0x690] sm:$0xff]
    %v603 = vld [vmem:[#allocation10 + $0x698] sm:$0xf]
    %v604 = vld [vmem:[#allocation10 + $0x69c] sm:$0xff]
    %v605 = vld [vmem:[#allocation10 + $0x6a4] sm:$0xff]
    %v606 = vld [vmem:[#allocation10 + $0x6ac] sm:$0xff]
    %v607 = vld [vmem:[#allocation10 + $0x6b4] sm:$0xff]
    %v608 = vld [vmem:[#allocation10 + $0x6bc] sm:$0xf]
    %v849 = vunpack.c.l.b16 %v369
    %v850 = vunpack.c.h.b16 %v369
    %v851 = vunpack.c.l.b16 %v370
    %v852 = vunpack.c.h.b16 %v370
    %v853 = vunpack.c.l.b16 %v371
    %v854 = vunpack.c.h.b16 %v371
    %v855 = vunpack.c.l.b16 %v372
    %v856 = vunpack.c.h.b16 %v372
    %v857 = vunpack.c.l.b16 %v373
    %v858 = vunpack.c.l.b16 %v374
    %v859 = vunpack.c.h.b16 %v374
    %v860 = vunpack.c.l.b16 %v375
    %v861 = vunpack.c.h.b16 %v375
    %v862 = vunpack.c.l.b16 %v376
    %v863 = vunpack.c.h.b16 %v376
    %v864 = vunpack.c.l.b16 %v377
    %v865 = vunpack.c.h.b16 %v377
    %v866 = vunpack.c.l.b16 %v378
    %v867 = vunpack.c.l.b16 %v379
    %v868 = vunpack.c.h.b16 %v379
    %v869 = vunpack.c.l.b16 %v380
    %v870 = vunpack.c.h.b16 %v380
    %v871 = vunpack.c.l.b16 %v381
    %v872 = vunpack.c.h.b16 %v381
    %v873 = vunpack.c.l.b16 %v382
    %v874 = vunpack.c.h.b16 %v382
    %v875 = vunpack.c.l.b16 %v383
    %v876 = vunpack.c.l.b16 %v384
    %v877 = vunpack.c.h.b16 %v384
    %v878 = vunpack.c.l.b16 %v385
    %v879 = vunpack.c.h.b16 %v385
    %v880 = vunpack.c.l.b16 %v386
    %v881 = vunpack.c.h.b16 %v386
    %v882 = vunpack.c.l.b16 %v387
    %v883 = vunpack.c.h.b16 %v387
    %v884 = vunpack.c.l.b16 %v388
    %v885 = vunpack.c.l.b16 %v389
    %v886 = vunpack.c.h.b16 %v389
    %v887 = vunpack.c.l.b16 %v390
    %v888 = vunpack.c.h.b16 %v390
    %v889 = vunpack.c.l.b16 %v391
    %v890 = vunpack.c.h.b16 %v391
    %v891 = vunpack.c.l.b16 %v392
    %v892 = vunpack.c.h.b16 %v392
    %v893 = vunpack.c.l.b16 %v393
    %v894 = vunpack.c.l.b16 %v394
    %v895 = vunpack.c.h.b16 %v394
    %v896 = vunpack.c.l.b16 %v395
    %v897 = vunpack.c.h.b16 %v395
    %v898 = vunpack.c.l.b16 %v396
    %v899 = vunpack.c.h.b16 %v396
    %v900 = vunpack.c.l.b16 %v397
    %v901 = vunpack.c.h.b16 %v397
    %v902 = vunpack.c.l.b16 %v398
    %v903 = vunpack.c.l.b16 %v399
    %v904 = vunpack.c.h.b16 %v399
    %v905 = vunpack.c.l.b16 %v400
    %v906 = vunpack.c.h.b16 %v400
    %v907 = vunpack.c.l.b16 %v401
    %v908 = vunpack.c.h.b16 %v401
    %v909 = vunpack.c.l.b16 %v402
    %v910 = vunpack.c.h.b16 %v402
    %v911 = vunpack.c.l.b16 %v403
    %v912 = vunpack.c.l.b16 %v404
    %v913 = vunpack.c.h.b16 %v404
    %v914 = vunpack.c.l.b16 %v405
    %v915 = vunpack.c.h.b16 %v405
    %v916 = vunpack.c.l.b16 %v406
    %v917 = vunpack.c.h.b16 %v406
    %v918 = vunpack.c.l.b16 %v407
    %v919 = vunpack.c.h.b16 %v407
    %v920 = vunpack.c.l.b16 %v408
    %v921 = vunpack.c.l.b16 %v409
    %v922 = vunpack.c.h.b16 %v409
    %v923 = vunpack.c.l.b16 %v410
    %v924 = vunpack.c.h.b16 %v410
    %v925 = vunpack.c.l.b16 %v411
    %v926 = vunpack.c.h.b16 %v411
    %v927 = vunpack.c.l.b16 %v412
    %v928 = vunpack.c.h.b16 %v412
    %v929 = vunpack.c.l.b16 %v413
    %v930 = vunpack.c.l.b16 %v414
    %v931 = vunpack.c.h.b16 %v414
    %v932 = vunpack.c.l.b16 %v415
    %v933 = vunpack.c.h.b16 %v415
    %v934 = vunpack.c.l.b16 %v416
    %v935 = vunpack.c.h.b16 %v416
    %v936 = vunpack.c.l.b16 %v417
    %v937 = vunpack.c.h.b16 %v417
    %v938 = vunpack.c.l.b16 %v418
    %v939 = vunpack.c.l.b16 %v419
    %v940 = vunpack.c.h.b16 %v419
    %v941 = vunpack.c.l.b16 %v420
    %v942 = vunpack.c.h.b16 %v420
    %v943 = vunpack.c.l.b16 %v421
    %v944 = vunpack.c.h.b16 %v421
    %v945 = vunpack.c.l.b16 %v422
    %v946 = vunpack.c.h.b16 %v422
    %v947 = vunpack.c.l.b16 %v423
    %v948 = vunpack.c.l.b16 %v424
    %v949 = vunpack.c.h.b16 %v424
    %v950 = vunpack.c.l.b16 %v425
    %v951 = vunpack.c.h.b16 %v425
    %v952 = vunpack.c.l.b16 %v426
    %v953 = vunpack.c.h.b16 %v426
    %v954 = vunpack.c.l.b16 %v427
    %v955 = vunpack.c.h.b16 %v427
    %v956 = vunpack.c.l.b16 %v428
    %v957 = vunpack.c.l.b16 %v429
    %v958 = vunpack.c.h.b16 %v429
    %v959 = vunpack.c.l.b16 %v430
    %v960 = vunpack.c.h.b16 %v430
    %v961 = vunpack.c.l.b16 %v431
    %v962 = vunpack.c.h.b16 %v431
    %v963 = vunpack.c.l.b16 %v432
    %v964 = vunpack.c.h.b16 %v432
    %v965 = vunpack.c.l.b16 %v433
    %v966 = vunpack.c.l.b16 %v434
    %v967 = vunpack.c.h.b16 %v434
    %v968 = vunpack.c.l.b16 %v435
    %v969 = vunpack.c.h.b16 %v435
    %v970 = vunpack.c.l.b16 %v436
    %v971 = vunpack.c.h.b16 %v436
    %v972 = vunpack.c.l.b16 %v437
    %v973 = vunpack.c.h.b16 %v437
    %v974 = vunpack.c.l.b16 %v438
    %v975 = vunpack.c.l.b16 %v439
    %v976 = vunpack.c.h.b16 %v439
    %v977 = vunpack.c.l.b16 %v440
    %v978 = vunpack.c.h.b16 %v440
    %v979 = vunpack.c.l.b16 %v441
    %v980 = vunpack.c.h.b16 %v441
    %v981 = vunpack.c.l.b16 %v442
    %v982 = vunpack.c.h.b16 %v442
    %v983 = vunpack.c.l.b16 %v443
    %v984 = vunpack.c.l.b16 %v444
    %v985 = vunpack.c.h.b16 %v444
    %v986 = vunpack.c.l.b16 %v445
    %v987 = vunpack.c.h.b16 %v445
    %v988 = vunpack.c.l.b16 %v446
    %v989 = vunpack.c.h.b16 %v446
    %v990 = vunpack.c.l.b16 %v447
    %v991 = vunpack.c.h.b16 %v447
    %v992 = vunpack.c.l.b16 %v448
    %v993 = vunpack.c.l.b16 %v449
    %v994 = vunpack.c.h.b16 %v449
    %v995 = vunpack.c.l.b16 %v450
    %v996 = vunpack.c.h.b16 %v450
    %v997 = vunpack.c.l.b16 %v451
    %v998 = vunpack.c.h.b16 %v451
    %v999 = vunpack.c.l.b16 %v452
    %v1000 = vunpack.c.h.b16 %v452
    %v1001 = vunpack.c.l.b16 %v453
    %v1002 = vunpack.c.l.b16 %v454
    %v1003 = vunpack.c.h.b16 %v454
    %v1004 = vunpack.c.l.b16 %v455
    %v1005 = vunpack.c.h.b16 %v455
    %v1006 = vunpack.c.l.b16 %v456
    %v1007 = vunpack.c.h.b16 %v456
    %v1008 = vunpack.c.l.b16 %v457
    %v1009 = vunpack.c.h.b16 %v457
    %v1010 = vunpack.c.l.b16 %v458
    %v1011 = vunpack.c.l.b16 %v459
    %v1012 = vunpack.c.h.b16 %v459
    %v1013 = vunpack.c.l.b16 %v460
    %v1014 = vunpack.c.h.b16 %v460
    %v1015 = vunpack.c.l.b16 %v461
    %v1016 = vunpack.c.h.b16 %v461
    %v1017 = vunpack.c.l.b16 %v462
    %v1018 = vunpack.c.h.b16 %v462
    %v1019 = vunpack.c.l.b16 %v463
    %v1020 = vunpack.c.l.b16 %v464
    %v1021 = vunpack.c.h.b16 %v464
    %v1022 = vunpack.c.l.b16 %v465
    %v1023 = vunpack.c.h.b16 %v465
    %v1024 = vunpack.c.l.b16 %v466
    %v1025 = vunpack.c.h.b16 %v466
    %v1026 = vunpack.c.l.b16 %v467
    %v1027 = vunpack.c.h.b16 %v467
    %v1028 = vunpack.c.l.b16 %v468
    %v1029 = vunpack.c.l.b16 %v469
    %v1030 = vunpack.c.h.b16 %v469
    %v1031 = vunpack.c.l.b16 %v470
    %v1032 = vunpack.c.h.b16 %v470
    %v1033 = vunpack.c.l.b16 %v471
    %v1034 = vunpack.c.h.b16 %v471
    %v1035 = vunpack.c.l.b16 %v472
    %v1036 = vunpack.c.h.b16 %v472
    %v1037 = vunpack.c.l.b16 %v473
    %v1038 = vunpack.c.l.b16 %v474
    %v1039 = vunpack.c.h.b16 %v474
    %v1040 = vunpack.c.l.b16 %v475
    %v1041 = vunpack.c.h.b16 %v475
    %v1042 = vunpack.c.l.b16 %v476
    %v1043 = vunpack.c.h.b16 %v476
    %v1044 = vunpack.c.l.b16 %v477
    %v1045 = vunpack.c.h.b16 %v477
    %v1046 = vunpack.c.l.b16 %v478
    %v1047 = vunpack.c.l.b16 %v479
    %v1048 = vunpack.c.h.b16 %v479
    %v1049 = vunpack.c.l.b16 %v480
    %v1050 = vunpack.c.h.b16 %v480
    %v1051 = vunpack.c.l.b16 %v481
    %v1052 = vunpack.c.h.b16 %v481
    %v1053 = vunpack.c.l.b16 %v482
    %v1054 = vunpack.c.h.b16 %v482
    %v1055 = vunpack.c.l.b16 %v483
    %v1056 = vunpack.c.l.b16 %v484
    %v1057 = vunpack.c.h.b16 %v484
    %v1058 = vunpack.c.l.b16 %v485
    %v1059 = vunpack.c.h.b16 %v485
    %v1060 = vunpack.c.l.b16 %v486
    %v1061 = vunpack.c.h.b16 %v486
    %v1062 = vunpack.c.l.b16 %v487
    %v1063 = vunpack.c.h.b16 %v487
    %v1064 = vunpack.c.l.b16 %v488
    %v1065 = vunpack.c.l.b16 %v489
    %v1066 = vunpack.c.h.b16 %v489
    %v1067 = vunpack.c.l.b16 %v490
    %v1068 = vunpack.c.h.b16 %v490
    %v1069 = vunpack.c.l.b16 %v491
    %v1070 = vunpack.c.h.b16 %v491
    %v1071 = vunpack.c.l.b16 %v492
    %v1072 = vunpack.c.h.b16 %v492
    %v1073 = vunpack.c.l.b16 %v493
    %v1074 = vunpack.c.l.b16 %v494
    %v1075 = vunpack.c.h.b16 %v494
    %v1076 = vunpack.c.l.b16 %v495
    %v1077 = vunpack.c.h.b16 %v495
    %v1078 = vunpack.c.l.b16 %v496
    %v1079 = vunpack.c.h.b16 %v496
    %v1080 = vunpack.c.l.b16 %v497
    %v1081 = vunpack.c.h.b16 %v497
    %v1082 = vunpack.c.l.b16 %v498
    %v1083 = vunpack.c.l.b16 %v499
    %v1084 = vunpack.c.h.b16 %v499
    %v1085 = vunpack.c.l.b16 %v500
    %v1086 = vunpack.c.h.b16 %v500
    %v1087 = vunpack.c.l.b16 %v501
    %v1088 = vunpack.c.h.b16 %v501
    %v1089 = vunpack.c.l.b16 %v502
    %v1090 = vunpack.c.h.b16 %v502
    %v1091 = vunpack.c.l.b16 %v503
    %v1092 = vunpack.c.l.b16 %v504
    %v1093 = vunpack.c.h.b16 %v504
    %v1094 = vunpack.c.l.b16 %v505
    %v1095 = vunpack.c.h.b16 %v505
    %v1096 = vunpack.c.l.b16 %v506
    %v1097 = vunpack.c.h.b16 %v506
    %v1098 = vunpack.c.l.b16 %v507
    %v1099 = vunpack.c.h.b16 %v507
    %v1100 = vunpack.c.l.b16 %v508
    %v1101 = vunpack.c.l.b16 %v509
    %v1102 = vunpack.c.h.b16 %v509
    %v1103 = vunpack.c.l.b16 %v510
    %v1104 = vunpack.c.h.b16 %v510
    %v1105 = vunpack.c.l.b16 %v511
    %v1106 = vunpack.c.h.b16 %v511
    %v1107 = vunpack.c.l.b16 %v512
    %v1108 = vunpack.c.h.b16 %v512
    %v1109 = vunpack.c.l.b16 %v513
    %v1110 = vunpack.c.l.b16 %v514
    %v1111 = vunpack.c.h.b16 %v514
    %v1112 = vunpack.c.l.b16 %v515
    %v1113 = vunpack.c.h.b16 %v515
    %v1114 = vunpack.c.l.b16 %v516
    %v1115 = vunpack.c.h.b16 %v516
    %v1116 = vunpack.c.l.b16 %v517
    %v1117 = vunpack.c.h.b16 %v517
    %v1118 = vunpack.c.l.b16 %v518
    %v1119 = vunpack.c.l.b16 %v519
    %v1120 = vunpack.c.h.b16 %v519
    %v1121 = vunpack.c.l.b16 %v520
    %v1122 = vunpack.c.h.b16 %v520
    %v1123 = vunpack.c.l.b16 %v521
    %v1124 = vunpack.c.h.b16 %v521
    %v1125 = vunpack.c.l.b16 %v522
    %v1126 = vunpack.c.h.b16 %v522
    %v1127 = vunpack.c.l.b16 %v523
    %v1128 = vunpack.c.l.b16 %v524
    %v1129 = vunpack.c.h.b16 %v524
    %v1130 = vunpack.c.l.b16 %v525
    %v1131 = vunpack.c.h.b16 %v525
    %v1132 = vunpack.c.l.b16 %v526
    %v1133 = vunpack.c.h.b16 %v526
    %v1134 = vunpack.c.l.b16 %v527
    %v1135 = vunpack.c.h.b16 %v527
    %v1136 = vunpack.c.l.b16 %v528
    %v1137 = vunpack.c.l.b16 %v529
    %v1138 = vunpack.c.h.b16 %v529
    %v1139 = vunpack.c.l.b16 %v530
    %v1140 = vunpack.c.h.b16 %v530
    %v1141 = vunpack.c.l.b16 %v531
    %v1142 = vunpack.c.h.b16 %v531
    %v1143 = vunpack.c.l.b16 %v532
    %v1144 = vunpack.c.h.b16 %v532
    %v1145 = vunpack.c.l.b16 %v533
    %v1146 = vunpack.c.l.b16 %v534
    %v1147 = vunpack.c.h.b16 %v534
    %v1148 = vunpack.c.l.b16 %v535
    %v1149 = vunpack.c.h.b16 %v535
    %v1150 = vunpack.c.l.b16 %v536
    %v1151 = vunpack.c.h.b16 %v536
    %v1152 = vunpack.c.l.b16 %v537
    %v1153 = vunpack.c.h.b16 %v537
    %v1154 = vunpack.c.l.b16 %v538
    %v1155 = vunpack.c.l.b16 %v539
    %v1156 = vunpack.c.h.b16 %v539
    %v1157 = vunpack.c.l.b16 %v540
    %v1158 = vunpack.c.h.b16 %v540
    %v1159 = vunpack.c.l.b16 %v541
    %v1160 = vunpack.c.h.b16 %v541
    %v1161 = vunpack.c.l.b16 %v542
    %v1162 = vunpack.c.h.b16 %v542
    %v1163 = vunpack.c.l.b16 %v543
    %v1164 = vunpack.c.l.b16 %v544
    %v1165 = vunpack.c.h.b16 %v544
    %v1166 = vunpack.c.l.b16 %v545
    %v1167 = vunpack.c.h.b16 %v545
    %v1168 = vunpack.c.l.b16 %v546
    %v1169 = vunpack.c.h.b16 %v546
    %v1170 = vunpack.c.l.b16 %v547
    %v1171 = vunpack.c.h.b16 %v547
    %v1172 = vunpack.c.l.b16 %v548
    %v1173 = vunpack.c.l.b16 %v549
    %v1174 = vunpack.c.h.b16 %v549
    %v1175 = vunpack.c.l.b16 %v550
    %v1176 = vunpack.c.h.b16 %v550
    %v1177 = vunpack.c.l.b16 %v551
    %v1178 = vunpack.c.h.b16 %v551
    %v1179 = vunpack.c.l.b16 %v552
    %v1180 = vunpack.c.h.b16 %v552
    %v1181 = vunpack.c.l.b16 %v553
    %v1182 = vunpack.c.l.b16 %v554
    %v1183 = vunpack.c.h.b16 %v554
    %v1184 = vunpack.c.l.b16 %v555
    %v1185 = vunpack.c.h.b16 %v555
    %v1186 = vunpack.c.l.b16 %v556
    %v1187 = vunpack.c.h.b16 %v556
    %v1188 = vunpack.c.l.b16 %v557
    %v1189 = vunpack.c.h.b16 %v557
    %v1190 = vunpack.c.l.b16 %v558
    %v1191 = vunpack.c.l.b16 %v559
    %v1192 = vunpack.c.h.b16 %v559
    %v1193 = vunpack.c.l.b16 %v560
    %v1194 = vunpack.c.h.b16 %v560
    %v1195 = vunpack.c.l.b16 %v561
    %v1196 = vunpack.c.h.b16 %v561
    %v1197 = vunpack.c.l.b16 %v562
    %v1198 = vunpack.c.h.b16 %v562
    %v1199 = vunpack.c.l.b16 %v563
    %v1200 = vunpack.c.l.b16 %v564
    %v1201 = vunpack.c.h.b16 %v564
    %v1202 = vunpack.c.l.b16 %v565
    %v1203 = vunpack.c.h.b16 %v565
    %v1204 = vunpack.c.l.b16 %v566
    %v1205 = vunpack.c.h.b16 %v566
    %v1206 = vunpack.c.l.b16 %v567
    %v1207 = vunpack.c.h.b16 %v567
    %v1208 = vunpack.c.l.b16 %v568
    %v1209 = vunpack.c.l.b16 %v569
    %v1210 = vunpack.c.h.b16 %v569
    %v1211 = vunpack.c.l.b16 %v570
    %v1212 = vunpack.c.h.b16 %v570
    %v1213 = vunpack.c.l.b16 %v571
    %v1214 = vunpack.c.h.b16 %v571
    %v1215 = vunpack.c.l.b16 %v572
    %v1216 = vunpack.c.h.b16 %v572
    %v1217 = vunpack.c.l.b16 %v573
    %v1218 = vunpack.c.l.b16 %v574
    %v1219 = vunpack.c.h.b16 %v574
    %v1220 = vunpack.c.l.b16 %v575
    %v1221 = vunpack.c.h.b16 %v575
    %v1222 = vunpack.c.l.b16 %v576
    %v1223 = vunpack.c.h.b16 %v576
    %v1224 = vunpack.c.l.b16 %v577
    %v1225 = vunpack.c.h.b16 %v577
    %v1226 = vunpack.c.l.b16 %v578
    %v1227 = vunpack.c.l.b16 %v579
    %v1228 = vunpack.c.h.b16 %v579
    %v1229 = vunpack.c.l.b16 %v580
    %v1230 = vunpack.c.h.b16 %v580
    %v1231 = vunpack.c.l.b16 %v581
    %v1232 = vunpack.c.h.b16 %v581
    %v1233 = vunpack.c.l.b16 %v582
    %v1234 = vunpack.c.h.b16 %v582
    %v1235 = vunpack.c.l.b16 %v583
    %v1236 = vunpack.c.l.b16 %v584
    %v1237 = vunpack.c.h.b16 %v584
    %v1238 = vunpack.c.l.b16 %v585
    %v1239 = vunpack.c.h.b16 %v585
    %v1240 = vunpack.c.l.b16 %v586
    %v1241 = vunpack.c.h.b16 %v586
    %v1242 = vunpack.c.l.b16 %v587
    %v1243 = vunpack.c.h.b16 %v587
    %v1244 = vunpack.c.l.b16 %v588
    %v1245 = vunpack.c.l.b16 %v589
    %v1246 = vunpack.c.h.b16 %v589
    %v1247 = vunpack.c.l.b16 %v590
    %v1248 = vunpack.c.h.b16 %v590
    %v1249 = vunpack.c.l.b16 %v591
    %v1250 = vunpack.c.h.b16 %v591
    %v1251 = vunpack.c.l.b16 %v592
    %v1252 = vunpack.c.h.b16 %v592
    %v1253 = vunpack.c.l.b16 %v593
    %v1254 = vunpack.c.l.b16 %v594
    %v1255 = vunpack.c.h.b16 %v594
    %v1256 = vunpack.c.l.b16 %v595
    %v1257 = vunpack.c.h.b16 %v595
    %v1258 = vunpack.c.l.b16 %v596
    %v1259 = vunpack.c.h.b16 %v596
    %v1260 = vunpack.c.l.b16 %v597
    %v1261 = vunpack.c.h.b16 %v597
    %v1262 = vunpack.c.l.b16 %v598
    %v1263 = vunpack.c.l.b16 %v599
    %v1264 = vunpack.c.h.b16 %v599
    %v1265 = vunpack.c.l.b16 %v600
    %v1266 = vunpack.c.h.b16 %v600
    %v1267 = vunpack.c.l.b16 %v601
    %v1268 = vunpack.c.h.b16 %v601
    %v1269 = vunpack.c.l.b16 %v602
    %v1270 = vunpack.c.h.b16 %v602
    %v1271 = vunpack.c.l.b16 %v603
    %v1272 = vunpack.c.l.b16 %v604
    %v1273 = vunpack.c.h.b16 %v604
    %v1274 = vunpack.c.l.b16 %v605
    %v1275 = vunpack.c.h.b16 %v605
    %v1276 = vunpack.c.l.b16 %v606
    %v1277 = vunpack.c.h.b16 %v606
    %v1278 = vunpack.c.l.b16 %v607
    %v1279 = vunpack.c.h.b16 %v607
    %v1280 = vunpack.c.l.b16 %v608
    %v1281 = vpack.c.b16 %v858, %v849
    %v1282 = vpack.c.b16 %v859, %v850
    %v1283 = vpack.c.b16 %v860, %v851
    %v1284 = vpack.c.b16 %v861, %v852
    %v1285 = vpack.c.b16 %v862, %v853
    %v1286 = vpack.c.b16 %v863, %v854
    %v1287 = vpack.c.b16 %v864, %v855
    %v1288 = vpack.c.b16 %v865, %v856
    %v1289 = vpack.c.b16 %v866, %v857
    %v1290 = vpack.c.b16 %v876, %v867
    %v1291 = vpack.c.b16 %v877, %v868
    %v1292 = vpack.c.b16 %v878, %v869
    %v1293 = vpack.c.b16 %v879, %v870
    %v1294 = vpack.c.b16 %v880, %v871
    %v1295 = vpack.c.b16 %v881, %v872
    %v1296 = vpack.c.b16 %v882, %v873
    %v1297 = vpack.c.b16 %v883, %v874
    %v1298 = vpack.c.b16 %v884, %v875
    %v1299 = vpack.c.b16 %v894, %v885
    %v1300 = vpack.c.b16 %v895, %v886
    %v1301 = vpack.c.b16 %v896, %v887
    %v1302 = vpack.c.b16 %v897, %v888
    %v1303 = vpack.c.b16 %v898, %v889
    %v1304 = vpack.c.b16 %v899, %v890
    %v1305 = vpack.c.b16 %v900, %v891
    %v1306 = vpack.c.b16 %v901, %v892
    %v1307 = vpack.c.b16 %v902, %v893
    %v1308 = vpack.c.b16 %v912, %v903
    %v1309 = vpack.c.b16 %v913, %v904
    %v1310 = vpack.c.b16 %v914, %v905
    %v1311 = vpack.c.b16 %v915, %v906
    %v1312 = vpack.c.b16 %v916, %v907
    %v1313 = vpack.c.b16 %v917, %v908
    %v1314 = vpack.c.b16 %v918, %v909
    %v1315 = vpack.c.b16 %v919, %v910
    %v1316 = vpack.c.b16 %v920, %v911
    %v1317 = vpack.c.b16 %v930, %v921
    %v1318 = vpack.c.b16 %v931, %v922
    %v1319 = vpack.c.b16 %v932, %v923
    %v1320 = vpack.c.b16 %v933, %v924
    %v1321 = vpack.c.b16 %v934, %v925
    %v1322 = vpack.c.b16 %v935, %v926
    %v1323 = vpack.c.b16 %v936, %v927
    %v1324 = vpack.c.b16 %v937, %v928
    %v1325 = vpack.c.b16 %v938, %v929
    %v1326 = vpack.c.b16 %v948, %v939
    %v1327 = vpack.c.b16 %v949, %v940
    %v1328 = vpack.c.b16 %v950, %v941
    %v1329 = vpack.c.b16 %v951, %v942
    %v1330 = vpack.c.b16 %v952, %v943
    %v1331 = vpack.c.b16 %v953, %v944
    %v1332 = vpack.c.b16 %v954, %v945
    %v1333 = vpack.c.b16 %v955, %v946
    %v1334 = vpack.c.b16 %v956, %v947
    %v1335 = vpack.c.b16 %v966, %v957
    %v1336 = vpack.c.b16 %v967, %v958
    %v1337 = vpack.c.b16 %v968, %v959
    %v1338 = vpack.c.b16 %v969, %v960
    %v1339 = vpack.c.b16 %v970, %v961
    %v1340 = vpack.c.b16 %v971, %v962
    %v1341 = vpack.c.b16 %v972, %v963
    %v1342 = vpack.c.b16 %v973, %v964
    %v1343 = vpack.c.b16 %v974, %v965
    %v1344 = vpack.c.b16 %v984, %v975
    %v1345 = vpack.c.b16 %v985, %v976
    %v1346 = vpack.c.b16 %v986, %v977
    %v1347 = vpack.c.b16 %v987, %v978
    %v1348 = vpack.c.b16 %v988, %v979
    %v1349 = vpack.c.b16 %v989, %v980
    %v1350 = vpack.c.b16 %v990, %v981
    %v1351 = vpack.c.b16 %v991, %v982
    %v1352 = vpack.c.b16 %v992, %v983
    %v1353 = vpack.c.b16 %v1002, %v993
    %v1354 = vpack.c.b16 %v1003, %v994
    %v1355 = vpack.c.b16 %v1004, %v995
    %v1356 = vpack.c.b16 %v1005, %v996
    %v1357 = vpack.c.b16 %v1006, %v997
    %v1358 = vpack.c.b16 %v1007, %v998
    %v1359 = vpack.c.b16 %v1008, %v999
    %v1360 = vpack.c.b16 %v1009, %v1000
    %v1361 = vpack.c.b16 %v1010, %v1001
    %v1362 = vpack.c.b16 %v1020, %v1011
    %v1363 = vpack.c.b16 %v1021, %v1012
    %v1364 = vpack.c.b16 %v1022, %v1013
    %v1365 = vpack.c.b16 %v1023, %v1014
    %v1366 = vpack.c.b16 %v1024, %v1015
    %v1367 = vpack.c.b16 %v1025, %v1016
    %v1368 = vpack.c.b16 %v1026, %v1017
    %v1369 = vpack.c.b16 %v1027, %v1018
    %v1370 = vpack.c.b16 %v1028, %v1019
    %v1371 = vpack.c.b16 %v1038, %v1029
    %v1372 = vpack.c.b16 %v1039, %v1030
    %v1373 = vpack.c.b16 %v1040, %v1031
    %v1374 = vpack.c.b16 %v1041, %v1032
    %v1375 = vpack.c.b16 %v1042, %v1033
    %v1376 = vpack.c.b16 %v1043, %v1034
    %v1377 = vpack.c.b16 %v1044, %v1035
    %v1378 = vpack.c.b16 %v1045, %v1036
    %v1379 = vpack.c.b16 %v1046, %v1037
    %v1380 = vpack.c.b16 %v1056, %v1047
    %v1381 = vpack.c.b16 %v1057, %v1048
    %v1382 = vpack.c.b16 %v1058, %v1049
    %v1383 = vpack.c.b16 %v1059, %v1050
    %v1384 = vpack.c.b16 %v1060, %v1051
    %v1385 = vpack.c.b16 %v1061, %v1052
    %v1386 = vpack.c.b16 %v1062, %v1053
    %v1387 = vpack.c.b16 %v1063, %v1054
    %v1388 = vpack.c.b16 %v1064, %v1055
    %v1389 = vpack.c.b16 %v1074, %v1065
    %v1390 = vpack.c.b16 %v1075, %v1066
    %v1391 = vpack.c.b16 %v1076, %v1067
    %v1392 = vpack.c.b16 %v1077, %v1068
    %v1393 = vpack.c.b16 %v1078, %v1069
    %v1394 = vpack.c.b16 %v1079, %v1070
    %v1395 = vpack.c.b16 %v1080, %v1071
    %v1396 = vpack.c.b16 %v1081, %v1072
    %v1397 = vpack.c.b16 %v1082, %v1073
    %v1398 = vpack.c.b16 %v1092, %v1083
    %v1399 = vpack.c.b16 %v1093, %v1084
    %v1400 = vpack.c.b16 %v1094, %v1085
    %v1401 = vpack.c.b16 %v1095, %v1086
    %v1402 = vpack.c.b16 %v1096, %v1087
    %v1403 = vpack.c.b16 %v1097, %v1088
    %v1404 = vpack.c.b16 %v1098, %v1089
    %v1405 = vpack.c.b16 %v1099, %v1090
    %v1406 = vpack.c.b16 %v1100, %v1091
    %v1407 = vpack.c.b16 %v1110, %v1101
    %v1408 = vpack.c.b16 %v1111, %v1102
    %v1409 = vpack.c.b16 %v1112, %v1103
    %v1410 = vpack.c.b16 %v1113, %v1104
    %v1411 = vpack.c.b16 %v1114, %v1105
    %v1412 = vpack.c.b16 %v1115, %v1106
    %v1413 = vpack.c.b16 %v1116, %v1107
    %v1414 = vpack.c.b16 %v1117, %v1108
    %v1415 = vpack.c.b16 %v1118, %v1109
    %v1416 = vpack.c.b16 %v1128, %v1119
    %v1417 = vpack.c.b16 %v1129, %v1120
    %v1418 = vpack.c.b16 %v1130, %v1121
    %v1419 = vpack.c.b16 %v1131, %v1122
    %v1420 = vpack.c.b16 %v1132, %v1123
    %v1421 = vpack.c.b16 %v1133, %v1124
    %v1422 = vpack.c.b16 %v1134, %v1125
    %v1423 = vpack.c.b16 %v1135, %v1126
    %v1424 = vpack.c.b16 %v1136, %v1127
    %v1425 = vpack.c.b16 %v1146, %v1137
    %v1426 = vpack.c.b16 %v1147, %v1138
    %v1427 = vpack.c.b16 %v1148, %v1139
    %v1428 = vpack.c.b16 %v1149, %v1140
    %v1429 = vpack.c.b16 %v1150, %v1141
    %v1430 = vpack.c.b16 %v1151, %v1142
    %v1431 = vpack.c.b16 %v1152, %v1143
    %v1432 = vpack.c.b16 %v1153, %v1144
    %v1433 = vpack.c.b16 %v1154, %v1145
    %v1434 = vpack.c.b16 %v1164, %v1155
    %v1435 = vpack.c.b16 %v1165, %v1156
    %v1436 = vpack.c.b16 %v1166, %v1157
    %v1437 = vpack.c.b16 %v1167, %v1158
    %v1438 = vpack.c.b16 %v1168, %v1159
    %v1439 = vpack.c.b16 %v1169, %v1160
    %v1440 = vpack.c.b16 %v1170, %v1161
    %v1441 = vpack.c.b16 %v1171, %v1162
    %v1442 = vpack.c.b16 %v1172, %v1163
    %v1443 = vpack.c.b16 %v1182, %v1173
    %v1444 = vpack.c.b16 %v1183, %v1174
    %v1445 = vpack.c.b16 %v1184, %v1175
    %v1446 = vpack.c.b16 %v1185, %v1176
    %v1447 = vpack.c.b16 %v1186, %v1177
    %v1448 = vpack.c.b16 %v1187, %v1178
    %v1449 = vpack.c.b16 %v1188, %v1179
    %v1450 = vpack.c.b16 %v1189, %v1180
    %v1451 = vpack.c.b16 %v1190, %v1181
    %v1452 = vpack.c.b16 %v1200, %v1191
    %v1453 = vpack.c.b16 %v1201, %v1192
    %v1454 = vpack.c.b16 %v1202, %v1193
    %v1455 = vpack.c.b16 %v1203, %v1194
    %v1456 = vpack.c.b16 %v1204, %v1195
    %v1457 = vpack.c.b16 %v1205, %v1196
    %v1458 = vpack.c.b16 %v1206, %v1197
    %v1459 = vpack.c.b16 %v1207, %v1198
    %v1460 = vpack.c.b16 %v1208, %v1199
    %v1461 = vpack.c.b16 %v1218, %v1209
    %v1462 = vpack.c.b16 %v1219, %v1210
    %v1463 = vpack.c.b16 %v1220, %v1211
    %v1464 = vpack.c.b16 %v1221, %v1212
    %v1465 = vpack.c.b16 %v1222, %v1213
    %v1466 = vpack.c.b16 %v1223, %v1214
    %v1467 = vpack.c.b16 %v1224, %v1215
    %v1468 = vpack.c.b16 %v1225, %v1216
    %v1469 = vpack.c.b16 %v1226, %v1217
    %v1470 = vpack.c.b16 %v1236, %v1227
    %v1471 = vpack.c.b16 %v1237, %v1228
    %v1472 = vpack.c.b16 %v1238, %v1229
    %v1473 = vpack.c.b16 %v1239, %v1230
    %v1474 = vpack.c.b16 %v1240, %v1231
    %v1475 = vpack.c.b16 %v1241, %v1232
    %v1476 = vpack.c.b16 %v1242, %v1233
    %v1477 = vpack.c.b16 %v1243, %v1234
    %v1478 = vpack.c.b16 %v1244, %v1235
    %v1479 = vpack.c.b16 %v1254, %v1245
    %v1480 = vpack.c.b16 %v1255, %v1246
    %v1481 = vpack.c.b16 %v1256, %v1247
    %v1482 = vpack.c.b16 %v1257, %v1248
    %v1483 = vpack.c.b16 %v1258, %v1249
    %v1484 = vpack.c.b16 %v1259, %v1250
    %v1485 = vpack.c.b16 %v1260, %v1251
    %v1486 = vpack.c.b16 %v1261, %v1252
    %v1487 = vpack.c.b16 %v1262, %v1253
    %v1488 = vpack.c.b16 %v1272, %v1263
    %v1489 = vpack.c.b16 %v1273, %v1264
    %v1490 = vpack.c.b16 %v1274, %v1265
    %v1491 = vpack.c.b16 %v1275, %v1266
    %v1492 = vpack.c.b16 %v1276, %v1267
    %v1493 = vpack.c.b16 %v1277, %v1268
    %v1494 = vpack.c.b16 %v1278, %v1269
    %v1495 = vpack.c.b16 %v1279, %v1270
    %v1496 = vpack.c.b16 %v1280, %v1271
    %1713 = vmatprep.subr.bf16.mxu0 %v1345
    %1714 = vmatpush1.bf16.msra.mxu0 %v1344
    %1715 = vmatprep.subr.bf16.mxu0 %v1336
    %1716 = vmatpush1.bf16.msra.mxu0 %v1335
    %1717 = vmatprep.subr.bf16.mxu0 %v1327
    %1718 = vmatpush1.bf16.msra.mxu0 %v1326
    %1719 = vmatprep.subr.bf16.mxu0 %v1318
    %1720 = vmatpush1.bf16.msra.mxu0 %v1317
    %1721 = vmatprep.subr.bf16.mxu0 %v1309
    %1722 = vmatpush1.bf16.msra.mxu0 %v1308
    %1723 = vmatprep.subr.bf16.mxu0 %v1300
    %1724 = vmatpush1.bf16.msra.mxu0 %v1299
    %1725 = vmatprep.subr.bf16.mxu0 %v1291
    %1726 = vmatpush1.bf16.msra.mxu0 %v1290
    %1727 = vmatprep.subr.bf16.mxu0 %v1282
    %1728 = vmatpush1.bf16.msra.mxu0 %v1281
    %1729 = vmatprep.subr.bf16.mxu0 %v1417
    %1730 = vmatpush2.bf16.msra.mxu0 %v1416
    %1731 = vmatprep.subr.bf16.mxu0 %v1408
    %1732 = vmatpush2.bf16.msra.mxu0 %v1407
    %1733 = vmatprep.subr.bf16.mxu0 %v1399
    %1734 = vmatpush2.bf16.msra.mxu0 %v1398
    %1735 = vmatprep.subr.bf16.mxu0 %v1390
    %1736 = vmatpush2.bf16.msra.mxu0 %v1389
    %1737 = vmatprep.subr.bf16.mxu0 %v1381
    %1738 = vmatpush2.bf16.msra.mxu0 %v1380
    %1739 = vmatprep.subr.bf16.mxu0 %v1372
    %1740 = vmatpush2.bf16.msra.mxu0 %v1371
    %1741 = vmatprep.subr.bf16.mxu0 %v1363
    %1742 = vmatpush2.bf16.msra.mxu0 %v1362
    %1743 = vmatprep.subr.bf16.mxu0 %v1354
    %1744 = vmatpush2.bf16.msra.mxu0 %v1353
    %1745 = vmatprep.mubr.bf16.mxu0 %v364
    %1746 = vmatmul.mubr.bf16.gmra.mxu0 %v363
    %v1747 = vpop.f32.mrf.mxu0
    %v1748 = vadd.f32 0.0, %v1747
    %v1749 = vpop.f32.mrf.mxu0
    %v1750 = vadd.f32 0.0, %v1749
    %v1751 = vpop.f32.mrf.mxu0
    %v1752 = vadd.f32 0.0, %v1751
    %v1753 = vpop.f32.mrf.mxu0
    %v1754 = vadd.f32 0.0, %v1753
    %1755 = vmatprep.mubr.bf16.mxu0 %v367
    %1756 = vmatmul.mubr.bf16.gmra.mxu0 %v366
    %v1757 = vpop.f32.mrf.mxu0
    %v1758 = vadd.f32 0.0, %v1757
    %v1759 = vpop.f32.mrf.mxu0
    %v1760 = vadd.f32 0.0, %v1759
    %v1761 = vpop.f32.mrf.mxu0
    %v1762 = vadd.f32 0.0, %v1761
    %v1763 = vpop.f32.mrf.mxu0
    %v1764 = vadd.f32 0.0, %v1763
    %1765 = vdwg.mxu0
    %1766 = vmatprep.subr.bf16.mxu0 %v1489
    %1767 = vmatpush1.bf16.msra.mxu0 %v1488
    %1768 = vmatprep.subr.bf16.mxu0 %v1480
    %1769 = vmatpush1.bf16.msra.mxu0 %v1479
    %1770 = vmatprep.subr.bf16.mxu0 %v1471
    %1771 = vmatpush1.bf16.msra.mxu0 %v1470
    %1772 = vmatprep.subr.bf16.mxu0 %v1462
    %1773 = vmatpush1.bf16.msra.mxu0 %v1461
    %1774 = vmatprep.subr.bf16.mxu0 %v1453
    %1775 = vmatpush1.bf16.msra.mxu0 %v1452
    %1776 = vmatprep.subr.bf16.mxu0 %v1444
    %1777 = vmatpush1.bf16.msra.mxu0 %v1443
    %1778 = vmatprep.subr.bf16.mxu0 %v1435
    %1779 = vmatpush1.bf16.msra.mxu0 %v1434
    %1780 = vmatprep.subr.bf16.mxu0 %v1426
    %1781 = vmatpush1.bf16.msra.mxu0 %v1425
    %1782 = vmatprep.subr.bf16.mxu0 0
    %1783 = vmatpush2.bf16.msra.mxu0 0
    %1784 = vmatprep.subr.bf16.mxu0 0
    %1785 = vmatpush2.bf16.msra.mxu0 0
    %1786 = vmatprep.subr.bf16.mxu0 0
    %1787 = vmatpush2.bf16.msra.mxu0 0
    %1788 = vmatprep.subr.bf16.mxu0 0
    %1789 = vmatpush2.bf16.msra.mxu0 0
    %1790 = vmatprep.subr.bf16.mxu0 0
    %1791 = vmatpush2.bf16.msra.mxu0 0
    %1792 = vmatprep.subr.bf16.mxu0 0
    %1793 = vmatpush2.bf16.msra.mxu0 0
    %1794 = vmatprep.subr.bf16.mxu0 0
    %1795 = vmatpush2.bf16.msra.mxu0 0
    %1796 = vmatprep.subr.bf16.mxu0 0
    %1797 = vmatpush2.bf16.msra.mxu0 0
    %1798 = vmatprep.mubr.bf16.mxu0 0
    %1799 = vmatmul.mubr.bf16.gmra.mxu0 %v365
    %v1800 = vpop.f32.mrf.mxu0
    %v1801 = vadd.f32 %v1748, %v1800
    %v1802 = vpop.f32.mrf.mxu0
    %v1803 = vadd.f32 %v1750, %v1802
    %v1804 = vpop.f32.mrf.mxu0
    %v1805 = vadd.f32 %v1752, %v1804
    %v1806 = vpop.f32.mrf.mxu0
    %v1807 = vadd.f32 %v1754, %v1806
    %1808 = vmatprep.mubr.bf16.mxu0 0
    %1809 = vmatmul.mubr.bf16.gmra.mxu0 %v368
    %v1810 = vpop.f32.mrf.mxu0
    %v1811 = vadd.f32 %v1758, %v1810
    %v1812 = vpop.f32.mrf.mxu0
    %v1813 = vadd.f32 %v1760, %v1812
    %v1814 = vpop.f32.mrf.mxu0
    %v1815 = vadd.f32 %v1762, %v1814
    %v1816 = vpop.f32.mrf.mxu0
    %v1817 = vadd.f32 %v1764, %v1816
    %1818 = vdwg.mxu0
    %1819 = vmatprep.subr.bf16.mxu0 %v1347
    %1820 = vmatpush1.bf16.msra.mxu0 %v1346
    %1821 = vmatprep.subr.bf16.mxu0 %v1338
    %1822 = vmatpush1.bf16.msra.mxu0 %v1337
    %1823 = vmatprep.subr.bf16.mxu0 %v1329
    %1824 = vmatpush1.bf16.msra.mxu0 %v1328
    %1825 = vmatprep.subr.bf16.mxu0 %v1320
    %1826 = vmatpush1.bf16.msra.mxu0 %v1319
    %1827 = vmatprep.subr.bf16.mxu0 %v1311
    %1828 = vmatpush1.bf16.msra.mxu0 %v1310
    %1829 = vmatprep.subr.bf16.mxu0 %v1302
    %1830 = vmatpush1.bf16.msra.mxu0 %v1301
    %1831 = vmatprep.subr.bf16.mxu0 %v1293
    %1832 = vmatpush1.bf16.msra.mxu0 %v1292
    %1833 = vmatprep.subr.bf16.mxu0 %v1284
    %1834 = vmatpush1.bf16.msra.mxu0 %v1283
    %1835 = vmatprep.subr.bf16.mxu0 %v1419
    %1836 = vmatpush2.bf16.msra.mxu0 %v1418
    %1837 = vmatprep.subr.bf16.mxu0 %v1410
    %1838 = vmatpush2.bf16.msra.mxu0 %v1409
    %1839 = vmatprep.subr.bf16.mxu0 %v1401
    %1840 = vmatpush2.bf16.msra.mxu0 %v1400
    %1841 = vmatprep.subr.bf16.mxu0 %v1392
    %1842 = vmatpush2.bf16.msra.mxu0 %v1391
    %1843 = vmatprep.subr.bf16.mxu0 %v1383
    %1844 = vmatpush2.bf16.msra.mxu0 %v1382
    %1845 = vmatprep.subr.bf16.mxu0 %v1374
    %1846 = vmatpush2.bf16.msra.mxu0 %v1373
    %1847 = vmatprep.subr.bf16.mxu0 %v1365
    %1848 = vmatpush2.bf16.msra.mxu0 %v1364
    %1849 = vmatprep.subr.bf16.mxu0 %v1356
    %1850 = vmatpush2.bf16.msra.mxu0 %v1355
    %1851 = vmatprep.mubr.bf16.mxu0 %v364
    %1852 = vmatmul.mubr.bf16.gmra.mxu0 %v363
    %v1853 = vpop.f32.mrf.mxu0
    %v1854 = vadd.f32 0.0, %v1853
    %v1855 = vpop.f32.mrf.mxu0
    %v1856 = vadd.f32 0.0, %v1855
    %v1857 = vpop.f32.mrf.mxu0
    %v1858 = vadd.f32 0.0, %v1857
    %v1859 = vpop.f32.mrf.mxu0
    %v1860 = vadd.f32 0.0, %v1859
    %1861 = vmatprep.mubr.bf16.mxu0 %v367
    %1862 = vmatmul.mubr.bf16.gmra.mxu0 %v366
    %v1863 = vpop.f32.mrf.mxu0
    %v1864 = vadd.f32 0.0, %v1863
    %v1865 = vpop.f32.mrf.mxu0
    %v1866 = vadd.f32 0.0, %v1865
    %v1867 = vpop.f32.mrf.mxu0
    %v1868 = vadd.f32 0.0, %v1867
    %v1869 = vpop.f32.mrf.mxu0
    %v1870 = vadd.f32 0.0, %v1869
    %1871 = vdwg.mxu0
    %1872 = vmatprep.subr.bf16.mxu0 %v1491
    %1873 = vmatpush1.bf16.msra.mxu0 %v1490
    %1874 = vmatprep.subr.bf16.mxu0 %v1482
    %1875 = vmatpush1.bf16.msra.mxu0 %v1481
    %1876 = vmatprep.subr.bf16.mxu0 %v1473
    %1877 = vmatpush1.bf16.msra.mxu0 %v1472
    %1878 = vmatprep.subr.bf16.mxu0 %v1464
    %1879 = vmatpush1.bf16.msra.mxu0 %v1463
    %1880 = vmatprep.subr.bf16.mxu0 %v1455
    %1881 = vmatpush1.bf16.msra.mxu0 %v1454
    %1882 = vmatprep.subr.bf16.mxu0 %v1446
    %1883 = vmatpush1.bf16.msra.mxu0 %v1445
    %1884 = vmatprep.subr.bf16.mxu0 %v1437
    %1885 = vmatpush1.bf16.msra.mxu0 %v1436
    %1886 = vmatprep.subr.bf16.mxu0 %v1428
    %1887 = vmatpush1.bf16.msra.mxu0 %v1427
    %1888 = vmatprep.subr.bf16.mxu0 0
    %1889 = vmatpush2.bf16.msra.mxu0 0
    %1890 = vmatprep.subr.bf16.mxu0 0
    %1891 = vmatpush2.bf16.msra.mxu0 0
    %1892 = vmatprep.subr.bf16.mxu0 0
    %1893 = vmatpush2.bf16.msra.mxu0 0
    %1894 = vmatprep.subr.bf16.mxu0 0
    %1895 = vmatpush2.bf16.msra.mxu0 0
    %1896 = vmatprep.subr.bf16.mxu0 0
    %1897 = vmatpush2.bf16.msra.mxu0 0
    %1898 = vmatprep.subr.bf16.mxu0 0
    %1899 = vmatpush2.bf16.msra.mxu0 0
    %1900 = vmatprep.subr.bf16.mxu0 0
    %1901 = vmatpush2.bf16.msra.mxu0 0
    %1902 = vmatprep.subr.bf16.mxu0 0
    %1903 = vmatpush2.bf16.msra.mxu0 0
    %1904 = vmatprep.mubr.bf16.mxu0 0
    %1905 = vmatmul.mubr.bf16.gmra.mxu0 %v365
    %v1906 = vpop.f32.mrf.mxu0
    %v1907 = vadd.f32 %v1854, %v1906
    %v1908 = vpop.f32.mrf.mxu0
    %v1909 = vadd.f32 %v1856, %v1908
    %v1910 = vpop.f32.mrf.mxu0
    %v1911 = vadd.f32 %v1858, %v1910
    %v1912 = vpop.f32.mrf.mxu0
    %v1913 = vadd.f32 %v1860, %v1912
    %1914 = vmatprep.mubr.bf16.mxu0 0
    %1915 = vmatmul.mubr.bf16.gmra.mxu0 %v368
    %v1916 = vpop.f32.mrf.mxu0
    %v1917 = vadd.f32 %v1864, %v1916
    %v1918 = vpop.f32.mrf.mxu0
    %v1919 = vadd.f32 %v1866, %v1918
    %v1920 = vpop.f32.mrf.mxu0
    %v1921 = vadd.f32 %v1868, %v1920
    %v1922 = vpop.f32.mrf.mxu0
    %v1923 = vadd.f32 %v1870, %v1922
    %1924 = vdwg.mxu0
    %1925 = vmatprep.subr.bf16.mxu0 %v1349
    %1926 = vmatpush1.bf16.msra.mxu0 %v1348
    %1927 = vmatprep.subr.bf16.mxu0 %v1340
    %1928 = vmatpush1.bf16.msra.mxu0 %v1339
    %1929 = vmatprep.subr.bf16.mxu0 %v1331
    %1930 = vmatpush1.bf16.msra.mxu0 %v1330
    %1931 = vmatprep.subr.bf16.mxu0 %v1322
    %1932 = vmatpush1.bf16.msra.mxu0 %v1321
    %1933 = vmatprep.subr.bf16.mxu0 %v1313
    %1934 = vmatpush1.bf16.msra.mxu0 %v1312
    %1935 = vmatprep.subr.bf16.mxu0 %v1304
    %1936 = vmatpush1.bf16.msra.mxu0 %v1303
    %1937 = vmatprep.subr.bf16.mxu0 %v1295
    %1938 = vmatpush1.bf16.msra.mxu0 %v1294
    %1939 = vmatprep.subr.bf16.mxu0 %v1286
    %1940 = vmatpush1.bf16.msra.mxu0 %v1285
    %1941 = vmatprep.subr.bf16.mxu0 %v1421
    %1942 = vmatpush2.bf16.msra.mxu0 %v1420
    %1943 = vmatprep.subr.bf16.mxu0 %v1412
    %1944 = vmatpush2.bf16.msra.mxu0 %v1411
    %1945 = vmatprep.subr.bf16.mxu0 %v1403
    %1946 = vmatpush2.bf16.msra.mxu0 %v1402
    %1947 = vmatprep.subr.bf16.mxu0 %v1394
    %1948 = vmatpush2.bf16.msra.mxu0 %v1393
    %1949 = vmatprep.subr.bf16.mxu0 %v1385
    %1950 = vmatpush2.bf16.msra.mxu0 %v1384
    %1951 = vmatprep.subr.bf16.mxu0 %v1376
    %1952 = vmatpush2.bf16.msra.mxu0 %v1375
    %1953 = vmatprep.subr.bf16.mxu0 %v1367
    %1954 = vmatpush2.bf16.msra.mxu0 %v1366
    %1955 = vmatprep.subr.bf16.mxu0 %v1358
    %1956 = vmatpush2.bf16.msra.mxu0 %v1357
    %1957 = vmatprep.mubr.bf16.mxu0 %v364
    %1958 = vmatmul.mubr.bf16.gmra.mxu0 %v363
    %v1959 = vpop.f32.mrf.mxu0
    %v1960 = vadd.f32 0.0, %v1959
    %v1961 = vpop.f32.mrf.mxu0
    %v1962 = vadd.f32 0.0, %v1961
    %v1963 = vpop.f32.mrf.mxu0
    %v1964 = vadd.f32 0.0, %v1963
    %v1965 = vpop.f32.mrf.mxu0
    %v1966 = vadd.f32 0.0, %v1965
    %1967 = vmatprep.mubr.bf16.mxu0 %v367
    %1968 = vmatmul.mubr.bf16.gmra.mxu0 %v366
    %v1969 = vpop.f32.mrf.mxu0
    %v1970 = vadd.f32 0.0, %v1969
    %v1971 = vpop.f32.mrf.mxu0
    %v1972 = vadd.f32 0.0, %v1971
    %v1973 = vpop.f32.mrf.mxu0
    %v1974 = vadd.f32 0.0, %v1973
    %v1975 = vpop.f32.mrf.mxu0
    %v1976 = vadd.f32 0.0, %v1975
    %1977 = vdwg.mxu0
    %1978 = vmatprep.subr.bf16.mxu0 %v1493
    %1979 = vmatpush1.bf16.msra.mxu0 %v1492
    %1980 = vmatprep.subr.bf16.mxu0 %v1484
    %1981 = vmatpush1.bf16.msra.mxu0 %v1483
    %1982 = vmatprep.subr.bf16.mxu0 %v1475
    %1983 = vmatpush1.bf16.msra.mxu0 %v1474
    %1984 = vmatprep.subr.bf16.mxu0 %v1466
    %1985 = vmatpush1.bf16.msra.mxu0 %v1465
    %1986 = vmatprep.subr.bf16.mxu0 %v1457
    %1987 = vmatpush1.bf16.msra.mxu0 %v1456
    %1988 = vmatprep.subr.bf16.mxu0 %v1448
    %1989 = vmatpush1.bf16.msra.mxu0 %v1447
    %1990 = vmatprep.subr.bf16.mxu0 %v1439
    %1991 = vmatpush1.bf16.msra.mxu0 %v1438
    %1992 = vmatprep.subr.bf16.mxu0 %v1430
    %1993 = vmatpush1.bf16.msra.mxu0 %v1429
    %1994 = vmatprep.subr.bf16.mxu0 0
    %1995 = vmatpush2.bf16.msra.mxu0 0
    %1996 = vmatprep.subr.bf16.mxu0 0
    %1997 = vmatpush2.bf16.msra.mxu0 0
    %1998 = vmatprep.subr.bf16.mxu0 0
    %1999 = vmatpush2.bf16.msra.mxu0 0
    %2000 = vmatprep.subr.bf16.mxu0 0
    %2001 = vmatpush2.bf16.msra.mxu0 0
    %2002 = vmatprep.subr.bf16.mxu0 0
    %2003 = vmatpush2.bf16.msra.mxu0 0
    %2004 = vmatprep.subr.bf16.mxu0 0
    %2005 = vmatpush2.bf16.msra.mxu0 0
    %2006 = vmatprep.subr.bf16.mxu0 0
    %2007 = vmatpush2.bf16.msra.mxu0 0
    %2008 = vmatprep.subr.bf16.mxu0 0
    %2009 = vmatpush2.bf16.msra.mxu0 0
    %2010 = vmatprep.mubr.bf16.mxu0 0
    %2011 = vmatmul.mubr.bf16.gmra.mxu0 %v365
    %v2012 = vpop.f32.mrf.mxu0
    %v2013 = vadd.f32 %v1960, %v2012
    %v2014 = vpop.f32.mrf.mxu0
    %v2015 = vadd.f32 %v1962, %v2014
    %v2016 = vpop.f32.mrf.mxu0
    %v2017 = vadd.f32 %v1964, %v2016
    %v2018 = vpop.f32.mrf.mxu0
    %v2019 = vadd.f32 %v1966, %v2018
    %2020 = vmatprep.mubr.bf16.mxu0 0
    %2021 = vmatmul.mubr.bf16.gmra.mxu0 %v368
    %v2022 = vpop.f32.mrf.mxu0
    %v2023 = vadd.f32 %v1970, %v2022
    %v2024 = vpop.f32.mrf.mxu0
    %v2025 = vadd.f32 %v1972, %v2024
    %v2026 = vpop.f32.mrf.mxu0
    %v2027 = vadd.f32 %v1974, %v2026
    %v2028 = vpop.f32.mrf.mxu0
    %v2029 = vadd.f32 %v1976, %v2028
    %2030 = vdwg.mxu0
    %2031 = vmatprep.subr.bf16.mxu0 %v1351
    %2032 = vmatpush1.bf16.msra.mxu0 %v1350
    %2033 = vmatprep.subr.bf16.mxu0 %v1342
    %2034 = vmatpush1.bf16.msra.mxu0 %v1341
    %2035 = vmatprep.subr.bf16.mxu0 %v1333
    %2036 = vmatpush1.bf16.msra.mxu0 %v1332
    %2037 = vmatprep.subr.bf16.mxu0 %v1324
    %2038 = vmatpush1.bf16.msra.mxu0 %v1323
    %2039 = vmatprep.subr.bf16.mxu0 %v1315
    %2040 = vmatpush1.bf16.msra.mxu0 %v1314
    %2041 = vmatprep.subr.bf16.mxu0 %v1306
    %2042 = vmatpush1.bf16.msra.mxu0 %v1305
    %2043 = vmatprep.subr.bf16.mxu0 %v1297
    %2044 = vmatpush1.bf16.msra.mxu0 %v1296
    %2045 = vmatprep.subr.bf16.mxu0 %v1288
    %2046 = vmatpush1.bf16.msra.mxu0 %v1287
    %2047 = vmatprep.subr.bf16.mxu0 %v1423
    %2048 = vmatpush2.bf16.msra.mxu0 %v1422
    %2049 = vmatprep.subr.bf16.mxu0 %v1414
    %2050 = vmatpush2.bf16.msra.mxu0 %v1413
    %2051 = vmatprep.subr.bf16.mxu0 %v1405
    %2052 = vmatpush2.bf16.msra.mxu0 %v1404
    %2053 = vmatprep.subr.bf16.mxu0 %v1396
    %2054 = vmatpush2.bf16.msra.mxu0 %v1395
    %2055 = vmatprep.subr.bf16.mxu0 %v1387
    %2056 = vmatpush2.bf16.msra.mxu0 %v1386
    %2057 = vmatprep.subr.bf16.mxu0 %v1378
    %2058 = vmatpush2.bf16.msra.mxu0 %v1377
    %2059 = vmatprep.subr.bf16.mxu0 %v1369
    %2060 = vmatpush2.bf16.msra.mxu0 %v1368
    %2061 = vmatprep.subr.bf16.mxu0 %v1360
    %2062 = vmatpush2.bf16.msra.mxu0 %v1359
    %2063 = vmatprep.mubr.bf16.mxu0 %v364
    %2064 = vmatmul.mubr.bf16.gmra.mxu0 %v363
    %v2065 = vpop.f32.mrf.mxu0
    %v2066 = vadd.f32 0.0, %v2065
    %v2067 = vpop.f32.mrf.mxu0
    %v2068 = vadd.f32 0.0, %v2067
    %v2069 = vpop.f32.mrf.mxu0
    %v2070 = vadd.f32 0.0, %v2069
    %v2071 = vpop.f32.mrf.mxu0
    %v2072 = vadd.f32 0.0, %v2071
    %2073 = vmatprep.mubr.bf16.mxu0 %v367
    %2074 = vmatmul.mubr.bf16.gmra.mxu0 %v366
    %v2075 = vpop.f32.mrf.mxu0
    %v2076 = vadd.f32 0.0, %v2075
    %v2077 = vpop.f32.mrf.mxu0
    %v2078 = vadd.f32 0.0, %v2077
    %v2079 = vpop.f32.mrf.mxu0
    %v2080 = vadd.f32 0.0, %v2079
    %v2081 = vpop.f32.mrf.mxu0
    %v2082 = vadd.f32 0.0, %v2081
    %2083 = vdwg.mxu0
    %2084 = vmatprep.subr.bf16.mxu0 %v1495
    %2085 = vmatpush1.bf16.msra.mxu0 %v1494
    %2086 = vmatprep.subr.bf16.mxu0 %v1486
    %2087 = vmatpush1.bf16.msra.mxu0 %v1485
    %2088 = vmatprep.subr.bf16.mxu0 %v1477
    %2089 = vmatpush1.bf16.msra.mxu0 %v1476
    %2090 = vmatprep.subr.bf16.mxu0 %v1468
    %2091 = vmatpush1.bf16.msra.mxu0 %v1467
    %2092 = vmatprep.subr.bf16.mxu0 %v1459
    %2093 = vmatpush1.bf16.msra.mxu0 %v1458
    %2094 = vmatprep.subr.bf16.mxu0 %v1450
    %2095 = vmatpush1.bf16.msra.mxu0 %v1449
    %2096 = vmatprep.subr.bf16.mxu0 %v1441
    %2097 = vmatpush1.bf16.msra.mxu0 %v1440
    %2098 = vmatprep.subr.bf16.mxu0 %v1432
    %2099 = vmatpush1.bf16.msra.mxu0 %v1431
    %2100 = vmatprep.subr.bf16.mxu0 0
    %2101 = vmatpush2.bf16.msra.mxu0 0
    %2102 = vmatprep.subr.bf16.mxu0 0
    %2103 = vmatpush2.bf16.msra.mxu0 0
    %2104 = vmatprep.subr.bf16.mxu0 0
    %2105 = vmatpush2.bf16.msra.mxu0 0
    %2106 = vmatprep.subr.bf16.mxu0 0
    %2107 = vmatpush2.bf16.msra.mxu0 0
    %2108 = vmatprep.subr.bf16.mxu0 0
    %2109 = vmatpush2.bf16.msra.mxu0 0
    %2110 = vmatprep.subr.bf16.mxu0 0
    %2111 = vmatpush2.bf16.msra.mxu0 0
    %2112 = vmatprep.subr.bf16.mxu0 0
    %2113 = vmatpush2.bf16.msra.mxu0 0
    %2114 = vmatprep.subr.bf16.mxu0 0
    %2115 = vmatpush2.bf16.msra.mxu0 0
    %2116 = vmatprep.mubr.bf16.mxu0 0
    %2117 = vmatmul.mubr.bf16.gmra.mxu0 %v365
    %v2118 = vpop.f32.mrf.mxu0
    %v2119 = vadd.f32 %v2066, %v2118
    %v2120 = vpop.f32.mrf.mxu0
    %v2121 = vadd.f32 %v2068, %v2120
    %v2122 = vpop.f32.mrf.mxu0
    %v2123 = vadd.f32 %v2070, %v2122
    %v2124 = vpop.f32.mrf.mxu0
    %v2125 = vadd.f32 %v2072, %v2124
    %2126 = vmatprep.mubr.bf16.mxu0 0
    %2127 = vmatmul.mubr.bf16.gmra.mxu0 %v368
    %v2128 = vpop.f32.mrf.mxu0
    %v2129 = vadd.f32 %v2076, %v2128
    %v2130 = vpop.f32.mrf.mxu0
    %v2131 = vadd.f32 %v2078, %v2130
    %v2132 = vpop.f32.mrf.mxu0
    %v2133 = vadd.f32 %v2080, %v2132
    %v2134 = vpop.f32.mrf.mxu0
    %v2135 = vadd.f32 %v2082, %v2134
    %2136 = vdwg.mxu0
    %2137 = vmatprep.subr.bf16.mxu0 0
    %2138 = vmatpush1.bf16.msra.mxu0 %v1352
    %2139 = vmatprep.subr.bf16.mxu0 0
    %2140 = vmatpush1.bf16.msra.mxu0 %v1343
    %2141 = vmatprep.subr.bf16.mxu0 0
    %2142 = vmatpush1.bf16.msra.mxu0 %v1334
    %2143 = vmatprep.subr.bf16.mxu0 0
    %2144 = vmatpush1.bf16.msra.mxu0 %v1325
    %2145 = vmatprep.subr.bf16.mxu0 0
    %2146 = vmatpush1.bf16.msra.mxu0 %v1316
    %2147 = vmatprep.subr.bf16.mxu0 0
    %2148 = vmatpush1.bf16.msra.mxu0 %v1307
    %2149 = vmatprep.subr.bf16.mxu0 0
    %2150 = vmatpush1.bf16.msra.mxu0 %v1298
    %2151 = vmatprep.subr.bf16.mxu0 0
    %2152 = vmatpush1.bf16.msra.mxu0 %v1289
    %2153 = vmatprep.subr.bf16.mxu0 0
    %2154 = vmatpush2.bf16.msra.mxu0 %v1424
    %2155 = vmatprep.subr.bf16.mxu0 0
    %2156 = vmatpush2.bf16.msra.mxu0 %v1415
    %2157 = vmatprep.subr.bf16.mxu0 0
    %2158 = vmatpush2.bf16.msra.mxu0 %v1406
    %2159 = vmatprep.subr.bf16.mxu0 0
    %2160 = vmatpush2.bf16.msra.mxu0 %v1397
    %2161 = vmatprep.subr.bf16.mxu0 0
    %2162 = vmatpush2.bf16.msra.mxu0 %v1388
    %2163 = vmatprep.subr.bf16.mxu0 0
    %2164 = vmatpush2.bf16.msra.mxu0 %v1379
    %2165 = vmatprep.subr.bf16.mxu0 0
    %2166 = vmatpush2.bf16.msra.mxu0 %v1370
    %2167 = vmatprep.subr.bf16.mxu0 0
    %2168 = vmatpush2.bf16.msra.mxu0 %v1361
    %2169 = vmatprep.mubr.bf16.mxu0 %v364
    %2170 = vmatmul.mubr.bf16.gmra.mxu0 %v363
    %v2171 = vpop.f32.mrf.mxu0
    %v2172 = vadd.f32 0.0, %v2171
    %v2173 = vpop.f32.mrf.mxu0
    %v2174 = vpop.f32.mrf.mxu0
    %v2175 = vadd.f32 0.0, %v2174
    %v2176 = vpop.f32.mrf.mxu0
    %2177 = vmatprep.mubr.bf16.mxu0 %v367
    %2178 = vmatmul.mubr.bf16.gmra.mxu0 %v366
    %v2179 = vpop.f32.mrf.mxu0
    %v2180 = vadd.f32 0.0, %v2179
    %v2181 = vpop.f32.mrf.mxu0
    %v2182 = vpop.f32.mrf.mxu0
    %v2183 = vadd.f32 0.0, %v2182
    %v2184 = vpop.f32.mrf.mxu0
    %2185 = vdwg.mxu0
    %2186 = vmatprep.subr.bf16.mxu0 0
    %2187 = vmatpush1.bf16.msra.mxu0 %v1496
    %2188 = vmatprep.subr.bf16.mxu0 0
    %2189 = vmatpush1.bf16.msra.mxu0 %v1487
    %2190 = vmatprep.subr.bf16.mxu0 0
    %2191 = vmatpush1.bf16.msra.mxu0 %v1478
    %2192 = vmatprep.subr.bf16.mxu0 0
    %2193 = vmatpush1.bf16.msra.mxu0 %v1469
    %2194 = vmatprep.subr.bf16.mxu0 0
    %2195 = vmatpush1.bf16.msra.mxu0 %v1460
    %2196 = vmatprep.subr.bf16.mxu0 0
    %2197 = vmatpush1.bf16.msra.mxu0 %v1451
    %2198 = vmatprep.subr.bf16.mxu0 0
    %2199 = vmatpush1.bf16.msra.mxu0 %v1442
    %2200 = vmatprep.subr.bf16.mxu0 0
    %2201 = vmatpush1.bf16.msra.mxu0 %v1433
    %2202 = vmatprep.subr.bf16.mxu0 0
    %2203 = vmatpush2.bf16.msra.mxu0 0
    %2204 = vmatprep.subr.bf16.mxu0 0
    %2205 = vmatpush2.bf16.msra.mxu0 0
    %2206 = vmatprep.subr.bf16.mxu0 0
    %2207 = vmatpush2.bf16.msra.mxu0 0
    %2208 = vmatprep.subr.bf16.mxu0 0
    %2209 = vmatpush2.bf16.msra.mxu0 0
    %2210 = vmatprep.subr.bf16.mxu0 0
    %2211 = vmatpush2.bf16.msra.mxu0 0
    %2212 = vmatprep.subr.bf16.mxu0 0
    %2213 = vmatpush2.bf16.msra.mxu0 0
    %2214 = vmatprep.subr.bf16.mxu0 0
    %2215 = vmatpush2.bf16.msra.mxu0 0
    %2216 = vmatprep.subr.bf16.mxu0 0
    %2217 = vmatpush2.bf16.msra.mxu0 0
    %2218 = vmatprep.mubr.bf16.mxu0 0
    %2219 = vmatmul.mubr.bf16.gmra.mxu0 %v365
    %v2220 = vpop.f32.mrf.mxu0
    %v2221 = vadd.f32 %v2172, %v2220
    %v2222 = vpop.f32.mrf.mxu0
    %v2223 = vpop.f32.mrf.mxu0
    %v2224 = vadd.f32 %v2175, %v2223
    %v2225 = vpop.f32.mrf.mxu0
    %2226 = vmatprep.mubr.bf16.mxu0 0
    %2227 = vmatmul.mubr.bf16.gmra.mxu0 %v368
    %v2228 = vpop.f32.mrf.mxu0
    %v2229 = vadd.f32 %v2180, %v2228
    %v2230 = vpop.f32.mrf.mxu0
    %v2231 = vpop.f32.mrf.mxu0
    %v2232 = vadd.f32 %v2183, %v2231
    %v2233 = vpop.f32.mrf.mxu0
    %2234 = vdwg.mxu0
    %v2235 = vlaneseq
    %v2236 = vand.u32 %v2235, 127
    %vm2237 = vcmp.lt.s32.totalorder %v2236, 64
    %v2238 = vsel %vm2237, 1, 0
    %v2239 = vcvt.s32.f32 %v2238
    %v2240 = vsub.f32 1.0, %v2239
    %v2241 = vld [vmem:[#allocation5] sm:$0xff]
    %v2242 = vld [vmem:[#allocation5 + $0x8] sm:$0xff]
    %v2243 = vld [vmem:[#allocation5 + $0x10] sm:$0xff]
    %v2244 = vld [vmem:[#allocation5 + $0x18] sm:$0xff]
    %v2245 = vld [vmem:[#allocation5 + $0x20] sm:$0xff]
    %v2246 = vld [vmem:[#allocation5 + $0x28] sm:$0xff]
    %v2247 = vld [vmem:[#allocation5 + $0x30] sm:$0xff]
    %v2248 = vld [vmem:[#allocation5 + $0x38] sm:$0xff]
    %v2249 = vld [vmem:[#allocation5 + $0x40] sm:$0xff]
    %v2250 = vld [vmem:[#allocation5 + $0x48] sm:$0xff]
    %v2251 = vld [vmem:[#allocation5 + $0x50] sm:$0xff]
    %v2252 = vld [vmem:[#allocation5 + $0x58] sm:$0xff]
    %v2253 = vmul.f32 %v1801, %v2239
    %v2254 = vmul.f32 %v1805, %v2239
    %v2255 = vmul.f32 %v1811, %v2239
    %v2256 = vmul.f32 %v1815, %v2239
    %v2257 = vmul.f32 %v1803, %v2239
    %v2258 = vmul.f32 %v1807, %v2239
    %v2259 = vmul.f32 %v1813, %v2239
    %v2260 = vmul.f32 %v1817, %v2239
    %v2261 = vmul.f32 %v1907, %v2239
    %v2262 = vmul.f32 %v1911, %v2239
    %v2263 = vmul.f32 %v1917, %v2239
    %v2264 = vmul.f32 %v1921, %v2239
    %2265 = vmatprep.subr.mxu0 0.0
    %2266 = vmatpush1.xpose.msra.mxu0 0.0
    %2267 = vmatprep.subr.mxu0 0.0
    %2268 = vmatpush1.xpose.msra.mxu0 0.0
    %2269 = vmatprep.subr.mxu0 0.0
    %2270 = vmatpush1.xpose.msra.mxu0 0.0
    %2271 = vmatprep.subr.mxu0 0.0
    %2272 = vmatpush1.xpose.msra.mxu0 0.0
    %2273 = vmatprep.subr.mxu0 0.0
    %2274 = vmatpush1.xpose.msra.mxu0 %v2029
    %2275 = vmatprep.subr.mxu0 0.0
    %2276 = vmatpush1.xpose.msra.mxu0 %v2025
    %2277 = vmatprep.subr.mxu0 0.0
    %2278 = vmatpush1.xpose.msra.mxu0 %v2019
    %2279 = vmatprep.subr.mxu0 0.0
    %2280 = vmatpush1.xpose.msra.mxu0 %v2015
    %2281 = vmatprep.subr.mxu0 0.0
    %2282 = vmatpush1.xpose.msra.mxu0 %v2027
    %2283 = vmatprep.subr.mxu0 0.0
    %2284 = vmatpush1.xpose.msra.mxu0 %v2023
    %2285 = vmatprep.subr.mxu0 0.0
    %2286 = vmatpush1.xpose.msra.mxu0 %v2017
    %2287 = vmatprep.subr.mxu0 0.0
    %2288 = vmatpush1.xpose.msra.mxu0 %v2013
    %2289 = vmatprep.subr.mxu0 0.0
    %2290 = vmatpush1.xpose.msra.mxu0 %v1923
    %2291 = vmatprep.subr.mxu0 0.0
    %2292 = vmatpush1.xpose.msra.mxu0 %v1919
    %2293 = vmatprep.subr.mxu0 0.0
    %2294 = vmatpush1.xpose.msra.mxu0 %v1913
    %2295 = vmatprep.subr.mxu0 0.0
    %2296 = vmatpush1.xpose.msra.mxu0 %v1909
    %2297 = vmatprep.subr.mxu0 0.0
    %2298 = vmatpush2.xpose.msra.mxu0 0.0
    %2299 = vmatprep.subr.mxu0 0.0
    %2300 = vmatpush2.xpose.msra.mxu0 0.0
    %2301 = vmatprep.subr.mxu0 0.0
    %2302 = vmatpush2.xpose.msra.mxu0 0.0
    %2303 = vmatprep.subr.mxu0 0.0
    %2304 = vmatpush2.xpose.msra.mxu0 0.0
    %2305 = vmatprep.subr.mxu0 0.0
    %2306 = vmatpush2.xpose.msra.mxu0 0.0
    %2307 = vmatprep.subr.mxu0 0.0
    %2308 = vmatpush2.xpose.msra.mxu0 0.0
    %2309 = vmatprep.subr.mxu0 0.0
    %2310 = vmatpush2.xpose.msra.mxu0 0.0
    %2311 = vmatprep.subr.mxu0 0.0
    %2312 = vmatpush2.xpose.msra.mxu0 0.0
    %2313 = vmatprep.subr.mxu0 0.0
    %2314 = vmatpush2.xpose.msra.mxu0 0.0
    %2315 = vmatprep.subr.mxu0 0.0
    %2316 = vmatpush2.xpose.msra.mxu0 0.0
    %2317 = vmatprep.subr.mxu0 0.0
    %2318 = vmatpush2.xpose.msra.mxu0 0.0
    %2319 = vmatprep.subr.mxu0 0.0
    %2320 = vmatpush2.xpose.msra.mxu0 0.0
    %2321 = vmatprep.subr.mxu0 0.0
    %2322 = vmatpush2.xpose.msra.mxu0 0.0
    %2323 = vmatprep.subr.mxu0 0.0
    %2324 = vmatpush2.xpose.msra.mxu0 0.0
    %2325 = vmatprep.subr.mxu0 0.0
    %2326 = vmatpush2.xpose.msra.mxu0 0.0
    %2327 = vmatprep.subr.mxu0 0.0
    %2328 = vmatpush2.xpose.msra.mxu0 0.0
    %2329 = vmatprep.mubr.f32.mxu0 0.0
    %2330 = vmatmul.mubr.f32.gmra.mxu0 %v2253
    %v2331 = vpop.f32.mrf.mxu0
    %v2332 = vadd.f32 0.0, %v2331
    %v2333 = vpop.f32.mrf.mxu0
    %2334 = vmatprep.mubr.f32.mxu0 0.0
    %2335 = vmatmul.mubr.f32.gmra.mxu0 %v2254
    %v2336 = vpop.f32.mrf.mxu0
    %v2337 = vadd.f32 0.0, %v2336
    %v2338 = vpop.f32.mrf.mxu0
    %2339 = vmatprep.mubr.f32.mxu0 0.0
    %2340 = vmatmul.mubr.f32.gmra.mxu0 %v2255
    %v2341 = vpop.f32.mrf.mxu0
    %v2342 = vadd.f32 0.0, %v2341
    %v2343 = vpop.f32.mrf.mxu0
    %2344 = vmatprep.mubr.f32.mxu0 0.0
    %2345 = vmatmul.mubr.f32.gmra.mxu0 %v2256
    %v2346 = vpop.f32.mrf.mxu0
    %v2347 = vadd.f32 0.0, %v2346
    %v2348 = vpop.f32.mrf.mxu0
    %2349 = vmatprep.mubr.f32.mxu0 0.0
    %2350 = vmatmul.mubr.f32.gmra.mxu0 %v2257
    %v2351 = vpop.f32.mrf.mxu0
    %v2352 = vadd.f32 0.0, %v2351
    %v2353 = vpop.f32.mrf.mxu0
    %2354 = vmatprep.mubr.f32.mxu0 0.0
    %2355 = vmatmul.mubr.f32.gmra.mxu0 %v2258
    %v2356 = vpop.f32.mrf.mxu0
    %v2357 = vadd.f32 0.0, %v2356
    %v2358 = vpop.f32.mrf.mxu0
    %2359 = vmatprep.mubr.f32.mxu0 0.0
    %2360 = vmatmul.mubr.f32.gmra.mxu0 %v2259
    %v2361 = vpop.f32.mrf.mxu0
    %v2362 = vadd.f32 0.0, %v2361
    %v2363 = vpop.f32.mrf.mxu0
    %2364 = vmatprep.mubr.f32.mxu0 0.0
    %2365 = vmatmul.mubr.f32.gmra.mxu0 %v2260
    %v2366 = vpop.f32.mrf.mxu0
    %v2367 = vadd.f32 0.0, %v2366
    %v2368 = vpop.f32.mrf.mxu0
    %2369 = vmatprep.mubr.f32.mxu0 0.0
    %2370 = vmatmul.mubr.f32.gmra.mxu0 %v2261
    %v2371 = vpop.f32.mrf.mxu0
    %v2372 = vadd.f32 0.0, %v2371
    %v2373 = vpop.f32.mrf.mxu0
    %2374 = vmatprep.mubr.f32.mxu0 0.0
    %2375 = vmatmul.mubr.f32.gmra.mxu0 %v2262
    %v2376 = vpop.f32.mrf.mxu0
    %v2377 = vadd.f32 0.0, %v2376
    %v2378 = vpop.f32.mrf.mxu0
    %2379 = vmatprep.mubr.f32.mxu0 0.0
    %2380 = vmatmul.mubr.f32.gmra.mxu0 %v2263
    %v2381 = vpop.f32.mrf.mxu0
    %v2382 = vadd.f32 0.0, %v2381
    %v2383 = vpop.f32.mrf.mxu0
    %2384 = vmatprep.mubr.f32.mxu0 0.0
    %2385 = vmatmul.mubr.f32.gmra.mxu0 %v2264
    %v2386 = vpop.f32.mrf.mxu0
    %v2387 = vadd.f32 0.0, %v2386
    %v2388 = vpop.f32.mrf.mxu0
    %2389 = vdwg.mxu0
    %v2390 = vmul.f32 %v2332, 0.125
    %v2391 = vmul.f32 %v2337, 0.125
    %v2392 = vmul.f32 %v2342, 0.125
    %v2393 = vmul.f32 %v2347, 0.125
    %v2394 = vmul.f32 %v2352, 0.125
    %v2395 = vmul.f32 %v2357, 0.125
    %v2396 = vmul.f32 %v2362, 0.125
    %v2397 = vmul.f32 %v2367, 0.125
    %v2398 = vmul.f32 %v2372, 0.125
    %v2399 = vmul.f32 %v2377, 0.125
    %v2400 = vmul.f32 %v2382, 0.125
    %v2401 = vmul.f32 %v2387, 0.125
    %v2402 = vadd.f32 %v2390, %v2241
    %v2403 = vadd.f32 %v2391, %v2242
    %v2404 = vadd.f32 %v2392, %v2243
    %v2405 = vadd.f32 %v2393, %v2244
    %v2406 = vadd.f32 %v2394, %v2245
    %v2407 = vadd.f32 %v2395, %v2246
    %v2408 = vadd.f32 %v2396, %v2247
    %v2409 = vadd.f32 %v2397, %v2248
    %v2410 = vadd.f32 %v2398, %v2249
    %v2411 = vadd.f32 %v2399, %v2250
    %v2412 = vadd.f32 %v2400, %v2251
    %v2413 = vadd.f32 %v2401, %v2252
    %vm2414 = vcmask 785408
    %v2415 = vsel %vm2414, %v2402, -inf
    %2416 = vmax.xlane.f32.xlu0 %v2415
    %v2417 = vpop.xlane.xlu0 %2416
    %v2418 = vsel %vm2414, %v2403, -inf
    %2419 = vmax.xlane.f32.xlu0 %v2418
    %v2420 = vpop.xlane.xlu0 %2419
    %v2421 = vsel %vm2414, %v2404, -inf
    %2422 = vmax.xlane.f32.xlu0 %v2421
    %v2423 = vpop.xlane.xlu0 %2422
    %v2424 = vsel %vm2414, %v2405, -inf
    %2425 = vmax.xlane.f32.xlu0 %v2424
    %v2426 = vpop.xlane.xlu0 %2425
    %v2427 = vsel %vm2414, %v2406, -inf
    %2428 = vmax.xlane.f32.xlu0 %v2427
    %v2429 = vpop.xlane.xlu0 %2428
    %v2430 = vsel %vm2414, %v2407, -inf
    %2431 = vmax.xlane.f32.xlu0 %v2430
    %v2432 = vpop.xlane.xlu0 %2431
    %v2433 = vsel %vm2414, %v2408, -inf
    %2434 = vmax.xlane.f32.xlu0 %v2433
    %v2435 = vpop.xlane.xlu0 %2434
    %v2436 = vsel %vm2414, %v2409, -inf
    %2437 = vmax.xlane.f32.xlu0 %v2436
    %v2438 = vpop.xlane.xlu0 %2437
    %v2439 = vsel %vm2414, %v2410, -inf
    %2440 = vmax.xlane.f32.xlu0 %v2439
    %v2441 = vpop.xlane.xlu0 %2440
    %v2442 = vsel %vm2414, %v2411, -inf
    %2443 = vmax.xlane.f32.xlu0 %v2442
    %v2444 = vpop.xlane.xlu0 %2443
    %v2445 = vsel %vm2414, %v2412, -inf
    %2446 = vmax.xlane.f32.xlu0 %v2445
    %v2447 = vpop.xlane.xlu0 %2446
    %v2448 = vsel %vm2414, %v2413, -inf
    %2449 = vmax.xlane.f32.xlu0 %v2448
    %v2450 = vpop.xlane.xlu0 %2449
    %v2451 = vsub.f32 %v2402, %v2417
    %v2452 = vsub.f32 %v2403, %v2420
    %v2453 = vsub.f32 %v2404, %v2423
    %v2454 = vsub.f32 %v2405, %v2426
    %v2455 = vsub.f32 %v2406, %v2429
    %v2456 = vsub.f32 %v2407, %v2432
    %v2457 = vsub.f32 %v2408, %v2435
    %v2458 = vsub.f32 %v2409, %v2438
    %v2459 = vsub.f32 %v2410, %v2441
    %v2460 = vsub.f32 %v2411, %v2444
    %v2461 = vsub.f32 %v2412, %v2447
    %v2462 = vsub.f32 %v2413, %v2450
    %v2463 = vmul.f32 %v2451, 1.442695
    %v2464 = vpow.pop %v2463
    %v2465 = vmul.f32 %v2452, 1.442695
    %v2466 = vpow.pop %v2465
    %v2467 = vmul.f32 %v2453, 1.442695
    %v2468 = vpow.pop %v2467
    %v2469 = vmul.f32 %v2454, 1.442695
    %v2470 = vpow.pop %v2469
    %v2471 = vmul.f32 %v2455, 1.442695
    %v2472 = vpow.pop %v2471
    %v2473 = vmul.f32 %v2456, 1.442695
    %v2474 = vpow.pop %v2473
    %v2475 = vmul.f32 %v2457, 1.442695
    %v2476 = vpow.pop %v2475
    %v2477 = vmul.f32 %v2458, 1.442695
    %v2478 = vpow.pop %v2477
    %v2479 = vmul.f32 %v2459, 1.442695
    %v2480 = vpow.pop %v2479
    %v2481 = vmul.f32 %v2460, 1.442695
    %v2482 = vpow.pop %v2481
    %v2483 = vmul.f32 %v2461, 1.442695
    %v2484 = vpow.pop %v2483
    %v2485 = vmul.f32 %v2462, 1.442695
    %v2486 = vpow.pop %v2485
    %v2487 = vsel %vm2414, %v2464, 0.0
    %2488 = vadd.xlane.f32.xlu0 %v2487
    %v2489 = vpop.xlane.xlu0 %2488
    %v2490 = vsel %vm2414, %v2466, 0.0
    %2491 = vadd.xlane.f32.xlu0 %v2490
    %v2492 = vpop.xlane.xlu0 %2491
    %v2493 = vsel %vm2414, %v2468, 0.0
    %2494 = vadd.xlane.f32.xlu0 %v2493
    %v2495 = vpop.xlane.xlu0 %2494
    %v2496 = vsel %vm2414, %v2470, 0.0
    %2497 = vadd.xlane.f32.xlu0 %v2496
    %v2498 = vpop.xlane.xlu0 %2497
    %v2499 = vsel %vm2414, %v2472, 0.0
    %2500 = vadd.xlane.f32.xlu0 %v2499
    %v2501 = vpop.xlane.xlu0 %2500
    %v2502 = vsel %vm2414, %v2474, 0.0
    %2503 = vadd.xlane.f32.xlu0 %v2502
    %v2504 = vpop.xlane.xlu0 %2503
    %v2505 = vsel %vm2414, %v2476, 0.0
    %2506 = vadd.xlane.f32.xlu0 %v2505
    %v2507 = vpop.xlane.xlu0 %2506
    %v2508 = vsel %vm2414, %v2478, 0.0
    %2509 = vadd.xlane.f32.xlu0 %v2508
    %v2510 = vpop.xlane.xlu0 %2509
    %v2511 = vsel %vm2414, %v2480, 0.0
    %2512 = vadd.xlane.f32.xlu0 %v2511
    %v2513 = vpop.xlane.xlu0 %2512
    %v2514 = vsel %vm2414, %v2482, 0.0
    %2515 = vadd.xlane.f32.xlu0 %v2514
    %v2516 = vpop.xlane.xlu0 %2515
    %v2517 = vsel %vm2414, %v2484, 0.0
    %2518 = vadd.xlane.f32.xlu0 %v2517
    %v2519 = vpop.xlane.xlu0 %2518
    %v2520 = vsel %vm2414, %v2486, 0.0
    %2521 = vadd.xlane.f32.xlu0 %v2520
    %v2522 = vpop.xlane.xlu0 %2521
    %v2523 = vrcp.pop %v2489
    %v2524 = vrcp.pop %v2492
    %v2525 = vrcp.pop %v2495
    %v2526 = vrcp.pop %v2498
    %v2527 = vrcp.pop %v2501
    %v2528 = vrcp.pop %v2504
    %v2529 = vrcp.pop %v2507
    %v2530 = vrcp.pop %v2510
    %v2531 = vrcp.pop %v2513
    %v2532 = vrcp.pop %v2516
    %v2533 = vrcp.pop %v2519
    %v2534 = vrcp.pop %v2522
    %v2535 = vmul.f32 %v2464, %v2523
    %v2536 = vmul.f32 %v2466, %v2524
    %v2537 = vmul.f32 %v2468, %v2525
    %v2538 = vmul.f32 %v2470, %v2526
    %v2539 = vmul.f32 %v2472, %v2527
    %v2540 = vmul.f32 %v2474, %v2528
    %v2541 = vmul.f32 %v2476, %v2529
    %v2542 = vmul.f32 %v2478, %v2530
    %v2543 = vmul.f32 %v2480, %v2531
    %v2544 = vmul.f32 %v2482, %v2532
    %v2545 = vmul.f32 %v2484, %v2533
    %v2546 = vmul.f32 %v2486, %v2534
    %v2547 = vmul.f32 %v2119, %v2239
    %v2548 = vmul.f32 %v2123, %v2239
    %v2549 = vmul.f32 %v2129, %v2239
    %v2550 = vmul.f32 %v2133, %v2239
    %v2551 = vmul.f32 %v2121, %v2239
    %v2552 = vmul.f32 %v2125, %v2239
    %v2553 = vmul.f32 %v2131, %v2239
    %v2554 = vmul.f32 %v2135, %v2239
    %v2555 = vmul.f32 %v2221, %v2239
    %v2556 = vmul.f32 %v2224, %v2239
    %v2557 = vmul.f32 %v2229, %v2239
    %v2558 = vmul.f32 %v2232, %v2239
    %v2559 = vmul.f32 %v1801, %v2240
    %v2560 = vmul.f32 %v1805, %v2240
    %v2561 = vmul.f32 %v1811, %v2240
    %v2562 = vmul.f32 %v1815, %v2240
    %v2563 = vmul.f32 %v1803, %v2240
    %v2564 = vmul.f32 %v1807, %v2240
    %v2565 = vmul.f32 %v1813, %v2240
    %v2566 = vmul.f32 %v1817, %v2240
    %v2567 = vmul.f32 %v1907, %v2240
    %v2568 = vmul.f32 %v1911, %v2240
    %v2569 = vmul.f32 %v1917, %v2240
    %v2570 = vmul.f32 %v1921, %v2240
    %2571 = vmatprep.subr.mxu0 0.0
    %2572 = vmatpush1.xpose.msra.mxu0 0.0
    %2573 = vmatprep.subr.mxu0 0.0
    %2574 = vmatpush1.xpose.msra.mxu0 0.0
    %2575 = vmatprep.subr.mxu0 0.0
    %2576 = vmatpush1.xpose.msra.mxu0 0.0
    %2577 = vmatprep.subr.mxu0 0.0
    %2578 = vmatpush1.xpose.msra.mxu0 0.0
    %2579 = vmatprep.subr.mxu0 0.0
    %2580 = vmatpush1.xpose.msra.mxu0 %v2029
    %2581 = vmatprep.subr.mxu0 0.0
    %2582 = vmatpush1.xpose.msra.mxu0 %v2025
    %2583 = vmatprep.subr.mxu0 0.0
    %2584 = vmatpush1.xpose.msra.mxu0 %v2019
    %2585 = vmatprep.subr.mxu0 0.0
    %2586 = vmatpush1.xpose.msra.mxu0 %v2015
    %2587 = vmatprep.subr.mxu0 0.0
    %2588 = vmatpush1.xpose.msra.mxu0 %v2027
    %2589 = vmatprep.subr.mxu0 0.0
    %2590 = vmatpush1.xpose.msra.mxu0 %v2023
    %2591 = vmatprep.subr.mxu0 0.0
    %2592 = vmatpush1.xpose.msra.mxu0 %v2017
    %2593 = vmatprep.subr.mxu0 0.0
    %2594 = vmatpush1.xpose.msra.mxu0 %v2013
    %2595 = vmatprep.subr.mxu0 0.0
    %2596 = vmatpush1.xpose.msra.mxu0 %v1923
    %2597 = vmatprep.subr.mxu0 0.0
    %2598 = vmatpush1.xpose.msra.mxu0 %v1919
    %2599 = vmatprep.subr.mxu0 0.0
    %2600 = vmatpush1.xpose.msra.mxu0 %v1913
    %2601 = vmatprep.subr.mxu0 0.0
    %2602 = vmatpush1.xpose.msra.mxu0 %v1909
    %2603 = vmatprep.subr.mxu0 0.0
    %2604 = vmatpush2.xpose.msra.mxu0 0.0
    %2605 = vmatprep.subr.mxu0 0.0
    %2606 = vmatpush2.xpose.msra.mxu0 0.0
    %2607 = vmatprep.subr.mxu0 0.0
    %2608 = vmatpush2.xpose.msra.mxu0 0.0
    %2609 = vmatprep.subr.mxu0 0.0
    %2610 = vmatpush2.xpose.msra.mxu0 0.0
    %2611 = vmatprep.subr.mxu0 0.0
    %2612 = vmatpush2.xpose.msra.mxu0 0.0
    %2613 = vmatprep.subr.mxu0 0.0
    %2614 = vmatpush2.xpose.msra.mxu0 0.0
    %2615 = vmatprep.subr.mxu0 0.0
    %2616 = vmatpush2.xpose.msra.mxu0 0.0
    %2617 = vmatprep.subr.mxu0 0.0
    %2618 = vmatpush2.xpose.msra.mxu0 0.0
    %2619 = vmatprep.subr.mxu0 0.0
    %2620 = vmatpush2.xpose.msra.mxu0 0.0
    %2621 = vmatprep.subr.mxu0 0.0
    %2622 = vmatpush2.xpose.msra.mxu0 0.0
    %2623 = vmatprep.subr.mxu0 0.0
    %2624 = vmatpush2.xpose.msra.mxu0 0.0
    %2625 = vmatprep.subr.mxu0 0.0
    %2626 = vmatpush2.xpose.msra.mxu0 0.0
    %2627 = vmatprep.subr.mxu0 0.0
    %2628 = vmatpush2.xpose.msra.mxu0 0.0
    %2629 = vmatprep.subr.mxu0 0.0
    %2630 = vmatpush2.xpose.msra.mxu0 0.0
    %2631 = vmatprep.subr.mxu0 0.0
    %2632 = vmatpush2.xpose.msra.mxu0 0.0
    %2633 = vmatprep.subr.mxu0 0.0
    %2634 = vmatpush2.xpose.msra.mxu0 0.0
    %2635 = vmatprep.mubr.f32.mxu0 0.0
    %2636 = vmatmul.mubr.f32.gmra.mxu0 %v2559
    %v2637 = vpop.f32.mrf.mxu0
    %v2638 = vadd.f32 0.0, %v2637
    %v2639 = vpop.f32.mrf.mxu0
    %2640 = vmatprep.mubr.f32.mxu0 0.0
    %2641 = vmatmul.mubr.f32.gmra.mxu0 %v2560
    %v2642 = vpop.f32.mrf.mxu0
    %v2643 = vadd.f32 0.0, %v2642
    %v2644 = vpop.f32.mrf.mxu0
    %2645 = vmatprep.mubr.f32.mxu0 0.0
    %2646 = vmatmul.mubr.f32.gmra.mxu0 %v2561
    %v2647 = vpop.f32.mrf.mxu0
    %v2648 = vadd.f32 0.0, %v2647
    %v2649 = vpop.f32.mrf.mxu0
    %2650 = vmatprep.mubr.f32.mxu0 0.0
    %2651 = vmatmul.mubr.f32.gmra.mxu0 %v2562
    %v2652 = vpop.f32.mrf.mxu0
    %v2653 = vadd.f32 0.0, %v2652
    %v2654 = vpop.f32.mrf.mxu0
    %2655 = vmatprep.mubr.f32.mxu0 0.0
    %2656 = vmatmul.mubr.f32.gmra.mxu0 %v2563
    %v2657 = vpop.f32.mrf.mxu0
    %v2658 = vadd.f32 0.0, %v2657
    %v2659 = vpop.f32.mrf.mxu0
    %2660 = vmatprep.mubr.f32.mxu0 0.0
    %2661 = vmatmul.mubr.f32.gmra.mxu0 %v2564
    %v2662 = vpop.f32.mrf.mxu0
    %v2663 = vadd.f32 0.0, %v2662
    %v2664 = vpop.f32.mrf.mxu0
    %2665 = vmatprep.mubr.f32.mxu0 0.0
    %2666 = vmatmul.mubr.f32.gmra.mxu0 %v2565
    %v2667 = vpop.f32.mrf.mxu0
    %v2668 = vadd.f32 0.0, %v2667
    %v2669 = vpop.f32.mrf.mxu0
    %2670 = vmatprep.mubr.f32.mxu0 0.0
    %2671 = vmatmul.mubr.f32.gmra.mxu0 %v2566
    %v2672 = vpop.f32.mrf.mxu0
    %v2673 = vadd.f32 0.0, %v2672
    %v2674 = vpop.f32.mrf.mxu0
    %2675 = vmatprep.mubr.f32.mxu0 0.0
    %2676 = vmatmul.mubr.f32.gmra.mxu0 %v2567
    %v2677 = vpop.f32.mrf.mxu0
    %v2678 = vadd.f32 0.0, %v2677
    %v2679 = vpop.f32.mrf.mxu0
    %2680 = vmatprep.mubr.f32.mxu0 0.0
    %2681 = vmatmul.mubr.f32.gmra.mxu0 %v2568
    %v2682 = vpop.f32.mrf.mxu0
    %v2683 = vadd.f32 0.0, %v2682
    %v2684 = vpop.f32.mrf.mxu0
    %2685 = vmatprep.mubr.f32.mxu0 0.0
    %2686 = vmatmul.mubr.f32.gmra.mxu0 %v2569
    %v2687 = vpop.f32.mrf.mxu0
    %v2688 = vadd.f32 0.0, %v2687
    %v2689 = vpop.f32.mrf.mxu0
    %2690 = vmatprep.mubr.f32.mxu0 0.0
    %2691 = vmatmul.mubr.f32.gmra.mxu0 %v2570
    %v2692 = vpop.f32.mrf.mxu0
    %v2693 = vadd.f32 0.0, %v2692
    %v2694 = vpop.f32.mrf.mxu0
    %2695 = vdwg.mxu0
    %v2696 = vmul.f32 %v2638, 0.125
    %v2697 = vmul.f32 %v2643, 0.125
    %v2698 = vmul.f32 %v2648, 0.125
    %v2699 = vmul.f32 %v2653, 0.125
    %v2700 = vmul.f32 %v2658, 0.125
    %v2701 = vmul.f32 %v2663, 0.125
    %v2702 = vmul.f32 %v2668, 0.125
    %v2703 = vmul.f32 %v2673, 0.125
    %v2704 = vmul.f32 %v2678, 0.125
    %v2705 = vmul.f32 %v2683, 0.125
    %v2706 = vmul.f32 %v2688, 0.125
    %v2707 = vmul.f32 %v2693, 0.125
    %v2708 = vadd.f32 %v2696, %v2241
    %v2709 = vadd.f32 %v2697, %v2242
    %v2710 = vadd.f32 %v2698, %v2243
    %v2711 = vadd.f32 %v2699, %v2244
    %v2712 = vadd.f32 %v2700, %v2245
    %v2713 = vadd.f32 %v2701, %v2246
    %v2714 = vadd.f32 %v2702, %v2247
    %v2715 = vadd.f32 %v2703, %v2248
    %v2716 = vadd.f32 %v2704, %v2249
    %v2717 = vadd.f32 %v2705, %v2250
    %v2718 = vadd.f32 %v2706, %v2251
    %v2719 = vadd.f32 %v2707, %v2252
    %v2720 = vsel %vm2414, %v2708, -inf
    %2721 = vmax.xlane.f32.xlu0 %v2720
    %v2722 = vpop.xlane.xlu0 %2721
    %v2723 = vsel %vm2414, %v2709, -inf
    %2724 = vmax.xlane.f32.xlu0 %v2723
    %v2725 = vpop.xlane.xlu0 %2724
    %v2726 = vsel %vm2414, %v2710, -inf
    %2727 = vmax.xlane.f32.xlu0 %v2726
    %v2728 = vpop.xlane.xlu0 %2727
    %v2729 = vsel %vm2414, %v2711, -inf
    %2730 = vmax.xlane.f32.xlu0 %v2729
    %v2731 = vpop.xlane.xlu0 %2730
    %v2732 = vsel %vm2414, %v2712, -inf
    %2733 = vmax.xlane.f32.xlu0 %v2732
    %v2734 = vpop.xlane.xlu0 %2733
    %v2735 = vsel %vm2414, %v2713, -inf
    %2736 = vmax.xlane.f32.xlu0 %v2735
    %v2737 = vpop.xlane.xlu0 %2736
    %v2738 = vsel %vm2414, %v2714, -inf
    %2739 = vmax.xlane.f32.xlu0 %v2738
    %v2740 = vpop.xlane.xlu0 %2739
    %v2741 = vsel %vm2414, %v2715, -inf
    %2742 = vmax.xlane.f32.xlu0 %v2741
    %v2743 = vpop.xlane.xlu0 %2742
    %v2744 = vsel %vm2414, %v2716, -inf
    %2745 = vmax.xlane.f32.xlu0 %v2744
    %v2746 = vpop.xlane.xlu0 %2745
    %v2747 = vsel %vm2414, %v2717, -inf
    %2748 = vmax.xlane.f32.xlu0 %v2747
    %v2749 = vpop.xlane.xlu0 %2748
    %v2750 = vsel %vm2414, %v2718, -inf
    %2751 = vmax.xlane.f32.xlu0 %v2750
    %v2752 = vpop.xlane.xlu0 %2751
    %v2753 = vsel %vm2414, %v2719, -inf
    %2754 = vmax.xlane.f32.xlu0 %v2753
    %v2755 = vpop.xlane.xlu0 %2754
    %v2756 = vsub.f32 %v2708, %v2722
    %v2757 = vsub.f32 %v2709, %v2725
    %v2758 = vsub.f32 %v2710, %v2728
    %v2759 = vsub.f32 %v2711, %v2731
    %v2760 = vsub.f32 %v2712, %v2734
    %v2761 = vsub.f32 %v2713, %v2737
    %v2762 = vsub.f32 %v2714, %v2740
    %v2763 = vsub.f32 %v2715, %v2743
    %v2764 = vsub.f32 %v2716, %v2746
    %v2765 = vsub.f32 %v2717, %v2749
    %v2766 = vsub.f32 %v2718, %v2752
    %v2767 = vsub.f32 %v2719, %v2755
    %v2768 = vmul.f32 %v2756, 1.442695
    %v2769 = vpow.pop %v2768
    %v2770 = vmul.f32 %v2757, 1.442695
    %v2771 = vpow.pop %v2770
    %v2772 = vmul.f32 %v2758, 1.442695
    %v2773 = vpow.pop %v2772
    %v2774 = vmul.f32 %v2759, 1.442695
    %v2775 = vpow.pop %v2774
    %v2776 = vmul.f32 %v2760, 1.442695
    %v2777 = vpow.pop %v2776
    %v2778 = vmul.f32 %v2761, 1.442695
    %v2779 = vpow.pop %v2778
    %v2780 = vmul.f32 %v2762, 1.442695
    %v2781 = vpow.pop %v2780
    %v2782 = vmul.f32 %v2763, 1.442695
    %v2783 = vpow.pop %v2782
    %v2784 = vmul.f32 %v2764, 1.442695
    %v2785 = vpow.pop %v2784
    %v2786 = vmul.f32 %v2765, 1.442695
    %v2787 = vpow.pop %v2786
    %v2788 = vmul.f32 %v2766, 1.442695
    %v2789 = vpow.pop %v2788
    %v2790 = vmul.f32 %v2767, 1.442695
    %v2791 = vpow.pop %v2790
    %v2792 = vsel %vm2414, %v2769, 0.0
    %2793 = vadd.xlane.f32.xlu0 %v2792
    %v2794 = vpop.xlane.xlu0 %2793
    %v2795 = vsel %vm2414, %v2771, 0.0
    %2796 = vadd.xlane.f32.xlu0 %v2795
    %v2797 = vpop.xlane.xlu0 %2796
    %v2798 = vsel %vm2414, %v2773, 0.0
    %2799 = vadd.xlane.f32.xlu0 %v2798
    %v2800 = vpop.xlane.xlu0 %2799
    %v2801 = vsel %vm2414, %v2775, 0.0
    %2802 = vadd.xlane.f32.xlu0 %v2801
    %v2803 = vpop.xlane.xlu0 %2802
    %v2804 = vsel %vm2414, %v2777, 0.0
    %2805 = vadd.xlane.f32.xlu0 %v2804
    %v2806 = vpop.xlane.xlu0 %2805
    %v2807 = vsel %vm2414, %v2779, 0.0
    %2808 = vadd.xlane.f32.xlu0 %v2807
    %v2809 = vpop.xlane.xlu0 %2808
    %v2810 = vsel %vm2414, %v2781, 0.0
    %2811 = vadd.xlane.f32.xlu0 %v2810
    %v2812 = vpop.xlane.xlu0 %2811
    %v2813 = vsel %vm2414, %v2783, 0.0
    %2814 = vadd.xlane.f32.xlu0 %v2813
    %v2815 = vpop.xlane.xlu0 %2814
    %v2816 = vsel %vm2414, %v2785, 0.0
    %2817 = vadd.xlane.f32.xlu0 %v2816
    %v2818 = vpop.xlane.xlu0 %2817
    %v2819 = vsel %vm2414, %v2787, 0.0
    %2820 = vadd.xlane.f32.xlu0 %v2819
    %v2821 = vpop.xlane.xlu0 %2820
    %v2822 = vsel %vm2414, %v2789, 0.0
    %2823 = vadd.xlane.f32.xlu0 %v2822
    %v2824 = vpop.xlane.xlu0 %2823
    %v2825 = vsel %vm2414, %v2791, 0.0
    %2826 = vadd.xlane.f32.xlu0 %v2825
    %v2827 = vpop.xlane.xlu0 %2826
    %v2828 = vrcp.pop %v2794
    %v2829 = vrcp.pop %v2797
    %v2830 = vrcp.pop %v2800
    %v2831 = vrcp.pop %v2803
    %v2832 = vrcp.pop %v2806
    %v2833 = vrcp.pop %v2809
    %v2834 = vrcp.pop %v2812
    %v2835 = vrcp.pop %v2815
    %v2836 = vrcp.pop %v2818
    %v2837 = vrcp.pop %v2821
    %v2838 = vrcp.pop %v2824
    %v2839 = vrcp.pop %v2827
    %v2840 = vmul.f32 %v2769, %v2828
    %v2841 = vmul.f32 %v2771, %v2829
    %v2842 = vmul.f32 %v2773, %v2830
    %v2843 = vmul.f32 %v2775, %v2831
    %v2844 = vmul.f32 %v2777, %v2832
    %v2845 = vmul.f32 %v2779, %v2833
    %v2846 = vmul.f32 %v2781, %v2834
    %v2847 = vmul.f32 %v2783, %v2835
    %v2848 = vmul.f32 %v2785, %v2836
    %v2849 = vmul.f32 %v2787, %v2837
    %v2850 = vmul.f32 %v2789, %v2838
    %v2851 = vmul.f32 %v2791, %v2839
    %v2852 = vmul.f32 %v2119, %v2240
    %v2853 = vmul.f32 %v2123, %v2240
    %v2854 = vmul.f32 %v2129, %v2240
    %v2855 = vmul.f32 %v2133, %v2240
    %v2856 = vmul.f32 %v2121, %v2240
    %v2857 = vmul.f32 %v2125, %v2240
    %v2858 = vmul.f32 %v2131, %v2240
    %v2859 = vmul.f32 %v2135, %v2240
    %v2860 = vmul.f32 %v2221, %v2240
    %v2861 = vmul.f32 %v2224, %v2240
    %v2862 = vmul.f32 %v2229, %v2240
    %v2863 = vmul.f32 %v2232, %v2240
    %v2865 = vsel %vm2414, %v2840, 0
    %v2868 = vsel %vm2414, %v2841, 0
    %v2871 = vsel %vm2414, %v2842, 0
    %v2874 = vsel %vm2414, %v2843, 0
    %v2877 = vsel %vm2414, %v2844, 0
    %v2880 = vsel %vm2414, %v2845, 0
    %v2883 = vsel %vm2414, %v2846, 0
    %v2886 = vsel %vm2414, %v2847, 0
    %v2889 = vsel %vm2414, %v2848, 0
    %v2892 = vsel %vm2414, %v2849, 0
    %v2895 = vsel %vm2414, %v2850, 0
    %v2898 = vsel %vm2414, %v2851, 0
    %2900 = vmatprep.subr.mxu0 0.0
    %2901 = vmatpush1.msra.mxu0 0.0
    %2902 = vmatprep.subr.mxu0 0.0
    %2903 = vmatpush1.msra.mxu0 0.0
    %2904 = vmatprep.subr.mxu0 0.0
    %2905 = vmatpush1.msra.mxu0 0.0
    %2906 = vmatprep.subr.mxu0 0.0
    %2907 = vmatpush1.msra.mxu0 0.0
    %2908 = vmatprep.subr.mxu0 0.0
    %2909 = vmatpush1.msra.mxu0 %v2863
    %2910 = vmatprep.subr.mxu0 0.0
    %2911 = vmatpush1.msra.mxu0 %v2862
    %2912 = vmatprep.subr.mxu0 0.0
    %2913 = vmatpush1.msra.mxu0 %v2861
    %2914 = vmatprep.subr.mxu0 0.0
    %2915 = vmatpush1.msra.mxu0 %v2860
    %2916 = vmatprep.subr.mxu0 0.0
    %2917 = vmatpush1.msra.mxu0 %v2859
    %2918 = vmatprep.subr.mxu0 0.0
    %2919 = vmatpush1.msra.mxu0 %v2858
    %2920 = vmatprep.subr.mxu0 0.0
    %2921 = vmatpush1.msra.mxu0 %v2857
    %2922 = vmatprep.subr.mxu0 0.0
    %2923 = vmatpush1.msra.mxu0 %v2856
    %2924 = vmatprep.subr.mxu0 0.0
    %2925 = vmatpush1.msra.mxu0 %v2855
    %2926 = vmatprep.subr.mxu0 0.0
    %2927 = vmatpush1.msra.mxu0 %v2854
    %2928 = vmatprep.subr.mxu0 0.0
    %2929 = vmatpush1.msra.mxu0 %v2853
    %2930 = vmatprep.subr.mxu0 0.0
    %2931 = vmatpush1.msra.mxu0 %v2852
    %2932 = vmatprep.subr.mxu0 0.0
    %2933 = vmatpush2.msra.mxu0 0.0
    %2934 = vmatprep.subr.mxu0 0.0
    %2935 = vmatpush2.msra.mxu0 0.0
    %2936 = vmatprep.subr.mxu0 0.0
    %2937 = vmatpush2.msra.mxu0 0.0
    %2938 = vmatprep.subr.mxu0 0.0
    %2939 = vmatpush2.msra.mxu0 0.0
    %2940 = vmatprep.subr.mxu0 0.0
    %2941 = vmatpush2.msra.mxu0 0.0
    %2942 = vmatprep.subr.mxu0 0.0
    %2943 = vmatpush2.msra.mxu0 0.0
    %2944 = vmatprep.subr.mxu0 0.0
    %2945 = vmatpush2.msra.mxu0 0.0
    %2946 = vmatprep.subr.mxu0 0.0
    %2947 = vmatpush2.msra.mxu0 0.0
    %2948 = vmatprep.subr.mxu0 0.0
    %2949 = vmatpush2.msra.mxu0 0.0
    %2950 = vmatprep.subr.mxu0 0.0
    %2951 = vmatpush2.msra.mxu0 0.0
    %2952 = vmatprep.subr.mxu0 0.0
    %2953 = vmatpush2.msra.mxu0 0.0
    %2954 = vmatprep.subr.mxu0 0.0
    %2955 = vmatpush2.msra.mxu0 0.0
    %2956 = vmatprep.subr.mxu0 0.0
    %2957 = vmatpush2.msra.mxu0 0.0
    %2958 = vmatprep.subr.mxu0 0.0
    %2959 = vmatpush2.msra.mxu0 0.0
    %2960 = vmatprep.subr.mxu0 0.0
    %2961 = vmatpush2.msra.mxu0 0.0
    %2962 = vmatprep.subr.mxu0 0.0
    %2963 = vmatpush2.msra.mxu0 0.0
    %2964 = vmatprep.mubr.f32.mxu0 0.0
    %2965 = vmatmul.mubr.f32.gmra.mxu0 %v2865
    %v2966 = vpop.f32.mrf.mxu0
    %v2967 = vadd.f32 0.0, %v2966
    %v2968 = vpop.f32.mrf.mxu0
    %2969 = vmatprep.mubr.f32.mxu0 0.0
    %2970 = vmatmul.mubr.f32.gmra.mxu0 %v2868
    %v2971 = vpop.f32.mrf.mxu0
    %v2972 = vadd.f32 0.0, %v2971
    %v2973 = vpop.f32.mrf.mxu0
    %2974 = vmatprep.mubr.f32.mxu0 0.0
    %2975 = vmatmul.mubr.f32.gmra.mxu0 %v2871
    %v2976 = vpop.f32.mrf.mxu0
    %v2977 = vadd.f32 0.0, %v2976
    %v2978 = vpop.f32.mrf.mxu0
    %2979 = vmatprep.mubr.f32.mxu0 0.0
    %2980 = vmatmul.mubr.f32.gmra.mxu0 %v2874
    %v2981 = vpop.f32.mrf.mxu0
    %v2982 = vadd.f32 0.0, %v2981
    %v2983 = vpop.f32.mrf.mxu0
    %2984 = vmatprep.mubr.f32.mxu0 0.0
    %2985 = vmatmul.mubr.f32.gmra.mxu0 %v2877
    %v2986 = vpop.f32.mrf.mxu0
    %v2987 = vadd.f32 0.0, %v2986
    %v2988 = vpop.f32.mrf.mxu0
    %2989 = vmatprep.mubr.f32.mxu0 0.0
    %2990 = vmatmul.mubr.f32.gmra.mxu0 %v2880
    %v2991 = vpop.f32.mrf.mxu0
    %v2992 = vadd.f32 0.0, %v2991
    %v2993 = vpop.f32.mrf.mxu0
    %2994 = vmatprep.mubr.f32.mxu0 0.0
    %2995 = vmatmul.mubr.f32.gmra.mxu0 %v2883
    %v2996 = vpop.f32.mrf.mxu0
    %v2997 = vadd.f32 0.0, %v2996
    %v2998 = vpop.f32.mrf.mxu0
    %2999 = vmatprep.mubr.f32.mxu0 0.0
    %3000 = vmatmul.mubr.f32.gmra.mxu0 %v2886
    %v3001 = vpop.f32.mrf.mxu0
    %v3002 = vadd.f32 0.0, %v3001
    %v3003 = vpop.f32.mrf.mxu0
    %3004 = vmatprep.mubr.f32.mxu0 0.0
    %3005 = vmatmul.mubr.f32.gmra.mxu0 %v2889
    %v3006 = vpop.f32.mrf.mxu0
    %v3007 = vadd.f32 0.0, %v3006
    %v3008 = vpop.f32.mrf.mxu0
    %3009 = vmatprep.mubr.f32.mxu0 0.0
    %3010 = vmatmul.mubr.f32.gmra.mxu0 %v2892
    %v3011 = vpop.f32.mrf.mxu0
    %v3012 = vadd.f32 0.0, %v3011
    %v3013 = vpop.f32.mrf.mxu0
    %3014 = vmatprep.mubr.f32.mxu0 0.0
    %3015 = vmatmul.mubr.f32.gmra.mxu0 %v2895
    %v3016 = vpop.f32.mrf.mxu0
    %v3017 = vadd.f32 0.0, %v3016
    %v3018 = vpop.f32.mrf.mxu0
    %3019 = vmatprep.mubr.f32.mxu0 0.0
    %3020 = vmatmul.mubr.f32.gmra.mxu0 %v2898
    %v3021 = vpop.f32.mrf.mxu0
    %v3022 = vadd.f32 0.0, %v3021
    %v3023 = vpop.f32.mrf.mxu0
    %3024 = vdwg.mxu0
    %v3026 = vsel %vm2414, %v2535, 0
    %v3029 = vsel %vm2414, %v2536, 0
    %v3032 = vsel %vm2414, %v2537, 0
    %v3035 = vsel %vm2414, %v2538, 0
    %v3038 = vsel %vm2414, %v2539, 0
    %v3041 = vsel %vm2414, %v2540, 0
    %v3044 = vsel %vm2414, %v2541, 0
    %v3047 = vsel %vm2414, %v2542, 0
    %v3050 = vsel %vm2414, %v2543, 0
    %v3053 = vsel %vm2414, %v2544, 0
    %v3056 = vsel %vm2414, %v2545, 0
    %v3059 = vsel %vm2414, %v2546, 0
    %3061 = vmatprep.subr.mxu0 0.0
    %3062 = vmatpush1.msra.mxu0 0.0
    %3063 = vmatprep.subr.mxu0 0.0
    %3064 = vmatpush1.msra.mxu0 0.0
    %3065 = vmatprep.subr.mxu0 0.0
    %3066 = vmatpush1.msra.mxu0 0.0
    %3067 = vmatprep.subr.mxu0 0.0
    %3068 = vmatpush1.msra.mxu0 0.0
    %3069 = vmatprep.subr.mxu0 0.0
    %3070 = vmatpush1.msra.mxu0 %v2558
    %3071 = vmatprep.subr.mxu0 0.0
    %3072 = vmatpush1.msra.mxu0 %v2557
    %3073 = vmatprep.subr.mxu0 0.0
    %3074 = vmatpush1.msra.mxu0 %v2556
    %3075 = vmatprep.subr.mxu0 0.0
    %3076 = vmatpush1.msra.mxu0 %v2555
    %3077 = vmatprep.subr.mxu0 0.0
    %3078 = vmatpush1.msra.mxu0 %v2554
    %3079 = vmatprep.subr.mxu0 0.0
    %3080 = vmatpush1.msra.mxu0 %v2553
    %3081 = vmatprep.subr.mxu0 0.0
    %3082 = vmatpush1.msra.mxu0 %v2552
    %3083 = vmatprep.subr.mxu0 0.0
    %3084 = vmatpush1.msra.mxu0 %v2551
    %3085 = vmatprep.subr.mxu0 0.0
    %3086 = vmatpush1.msra.mxu0 %v2550
    %3087 = vmatprep.subr.mxu0 0.0
    %3088 = vmatpush1.msra.mxu0 %v2549
    %3089 = vmatprep.subr.mxu0 0.0
    %3090 = vmatpush1.msra.mxu0 %v2548
    %3091 = vmatprep.subr.mxu0 0.0
    %3092 = vmatpush1.msra.mxu0 %v2547
    %3093 = vmatprep.subr.mxu0 0.0
    %3094 = vmatpush2.msra.mxu0 0.0
    %3095 = vmatprep.subr.mxu0 0.0
    %3096 = vmatpush2.msra.mxu0 0.0
    %3097 = vmatprep.subr.mxu0 0.0
    %3098 = vmatpush2.msra.mxu0 0.0
    %3099 = vmatprep.subr.mxu0 0.0
    %3100 = vmatpush2.msra.mxu0 0.0
    %3101 = vmatprep.subr.mxu0 0.0
    %3102 = vmatpush2.msra.mxu0 0.0
    %3103 = vmatprep.subr.mxu0 0.0
    %3104 = vmatpush2.msra.mxu0 0.0
    %3105 = vmatprep.subr.mxu0 0.0
    %3106 = vmatpush2.msra.mxu0 0.0
    %3107 = vmatprep.subr.mxu0 0.0
    %3108 = vmatpush2.msra.mxu0 0.0
    %3109 = vmatprep.subr.mxu0 0.0
    %3110 = vmatpush2.msra.mxu0 0.0
    %3111 = vmatprep.subr.mxu0 0.0
    %3112 = vmatpush2.msra.mxu0 0.0
    %3113 = vmatprep.subr.mxu0 0.0
    %3114 = vmatpush2.msra.mxu0 0.0
    %3115 = vmatprep.subr.mxu0 0.0
    %3116 = vmatpush2.msra.mxu0 0.0
    %3117 = vmatprep.subr.mxu0 0.0
    %3118 = vmatpush2.msra.mxu0 0.0
    %3119 = vmatprep.subr.mxu0 0.0
    %3120 = vmatpush2.msra.mxu0 0.0
    %3121 = vmatprep.subr.mxu0 0.0
    %3122 = vmatpush2.msra.mxu0 0.0
    %3123 = vmatprep.subr.mxu0 0.0
    %3124 = vmatpush2.msra.mxu0 0.0
    %3125 = vmatprep.mubr.f32.mxu0 0.0
    %3126 = vmatmul.mubr.f32.gmra.mxu0 %v3026
    %v3127 = vpop.f32.mrf.mxu0
    %v3128 = vadd.f32 %v2967, %v3127
    %v3129 = vpop.f32.mrf.mxu0
    %3130 = vmatprep.mubr.f32.mxu0 0.0
    %3131 = vmatmul.mubr.f32.gmra.mxu0 %v3029
    %v3132 = vpop.f32.mrf.mxu0
    %v3133 = vadd.f32 %v2972, %v3132
    %v3134 = vpop.f32.mrf.mxu0
    %3135 = vmatprep.mubr.f32.mxu0 0.0
    %3136 = vmatmul.mubr.f32.gmra.mxu0 %v3032
    %v3137 = vpop.f32.mrf.mxu0
    %v3138 = vadd.f32 %v2977, %v3137
    %v3139 = vpop.f32.mrf.mxu0
    %3140 = vmatprep.mubr.f32.mxu0 0.0
    %3141 = vmatmul.mubr.f32.gmra.mxu0 %v3035
    %v3142 = vpop.f32.mrf.mxu0
    %v3143 = vadd.f32 %v2982, %v3142
    %v3144 = vpop.f32.mrf.mxu0
    %3145 = vmatprep.mubr.f32.mxu0 0.0
    %3146 = vmatmul.mubr.f32.gmra.mxu0 %v3038
    %v3147 = vpop.f32.mrf.mxu0
    %v3148 = vadd.f32 %v2987, %v3147
    %v3149 = vpop.f32.mrf.mxu0
    %3150 = vmatprep.mubr.f32.mxu0 0.0
    %3151 = vmatmul.mubr.f32.gmra.mxu0 %v3041
    %v3152 = vpop.f32.mrf.mxu0
    %v3153 = vadd.f32 %v2992, %v3152
    %v3154 = vpop.f32.mrf.mxu0
    %3155 = vmatprep.mubr.f32.mxu0 0.0
    %3156 = vmatmul.mubr.f32.gmra.mxu0 %v3044
    %v3157 = vpop.f32.mrf.mxu0
    %v3158 = vadd.f32 %v2997, %v3157
    %v3159 = vpop.f32.mrf.mxu0
    %3160 = vmatprep.mubr.f32.mxu0 0.0
    %3161 = vmatmul.mubr.f32.gmra.mxu0 %v3047
    %v3162 = vpop.f32.mrf.mxu0
    %v3163 = vadd.f32 %v3002, %v3162
    %v3164 = vpop.f32.mrf.mxu0
    %3165 = vmatprep.mubr.f32.mxu0 0.0
    %3166 = vmatmul.mubr.f32.gmra.mxu0 %v3050
    %v3167 = vpop.f32.mrf.mxu0
    %v3168 = vadd.f32 %v3007, %v3167
    %v3169 = vpop.f32.mrf.mxu0
    %3170 = vmatprep.mubr.f32.mxu0 0.0
    %3171 = vmatmul.mubr.f32.gmra.mxu0 %v3053
    %v3172 = vpop.f32.mrf.mxu0
    %v3173 = vadd.f32 %v3012, %v3172
    %v3174 = vpop.f32.mrf.mxu0
    %3175 = vmatprep.mubr.f32.mxu0 0.0
    %3176 = vmatmul.mubr.f32.gmra.mxu0 %v3056
    %v3177 = vpop.f32.mrf.mxu0
    %v3178 = vadd.f32 %v3017, %v3177
    %v3179 = vpop.f32.mrf.mxu0
    %3180 = vmatprep.mubr.f32.mxu0 0.0
    %3181 = vmatmul.mubr.f32.gmra.mxu0 %v3059
    %v3182 = vpop.f32.mrf.mxu0
    %v3183 = vadd.f32 %v3022, %v3182
    %v3184 = vpop.f32.mrf.mxu0
    %3185 = vdwg.mxu0
    %v3186 = vpack.c.bf16 %v3133, %v3128
    %v3187 = vpack.c.bf16 %v3153, %v3148
    %v3188 = vpack.c.bf16 %v3173, %v3168
    %v3189 = vpack.c.bf16 %v3143, %v3138
    %v3190 = vpack.c.bf16 %v3163, %v3158
    %v3191 = vpack.c.bf16 %v3183, %v3178
    %v3192 = vld [vmem:[#allocation11] sm:$0xff]
    %v3193 = vld [vmem:[#allocation11 + $0x8] sm:$0xf]
    %v3194 = vld [vmem:[#allocation11 + $0xc] sm:$0xff]
    %v3195 = vld [vmem:[#allocation11 + $0x14] sm:$0xf]
    %v3196 = vld [vmem:[#allocation11 + $0x18] sm:$0xff]
    %v3197 = vld [vmem:[#allocation11 + $0x20] sm:$0xf]
    %v3198 = vld [vmem:[#allocation11 + $0x24] sm:$0xff]
    %v3199 = vld [vmem:[#allocation11 + $0x2c] sm:$0xf]
    %v3200 = vld [vmem:[#allocation11 + $0x30] sm:$0xff]
    %v3201 = vld [vmem:[#allocation11 + $0x38] sm:$0xf]
    %v3202 = vld [vmem:[#allocation11 + $0x3c] sm:$0xff]
    %v3203 = vld [vmem:[#allocation11 + $0x44] sm:$0xf]
    %v3204 = vld [vmem:[#allocation11 + $0x48] sm:$0xff]
    %v3205 = vld [vmem:[#allocation11 + $0x50] sm:$0xf]
    %v3206 = vld [vmem:[#allocation11 + $0x54] sm:$0xff]
    %v3207 = vld [vmem:[#allocation11 + $0x5c] sm:$0xf]
    %v3208 = vld [vmem:[#allocation11 + $0x60] sm:$0xff]
    %v3209 = vld [vmem:[#allocation11 + $0x68] sm:$0xf]
    %v3210 = vld [vmem:[#allocation11 + $0x6c] sm:$0xff]
    %v3211 = vld [vmem:[#allocation11 + $0x74] sm:$0xf]
    %v3212 = vld [vmem:[#allocation11 + $0x78] sm:$0xff]
    %v3213 = vld [vmem:[#allocation11 + $0x80] sm:$0xf]
    %v3214 = vld [vmem:[#allocation11 + $0x84] sm:$0xff]
    %v3215 = vld [vmem:[#allocation11 + $0x8c] sm:$0xf]
    %v3216 = vld [vmem:[#allocation11 + $0x90] sm:$0xff]
    %v3217 = vld [vmem:[#allocation11 + $0x98] sm:$0xf]
    %v3218 = vld [vmem:[#allocation11 + $0x9c] sm:$0xff]
    %v3219 = vld [vmem:[#allocation11 + $0xa4] sm:$0xf]
    %v3220 = vld [vmem:[#allocation11 + $0xa8] sm:$0xff]
    %v3221 = vld [vmem:[#allocation11 + $0xb0] sm:$0xf]
    %v3222 = vld [vmem:[#allocation11 + $0xb4] sm:$0xff]
    %v3223 = vld [vmem:[#allocation11 + $0xbc] sm:$0xf]
    %v3224 = vld [vmem:[#allocation11 + $0xc0] sm:$0xff]
    %v3225 = vld [vmem:[#allocation11 + $0xc8] sm:$0xf]
    %v3226 = vld [vmem:[#allocation11 + $0xcc] sm:$0xff]
    %v3227 = vld [vmem:[#allocation11 + $0xd4] sm:$0xf]
    %v3228 = vld [vmem:[#allocation11 + $0xd8] sm:$0xff]
    %v3229 = vld [vmem:[#allocation11 + $0xe0] sm:$0xf]
    %v3230 = vld [vmem:[#allocation11 + $0xe4] sm:$0xff]
    %v3231 = vld [vmem:[#allocation11 + $0xec] sm:$0xf]
    %v3232 = vld [vmem:[#allocation11 + $0xf0] sm:$0xff]
    %v3233 = vld [vmem:[#allocation11 + $0xf8] sm:$0xf]
    %v3234 = vld [vmem:[#allocation11 + $0xfc] sm:$0xff]
    %v3235 = vld [vmem:[#allocation11 + $0x104] sm:$0xf]
    %v3236 = vld [vmem:[#allocation11 + $0x108] sm:$0xff]
    %v3237 = vld [vmem:[#allocation11 + $0x110] sm:$0xf]
    %v3238 = vld [vmem:[#allocation11 + $0x114] sm:$0xff]
    %v3239 = vld [vmem:[#allocation11 + $0x11c] sm:$0xf]
    %v3240 = vld [vmem:[#allocation11 + $0x120] sm:$0xff]
    %v3241 = vld [vmem:[#allocation11 + $0x128] sm:$0xf]
    %v3242 = vld [vmem:[#allocation11 + $0x12c] sm:$0xff]
    %v3243 = vld [vmem:[#allocation11 + $0x134] sm:$0xf]
    %v3244 = vld [vmem:[#allocation11 + $0x138] sm:$0xff]
    %v3245 = vld [vmem:[#allocation11 + $0x140] sm:$0xf]
    %v3246 = vld [vmem:[#allocation11 + $0x144] sm:$0xff]
    %v3247 = vld [vmem:[#allocation11 + $0x14c] sm:$0xf]
    %v3248 = vld [vmem:[#allocation11 + $0x150] sm:$0xff]
    %v3249 = vld [vmem:[#allocation11 + $0x158] sm:$0xf]
    %v3250 = vld [vmem:[#allocation11 + $0x15c] sm:$0xff]
    %v3251 = vld [vmem:[#allocation11 + $0x164] sm:$0xf]
    %v3252 = vld [vmem:[#allocation11 + $0x168] sm:$0xff]
    %v3253 = vld [vmem:[#allocation11 + $0x170] sm:$0xf]
    %v3254 = vld [vmem:[#allocation11 + $0x174] sm:$0xff]
    %v3255 = vld [vmem:[#allocation11 + $0x17c] sm:$0xf]
    %v3256 = vld [vmem:[#allocation11 + $0x180] sm:$0xff]
    %v3257 = vld [vmem:[#allocation11 + $0x188] sm:$0xf]
    %v3258 = vld [vmem:[#allocation11 + $0x18c] sm:$0xff]
    %v3259 = vld [vmem:[#allocation11 + $0x194] sm:$0xf]
    %v3260 = vld [vmem:[#allocation11 + $0x198] sm:$0xff]
    %v3261 = vld [vmem:[#allocation11 + $0x1a0] sm:$0xf]
    %v3262 = vld [vmem:[#allocation11 + $0x1a4] sm:$0xff]
    %v3263 = vld [vmem:[#allocation11 + $0x1ac] sm:$0xf]
    %v3264 = vld [vmem:[#allocation11 + $0x1b0] sm:$0xff]
    %v3265 = vld [vmem:[#allocation11 + $0x1b8] sm:$0xf]
    %v3266 = vld [vmem:[#allocation11 + $0x1bc] sm:$0xff]
    %v3267 = vld [vmem:[#allocation11 + $0x1c4] sm:$0xf]
    %v3268 = vld [vmem:[#allocation11 + $0x1c8] sm:$0xff]
    %v3269 = vld [vmem:[#allocation11 + $0x1d0] sm:$0xf]
    %v3270 = vld [vmem:[#allocation11 + $0x1d4] sm:$0xff]
    %v3271 = vld [vmem:[#allocation11 + $0x1dc] sm:$0xf]
    %v3272 = vld [vmem:[#allocation11 + $0x1e0] sm:$0xff]
    %v3273 = vld [vmem:[#allocation11 + $0x1e8] sm:$0xf]
    %v3274 = vld [vmem:[#allocation11 + $0x1ec] sm:$0xff]
    %v3275 = vld [vmem:[#allocation11 + $0x1f4] sm:$0xf]
    %v3276 = vld [vmem:[#allocation11 + $0x1f8] sm:$0xff]
    %v3277 = vld [vmem:[#allocation11 + $0x200] sm:$0xf]
    %v3278 = vld [vmem:[#allocation11 + $0x204] sm:$0xff]
    %v3279 = vld [vmem:[#allocation11 + $0x20c] sm:$0xf]
    %v3280 = vld [vmem:[#allocation11 + $0x210] sm:$0xff]
    %v3281 = vld [vmem:[#allocation11 + $0x218] sm:$0xf]
    %v3282 = vld [vmem:[#allocation11 + $0x21c] sm:$0xff]
    %v3283 = vld [vmem:[#allocation11 + $0x224] sm:$0xf]
    %v3284 = vld [vmem:[#allocation11 + $0x228] sm:$0xff]
    %v3285 = vld [vmem:[#allocation11 + $0x230] sm:$0xf]
    %v3286 = vld [vmem:[#allocation11 + $0x234] sm:$0xff]
    %v3287 = vld [vmem:[#allocation11 + $0x23c] sm:$0xf]
    %v3288 = vld [vmem:[#allocation13] sm:$0x7]
    %v3290 = vlaneseq
    %v3291 = vshrl.u32 %v3290, 7
    %v3292 = vsub.s32 0, %v3291
    %v3293 = vrot.slane %v3288, %v3292
    %v3294 = vlaneseq
    %v3295 = vshrl.u32 %v3294, 7
    %v3296 = vsub.s32 1, %v3295
    %v3297 = vrot.slane %v3288, %v3296
    %v3298 = vlaneseq
    %v3299 = vshrl.u32 %v3298, 7
    %v3300 = vsub.s32 2, %v3299
    %v3301 = vrot.slane %v3288, %v3300
    %v3401 = vunpack.c.l.b16 %v3192
    %v3402 = vunpack.c.h.b16 %v3192
    %v3403 = vunpack.c.l.b16 %v3193
    %v3404 = vunpack.c.l.b16 %v3194
    %v3405 = vunpack.c.h.b16 %v3194
    %v3406 = vunpack.c.l.b16 %v3195
    %v3407 = vunpack.c.l.b16 %v3196
    %v3408 = vunpack.c.h.b16 %v3196
    %v3409 = vunpack.c.l.b16 %v3197
    %v3410 = vunpack.c.l.b16 %v3198
    %v3411 = vunpack.c.h.b16 %v3198
    %v3412 = vunpack.c.l.b16 %v3199
    %v3413 = vunpack.c.l.b16 %v3200
    %v3414 = vunpack.c.h.b16 %v3200
    %v3415 = vunpack.c.l.b16 %v3201
    %v3416 = vunpack.c.l.b16 %v3202
    %v3417 = vunpack.c.h.b16 %v3202
    %v3418 = vunpack.c.l.b16 %v3203
    %v3419 = vunpack.c.l.b16 %v3204
    %v3420 = vunpack.c.h.b16 %v3204
    %v3421 = vunpack.c.l.b16 %v3205
    %v3422 = vunpack.c.l.b16 %v3206
    %v3423 = vunpack.c.h.b16 %v3206
    %v3424 = vunpack.c.l.b16 %v3207
    %v3425 = vunpack.c.l.b16 %v3208
    %v3426 = vunpack.c.h.b16 %v3208
    %v3427 = vunpack.c.l.b16 %v3209
    %v3428 = vunpack.c.l.b16 %v3210
    %v3429 = vunpack.c.h.b16 %v3210
    %v3430 = vunpack.c.l.b16 %v3211
    %v3431 = vunpack.c.l.b16 %v3212
    %v3432 = vunpack.c.h.b16 %v3212
    %v3433 = vunpack.c.l.b16 %v3213
    %v3434 = vunpack.c.l.b16 %v3214
    %v3435 = vunpack.c.h.b16 %v3214
    %v3436 = vunpack.c.l.b16 %v3215
    %v3437 = vunpack.c.l.b16 %v3216
    %v3438 = vunpack.c.h.b16 %v3216
    %v3439 = vunpack.c.l.b16 %v3217
    %v3440 = vunpack.c.l.b16 %v3218
    %v3441 = vunpack.c.h.b16 %v3218
    %v3442 = vunpack.c.l.b16 %v3219
    %v3443 = vunpack.c.l.b16 %v3220
    %v3444 = vunpack.c.h.b16 %v3220
    %v3445 = vunpack.c.l.b16 %v3221
    %v3446 = vunpack.c.l.b16 %v3222
    %v3447 = vunpack.c.h.b16 %v3222
    %v3448 = vunpack.c.l.b16 %v3223
    %v3449 = vunpack.c.l.b16 %v3224
    %v3450 = vunpack.c.h.b16 %v3224
    %v3451 = vunpack.c.l.b16 %v3225
    %v3452 = vunpack.c.l.b16 %v3226
    %v3453 = vunpack.c.h.b16 %v3226
    %v3454 = vunpack.c.l.b16 %v3227
    %v3455 = vunpack.c.l.b16 %v3228
    %v3456 = vunpack.c.h.b16 %v3228
    %v3457 = vunpack.c.l.b16 %v3229
    %v3458 = vunpack.c.l.b16 %v3230
    %v3459 = vunpack.c.h.b16 %v3230
    %v3460 = vunpack.c.l.b16 %v3231
    %v3461 = vunpack.c.l.b16 %v3232
    %v3462 = vunpack.c.h.b16 %v3232
    %v3463 = vunpack.c.l.b16 %v3233
    %v3464 = vunpack.c.l.b16 %v3234
    %v3465 = vunpack.c.h.b16 %v3234
    %v3466 = vunpack.c.l.b16 %v3235
    %v3467 = vunpack.c.l.b16 %v3236
    %v3468 = vunpack.c.h.b16 %v3236
    %v3469 = vunpack.c.l.b16 %v3237
    %v3470 = vunpack.c.l.b16 %v3238
    %v3471 = vunpack.c.h.b16 %v3238
    %v3472 = vunpack.c.l.b16 %v3239
    %v3473 = vunpack.c.l.b16 %v3240
    %v3474 = vunpack.c.h.b16 %v3240
    %v3475 = vunpack.c.l.b16 %v3241
    %v3476 = vunpack.c.l.b16 %v3242
    %v3477 = vunpack.c.h.b16 %v3242
    %v3478 = vunpack.c.l.b16 %v3243
    %v3479 = vunpack.c.l.b16 %v3244
    %v3480 = vunpack.c.h.b16 %v3244
    %v3481 = vunpack.c.l.b16 %v3245
    %v3482 = vunpack.c.l.b16 %v3246
    %v3483 = vunpack.c.h.b16 %v3246
    %v3484 = vunpack.c.l.b16 %v3247
    %v3485 = vunpack.c.l.b16 %v3248
    %v3486 = vunpack.c.h.b16 %v3248
    %v3487 = vunpack.c.l.b16 %v3249
    %v3488 = vunpack.c.l.b16 %v3250
    %v3489 = vunpack.c.h.b16 %v3250
    %v3490 = vunpack.c.l.b16 %v3251
    %v3491 = vunpack.c.l.b16 %v3252
    %v3492 = vunpack.c.h.b16 %v3252
    %v3493 = vunpack.c.l.b16 %v3253
    %v3494 = vunpack.c.l.b16 %v3254
    %v3495 = vunpack.c.h.b16 %v3254
    %v3496 = vunpack.c.l.b16 %v3255
    %v3497 = vunpack.c.l.b16 %v3256
    %v3498 = vunpack.c.h.b16 %v3256
    %v3499 = vunpack.c.l.b16 %v3257
    %v3500 = vunpack.c.l.b16 %v3258
    %v3501 = vunpack.c.h.b16 %v3258
    %v3502 = vunpack.c.l.b16 %v3259
    %v3503 = vunpack.c.l.b16 %v3260
    %v3504 = vunpack.c.h.b16 %v3260
    %v3505 = vunpack.c.l.b16 %v3261
    %v3506 = vunpack.c.l.b16 %v3262
    %v3507 = vunpack.c.h.b16 %v3262
    %v3508 = vunpack.c.l.b16 %v3263
    %v3509 = vunpack.c.l.b16 %v3264
    %v3510 = vunpack.c.h.b16 %v3264
    %v3511 = vunpack.c.l.b16 %v3265
    %v3512 = vunpack.c.l.b16 %v3266
    %v3513 = vunpack.c.h.b16 %v3266
    %v3514 = vunpack.c.l.b16 %v3267
    %v3515 = vunpack.c.l.b16 %v3268
    %v3516 = vunpack.c.h.b16 %v3268
    %v3517 = vunpack.c.l.b16 %v3269
    %v3518 = vunpack.c.l.b16 %v3270
    %v3519 = vunpack.c.h.b16 %v3270
    %v3520 = vunpack.c.l.b16 %v3271
    %v3521 = vunpack.c.l.b16 %v3272
    %v3522 = vunpack.c.h.b16 %v3272
    %v3523 = vunpack.c.l.b16 %v3273
    %v3524 = vunpack.c.l.b16 %v3274
    %v3525 = vunpack.c.h.b16 %v3274
    %v3526 = vunpack.c.l.b16 %v3275
    %v3527 = vunpack.c.l.b16 %v3276
    %v3528 = vunpack.c.h.b16 %v3276
    %v3529 = vunpack.c.l.b16 %v3277
    %v3530 = vunpack.c.l.b16 %v3278
    %v3531 = vunpack.c.h.b16 %v3278
    %v3532 = vunpack.c.l.b16 %v3279
    %v3533 = vunpack.c.l.b16 %v3280
    %v3534 = vunpack.c.h.b16 %v3280
    %v3535 = vunpack.c.l.b16 %v3281
    %v3536 = vunpack.c.l.b16 %v3282
    %v3537 = vunpack.c.h.b16 %v3282
    %v3538 = vunpack.c.l.b16 %v3283
    %v3539 = vunpack.c.l.b16 %v3284
    %v3540 = vunpack.c.h.b16 %v3284
    %v3541 = vunpack.c.l.b16 %v3285
    %v3542 = vunpack.c.l.b16 %v3286
    %v3543 = vunpack.c.h.b16 %v3286
    %v3544 = vunpack.c.l.b16 %v3287
    %v3545 = vpack.c.b16 %v3404, %v3401
    %v3546 = vpack.c.b16 %v3405, %v3402
    %v3547 = vpack.c.b16 %v3406, %v3403
    %v3548 = vpack.c.b16 %v3410, %v3407
    %v3549 = vpack.c.b16 %v3411, %v3408
    %v3550 = vpack.c.b16 %v3412, %v3409
    %v3551 = vpack.c.b16 %v3416, %v3413
    %v3552 = vpack.c.b16 %v3417, %v3414
    %v3553 = vpack.c.b16 %v3418, %v3415
    %v3554 = vpack.c.b16 %v3422, %v3419
    %v3555 = vpack.c.b16 %v3423, %v3420
    %v3556 = vpack.c.b16 %v3424, %v3421
    %v3557 = vpack.c.b16 %v3428, %v3425
    %v3558 = vpack.c.b16 %v3429, %v3426
    %v3559 = vpack.c.b16 %v3430, %v3427
    %v3560 = vpack.c.b16 %v3434, %v3431
    %v3561 = vpack.c.b16 %v3435, %v3432
    %v3562 = vpack.c.b16 %v3436, %v3433
    %v3563 = vpack.c.b16 %v3440, %v3437
    %v3564 = vpack.c.b16 %v3441, %v3438
    %v3565 = vpack.c.b16 %v3442, %v3439
    %v3566 = vpack.c.b16 %v3446, %v3443
    %v3567 = vpack.c.b16 %v3447, %v3444
    %v3568 = vpack.c.b16 %v3448, %v3445
    %v3569 = vpack.c.b16 %v3452, %v3449
    %v3570 = vpack.c.b16 %v3453, %v3450
    %v3571 = vpack.c.b16 %v3454, %v3451
    %v3572 = vpack.c.b16 %v3458, %v3455
    %v3573 = vpack.c.b16 %v3459, %v3456
    %v3574 = vpack.c.b16 %v3460, %v3457
    %v3575 = vpack.c.b16 %v3464, %v3461
    %v3576 = vpack.c.b16 %v3465, %v3462
    %v3577 = vpack.c.b16 %v3466, %v3463
    %v3578 = vpack.c.b16 %v3470, %v3467
    %v3579 = vpack.c.b16 %v3471, %v3468
    %v3580 = vpack.c.b16 %v3472, %v3469
    %v3581 = vpack.c.b16 %v3476, %v3473
    %v3582 = vpack.c.b16 %v3477, %v3474
    %v3583 = vpack.c.b16 %v3478, %v3475
    %v3584 = vpack.c.b16 %v3482, %v3479
    %v3585 = vpack.c.b16 %v3483, %v3480
    %v3586 = vpack.c.b16 %v3484, %v3481
    %v3587 = vpack.c.b16 %v3488, %v3485
    %v3588 = vpack.c.b16 %v3489, %v3486
    %v3589 = vpack.c.b16 %v3490, %v3487
    %v3590 = vpack.c.b16 %v3494, %v3491
    %v3591 = vpack.c.b16 %v3495, %v3492
    %v3592 = vpack.c.b16 %v3496, %v3493
    %v3593 = vpack.c.b16 %v3500, %v3497
    %v3594 = vpack.c.b16 %v3501, %v3498
    %v3595 = vpack.c.b16 %v3502, %v3499
    %v3596 = vpack.c.b16 %v3506, %v3503
    %v3597 = vpack.c.b16 %v3507, %v3504
    %v3598 = vpack.c.b16 %v3508, %v3505
    %v3599 = vpack.c.b16 %v3512, %v3509
    %v3600 = vpack.c.b16 %v3513, %v3510
    %v3601 = vpack.c.b16 %v3514, %v3511
    %v3602 = vpack.c.b16 %v3518, %v3515
    %v3603 = vpack.c.b16 %v3519, %v3516
    %v3604 = vpack.c.b16 %v3520, %v3517
    %v3605 = vpack.c.b16 %v3524, %v3521
    %v3606 = vpack.c.b16 %v3525, %v3522
    %v3607 = vpack.c.b16 %v3526, %v3523
    %v3608 = vpack.c.b16 %v3530, %v3527
    %v3609 = vpack.c.b16 %v3531, %v3528
    %v3610 = vpack.c.b16 %v3532, %v3529
    %v3611 = vpack.c.b16 %v3536, %v3533
    %v3612 = vpack.c.b16 %v3537, %v3534
    %v3613 = vpack.c.b16 %v3538, %v3535
    %v3614 = vpack.c.b16 %v3542, %v3539
    %v3615 = vpack.c.b16 %v3543, %v3540
    %v3616 = vpack.c.b16 %v3544, %v3541
    %3689 = vmatprep.subr.bf16.mxu0 %v3567
    %3690 = vmatpush1.bf16.msra.mxu0 %v3566
    %3691 = vmatprep.subr.bf16.mxu0 %v3564
    %3692 = vmatpush1.bf16.msra.mxu0 %v3563
    %3693 = vmatprep.subr.bf16.mxu0 %v3561
    %3694 = vmatpush1.bf16.msra.mxu0 %v3560
    %3695 = vmatprep.subr.bf16.mxu0 %v3558
    %3696 = vmatpush1.bf16.msra.mxu0 %v3557
    %3697 = vmatprep.subr.bf16.mxu0 %v3555
    %3698 = vmatpush1.bf16.msra.mxu0 %v3554
    %3699 = vmatprep.subr.bf16.mxu0 %v3552
    %3700 = vmatpush1.bf16.msra.mxu0 %v3551
    %3701 = vmatprep.subr.bf16.mxu0 %v3549
    %3702 = vmatpush1.bf16.msra.mxu0 %v3548
    %3703 = vmatprep.subr.bf16.mxu0 %v3546
    %3704 = vmatpush1.bf16.msra.mxu0 %v3545
    %3705 = vmatprep.subr.bf16.mxu0 %v3591
    %3706 = vmatpush2.bf16.msra.mxu0 %v3590
    %3707 = vmatprep.subr.bf16.mxu0 %v3588
    %3708 = vmatpush2.bf16.msra.mxu0 %v3587
    %3709 = vmatprep.subr.bf16.mxu0 %v3585
    %3710 = vmatpush2.bf16.msra.mxu0 %v3584
    %3711 = vmatprep.subr.bf16.mxu0 %v3582
    %3712 = vmatpush2.bf16.msra.mxu0 %v3581
    %3713 = vmatprep.subr.bf16.mxu0 %v3579
    %3714 = vmatpush2.bf16.msra.mxu0 %v3578
    %3715 = vmatprep.subr.bf16.mxu0 %v3576
    %3716 = vmatpush2.bf16.msra.mxu0 %v3575
    %3717 = vmatprep.subr.bf16.mxu0 %v3573
    %3718 = vmatpush2.bf16.msra.mxu0 %v3572
    %3719 = vmatprep.subr.bf16.mxu0 %v3570
    %3720 = vmatpush2.bf16.msra.mxu0 %v3569
    %3721 = vmatprep.mubr.bf16.mxu0 %v3187
    %3722 = vmatmul.mubr.bf16.gmra.mxu0 %v3186
    %v3723 = vpop.f32.mrf.mxu0
    %v3724 = vadd.f32 %v3293, %v3723
    %v3725 = vpop.f32.mrf.mxu0
    %v3726 = vadd.f32 %v3297, %v3725
    %v3727 = vpop.f32.mrf.mxu0
    %v3728 = vadd.f32 %v3293, %v3727
    %v3729 = vpop.f32.mrf.mxu0
    %v3730 = vadd.f32 %v3297, %v3729
    %3731 = vmatprep.mubr.bf16.mxu0 %v3190
    %3732 = vmatmul.mubr.bf16.gmra.mxu0 %v3189
    %v3733 = vpop.f32.mrf.mxu0
    %v3734 = vadd.f32 %v3293, %v3733
    %v3735 = vpop.f32.mrf.mxu0
    %v3736 = vadd.f32 %v3297, %v3735
    %v3737 = vpop.f32.mrf.mxu0
    %v3738 = vadd.f32 %v3293, %v3737
    %v3739 = vpop.f32.mrf.mxu0
    %v3740 = vadd.f32 %v3297, %v3739
    %3741 = vdwg.mxu0
    %3742 = vmatprep.subr.bf16.mxu0 %v3615
    %3743 = vmatpush1.bf16.msra.mxu0 %v3614
    %3744 = vmatprep.subr.bf16.mxu0 %v3612
    %3745 = vmatpush1.bf16.msra.mxu0 %v3611
    %3746 = vmatprep.subr.bf16.mxu0 %v3609
    %3747 = vmatpush1.bf16.msra.mxu0 %v3608
    %3748 = vmatprep.subr.bf16.mxu0 %v3606
    %3749 = vmatpush1.bf16.msra.mxu0 %v3605
    %3750 = vmatprep.subr.bf16.mxu0 %v3603
    %3751 = vmatpush1.bf16.msra.mxu0 %v3602
    %3752 = vmatprep.subr.bf16.mxu0 %v3600
    %3753 = vmatpush1.bf16.msra.mxu0 %v3599
    %3754 = vmatprep.subr.bf16.mxu0 %v3597
    %3755 = vmatpush1.bf16.msra.mxu0 %v3596
    %3756 = vmatprep.subr.bf16.mxu0 %v3594
    %3757 = vmatpush1.bf16.msra.mxu0 %v3593
    %3758 = vmatprep.subr.bf16.mxu0 0
    %3759 = vmatpush2.bf16.msra.mxu0 0
    %3760 = vmatprep.subr.bf16.mxu0 0
    %3761 = vmatpush2.bf16.msra.mxu0 0
    %3762 = vmatprep.subr.bf16.mxu0 0
    %3763 = vmatpush2.bf16.msra.mxu0 0
    %3764 = vmatprep.subr.bf16.mxu0 0
    %3765 = vmatpush2.bf16.msra.mxu0 0
    %3766 = vmatprep.subr.bf16.mxu0 0
    %3767 = vmatpush2.bf16.msra.mxu0 0
    %3768 = vmatprep.subr.bf16.mxu0 0
    %3769 = vmatpush2.bf16.msra.mxu0 0
    %3770 = vmatprep.subr.bf16.mxu0 0
    %3771 = vmatpush2.bf16.msra.mxu0 0
    %3772 = vmatprep.subr.bf16.mxu0 0
    %3773 = vmatpush2.bf16.msra.mxu0 0
    %3774 = vmatprep.mubr.bf16.mxu0 0
    %3775 = vmatmul.mubr.bf16.gmra.mxu0 %v3188
    %v3776 = vpop.f32.mrf.mxu0
    %v3777 = vadd.f32 %v3724, %v3776
    %v3778 = vpop.f32.mrf.mxu0
    %v3779 = vadd.f32 %v3726, %v3778
    %v3780 = vpop.f32.mrf.mxu0
    %v3781 = vadd.f32 %v3728, %v3780
    %v3782 = vpop.f32.mrf.mxu0
    %v3783 = vadd.f32 %v3730, %v3782
    %3784 = vmatprep.mubr.bf16.mxu0 0
    %3785 = vmatmul.mubr.bf16.gmra.mxu0 %v3191
    %v3786 = vpop.f32.mrf.mxu0
    %v3787 = vadd.f32 %v3734, %v3786
    %v3788 = vpop.f32.mrf.mxu0
    %v3789 = vadd.f32 %v3736, %v3788
    %v3790 = vpop.f32.mrf.mxu0
    %v3791 = vadd.f32 %v3738, %v3790
    %v3792 = vpop.f32.mrf.mxu0
    %v3793 = vadd.f32 %v3740, %v3792
    %3794 = vdwg.mxu0
    %3795 = vmatprep.subr.bf16.mxu0 0
    %3796 = vmatpush1.bf16.msra.mxu0 %v3568
    %3797 = vmatprep.subr.bf16.mxu0 0
    %3798 = vmatpush1.bf16.msra.mxu0 %v3565
    %3799 = vmatprep.subr.bf16.mxu0 0
    %3800 = vmatpush1.bf16.msra.mxu0 %v3562
    %3801 = vmatprep.subr.bf16.mxu0 0
    %3802 = vmatpush1.bf16.msra.mxu0 %v3559
    %3803 = vmatprep.subr.bf16.mxu0 0
    %3804 = vmatpush1.bf16.msra.mxu0 %v3556
    %3805 = vmatprep.subr.bf16.mxu0 0
    %3806 = vmatpush1.bf16.msra.mxu0 %v3553
    %3807 = vmatprep.subr.bf16.mxu0 0
    %3808 = vmatpush1.bf16.msra.mxu0 %v3550
    %3809 = vmatprep.subr.bf16.mxu0 0
    %3810 = vmatpush1.bf16.msra.mxu0 %v3547
    %3811 = vmatprep.subr.bf16.mxu0 0
    %3812 = vmatpush2.bf16.msra.mxu0 %v3592
    %3813 = vmatprep.subr.bf16.mxu0 0
    %3814 = vmatpush2.bf16.msra.mxu0 %v3589
    %3815 = vmatprep.subr.bf16.mxu0 0
    %3816 = vmatpush2.bf16.msra.mxu0 %v3586
    %3817 = vmatprep.subr.bf16.mxu0 0
    %3818 = vmatpush2.bf16.msra.mxu0 %v3583
    %3819 = vmatprep.subr.bf16.mxu0 0
    %3820 = vmatpush2.bf16.msra.mxu0 %v3580
    %3821 = vmatprep.subr.bf16.mxu0 0
    %3822 = vmatpush2.bf16.msra.mxu0 %v3577
    %3823 = vmatprep.subr.bf16.mxu0 0
    %3824 = vmatpush2.bf16.msra.mxu0 %v3574
    %3825 = vmatprep.subr.bf16.mxu0 0
    %3826 = vmatpush2.bf16.msra.mxu0 %v3571
    %3827 = vmatprep.mubr.bf16.mxu0 %v3187
    %3828 = vmatmul.mubr.bf16.gmra.mxu0 %v3186
    %v3829 = vpop.f32.mrf.mxu0
    %v3830 = vadd.f32 %v3301, %v3829
    %v3831 = vpop.f32.mrf.mxu0
    %v3832 = vpop.f32.mrf.mxu0
    %v3833 = vadd.f32 %v3301, %v3832
    %v3834 = vpop.f32.mrf.mxu0
    %3835 = vmatprep.mubr.bf16.mxu0 %v3190
    %3836 = vmatmul.mubr.bf16.gmra.mxu0 %v3189
    %v3837 = vpop.f32.mrf.mxu0
    %v3838 = vadd.f32 %v3301, %v3837
    %v3839 = vpop.f32.mrf.mxu0
    %v3840 = vpop.f32.mrf.mxu0
    %v3841 = vadd.f32 %v3301, %v3840
    %v3842 = vpop.f32.mrf.mxu0
    %3843 = vdwg.mxu0
    %3844 = vmatprep.subr.bf16.mxu0 0
    %3845 = vmatpush1.bf16.msra.mxu0 %v3616
    %3846 = vmatprep.subr.bf16.mxu0 0
    %3847 = vmatpush1.bf16.msra.mxu0 %v3613
    %3848 = vmatprep.subr.bf16.mxu0 0
    %3849 = vmatpush1.bf16.msra.mxu0 %v3610
    %3850 = vmatprep.subr.bf16.mxu0 0
    %3851 = vmatpush1.bf16.msra.mxu0 %v3607
    %3852 = vmatprep.subr.bf16.mxu0 0
    %3853 = vmatpush1.bf16.msra.mxu0 %v3604
    %3854 = vmatprep.subr.bf16.mxu0 0
    %3855 = vmatpush1.bf16.msra.mxu0 %v3601
    %3856 = vmatprep.subr.bf16.mxu0 0
    %3857 = vmatpush1.bf16.msra.mxu0 %v3598
    %3858 = vmatprep.subr.bf16.mxu0 0
    %3859 = vmatpush1.bf16.msra.mxu0 %v3595
    %3860 = vmatprep.subr.bf16.mxu0 0
    %3861 = vmatpush2.bf16.msra.mxu0 0
    %3862 = vmatprep.subr.bf16.mxu0 0
    %3863 = vmatpush2.bf16.msra.mxu0 0
    %3864 = vmatprep.subr.bf16.mxu0 0
    %3865 = vmatpush2.bf16.msra.mxu0 0
    %3866 = vmatprep.subr.bf16.mxu0 0
    %3867 = vmatpush2.bf16.msra.mxu0 0
    %3868 = vmatprep.subr.bf16.mxu0 0
    %3869 = vmatpush2.bf16.msra.mxu0 0
    %3870 = vmatprep.subr.bf16.mxu0 0
    %3871 = vmatpush2.bf16.msra.mxu0 0
    %3872 = vmatprep.subr.bf16.mxu0 0
    %3873 = vmatpush2.bf16.msra.mxu0 0
    %3874 = vmatprep.subr.bf16.mxu0 0
    %3875 = vmatpush2.bf16.msra.mxu0 0
    %3876 = vmatprep.mubr.bf16.mxu0 0
    %3877 = vmatmul.mubr.bf16.gmra.mxu0 %v3188
    %v3878 = vpop.f32.mrf.mxu0
    %v3879 = vadd.f32 %v3830, %v3878
    %v3880 = vpop.f32.mrf.mxu0
    %v3881 = vpop.f32.mrf.mxu0
    %v3882 = vadd.f32 %v3833, %v3881
    %v3883 = vpop.f32.mrf.mxu0
    %3884 = vmatprep.mubr.bf16.mxu0 0
    %3885 = vmatmul.mubr.bf16.gmra.mxu0 %v3191
    %v3886 = vpop.f32.mrf.mxu0
    %v3887 = vadd.f32 %v3838, %v3886
    %v3888 = vpop.f32.mrf.mxu0
    %v3889 = vpop.f32.mrf.mxu0
    %v3890 = vadd.f32 %v3841, %v3889
    %v3891 = vpop.f32.mrf.mxu0
    %3892 = vdwg.mxu0
    %v3893 = vadd.f32 %v208, %v3777
    %v3894 = vadd.f32 %v209, %v3779
    %v3895 = vadd.f32 %v210, %v3879
    %v3896 = vadd.f32 %v211, %v3781
    %v3897 = vadd.f32 %v212, %v3783
    %v3898 = vadd.f32 %v213, %v3882
    %v3899 = vadd.f32 %v214, %v3787
    %v3900 = vadd.f32 %v215, %v3789
    %v3901 = vadd.f32 %v216, %v3887
    %v3902 = vadd.f32 %v217, %v3791
    %v3903 = vadd.f32 %v218, %v3793
    %v3904 = vadd.f32 %v219, %v3890
    %v3905 = vld [vmem:[#allocation14] sm:$0x7]
    %v3906 = vld [vmem:[#allocation16] sm:$0x7]
    %v3907 = vadd.f32 %v3893, %v3894
    %v3908 = vadd.f32 %v3907, %v3895
    %3909 = vadd.xlane.f32.xlu0 %v3908
    %v3910 = vpop.xlane.xlu0 %3909
    %v3911 = vadd.f32 %v3896, %v3897
    %v3912 = vadd.f32 %v3911, %v3898
    %3913 = vadd.xlane.f32.xlu0 %v3912
    %v3914 = vpop.xlane.xlu0 %3913
    %v3915 = vadd.f32 %v3899, %v3900
    %v3916 = vadd.f32 %v3915, %v3901
    %3917 = vadd.xlane.f32.xlu0 %v3916
    %v3918 = vpop.xlane.xlu0 %3917
    %v3919 = vadd.f32 %v3902, %v3903
    %v3920 = vadd.f32 %v3919, %v3904
    %3921 = vadd.xlane.f32.xlu0 %v3920
    %v3922 = vpop.xlane.xlu0 %3921
    %v3923 = vmul.f32 %v3910, %v238
    %v3924 = vmul.f32 %v3914, %v238
    %v3925 = vmul.f32 %v3918, %v238
    %v3926 = vmul.f32 %v3922, %v238
    %v3927 = vsub.f32 %v3893, %v3923
    %v3928 = vsub.f32 %v3894, %v3923
    %v3929 = vsub.f32 %v3895, %v3923
    %v3930 = vsub.f32 %v3896, %v3924
    %v3931 = vsub.f32 %v3897, %v3924
    %v3932 = vsub.f32 %v3898, %v3924
    %v3933 = vsub.f32 %v3899, %v3925
    %v3934 = vsub.f32 %v3900, %v3925
    %v3935 = vsub.f32 %v3901, %v3925
    %v3936 = vsub.f32 %v3902, %v3926
    %v3937 = vsub.f32 %v3903, %v3926
    %v3938 = vsub.f32 %v3904, %v3926
    %v3939 = vmul.f32 %v3927, %v3927
    %v3940 = vmul.f32 %v3928, %v3928
    %v3941 = vmul.f32 %v3929, %v3929
    %v3942 = vmul.f32 %v3930, %v3930
    %v3943 = vmul.f32 %v3931, %v3931
    %v3944 = vmul.f32 %v3932, %v3932
    %v3945 = vmul.f32 %v3933, %v3933
    %v3946 = vmul.f32 %v3934, %v3934
    %v3947 = vmul.f32 %v3935, %v3935
    %v3948 = vmul.f32 %v3936, %v3936
    %v3949 = vmul.f32 %v3937, %v3937
    %v3950 = vmul.f32 %v3938, %v3938
    %v3951 = vadd.f32 %v3939, %v3940
    %v3952 = vadd.f32 %v3951, %v3941
    %3953 = vadd.xlane.f32.xlu0 %v3952
    %v3954 = vpop.xlane.xlu0 %3953
    %v3955 = vadd.f32 %v3942, %v3943
    %v3956 = vadd.f32 %v3955, %v3944
    %3957 = vadd.xlane.f32.xlu0 %v3956
    %v3958 = vpop.xlane.xlu0 %3957
    %v3959 = vadd.f32 %v3945, %v3946
    %v3960 = vadd.f32 %v3959, %v3947
    %3961 = vadd.xlane.f32.xlu0 %v3960
    %v3962 = vpop.xlane.xlu0 %3961
    %v3963 = vadd.f32 %v3948, %v3949
    %v3964 = vadd.f32 %v3963, %v3950
    %3965 = vadd.xlane.f32.xlu0 %v3964
    %v3966 = vpop.xlane.xlu0 %3965
    %v3967 = vmul.f32 %v3954, %v238
    %v3968 = vmul.f32 %v3958, %v238
    %v3969 = vmul.f32 %v3962, %v238
    %v3970 = vmul.f32 %v3966, %v238
    %v3971 = vadd.f32 %v3967, 1e-05
    %v3972 = vadd.f32 %v3968, 1e-05
    %v3973 = vadd.f32 %v3969, 1e-05
    %v3974 = vadd.f32 %v3970, 1e-05
    %v3975 = vrsqrt.pop %v3971
    %v3976 = vrsqrt.pop %v3972
    %v3977 = vrsqrt.pop %v3973
    %v3978 = vrsqrt.pop %v3974
    %v3979 = vmul.f32 %v3927, %v3975
    %v3980 = vmul.f32 %v3928, %v3975
    %v3981 = vmul.f32 %v3929, %v3975
    %v3982 = vmul.f32 %v3930, %v3976
    %v3983 = vmul.f32 %v3931, %v3976
    %v3984 = vmul.f32 %v3932, %v3976
    %v3985 = vmul.f32 %v3933, %v3977
    %v3986 = vmul.f32 %v3934, %v3977
    %v3987 = vmul.f32 %v3935, %v3977
    %v3988 = vmul.f32 %v3936, %v3978
    %v3989 = vmul.f32 %v3937, %v3978
    %v3990 = vmul.f32 %v3938, %v3978
    %v3992 = vlaneseq
    %v3993 = vshrl.u32 %v3992, 7
    %v3994 = vsub.s32 0, %v3993
    %v3995 = vrot.slane %v3905, %v3994
    %v3996 = vlaneseq
    %v3997 = vshrl.u32 %v3996, 7
    %v3998 = vsub.s32 1, %v3997
    %v3999 = vrot.slane %v3905, %v3998
    %v4000 = vlaneseq
    %v4001 = vshrl.u32 %v4000, 7
    %v4002 = vsub.s32 2, %v4001
    %v4003 = vrot.slane %v3905, %v4002
    %v4007 = vmul.f32 %v3979, %v3995
    %v4008 = vmul.f32 %v3980, %v3999
    %v4009 = vmul.f32 %v3981, %v4003
    %v4010 = vmul.f32 %v3982, %v3995
    %v4011 = vmul.f32 %v3983, %v3999
    %v4012 = vmul.f32 %v3984, %v4003
    %v4013 = vmul.f32 %v3985, %v3995
    %v4014 = vmul.f32 %v3986, %v3999
    %v4015 = vmul.f32 %v3987, %v4003
    %v4016 = vmul.f32 %v3988, %v3995
    %v4017 = vmul.f32 %v3989, %v3999
    %v4018 = vmul.f32 %v3990, %v4003
    %v4020 = vlaneseq
    %v4021 = vshrl.u32 %v4020, 7
    %v4022 = vsub.s32 0, %v4021
    %v4023 = vrot.slane %v3906, %v4022
    %v4024 = vlaneseq
    %v4025 = vshrl.u32 %v4024, 7
    %v4026 = vsub.s32 1, %v4025
    %v4027 = vrot.slane %v3906, %v4026
    %v4028 = vlaneseq
    %v4029 = vshrl.u32 %v4028, 7
    %v4030 = vsub.s32 2, %v4029
    %v4031 = vrot.slane %v3906, %v4030
    %v4035 = vadd.f32 %v4007, %v4023
    %v4036 = vadd.f32 %v4008, %v4027
    %v4037 = vadd.f32 %v4009, %v4031
    %v4038 = vadd.f32 %v4010, %v4023
    %v4039 = vadd.f32 %v4011, %v4027
    %v4040 = vadd.f32 %v4012, %v4031
    %v4041 = vadd.f32 %v4013, %v4023
    %v4042 = vadd.f32 %v4014, %v4027
    %v4043 = vadd.f32 %v4015, %v4031
    %v4044 = vadd.f32 %v4016, %v4023
    %v4045 = vadd.f32 %v4017, %v4027
    %v4046 = vadd.f32 %v4018, %v4031
    %v4047 = vpack.c.bf16 %v4038, %v4035
    %v4048 = vpack.c.bf16 %v4039, %v4036
    %v4049 = vpack.c.bf16 %v4040, %v4037
    %v4050 = vpack.c.bf16 %v4044, %v4041
    %v4051 = vpack.c.bf16 %v4045, %v4042
    %v4052 = vpack.c.bf16 %v4046, %v4043
    %v4053 = vld [vmem:[#allocation17] sm:$0xff]
    %v4054 = vld [vmem:[#allocation17 + $0x8] sm:$0xff]
    %v4055 = vld [vmem:[#allocation17 + $0x10] sm:$0xff]
    %v4056 = vld [vmem:[#allocation17 + $0x18] sm:$0xff]
    %v4057 = vld [vmem:[#allocation17 + $0x20] sm:$0xff]
    %v4058 = vld [vmem:[#allocation17 + $0x28] sm:$0xff]
    %v4059 = vld [vmem:[#allocation17 + $0x30] sm:$0xff]
    %v4060 = vld [vmem:[#allocation17 + $0x38] sm:$0xff]
    %v4061 = vld [vmem:[#allocation17 + $0x40] sm:$0xff]
    %v4062 = vld [vmem:[#allocation17 + $0x48] sm:$0xff]
    %v4063 = vld [vmem:[#allocation17 + $0x50] sm:$0xff]
    %v4064 = vld [vmem:[#allocation17 + $0x58] sm:$0xff]
    %v4065 = vld [vmem:[#allocation17 + $0x60] sm:$0xff]
    %v4066 = vld [vmem:[#allocation17 + $0x68] sm:$0xff]
    %v4067 = vld [vmem:[#allocation17 + $0x70] sm:$0xff]
    %v4068 = vld [vmem:[#allocation17 + $0x78] sm:$0xff]
    %v4069 = vld [vmem:[#allocation17 + $0x80] sm:$0xff]
    %v4070 = vld [vmem:[#allocation17 + $0x88] sm:$0xff]
    %v4071 = vld [vmem:[#allocation17 + $0x90] sm:$0xff]
    %v4072 = vld [vmem:[#allocation17 + $0x98] sm:$0xff]
    %v4073 = vld [vmem:[#allocation17 + $0xa0] sm:$0xff]
    %v4074 = vld [vmem:[#allocation17 + $0xa8] sm:$0xff]
    %v4075 = vld [vmem:[#allocation17 + $0xb0] sm:$0xff]
    %v4076 = vld [vmem:[#allocation17 + $0xb8] sm:$0xff]
    %v4077 = vld [vmem:[#allocation17 + $0xc0] sm:$0xff]
    %v4078 = vld [vmem:[#allocation17 + $0xc8] sm:$0xff]
    %v4079 = vld [vmem:[#allocation17 + $0xd0] sm:$0xff]
    %v4080 = vld [vmem:[#allocation17 + $0xd8] sm:$0xff]
    %v4081 = vld [vmem:[#allocation17 + $0xe0] sm:$0xff]
    %v4082 = vld [vmem:[#allocation17 + $0xe8] sm:$0xff]
    %v4083 = vld [vmem:[#allocation17 + $0xf0] sm:$0xff]
    %v4084 = vld [vmem:[#allocation17 + $0xf8] sm:$0xff]
    %v4085 = vld [vmem:[#allocation17 + $0x100] sm:$0xff]
    %v4086 = vld [vmem:[#allocation17 + $0x108] sm:$0xff]
    %v4087 = vld [vmem:[#allocation17 + $0x110] sm:$0xff]
    %v4088 = vld [vmem:[#allocation17 + $0x118] sm:$0xff]
    %v4089 = vld [vmem:[#allocation17 + $0x120] sm:$0xff]
    %v4090 = vld [vmem:[#allocation17 + $0x128] sm:$0xff]
    %v4091 = vld [vmem:[#allocation17 + $0x130] sm:$0xff]
    %v4092 = vld [vmem:[#allocation17 + $0x138] sm:$0xff]
    %v4093 = vld [vmem:[#allocation17 + $0x140] sm:$0xff]
    %v4094 = vld [vmem:[#allocation17 + $0x148] sm:$0xff]
    %v4095 = vld [vmem:[#allocation17 + $0x150] sm:$0xff]
    %v4096 = vld [vmem:[#allocation17 + $0x158] sm:$0xff]
    %v4097 = vld [vmem:[#allocation17 + $0x160] sm:$0xff]
    %v4098 = vld [vmem:[#allocation17 + $0x168] sm:$0xff]
    %v4099 = vld [vmem:[#allocation17 + $0x170] sm:$0xff]
    %v4100 = vld [vmem:[#allocation17 + $0x178] sm:$0xff]
    %v4101 = vld [vmem:[#allocation17 + $0x180] sm:$0xff]
    %v4102 = vld [vmem:[#allocation17 + $0x188] sm:$0xff]
    %v4103 = vld [vmem:[#allocation17 + $0x190] sm:$0xff]
    %v4104 = vld [vmem:[#allocation17 + $0x198] sm:$0xff]
    %v4105 = vld [vmem:[#allocation17 + $0x1a0] sm:$0xff]
    %v4106 = vld [vmem:[#allocation17 + $0x1a8] sm:$0xff]
    %v4107 = vld [vmem:[#allocation17 + $0x1b0] sm:$0xff]
    %v4108 = vld [vmem:[#allocation17 + $0x1b8] sm:$0xff]
    %v4109 = vld [vmem:[#allocation17 + $0x1c0] sm:$0xff]
    %v4110 = vld [vmem:[#allocation17 + $0x1c8] sm:$0xff]
    %v4111 = vld [vmem:[#allocation17 + $0x1d0] sm:$0xff]
    %v4112 = vld [vmem:[#allocation17 + $0x1d8] sm:$0xff]
    %v4113 = vld [vmem:[#allocation17 + $0x1e0] sm:$0xff]
    %v4114 = vld [vmem:[#allocation17 + $0x1e8] sm:$0xff]
    %v4115 = vld [vmem:[#allocation17 + $0x1f0] sm:$0xff]
    %v4116 = vld [vmem:[#allocation17 + $0x1f8] sm:$0xff]
    %v4117 = vld [vmem:[#allocation17 + $0x200] sm:$0xff]
    %v4118 = vld [vmem:[#allocation17 + $0x208] sm:$0xff]
    %v4119 = vld [vmem:[#allocation17 + $0x210] sm:$0xff]
    %v4120 = vld [vmem:[#allocation17 + $0x218] sm:$0xff]
    %v4121 = vld [vmem:[#allocation17 + $0x220] sm:$0xff]
    %v4122 = vld [vmem:[#allocation17 + $0x228] sm:$0xff]
    %v4123 = vld [vmem:[#allocation17 + $0x230] sm:$0xff]
    %v4124 = vld [vmem:[#allocation17 + $0x238] sm:$0xff]
    %v4125 = vld [vmem:[#allocation17 + $0x240] sm:$0xff]
    %v4126 = vld [vmem:[#allocation17 + $0x248] sm:$0xff]
    %v4127 = vld [vmem:[#allocation17 + $0x250] sm:$0xff]
    %v4128 = vld [vmem:[#allocation17 + $0x258] sm:$0xff]
    %v4129 = vld [vmem:[#allocation17 + $0x260] sm:$0xff]
    %v4130 = vld [vmem:[#allocation17 + $0x268] sm:$0xff]
    %v4131 = vld [vmem:[#allocation17 + $0x270] sm:$0xff]
    %v4132 = vld [vmem:[#allocation17 + $0x278] sm:$0xff]
    %v4133 = vld [vmem:[#allocation17 + $0x280] sm:$0xff]
    %v4134 = vld [vmem:[#allocation17 + $0x288] sm:$0xff]
    %v4135 = vld [vmem:[#allocation17 + $0x290] sm:$0xff]
    %v4136 = vld [vmem:[#allocation17 + $0x298] sm:$0xff]
    %v4137 = vld [vmem:[#allocation17 + $0x2a0] sm:$0xff]
    %v4138 = vld [vmem:[#allocation17 + $0x2a8] sm:$0xff]
    %v4139 = vld [vmem:[#allocation17 + $0x2b0] sm:$0xff]
    %v4140 = vld [vmem:[#allocation17 + $0x2b8] sm:$0xff]
    %v4141 = vld [vmem:[#allocation17 + $0x2c0] sm:$0xff]
    %v4142 = vld [vmem:[#allocation17 + $0x2c8] sm:$0xff]
    %v4143 = vld [vmem:[#allocation17 + $0x2d0] sm:$0xff]
    %v4144 = vld [vmem:[#allocation17 + $0x2d8] sm:$0xff]
    %v4145 = vld [vmem:[#allocation17 + $0x2e0] sm:$0xff]
    %v4146 = vld [vmem:[#allocation17 + $0x2e8] sm:$0xff]
    %v4147 = vld [vmem:[#allocation17 + $0x2f0] sm:$0xff]
    %v4148 = vld [vmem:[#allocation17 + $0x2f8] sm:$0xff]
    %v4149 = vld [vmem:[#allocation17 + $0x300] sm:$0xff]
    %v4150 = vld [vmem:[#allocation17 + $0x308] sm:$0xff]
    %v4151 = vld [vmem:[#allocation17 + $0x310] sm:$0xff]
    %v4152 = vld [vmem:[#allocation17 + $0x318] sm:$0xff]
    %v4153 = vld [vmem:[#allocation17 + $0x320] sm:$0xff]
    %v4154 = vld [vmem:[#allocation17 + $0x328] sm:$0xff]
    %v4155 = vld [vmem:[#allocation17 + $0x330] sm:$0xff]
    %v4156 = vld [vmem:[#allocation17 + $0x338] sm:$0xff]
    %v4157 = vld [vmem:[#allocation17 + $0x340] sm:$0xff]
    %v4158 = vld [vmem:[#allocation17 + $0x348] sm:$0xff]
    %v4159 = vld [vmem:[#allocation17 + $0x350] sm:$0xff]
    %v4160 = vld [vmem:[#allocation17 + $0x358] sm:$0xff]
    %v4161 = vld [vmem:[#allocation17 + $0x360] sm:$0xff]
    %v4162 = vld [vmem:[#allocation17 + $0x368] sm:$0xff]
    %v4163 = vld [vmem:[#allocation17 + $0x370] sm:$0xff]
    %v4164 = vld [vmem:[#allocation17 + $0x378] sm:$0xff]
    %v4165 = vld [vmem:[#allocation17 + $0x380] sm:$0xff]
    %v4166 = vld [vmem:[#allocation17 + $0x388] sm:$0xff]
    %v4167 = vld [vmem:[#allocation17 + $0x390] sm:$0xff]
    %v4168 = vld [vmem:[#allocation17 + $0x398] sm:$0xff]
    %v4169 = vld [vmem:[#allocation17 + $0x3a0] sm:$0xff]
    %v4170 = vld [vmem:[#allocation17 + $0x3a8] sm:$0xff]
    %v4171 = vld [vmem:[#allocation17 + $0x3b0] sm:$0xff]
    %v4172 = vld [vmem:[#allocation17 + $0x3b8] sm:$0xff]
    %v4173 = vld [vmem:[#allocation17 + $0x3c0] sm:$0xff]
    %v4174 = vld [vmem:[#allocation17 + $0x3c8] sm:$0xff]
    %v4175 = vld [vmem:[#allocation17 + $0x3d0] sm:$0xff]
    %v4176 = vld [vmem:[#allocation17 + $0x3d8] sm:$0xff]
    %v4177 = vld [vmem:[#allocation17 + $0x3e0] sm:$0xff]
    %v4178 = vld [vmem:[#allocation17 + $0x3e8] sm:$0xff]
    %v4179 = vld [vmem:[#allocation17 + $0x3f0] sm:$0xff]
    %v4180 = vld [vmem:[#allocation17 + $0x3f8] sm:$0xff]
    %v4181 = vld [vmem:[#allocation17 + $0x400] sm:$0xff]
    %v4182 = vld [vmem:[#allocation17 + $0x408] sm:$0xff]
    %v4183 = vld [vmem:[#allocation17 + $0x410] sm:$0xff]
    %v4184 = vld [vmem:[#allocation17 + $0x418] sm:$0xff]
    %v4185 = vld [vmem:[#allocation17 + $0x420] sm:$0xff]
    %v4186 = vld [vmem:[#allocation17 + $0x428] sm:$0xff]
    %v4187 = vld [vmem:[#allocation17 + $0x430] sm:$0xff]
    %v4188 = vld [vmem:[#allocation17 + $0x438] sm:$0xff]
    %v4189 = vld [vmem:[#allocation17 + $0x440] sm:$0xff]
    %v4190 = vld [vmem:[#allocation17 + $0x448] sm:$0xff]
    %v4191 = vld [vmem:[#allocation17 + $0x450] sm:$0xff]
    %v4192 = vld [vmem:[#allocation17 + $0x458] sm:$0xff]
    %v4193 = vld [vmem:[#allocation17 + $0x460] sm:$0xff]
    %v4194 = vld [vmem:[#allocation17 + $0x468] sm:$0xff]
    %v4195 = vld [vmem:[#allocation17 + $0x470] sm:$0xff]
    %v4196 = vld [vmem:[#allocation17 + $0x478] sm:$0xff]
    %v4197 = vld [vmem:[#allocation17 + $0x480] sm:$0xff]
    %v4198 = vld [vmem:[#allocation17 + $0x488] sm:$0xff]
    %v4199 = vld [vmem:[#allocation17 + $0x490] sm:$0xff]
    %v4200 = vld [vmem:[#allocation17 + $0x498] sm:$0xff]
    %v4201 = vld [vmem:[#allocation17 + $0x4a0] sm:$0xff]
    %v4202 = vld [vmem:[#allocation17 + $0x4a8] sm:$0xff]
    %v4203 = vld [vmem:[#allocation17 + $0x4b0] sm:$0xff]
    %v4204 = vld [vmem:[#allocation17 + $0x4b8] sm:$0xff]
    %v4205 = vld [vmem:[#allocation17 + $0x4c0] sm:$0xff]
    %v4206 = vld [vmem:[#allocation17 + $0x4c8] sm:$0xff]
    %v4207 = vld [vmem:[#allocation17 + $0x4d0] sm:$0xff]
    %v4208 = vld [vmem:[#allocation17 + $0x4d8] sm:$0xff]
    %v4209 = vld [vmem:[#allocation17 + $0x4e0] sm:$0xff]
    %v4210 = vld [vmem:[#allocation17 + $0x4e8] sm:$0xff]
    %v4211 = vld [vmem:[#allocation17 + $0x4f0] sm:$0xff]
    %v4212 = vld [vmem:[#allocation17 + $0x4f8] sm:$0xff]
    %v4213 = vld [vmem:[#allocation17 + $0x500] sm:$0xff]
    %v4214 = vld [vmem:[#allocation17 + $0x508] sm:$0xff]
    %v4215 = vld [vmem:[#allocation17 + $0x510] sm:$0xff]
    %v4216 = vld [vmem:[#allocation17 + $0x518] sm:$0xff]
    %v4217 = vld [vmem:[#allocation17 + $0x520] sm:$0xff]
    %v4218 = vld [vmem:[#allocation17 + $0x528] sm:$0xff]
    %v4219 = vld [vmem:[#allocation17 + $0x530] sm:$0xff]
    %v4220 = vld [vmem:[#allocation17 + $0x538] sm:$0xff]
    %v4221 = vld [vmem:[#allocation17 + $0x540] sm:$0xff]
    %v4222 = vld [vmem:[#allocation17 + $0x548] sm:$0xff]
    %v4223 = vld [vmem:[#allocation17 + $0x550] sm:$0xff]
    %v4224 = vld [vmem:[#allocation17 + $0x558] sm:$0xff]
    %v4225 = vld [vmem:[#allocation17 + $0x560] sm:$0xff]
    %v4226 = vld [vmem:[#allocation17 + $0x568] sm:$0xff]
    %v4227 = vld [vmem:[#allocation17 + $0x570] sm:$0xff]
    %v4228 = vld [vmem:[#allocation17 + $0x578] sm:$0xff]
    %v4229 = vld [vmem:[#allocation17 + $0x580] sm:$0xff]
    %v4230 = vld [vmem:[#allocation17 + $0x588] sm:$0xff]
    %v4231 = vld [vmem:[#allocation17 + $0x590] sm:$0xff]
    %v4232 = vld [vmem:[#allocation17 + $0x598] sm:$0xff]
    %v4233 = vld [vmem:[#allocation17 + $0x5a0] sm:$0xff]
    %v4234 = vld [vmem:[#allocation17 + $0x5a8] sm:$0xff]
    %v4235 = vld [vmem:[#allocation17 + $0x5b0] sm:$0xff]
    %v4236 = vld [vmem:[#allocation17 + $0x5b8] sm:$0xff]
    %v4237 = vld [vmem:[#allocation17 + $0x5c0] sm:$0xff]
    %v4238 = vld [vmem:[#allocation17 + $0x5c8] sm:$0xff]
    %v4239 = vld [vmem:[#allocation17 + $0x5d0] sm:$0xff]
    %v4240 = vld [vmem:[#allocation17 + $0x5d8] sm:$0xff]
    %v4241 = vld [vmem:[#allocation17 + $0x5e0] sm:$0xff]
    %v4242 = vld [vmem:[#allocation17 + $0x5e8] sm:$0xff]
    %v4243 = vld [vmem:[#allocation17 + $0x5f0] sm:$0xff]
    %v4244 = vld [vmem:[#allocation17 + $0x5f8] sm:$0xff]
    %v4245 = vld [vmem:[#allocation17 + $0x600] sm:$0xff]
    %v4246 = vld [vmem:[#allocation17 + $0x608] sm:$0xff]
    %v4247 = vld [vmem:[#allocation17 + $0x610] sm:$0xff]
    %v4248 = vld [vmem:[#allocation17 + $0x618] sm:$0xff]
    %v4249 = vld [vmem:[#allocation17 + $0x620] sm:$0xff]
    %v4250 = vld [vmem:[#allocation17 + $0x628] sm:$0xff]
    %v4251 = vld [vmem:[#allocation17 + $0x630] sm:$0xff]
    %v4252 = vld [vmem:[#allocation17 + $0x638] sm:$0xff]
    %v4253 = vld [vmem:[#allocation17 + $0x640] sm:$0xff]
    %v4254 = vld [vmem:[#allocation17 + $0x648] sm:$0xff]
    %v4255 = vld [vmem:[#allocation17 + $0x650] sm:$0xff]
    %v4256 = vld [vmem:[#allocation17 + $0x658] sm:$0xff]
    %v4257 = vld [vmem:[#allocation17 + $0x660] sm:$0xff]
    %v4258 = vld [vmem:[#allocation17 + $0x668] sm:$0xff]
    %v4259 = vld [vmem:[#allocation17 + $0x670] sm:$0xff]
    %v4260 = vld [vmem:[#allocation17 + $0x678] sm:$0xff]
    %v4261 = vld [vmem:[#allocation17 + $0x680] sm:$0xff]
    %v4262 = vld [vmem:[#allocation17 + $0x688] sm:$0xff]
    %v4263 = vld [vmem:[#allocation17 + $0x690] sm:$0xff]
    %v4264 = vld [vmem:[#allocation17 + $0x698] sm:$0xff]
    %v4265 = vld [vmem:[#allocation17 + $0x6a0] sm:$0xff]
    %v4266 = vld [vmem:[#allocation17 + $0x6a8] sm:$0xff]
    %v4267 = vld [vmem:[#allocation17 + $0x6b0] sm:$0xff]
    %v4268 = vld [vmem:[#allocation17 + $0x6b8] sm:$0xff]
    %v4269 = vld [vmem:[#allocation17 + $0x6c0] sm:$0xff]
    %v4270 = vld [vmem:[#allocation17 + $0x6c8] sm:$0xff]
    %v4271 = vld [vmem:[#allocation17 + $0x6d0] sm:$0xff]
    %v4272 = vld [vmem:[#allocation17 + $0x6d8] sm:$0xff]
    %v4273 = vld [vmem:[#allocation17 + $0x6e0] sm:$0xff]
    %v4274 = vld [vmem:[#allocation17 + $0x6e8] sm:$0xff]
    %v4275 = vld [vmem:[#allocation17 + $0x6f0] sm:$0xff]
    %v4276 = vld [vmem:[#allocation17 + $0x6f8] sm:$0xff]
    %v4277 = vld [vmem:[#allocation17 + $0x700] sm:$0xff]
    %v4278 = vld [vmem:[#allocation17 + $0x708] sm:$0xff]
    %v4279 = vld [vmem:[#allocation17 + $0x710] sm:$0xff]
    %v4280 = vld [vmem:[#allocation17 + $0x718] sm:$0xff]
    %v4281 = vld [vmem:[#allocation17 + $0x720] sm:$0xff]
    %v4282 = vld [vmem:[#allocation17 + $0x728] sm:$0xff]
    %v4283 = vld [vmem:[#allocation17 + $0x730] sm:$0xff]
    %v4284 = vld [vmem:[#allocation17 + $0x738] sm:$0xff]
    %v4285 = vld [vmem:[#allocation17 + $0x740] sm:$0xff]
    %v4286 = vld [vmem:[#allocation17 + $0x748] sm:$0xff]
    %v4287 = vld [vmem:[#allocation17 + $0x750] sm:$0xff]
    %v4288 = vld [vmem:[#allocation17 + $0x758] sm:$0xff]
    %v4289 = vld [vmem:[#allocation17 + $0x760] sm:$0xff]
    %v4290 = vld [vmem:[#allocation17 + $0x768] sm:$0xff]
    %v4291 = vld [vmem:[#allocation17 + $0x770] sm:$0xff]
    %v4292 = vld [vmem:[#allocation17 + $0x778] sm:$0xff]
    %v4293 = vld [vmem:[#allocation17 + $0x780] sm:$0xff]
    %v4294 = vld [vmem:[#allocation17 + $0x788] sm:$0xff]
    %v4295 = vld [vmem:[#allocation17 + $0x790] sm:$0xff]
    %v4296 = vld [vmem:[#allocation17 + $0x798] sm:$0xff]
    %v4297 = vld [vmem:[#allocation17 + $0x7a0] sm:$0xff]
    %v4298 = vld [vmem:[#allocation17 + $0x7a8] sm:$0xff]
    %v4299 = vld [vmem:[#allocation17 + $0x7b0] sm:$0xff]
    %v4300 = vld [vmem:[#allocation17 + $0x7b8] sm:$0xff]
    %v4301 = vld [vmem:[#allocation17 + $0x7c0] sm:$0xff]
    %v4302 = vld [vmem:[#allocation17 + $0x7c8] sm:$0xff]
    %v4303 = vld [vmem:[#allocation17 + $0x7d0] sm:$0xff]
    %v4304 = vld [vmem:[#allocation17 + $0x7d8] sm:$0xff]
    %v4305 = vld [vmem:[#allocation17 + $0x7e0] sm:$0xff]
    %v4306 = vld [vmem:[#allocation17 + $0x7e8] sm:$0xff]
    %v4307 = vld [vmem:[#allocation17 + $0x7f0] sm:$0xff]
    %v4308 = vld [vmem:[#allocation17 + $0x7f8] sm:$0xff]
    %v4309 = vld [vmem:[#allocation17 + $0x800] sm:$0xff]
    %v4310 = vld [vmem:[#allocation17 + $0x808] sm:$0xff]
    %v4311 = vld [vmem:[#allocation17 + $0x810] sm:$0xff]
    %v4312 = vld [vmem:[#allocation17 + $0x818] sm:$0xff]
    %v4313 = vld [vmem:[#allocation17 + $0x820] sm:$0xff]
    %v4314 = vld [vmem:[#allocation17 + $0x828] sm:$0xff]
    %v4315 = vld [vmem:[#allocation17 + $0x830] sm:$0xff]
    %v4316 = vld [vmem:[#allocation17 + $0x838] sm:$0xff]
    %v4317 = vld [vmem:[#allocation17 + $0x840] sm:$0xff]
    %v4318 = vld [vmem:[#allocation17 + $0x848] sm:$0xff]
    %v4319 = vld [vmem:[#allocation17 + $0x850] sm:$0xff]
    %v4320 = vld [vmem:[#allocation17 + $0x858] sm:$0xff]
    %v4321 = vld [vmem:[#allocation17 + $0x860] sm:$0xff]
    %v4322 = vld [vmem:[#allocation17 + $0x868] sm:$0xff]
    %v4323 = vld [vmem:[#allocation17 + $0x870] sm:$0xff]
    %v4324 = vld [vmem:[#allocation17 + $0x878] sm:$0xff]
    %v4325 = vld [vmem:[#allocation17 + $0x880] sm:$0xff]
    %v4326 = vld [vmem:[#allocation17 + $0x888] sm:$0xff]
    %v4327 = vld [vmem:[#allocation17 + $0x890] sm:$0xff]
    %v4328 = vld [vmem:[#allocation17 + $0x898] sm:$0xff]
    %v4329 = vld [vmem:[#allocation17 + $0x8a0] sm:$0xff]
    %v4330 = vld [vmem:[#allocation17 + $0x8a8] sm:$0xff]
    %v4331 = vld [vmem:[#allocation17 + $0x8b0] sm:$0xff]
    %v4332 = vld [vmem:[#allocation17 + $0x8b8] sm:$0xff]
    %v4333 = vld [vmem:[#allocation17 + $0x8c0] sm:$0xff]
    %v4334 = vld [vmem:[#allocation17 + $0x8c8] sm:$0xff]
    %v4335 = vld [vmem:[#allocation17 + $0x8d0] sm:$0xff]
    %v4336 = vld [vmem:[#allocation17 + $0x8d8] sm:$0xff]
    %v4337 = vld [vmem:[#allocation17 + $0x8e0] sm:$0xff]
    %v4338 = vld [vmem:[#allocation17 + $0x8e8] sm:$0xff]
    %v4339 = vld [vmem:[#allocation17 + $0x8f0] sm:$0xff]
    %v4340 = vld [vmem:[#allocation17 + $0x8f8] sm:$0xff]
    %v4341 = vld [vmem:[#allocation19] sm:$0xff]
    %v4342 = vld [vmem:[#allocation19 + $0x8] sm:$0xf]
    %v4345 = vlaneseq
    %v4346 = vshrl.u32 %v4345, 7
    %v4347 = vsub.s32 0, %v4346
    %v4348 = vrot.slane %v4341, %v4347
    %v4349 = vlaneseq
    %v4350 = vshrl.u32 %v4349, 7
    %v4351 = vsub.s32 1, %v4350
    %v4352 = vrot.slane %v4341, %v4351
    %v4353 = vlaneseq
    %v4354 = vshrl.u32 %v4353, 7
    %v4355 = vsub.s32 2, %v4354
    %v4356 = vrot.slane %v4341, %v4355
    %v4357 = vlaneseq
    %v4358 = vshrl.u32 %v4357, 7
    %v4359 = vsub.s32 3, %v4358
    %v4360 = vrot.slane %v4341, %v4359
    %v4361 = vlaneseq
    %v4362 = vshrl.u32 %v4361, 7
    %v4363 = vsub.s32 4, %v4362
    %v4364 = vrot.slane %v4341, %v4363
    %v4365 = vlaneseq
    %v4366 = vshrl.u32 %v4365, 7
    %v4367 = vsub.s32 5, %v4366
    %v4368 = vrot.slane %v4341, %v4367
    %v4369 = vlaneseq
    %v4370 = vshrl.u32 %v4369, 7
    %v4371 = vsub.s32 6, %v4370
    %v4372 = vrot.slane %v4341, %v4371
    %v4373 = vlaneseq
    %v4374 = vshrl.u32 %v4373, 7
    %v4375 = vsub.s32 7, %v4374
    %v4376 = vrot.slane %v4341, %v4375
    %v4377 = vlaneseq
    %v4378 = vshrl.u32 %v4377, 7
    %v4379 = vsub.s32 0, %v4378
    %v4380 = vrot.slane %v4342, %v4379
    %v4381 = vlaneseq
    %v4382 = vshrl.u32 %v4381, 7
    %v4383 = vsub.s32 1, %v4382
    %v4384 = vrot.slane %v4342, %v4383
    %v4385 = vlaneseq
    %v4386 = vshrl.u32 %v4385, 7
    %v4387 = vsub.s32 2, %v4386
    %v4388 = vrot.slane %v4342, %v4387
    %v4389 = vlaneseq
    %v4390 = vshrl.u32 %v4389, 7
    %v4391 = vsub.s32 3, %v4390
    %v4392 = vrot.slane %v4342, %v4391
    %v4693 = vunpack.c.l.b16 %v4053
    %v4694 = vunpack.c.h.b16 %v4053
    %v4695 = vunpack.c.l.b16 %v4054
    %v4696 = vunpack.c.h.b16 %v4054
    %v4697 = vunpack.c.l.b16 %v4055
    %v4698 = vunpack.c.h.b16 %v4055
    %v4699 = vunpack.c.l.b16 %v4056
    %v4700 = vunpack.c.h.b16 %v4056
    %v4701 = vunpack.c.l.b16 %v4057
    %v4702 = vunpack.c.h.b16 %v4057
    %v4703 = vunpack.c.l.b16 %v4058
    %v4704 = vunpack.c.h.b16 %v4058
    %v4705 = vunpack.c.l.b16 %v4059
    %v4706 = vunpack.c.h.b16 %v4059
    %v4707 = vunpack.c.l.b16 %v4060
    %v4708 = vunpack.c.h.b16 %v4060
    %v4709 = vunpack.c.l.b16 %v4061
    %v4710 = vunpack.c.h.b16 %v4061
    %v4711 = vunpack.c.l.b16 %v4062
    %v4712 = vunpack.c.h.b16 %v4062
    %v4713 = vunpack.c.l.b16 %v4063
    %v4714 = vunpack.c.h.b16 %v4063
    %v4715 = vunpack.c.l.b16 %v4064
    %v4716 = vunpack.c.h.b16 %v4064
    %v4717 = vunpack.c.l.b16 %v4065
    %v4718 = vunpack.c.h.b16 %v4065
    %v4719 = vunpack.c.l.b16 %v4066
    %v4720 = vunpack.c.h.b16 %v4066
    %v4721 = vunpack.c.l.b16 %v4067
    %v4722 = vunpack.c.h.b16 %v4067
    %v4723 = vunpack.c.l.b16 %v4068
    %v4724 = vunpack.c.h.b16 %v4068
    %v4725 = vunpack.c.l.b16 %v4069
    %v4726 = vunpack.c.h.b16 %v4069
    %v4727 = vunpack.c.l.b16 %v4070
    %v4728 = vunpack.c.h.b16 %v4070
    %v4729 = vunpack.c.l.b16 %v4071
    %v4730 = vunpack.c.h.b16 %v4071
    %v4731 = vunpack.c.l.b16 %v4072
    %v4732 = vunpack.c.h.b16 %v4072
    %v4733 = vunpack.c.l.b16 %v4073
    %v4734 = vunpack.c.h.b16 %v4073
    %v4735 = vunpack.c.l.b16 %v4074
    %v4736 = vunpack.c.h.b16 %v4074
    %v4737 = vunpack.c.l.b16 %v4075
    %v4738 = vunpack.c.h.b16 %v4075
    %v4739 = vunpack.c.l.b16 %v4076
    %v4740 = vunpack.c.h.b16 %v4076
    %v4741 = vunpack.c.l.b16 %v4077
    %v4742 = vunpack.c.h.b16 %v4077
    %v4743 = vunpack.c.l.b16 %v4078
    %v4744 = vunpack.c.h.b16 %v4078
    %v4745 = vunpack.c.l.b16 %v4079
    %v4746 = vunpack.c.h.b16 %v4079
    %v4747 = vunpack.c.l.b16 %v4080
    %v4748 = vunpack.c.h.b16 %v4080
    %v4749 = vunpack.c.l.b16 %v4081
    %v4750 = vunpack.c.h.b16 %v4081
    %v4751 = vunpack.c.l.b16 %v4082
    %v4752 = vunpack.c.h.b16 %v4082
    %v4753 = vunpack.c.l.b16 %v4083
    %v4754 = vunpack.c.h.b16 %v4083
    %v4755 = vunpack.c.l.b16 %v4084
    %v4756 = vunpack.c.h.b16 %v4084
    %v4757 = vunpack.c.l.b16 %v4085
    %v4758 = vunpack.c.h.b16 %v4085
    %v4759 = vunpack.c.l.b16 %v4086
    %v4760 = vunpack.c.h.b16 %v4086
    %v4761 = vunpack.c.l.b16 %v4087
    %v4762 = vunpack.c.h.b16 %v4087
    %v4763 = vunpack.c.l.b16 %v4088
    %v4764 = vunpack.c.h.b16 %v4088
    %v4765 = vunpack.c.l.b16 %v4089
    %v4766 = vunpack.c.h.b16 %v4089
    %v4767 = vunpack.c.l.b16 %v4090
    %v4768 = vunpack.c.h.b16 %v4090
    %v4769 = vunpack.c.l.b16 %v4091
    %v4770 = vunpack.c.h.b16 %v4091
    %v4771 = vunpack.c.l.b16 %v4092
    %v4772 = vunpack.c.h.b16 %v4092
    %v4773 = vunpack.c.l.b16 %v4093
    %v4774 = vunpack.c.h.b16 %v4093
    %v4775 = vunpack.c.l.b16 %v4094
    %v4776 = vunpack.c.h.b16 %v4094
    %v4777 = vunpack.c.l.b16 %v4095
    %v4778 = vunpack.c.h.b16 %v4095
    %v4779 = vunpack.c.l.b16 %v4096
    %v4780 = vunpack.c.h.b16 %v4096
    %v4781 = vunpack.c.l.b16 %v4097
    %v4782 = vunpack.c.h.b16 %v4097
    %v4783 = vunpack.c.l.b16 %v4098
    %v4784 = vunpack.c.h.b16 %v4098
    %v4785 = vunpack.c.l.b16 %v4099
    %v4786 = vunpack.c.h.b16 %v4099
    %v4787 = vunpack.c.l.b16 %v4100
    %v4788 = vunpack.c.h.b16 %v4100
    %v4789 = vunpack.c.l.b16 %v4101
    %v4790 = vunpack.c.h.b16 %v4101
    %v4791 = vunpack.c.l.b16 %v4102
    %v4792 = vunpack.c.h.b16 %v4102
    %v4793 = vunpack.c.l.b16 %v4103
    %v4794 = vunpack.c.h.b16 %v4103
    %v4795 = vunpack.c.l.b16 %v4104
    %v4796 = vunpack.c.h.b16 %v4104
    %v4797 = vunpack.c.l.b16 %v4105
    %v4798 = vunpack.c.h.b16 %v4105
    %v4799 = vunpack.c.l.b16 %v4106
    %v4800 = vunpack.c.h.b16 %v4106
    %v4801 = vunpack.c.l.b16 %v4107
    %v4802 = vunpack.c.h.b16 %v4107
    %v4803 = vunpack.c.l.b16 %v4108
    %v4804 = vunpack.c.h.b16 %v4108
    %v4805 = vunpack.c.l.b16 %v4109
    %v4806 = vunpack.c.h.b16 %v4109
    %v4807 = vunpack.c.l.b16 %v4110
    %v4808 = vunpack.c.h.b16 %v4110
    %v4809 = vunpack.c.l.b16 %v4111
    %v4810 = vunpack.c.h.b16 %v4111
    %v4811 = vunpack.c.l.b16 %v4112
    %v4812 = vunpack.c.h.b16 %v4112
    %v4813 = vunpack.c.l.b16 %v4113
    %v4814 = vunpack.c.h.b16 %v4113
    %v4815 = vunpack.c.l.b16 %v4114
    %v4816 = vunpack.c.h.b16 %v4114
    %v4817 = vunpack.c.l.b16 %v4115
    %v4818 = vunpack.c.h.b16 %v4115
    %v4819 = vunpack.c.l.b16 %v4116
    %v4820 = vunpack.c.h.b16 %v4116
    %v4821 = vunpack.c.l.b16 %v4117
    %v4822 = vunpack.c.h.b16 %v4117
    %v4823 = vunpack.c.l.b16 %v4118
    %v4824 = vunpack.c.h.b16 %v4118
    %v4825 = vunpack.c.l.b16 %v4119
    %v4826 = vunpack.c.h.b16 %v4119
    %v4827 = vunpack.c.l.b16 %v4120
    %v4828 = vunpack.c.h.b16 %v4120
    %v4829 = vunpack.c.l.b16 %v4121
    %v4830 = vunpack.c.h.b16 %v4121
    %v4831 = vunpack.c.l.b16 %v4122
    %v4832 = vunpack.c.h.b16 %v4122
    %v4833 = vunpack.c.l.b16 %v4123
    %v4834 = vunpack.c.h.b16 %v4123
    %v4835 = vunpack.c.l.b16 %v4124
    %v4836 = vunpack.c.h.b16 %v4124
    %v4837 = vunpack.c.l.b16 %v4125
    %v4838 = vunpack.c.h.b16 %v4125
    %v4839 = vunpack.c.l.b16 %v4126
    %v4840 = vunpack.c.h.b16 %v4126
    %v4841 = vunpack.c.l.b16 %v4127
    %v4842 = vunpack.c.h.b16 %v4127
    %v4843 = vunpack.c.l.b16 %v4128
    %v4844 = vunpack.c.h.b16 %v4128
    %v4845 = vunpack.c.l.b16 %v4129
    %v4846 = vunpack.c.h.b16 %v4129
    %v4847 = vunpack.c.l.b16 %v4130
    %v4848 = vunpack.c.h.b16 %v4130
    %v4849 = vunpack.c.l.b16 %v4131
    %v4850 = vunpack.c.h.b16 %v4131
    %v4851 = vunpack.c.l.b16 %v4132
    %v4852 = vunpack.c.h.b16 %v4132
    %v4853 = vunpack.c.l.b16 %v4133
    %v4854 = vunpack.c.h.b16 %v4133
    %v4855 = vunpack.c.l.b16 %v4134
    %v4856 = vunpack.c.h.b16 %v4134
    %v4857 = vunpack.c.l.b16 %v4135
    %v4858 = vunpack.c.h.b16 %v4135
    %v4859 = vunpack.c.l.b16 %v4136
    %v4860 = vunpack.c.h.b16 %v4136
    %v4861 = vunpack.c.l.b16 %v4137
    %v4862 = vunpack.c.h.b16 %v4137
    %v4863 = vunpack.c.l.b16 %v4138
    %v4864 = vunpack.c.h.b16 %v4138
    %v4865 = vunpack.c.l.b16 %v4139
    %v4866 = vunpack.c.h.b16 %v4139
    %v4867 = vunpack.c.l.b16 %v4140
    %v4868 = vunpack.c.h.b16 %v4140
    %v4869 = vunpack.c.l.b16 %v4141
    %v4870 = vunpack.c.h.b16 %v4141
    %v4871 = vunpack.c.l.b16 %v4142
    %v4872 = vunpack.c.h.b16 %v4142
    %v4873 = vunpack.c.l.b16 %v4143
    %v4874 = vunpack.c.h.b16 %v4143
    %v4875 = vunpack.c.l.b16 %v4144
    %v4876 = vunpack.c.h.b16 %v4144
    %v4877 = vunpack.c.l.b16 %v4145
    %v4878 = vunpack.c.h.b16 %v4145
    %v4879 = vunpack.c.l.b16 %v4146
    %v4880 = vunpack.c.h.b16 %v4146
    %v4881 = vunpack.c.l.b16 %v4147
    %v4882 = vunpack.c.h.b16 %v4147
    %v4883 = vunpack.c.l.b16 %v4148
    %v4884 = vunpack.c.h.b16 %v4148
    %v4885 = vunpack.c.l.b16 %v4149
    %v4886 = vunpack.c.h.b16 %v4149
    %v4887 = vunpack.c.l.b16 %v4150
    %v4888 = vunpack.c.h.b16 %v4150
    %v4889 = vunpack.c.l.b16 %v4151
    %v4890 = vunpack.c.h.b16 %v4151
    %v4891 = vunpack.c.l.b16 %v4152
    %v4892 = vunpack.c.h.b16 %v4152
    %v4893 = vunpack.c.l.b16 %v4153
    %v4894 = vunpack.c.h.b16 %v4153
    %v4895 = vunpack.c.l.b16 %v4154
    %v4896 = vunpack.c.h.b16 %v4154
    %v4897 = vunpack.c.l.b16 %v4155
    %v4898 = vunpack.c.h.b16 %v4155
    %v4899 = vunpack.c.l.b16 %v4156
    %v4900 = vunpack.c.h.b16 %v4156
    %v4901 = vunpack.c.l.b16 %v4157
    %v4902 = vunpack.c.h.b16 %v4157
    %v4903 = vunpack.c.l.b16 %v4158
    %v4904 = vunpack.c.h.b16 %v4158
    %v4905 = vunpack.c.l.b16 %v4159
    %v4906 = vunpack.c.h.b16 %v4159
    %v4907 = vunpack.c.l.b16 %v4160
    %v4908 = vunpack.c.h.b16 %v4160
    %v4909 = vunpack.c.l.b16 %v4161
    %v4910 = vunpack.c.h.b16 %v4161
    %v4911 = vunpack.c.l.b16 %v4162
    %v4912 = vunpack.c.h.b16 %v4162
    %v4913 = vunpack.c.l.b16 %v4163
    %v4914 = vunpack.c.h.b16 %v4163
    %v4915 = vunpack.c.l.b16 %v4164
    %v4916 = vunpack.c.h.b16 %v4164
    %v4917 = vunpack.c.l.b16 %v4165
    %v4918 = vunpack.c.h.b16 %v4165
    %v4919 = vunpack.c.l.b16 %v4166
    %v4920 = vunpack.c.h.b16 %v4166
    %v4921 = vunpack.c.l.b16 %v4167
    %v4922 = vunpack.c.h.b16 %v4167
    %v4923 = vunpack.c.l.b16 %v4168
    %v4924 = vunpack.c.h.b16 %v4168
    %v4925 = vunpack.c.l.b16 %v4169
    %v4926 = vunpack.c.h.b16 %v4169
    %v4927 = vunpack.c.l.b16 %v4170
    %v4928 = vunpack.c.h.b16 %v4170
    %v4929 = vunpack.c.l.b16 %v4171
    %v4930 = vunpack.c.h.b16 %v4171
    %v4931 = vunpack.c.l.b16 %v4172
    %v4932 = vunpack.c.h.b16 %v4172
    %v4933 = vunpack.c.l.b16 %v4173
    %v4934 = vunpack.c.h.b16 %v4173
    %v4935 = vunpack.c.l.b16 %v4174
    %v4936 = vunpack.c.h.b16 %v4174
    %v4937 = vunpack.c.l.b16 %v4175
    %v4938 = vunpack.c.h.b16 %v4175
    %v4939 = vunpack.c.l.b16 %v4176
    %v4940 = vunpack.c.h.b16 %v4176
    %v4941 = vunpack.c.l.b16 %v4177
    %v4942 = vunpack.c.h.b16 %v4177
    %v4943 = vunpack.c.l.b16 %v4178
    %v4944 = vunpack.c.h.b16 %v4178
    %v4945 = vunpack.c.l.b16 %v4179
    %v4946 = vunpack.c.h.b16 %v4179
    %v4947 = vunpack.c.l.b16 %v4180
    %v4948 = vunpack.c.h.b16 %v4180
    %v4949 = vunpack.c.l.b16 %v4181
    %v4950 = vunpack.c.h.b16 %v4181
    %v4951 = vunpack.c.l.b16 %v4182
    %v4952 = vunpack.c.h.b16 %v4182
    %v4953 = vunpack.c.l.b16 %v4183
    %v4954 = vunpack.c.h.b16 %v4183
    %v4955 = vunpack.c.l.b16 %v4184
    %v4956 = vunpack.c.h.b16 %v4184
    %v4957 = vunpack.c.l.b16 %v4185
    %v4958 = vunpack.c.h.b16 %v4185
    %v4959 = vunpack.c.l.b16 %v4186
    %v4960 = vunpack.c.h.b16 %v4186
    %v4961 = vunpack.c.l.b16 %v4187
    %v4962 = vunpack.c.h.b16 %v4187
    %v4963 = vunpack.c.l.b16 %v4188
    %v4964 = vunpack.c.h.b16 %v4188
    %v4965 = vunpack.c.l.b16 %v4189
    %v4966 = vunpack.c.h.b16 %v4189
    %v4967 = vunpack.c.l.b16 %v4190
    %v4968 = vunpack.c.h.b16 %v4190
    %v4969 = vunpack.c.l.b16 %v4191
    %v4970 = vunpack.c.h.b16 %v4191
    %v4971 = vunpack.c.l.b16 %v4192
    %v4972 = vunpack.c.h.b16 %v4192
    %v4973 = vunpack.c.l.b16 %v4193
    %v4974 = vunpack.c.h.b16 %v4193
    %v4975 = vunpack.c.l.b16 %v4194
    %v4976 = vunpack.c.h.b16 %v4194
    %v4977 = vunpack.c.l.b16 %v4195
    %v4978 = vunpack.c.h.b16 %v4195
    %v4979 = vunpack.c.l.b16 %v4196
    %v4980 = vunpack.c.h.b16 %v4196
    %v4981 = vunpack.c.l.b16 %v4197
    %v4982 = vunpack.c.h.b16 %v4197
    %v4983 = vunpack.c.l.b16 %v4198
    %v4984 = vunpack.c.h.b16 %v4198
    %v4985 = vunpack.c.l.b16 %v4199
    %v4986 = vunpack.c.h.b16 %v4199
    %v4987 = vunpack.c.l.b16 %v4200
    %v4988 = vunpack.c.h.b16 %v4200
    %v4989 = vunpack.c.l.b16 %v4201
    %v4990 = vunpack.c.h.b16 %v4201
    %v4991 = vunpack.c.l.b16 %v4202
    %v4992 = vunpack.c.h.b16 %v4202
    %v4993 = vunpack.c.l.b16 %v4203
    %v4994 = vunpack.c.h.b16 %v4203
    %v4995 = vunpack.c.l.b16 %v4204
    %v4996 = vunpack.c.h.b16 %v4204
    %v4997 = vunpack.c.l.b16 %v4205
    %v4998 = vunpack.c.h.b16 %v4205
    %v4999 = vunpack.c.l.b16 %v4206
    %v5000 = vunpack.c.h.b16 %v4206
    %v5001 = vunpack.c.l.b16 %v4207
    %v5002 = vunpack.c.h.b16 %v4207
    %v5003 = vunpack.c.l.b16 %v4208
    %v5004 = vunpack.c.h.b16 %v4208
    %v5005 = vunpack.c.l.b16 %v4209
    %v5006 = vunpack.c.h.b16 %v4209
    %v5007 = vunpack.c.l.b16 %v4210
    %v5008 = vunpack.c.h.b16 %v4210
    %v5009 = vunpack.c.l.b16 %v4211
    %v5010 = vunpack.c.h.b16 %v4211
    %v5011 = vunpack.c.l.b16 %v4212
    %v5012 = vunpack.c.h.b16 %v4212
    %v5013 = vunpack.c.l.b16 %v4213
    %v5014 = vunpack.c.h.b16 %v4213
    %v5015 = vunpack.c.l.b16 %v4214
    %v5016 = vunpack.c.h.b16 %v4214
    %v5017 = vunpack.c.l.b16 %v4215
    %v5018 = vunpack.c.h.b16 %v4215
    %v5019 = vunpack.c.l.b16 %v4216
    %v5020 = vunpack.c.h.b16 %v4216
    %v5021 = vunpack.c.l.b16 %v4217
    %v5022 = vunpack.c.h.b16 %v4217
    %v5023 = vunpack.c.l.b16 %v4218
    %v5024 = vunpack.c.h.b16 %v4218
    %v5025 = vunpack.c.l.b16 %v4219
    %v5026 = vunpack.c.h.b16 %v4219
    %v5027 = vunpack.c.l.b16 %v4220
    %v5028 = vunpack.c.h.b16 %v4220
    %v5029 = vunpack.c.l.b16 %v4221
    %v5030 = vunpack.c.h.b16 %v4221
    %v5031 = vunpack.c.l.b16 %v4222
    %v5032 = vunpack.c.h.b16 %v4222
    %v5033 = vunpack.c.l.b16 %v4223
    %v5034 = vunpack.c.h.b16 %v4223
    %v5035 = vunpack.c.l.b16 %v4224
    %v5036 = vunpack.c.h.b16 %v4224
    %v5037 = vunpack.c.l.b16 %v4225
    %v5038 = vunpack.c.h.b16 %v4225
    %v5039 = vunpack.c.l.b16 %v4226
    %v5040 = vunpack.c.h.b16 %v4226
    %v5041 = vunpack.c.l.b16 %v4227
    %v5042 = vunpack.c.h.b16 %v4227
    %v5043 = vunpack.c.l.b16 %v4228
    %v5044 = vunpack.c.h.b16 %v4228
    %v5045 = vunpack.c.l.b16 %v4229
    %v5046 = vunpack.c.h.b16 %v4229
    %v5047 = vunpack.c.l.b16 %v4230
    %v5048 = vunpack.c.h.b16 %v4230
    %v5049 = vunpack.c.l.b16 %v4231
    %v5050 = vunpack.c.h.b16 %v4231
    %v5051 = vunpack.c.l.b16 %v4232
    %v5052 = vunpack.c.h.b16 %v4232
    %v5053 = vunpack.c.l.b16 %v4233
    %v5054 = vunpack.c.h.b16 %v4233
    %v5055 = vunpack.c.l.b16 %v4234
    %v5056 = vunpack.c.h.b16 %v4234
    %v5057 = vunpack.c.l.b16 %v4235
    %v5058 = vunpack.c.h.b16 %v4235
    %v5059 = vunpack.c.l.b16 %v4236
    %v5060 = vunpack.c.h.b16 %v4236
    %v5061 = vunpack.c.l.b16 %v4237
    %v5062 = vunpack.c.h.b16 %v4237
    %v5063 = vunpack.c.l.b16 %v4238
    %v5064 = vunpack.c.h.b16 %v4238
    %v5065 = vunpack.c.l.b16 %v4239
    %v5066 = vunpack.c.h.b16 %v4239
    %v5067 = vunpack.c.l.b16 %v4240
    %v5068 = vunpack.c.h.b16 %v4240
    %v5069 = vunpack.c.l.b16 %v4241
    %v5070 = vunpack.c.h.b16 %v4241
    %v5071 = vunpack.c.l.b16 %v4242
    %v5072 = vunpack.c.h.b16 %v4242
    %v5073 = vunpack.c.l.b16 %v4243
    %v5074 = vunpack.c.h.b16 %v4243
    %v5075 = vunpack.c.l.b16 %v4244
    %v5076 = vunpack.c.h.b16 %v4244
    %v5077 = vunpack.c.l.b16 %v4245
    %v5078 = vunpack.c.h.b16 %v4245
    %v5079 = vunpack.c.l.b16 %v4246
    %v5080 = vunpack.c.h.b16 %v4246
    %v5081 = vunpack.c.l.b16 %v4247
    %v5082 = vunpack.c.h.b16 %v4247
    %v5083 = vunpack.c.l.b16 %v4248
    %v5084 = vunpack.c.h.b16 %v4248
    %v5085 = vunpack.c.l.b16 %v4249
    %v5086 = vunpack.c.h.b16 %v4249
    %v5087 = vunpack.c.l.b16 %v4250
    %v5088 = vunpack.c.h.b16 %v4250
    %v5089 = vunpack.c.l.b16 %v4251
    %v5090 = vunpack.c.h.b16 %v4251
    %v5091 = vunpack.c.l.b16 %v4252
    %v5092 = vunpack.c.h.b16 %v4252
    %v5093 = vunpack.c.l.b16 %v4253
    %v5094 = vunpack.c.h.b16 %v4253
    %v5095 = vunpack.c.l.b16 %v4254
    %v5096 = vunpack.c.h.b16 %v4254
    %v5097 = vunpack.c.l.b16 %v4255
    %v5098 = vunpack.c.h.b16 %v4255
    %v5099 = vunpack.c.l.b16 %v4256
    %v5100 = vunpack.c.h.b16 %v4256
    %v5101 = vunpack.c.l.b16 %v4257
    %v5102 = vunpack.c.h.b16 %v4257
    %v5103 = vunpack.c.l.b16 %v4258
    %v5104 = vunpack.c.h.b16 %v4258
    %v5105 = vunpack.c.l.b16 %v4259
    %v5106 = vunpack.c.h.b16 %v4259
    %v5107 = vunpack.c.l.b16 %v4260
    %v5108 = vunpack.c.h.b16 %v4260
    %v5109 = vunpack.c.l.b16 %v4261
    %v5110 = vunpack.c.h.b16 %v4261
    %v5111 = vunpack.c.l.b16 %v4262
    %v5112 = vunpack.c.h.b16 %v4262
    %v5113 = vunpack.c.l.b16 %v4263
    %v5114 = vunpack.c.h.b16 %v4263
    %v5115 = vunpack.c.l.b16 %v4264
    %v5116 = vunpack.c.h.b16 %v4264
    %v5117 = vunpack.c.l.b16 %v4265
    %v5118 = vunpack.c.h.b16 %v4265
    %v5119 = vunpack.c.l.b16 %v4266
    %v5120 = vunpack.c.h.b16 %v4266
    %v5121 = vunpack.c.l.b16 %v4267
    %v5122 = vunpack.c.h.b16 %v4267
    %v5123 = vunpack.c.l.b16 %v4268
    %v5124 = vunpack.c.h.b16 %v4268
    %v5125 = vunpack.c.l.b16 %v4269
    %v5126 = vunpack.c.h.b16 %v4269
    %v5127 = vunpack.c.l.b16 %v4270
    %v5128 = vunpack.c.h.b16 %v4270
    %v5129 = vunpack.c.l.b16 %v4271
    %v5130 = vunpack.c.h.b16 %v4271
    %v5131 = vunpack.c.l.b16 %v4272
    %v5132 = vunpack.c.h.b16 %v4272
    %v5133 = vunpack.c.l.b16 %v4273
    %v5134 = vunpack.c.h.b16 %v4273
    %v5135 = vunpack.c.l.b16 %v4274
    %v5136 = vunpack.c.h.b16 %v4274
    %v5137 = vunpack.c.l.b16 %v4275
    %v5138 = vunpack.c.h.b16 %v4275
    %v5139 = vunpack.c.l.b16 %v4276
    %v5140 = vunpack.c.h.b16 %v4276
    %v5141 = vunpack.c.l.b16 %v4277
    %v5142 = vunpack.c.h.b16 %v4277
    %v5143 = vunpack.c.l.b16 %v4278
    %v5144 = vunpack.c.h.b16 %v4278
    %v5145 = vunpack.c.l.b16 %v4279
    %v5146 = vunpack.c.h.b16 %v4279
    %v5147 = vunpack.c.l.b16 %v4280
    %v5148 = vunpack.c.h.b16 %v4280
    %v5149 = vunpack.c.l.b16 %v4281
    %v5150 = vunpack.c.h.b16 %v4281
    %v5151 = vunpack.c.l.b16 %v4282
    %v5152 = vunpack.c.h.b16 %v4282
    %v5153 = vunpack.c.l.b16 %v4283
    %v5154 = vunpack.c.h.b16 %v4283
    %v5155 = vunpack.c.l.b16 %v4284
    %v5156 = vunpack.c.h.b16 %v4284
    %v5157 = vunpack.c.l.b16 %v4285
    %v5158 = vunpack.c.h.b16 %v4285
    %v5159 = vunpack.c.l.b16 %v4286
    %v5160 = vunpack.c.h.b16 %v4286
    %v5161 = vunpack.c.l.b16 %v4287
    %v5162 = vunpack.c.h.b16 %v4287
    %v5163 = vunpack.c.l.b16 %v4288
    %v5164 = vunpack.c.h.b16 %v4288
    %v5165 = vunpack.c.l.b16 %v4289
    %v5166 = vunpack.c.h.b16 %v4289
    %v5167 = vunpack.c.l.b16 %v4290
    %v5168 = vunpack.c.h.b16 %v4290
    %v5169 = vunpack.c.l.b16 %v4291
    %v5170 = vunpack.c.h.b16 %v4291
    %v5171 = vunpack.c.l.b16 %v4292
    %v5172 = vunpack.c.h.b16 %v4292
    %v5173 = vunpack.c.l.b16 %v4293
    %v5174 = vunpack.c.h.b16 %v4293
    %v5175 = vunpack.c.l.b16 %v4294
    %v5176 = vunpack.c.h.b16 %v4294
    %v5177 = vunpack.c.l.b16 %v4295
    %v5178 = vunpack.c.h.b16 %v4295
    %v5179 = vunpack.c.l.b16 %v4296
    %v5180 = vunpack.c.h.b16 %v4296
    %v5181 = vunpack.c.l.b16 %v4297
    %v5182 = vunpack.c.h.b16 %v4297
    %v5183 = vunpack.c.l.b16 %v4298
    %v5184 = vunpack.c.h.b16 %v4298
    %v5185 = vunpack.c.l.b16 %v4299
    %v5186 = vunpack.c.h.b16 %v4299
    %v5187 = vunpack.c.l.b16 %v4300
    %v5188 = vunpack.c.h.b16 %v4300
    %v5189 = vunpack.c.l.b16 %v4301
    %v5190 = vunpack.c.h.b16 %v4301
    %v5191 = vunpack.c.l.b16 %v4302
    %v5192 = vunpack.c.h.b16 %v4302
    %v5193 = vunpack.c.l.b16 %v4303
    %v5194 = vunpack.c.h.b16 %v4303
    %v5195 = vunpack.c.l.b16 %v4304
    %v5196 = vunpack.c.h.b16 %v4304
    %v5197 = vunpack.c.l.b16 %v4305
    %v5198 = vunpack.c.h.b16 %v4305
    %v5199 = vunpack.c.l.b16 %v4306
    %v5200 = vunpack.c.h.b16 %v4306
    %v5201 = vunpack.c.l.b16 %v4307
    %v5202 = vunpack.c.h.b16 %v4307
    %v5203 = vunpack.c.l.b16 %v4308
    %v5204 = vunpack.c.h.b16 %v4308
    %v5205 = vunpack.c.l.b16 %v4309
    %v5206 = vunpack.c.h.b16 %v4309
    %v5207 = vunpack.c.l.b16 %v4310
    %v5208 = vunpack.c.h.b16 %v4310
    %v5209 = vunpack.c.l.b16 %v4311
    %v5210 = vunpack.c.h.b16 %v4311
    %v5211 = vunpack.c.l.b16 %v4312
    %v5212 = vunpack.c.h.b16 %v4312
    %v5213 = vunpack.c.l.b16 %v4313
    %v5214 = vunpack.c.h.b16 %v4313
    %v5215 = vunpack.c.l.b16 %v4314
    %v5216 = vunpack.c.h.b16 %v4314
    %v5217 = vunpack.c.l.b16 %v4315
    %v5218 = vunpack.c.h.b16 %v4315
    %v5219 = vunpack.c.l.b16 %v4316
    %v5220 = vunpack.c.h.b16 %v4316
    %v5221 = vunpack.c.l.b16 %v4317
    %v5222 = vunpack.c.h.b16 %v4317
    %v5223 = vunpack.c.l.b16 %v4318
    %v5224 = vunpack.c.h.b16 %v4318
    %v5225 = vunpack.c.l.b16 %v4319
    %v5226 = vunpack.c.h.b16 %v4319
    %v5227 = vunpack.c.l.b16 %v4320
    %v5228 = vunpack.c.h.b16 %v4320
    %v5229 = vunpack.c.l.b16 %v4321
    %v5230 = vunpack.c.h.b16 %v4321
    %v5231 = vunpack.c.l.b16 %v4322
    %v5232 = vunpack.c.h.b16 %v4322
    %v5233 = vunpack.c.l.b16 %v4323
    %v5234 = vunpack.c.h.b16 %v4323
    %v5235 = vunpack.c.l.b16 %v4324
    %v5236 = vunpack.c.h.b16 %v4324
    %v5237 = vunpack.c.l.b16 %v4325
    %v5238 = vunpack.c.h.b16 %v4325
    %v5239 = vunpack.c.l.b16 %v4326
    %v5240 = vunpack.c.h.b16 %v4326
    %v5241 = vunpack.c.l.b16 %v4327
    %v5242 = vunpack.c.h.b16 %v4327
    %v5243 = vunpack.c.l.b16 %v4328
    %v5244 = vunpack.c.h.b16 %v4328
    %v5245 = vunpack.c.l.b16 %v4329
    %v5246 = vunpack.c.h.b16 %v4329
    %v5247 = vunpack.c.l.b16 %v4330
    %v5248 = vunpack.c.h.b16 %v4330
    %v5249 = vunpack.c.l.b16 %v4331
    %v5250 = vunpack.c.h.b16 %v4331
    %v5251 = vunpack.c.l.b16 %v4332
    %v5252 = vunpack.c.h.b16 %v4332
    %v5253 = vunpack.c.l.b16 %v4333
    %v5254 = vunpack.c.h.b16 %v4333
    %v5255 = vunpack.c.l.b16 %v4334
    %v5256 = vunpack.c.h.b16 %v4334
    %v5257 = vunpack.c.l.b16 %v4335
    %v5258 = vunpack.c.h.b16 %v4335
    %v5259 = vunpack.c.l.b16 %v4336
    %v5260 = vunpack.c.h.b16 %v4336
    %v5261 = vunpack.c.l.b16 %v4337
    %v5262 = vunpack.c.h.b16 %v4337
    %v5263 = vunpack.c.l.b16 %v4338
    %v5264 = vunpack.c.h.b16 %v4338
    %v5265 = vunpack.c.l.b16 %v4339
    %v5266 = vunpack.c.h.b16 %v4339
    %v5267 = vunpack.c.l.b16 %v4340
    %v5268 = vunpack.c.h.b16 %v4340
    %v5269 = vpack.c.b16 %v4705, %v4693
    %v5270 = vpack.c.b16 %v4706, %v4694
    %v5271 = vpack.c.b16 %v4707, %v4695
    %v5272 = vpack.c.b16 %v4708, %v4696
    %v5273 = vpack.c.b16 %v4709, %v4697
    %v5274 = vpack.c.b16 %v4710, %v4698
    %v5275 = vpack.c.b16 %v4711, %v4699
    %v5276 = vpack.c.b16 %v4712, %v4700
    %v5277 = vpack.c.b16 %v4713, %v4701
    %v5278 = vpack.c.b16 %v4714, %v4702
    %v5279 = vpack.c.b16 %v4715, %v4703
    %v5280 = vpack.c.b16 %v4716, %v4704
    %v5281 = vpack.c.b16 %v4729, %v4717
    %v5282 = vpack.c.b16 %v4730, %v4718
    %v5283 = vpack.c.b16 %v4731, %v4719
    %v5284 = vpack.c.b16 %v4732, %v4720
    %v5285 = vpack.c.b16 %v4733, %v4721
    %v5286 = vpack.c.b16 %v4734, %v4722
    %v5287 = vpack.c.b16 %v4735, %v4723
    %v5288 = vpack.c.b16 %v4736, %v4724
    %v5289 = vpack.c.b16 %v4737, %v4725
    %v5290 = vpack.c.b16 %v4738, %v4726
    %v5291 = vpack.c.b16 %v4739, %v4727
    %v5292 = vpack.c.b16 %v4740, %v4728
    %v5293 = vpack.c.b16 %v4753, %v4741
    %v5294 = vpack.c.b16 %v4754, %v4742
    %v5295 = vpack.c.b16 %v4755, %v4743
    %v5296 = vpack.c.b16 %v4756, %v4744
    %v5297 = vpack.c.b16 %v4757, %v4745
    %v5298 = vpack.c.b16 %v4758, %v4746
    %v5299 = vpack.c.b16 %v4759, %v4747
    %v5300 = vpack.c.b16 %v4760, %v4748
    %v5301 = vpack.c.b16 %v4761, %v4749
    %v5302 = vpack.c.b16 %v4762, %v4750
    %v5303 = vpack.c.b16 %v4763, %v4751
    %v5304 = vpack.c.b16 %v4764, %v4752
    %v5305 = vpack.c.b16 %v4777, %v4765
    %v5306 = vpack.c.b16 %v4778, %v4766
    %v5307 = vpack.c.b16 %v4779, %v4767
    %v5308 = vpack.c.b16 %v4780, %v4768
    %v5309 = vpack.c.b16 %v4781, %v4769
    %v5310 = vpack.c.b16 %v4782, %v4770
    %v5311 = vpack.c.b16 %v4783, %v4771
    %v5312 = vpack.c.b16 %v4784, %v4772
    %v5313 = vpack.c.b16 %v4785, %v4773
    %v5314 = vpack.c.b16 %v4786, %v4774
    %v5315 = vpack.c.b16 %v4787, %v4775
    %v5316 = vpack.c.b16 %v4788, %v4776
    %v5317 = vpack.c.b16 %v4801, %v4789
    %v5318 = vpack.c.b16 %v4802, %v4790
    %v5319 = vpack.c.b16 %v4803, %v4791
    %v5320 = vpack.c.b16 %v4804, %v4792
    %v5321 = vpack.c.b16 %v4805, %v4793
    %v5322 = vpack.c.b16 %v4806, %v4794
    %v5323 = vpack.c.b16 %v4807, %v4795
    %v5324 = vpack.c.b16 %v4808, %v4796
    %v5325 = vpack.c.b16 %v4809, %v4797
    %v5326 = vpack.c.b16 %v4810, %v4798
    %v5327 = vpack.c.b16 %v4811, %v4799
    %v5328 = vpack.c.b16 %v4812, %v4800
    %v5329 = vpack.c.b16 %v4825, %v4813
    %v5330 = vpack.c.b16 %v4826, %v4814
    %v5331 = vpack.c.b16 %v4827, %v4815
    %v5332 = vpack.c.b16 %v4828, %v4816
    %v5333 = vpack.c.b16 %v4829, %v4817
    %v5334 = vpack.c.b16 %v4830, %v4818
    %v5335 = vpack.c.b16 %v4831, %v4819
    %v5336 = vpack.c.b16 %v4832, %v4820
    %v5337 = vpack.c.b16 %v4833, %v4821
    %v5338 = vpack.c.b16 %v4834, %v4822
    %v5339 = vpack.c.b16 %v4835, %v4823
    %v5340 = vpack.c.b16 %v4836, %v4824
    %v5341 = vpack.c.b16 %v4849, %v4837
    %v5342 = vpack.c.b16 %v4850, %v4838
    %v5343 = vpack.c.b16 %v4851, %v4839
    %v5344 = vpack.c.b16 %v4852, %v4840
    %v5345 = vpack.c.b16 %v4853, %v4841
    %v5346 = vpack.c.b16 %v4854, %v4842
    %v5347 = vpack.c.b16 %v4855, %v4843
    %v5348 = vpack.c.b16 %v4856, %v4844
    %v5349 = vpack.c.b16 %v4857, %v4845
    %v5350 = vpack.c.b16 %v4858, %v4846
    %v5351 = vpack.c.b16 %v4859, %v4847
    %v5352 = vpack.c.b16 %v4860, %v4848
    %v5353 = vpack.c.b16 %v4873, %v4861
    %v5354 = vpack.c.b16 %v4874, %v4862
    %v5355 = vpack.c.b16 %v4875, %v4863
    %v5356 = vpack.c.b16 %v4876, %v4864
    %v5357 = vpack.c.b16 %v4877, %v4865
    %v5358 = vpack.c.b16 %v4878, %v4866
    %v5359 = vpack.c.b16 %v4879, %v4867
    %v5360 = vpack.c.b16 %v4880, %v4868
    %v5361 = vpack.c.b16 %v4881, %v4869
    %v5362 = vpack.c.b16 %v4882, %v4870
    %v5363 = vpack.c.b16 %v4883, %v4871
    %v5364 = vpack.c.b16 %v4884, %v4872
    %v5365 = vpack.c.b16 %v4897, %v4885
    %v5366 = vpack.c.b16 %v4898, %v4886
    %v5367 = vpack.c.b16 %v4899, %v4887
    %v5368 = vpack.c.b16 %v4900, %v4888
    %v5369 = vpack.c.b16 %v4901, %v4889
    %v5370 = vpack.c.b16 %v4902, %v4890
    %v5371 = vpack.c.b16 %v4903, %v4891
    %v5372 = vpack.c.b16 %v4904, %v4892
    %v5373 = vpack.c.b16 %v4905, %v4893
    %v5374 = vpack.c.b16 %v4906, %v4894
    %v5375 = vpack.c.b16 %v4907, %v4895
    %v5376 = vpack.c.b16 %v4908, %v4896
    %v5377 = vpack.c.b16 %v4921, %v4909
    %v5378 = vpack.c.b16 %v4922, %v4910
    %v5379 = vpack.c.b16 %v4923, %v4911
    %v5380 = vpack.c.b16 %v4924, %v4912
    %v5381 = vpack.c.b16 %v4925, %v4913
    %v5382 = vpack.c.b16 %v4926, %v4914
    %v5383 = vpack.c.b16 %v4927, %v4915
    %v5384 = vpack.c.b16 %v4928, %v4916
    %v5385 = vpack.c.b16 %v4929, %v4917
    %v5386 = vpack.c.b16 %v4930, %v4918
    %v5387 = vpack.c.b16 %v4931, %v4919
    %v5388 = vpack.c.b16 %v4932, %v4920
    %v5389 = vpack.c.b16 %v4945, %v4933
    %v5390 = vpack.c.b16 %v4946, %v4934
    %v5391 = vpack.c.b16 %v4947, %v4935
    %v5392 = vpack.c.b16 %v4948, %v4936
    %v5393 = vpack.c.b16 %v4949, %v4937
    %v5394 = vpack.c.b16 %v4950, %v4938
    %v5395 = vpack.c.b16 %v4951, %v4939
    %v5396 = vpack.c.b16 %v4952, %v4940
    %v5397 = vpack.c.b16 %v4953, %v4941
    %v5398 = vpack.c.b16 %v4954, %v4942
    %v5399 = vpack.c.b16 %v4955, %v4943
    %v5400 = vpack.c.b16 %v4956, %v4944
    %v5401 = vpack.c.b16 %v4969, %v4957
    %v5402 = vpack.c.b16 %v4970, %v4958
    %v5403 = vpack.c.b16 %v4971, %v4959
    %v5404 = vpack.c.b16 %v4972, %v4960
    %v5405 = vpack.c.b16 %v4973, %v4961
    %v5406 = vpack.c.b16 %v4974, %v4962
    %v5407 = vpack.c.b16 %v4975, %v4963
    %v5408 = vpack.c.b16 %v4976, %v4964
    %v5409 = vpack.c.b16 %v4977, %v4965
    %v5410 = vpack.c.b16 %v4978, %v4966
    %v5411 = vpack.c.b16 %v4979, %v4967
    %v5412 = vpack.c.b16 %v4980, %v4968
    %v5413 = vpack.c.b16 %v4993, %v4981
    %v5414 = vpack.c.b16 %v4994, %v4982
    %v5415 = vpack.c.b16 %v4995, %v4983
    %v5416 = vpack.c.b16 %v4996, %v4984
    %v5417 = vpack.c.b16 %v4997, %v4985
    %v5418 = vpack.c.b16 %v4998, %v4986
    %v5419 = vpack.c.b16 %v4999, %v4987
    %v5420 = vpack.c.b16 %v5000, %v4988
    %v5421 = vpack.c.b16 %v5001, %v4989
    %v5422 = vpack.c.b16 %v5002, %v4990
    %v5423 = vpack.c.b16 %v5003, %v4991
    %v5424 = vpack.c.b16 %v5004, %v4992
    %v5425 = vpack.c.b16 %v5017, %v5005
    %v5426 = vpack.c.b16 %v5018, %v5006
    %v5427 = vpack.c.b16 %v5019, %v5007
    %v5428 = vpack.c.b16 %v5020, %v5008
    %v5429 = vpack.c.b16 %v5021, %v5009
    %v5430 = vpack.c.b16 %v5022, %v5010
    %v5431 = vpack.c.b16 %v5023, %v5011
    %v5432 = vpack.c.b16 %v5024, %v5012
    %v5433 = vpack.c.b16 %v5025, %v5013
    %v5434 = vpack.c.b16 %v5026, %v5014
    %v5435 = vpack.c.b16 %v5027, %v5015
    %v5436 = vpack.c.b16 %v5028, %v5016
    %v5437 = vpack.c.b16 %v5041, %v5029
    %v5438 = vpack.c.b16 %v5042, %v5030
    %v5439 = vpack.c.b16 %v5043, %v5031
    %v5440 = vpack.c.b16 %v5044, %v5032
    %v5441 = vpack.c.b16 %v5045, %v5033
    %v5442 = vpack.c.b16 %v5046, %v5034
    %v5443 = vpack.c.b16 %v5047, %v5035
    %v5444 = vpack.c.b16 %v5048, %v5036
    %v5445 = vpack.c.b16 %v5049, %v5037
    %v5446 = vpack.c.b16 %v5050, %v5038
    %v5447 = vpack.c.b16 %v5051, %v5039
    %v5448 = vpack.c.b16 %v5052, %v5040
    %v5449 = vpack.c.b16 %v5065, %v5053
    %v5450 = vpack.c.b16 %v5066, %v5054
    %v5451 = vpack.c.b16 %v5067, %v5055
    %v5452 = vpack.c.b16 %v5068, %v5056
    %v5453 = vpack.c.b16 %v5069, %v5057
    %v5454 = vpack.c.b16 %v5070, %v5058
    %v5455 = vpack.c.b16 %v5071, %v5059
    %v5456 = vpack.c.b16 %v5072, %v5060
    %v5457 = vpack.c.b16 %v5073, %v5061
    %v5458 = vpack.c.b16 %v5074, %v5062
    %v5459 = vpack.c.b16 %v5075, %v5063
    %v5460 = vpack.c.b16 %v5076, %v5064
    %v5461 = vpack.c.b16 %v5089, %v5077
    %v5462 = vpack.c.b16 %v5090, %v5078
    %v5463 = vpack.c.b16 %v5091, %v5079
    %v5464 = vpack.c.b16 %v5092, %v5080
    %v5465 = vpack.c.b16 %v5093, %v5081
    %v5466 = vpack.c.b16 %v5094, %v5082
    %v5467 = vpack.c.b16 %v5095, %v5083
    %v5468 = vpack.c.b16 %v5096, %v5084
    %v5469 = vpack.c.b16 %v5097, %v5085
    %v5470 = vpack.c.b16 %v5098, %v5086
    %v5471 = vpack.c.b16 %v5099, %v5087
    %v5472 = vpack.c.b16 %v5100, %v5088
    %v5473 = vpack.c.b16 %v5113, %v5101
    %v5474 = vpack.c.b16 %v5114, %v5102
    %v5475 = vpack.c.b16 %v5115, %v5103
    %v5476 = vpack.c.b16 %v5116, %v5104
    %v5477 = vpack.c.b16 %v5117, %v5105
    %v5478 = vpack.c.b16 %v5118, %v5106
    %v5479 = vpack.c.b16 %v5119, %v5107
    %v5480 = vpack.c.b16 %v5120, %v5108
    %v5481 = vpack.c.b16 %v5121, %v5109
    %v5482 = vpack.c.b16 %v5122, %v5110
    %v5483 = vpack.c.b16 %v5123, %v5111
    %v5484 = vpack.c.b16 %v5124, %v5112
    %v5485 = vpack.c.b16 %v5137, %v5125
    %v5486 = vpack.c.b16 %v5138, %v5126
    %v5487 = vpack.c.b16 %v5139, %v5127
    %v5488 = vpack.c.b16 %v5140, %v5128
    %v5489 = vpack.c.b16 %v5141, %v5129
    %v5490 = vpack.c.b16 %v5142, %v5130
    %v5491 = vpack.c.b16 %v5143, %v5131
    %v5492 = vpack.c.b16 %v5144, %v5132
    %v5493 = vpack.c.b16 %v5145, %v5133
    %v5494 = vpack.c.b16 %v5146, %v5134
    %v5495 = vpack.c.b16 %v5147, %v5135
    %v5496 = vpack.c.b16 %v5148, %v5136
    %v5497 = vpack.c.b16 %v5161, %v5149
    %v5498 = vpack.c.b16 %v5162, %v5150
    %v5499 = vpack.c.b16 %v5163, %v5151
    %v5500 = vpack.c.b16 %v5164, %v5152
    %v5501 = vpack.c.b16 %v5165, %v5153
    %v5502 = vpack.c.b16 %v5166, %v5154
    %v5503 = vpack.c.b16 %v5167, %v5155
    %v5504 = vpack.c.b16 %v5168, %v5156
    %v5505 = vpack.c.b16 %v5169, %v5157
    %v5506 = vpack.c.b16 %v5170, %v5158
    %v5507 = vpack.c.b16 %v5171, %v5159
    %v5508 = vpack.c.b16 %v5172, %v5160
    %v5509 = vpack.c.b16 %v5185, %v5173
    %v5510 = vpack.c.b16 %v5186, %v5174
    %v5511 = vpack.c.b16 %v5187, %v5175
    %v5512 = vpack.c.b16 %v5188, %v5176
    %v5513 = vpack.c.b16 %v5189, %v5177
    %v5514 = vpack.c.b16 %v5190, %v5178
    %v5515 = vpack.c.b16 %v5191, %v5179
    %v5516 = vpack.c.b16 %v5192, %v5180
    %v5517 = vpack.c.b16 %v5193, %v5181
    %v5518 = vpack.c.b16 %v5194, %v5182
    %v5519 = vpack.c.b16 %v5195, %v5183
    %v5520 = vpack.c.b16 %v5196, %v5184
    %v5521 = vpack.c.b16 %v5209, %v5197
    %v5522 = vpack.c.b16 %v5210, %v5198
    %v5523 = vpack.c.b16 %v5211, %v5199
    %v5524 = vpack.c.b16 %v5212, %v5200
    %v5525 = vpack.c.b16 %v5213, %v5201
    %v5526 = vpack.c.b16 %v5214, %v5202
    %v5527 = vpack.c.b16 %v5215, %v5203
    %v5528 = vpack.c.b16 %v5216, %v5204
    %v5529 = vpack.c.b16 %v5217, %v5205
    %v5530 = vpack.c.b16 %v5218, %v5206
    %v5531 = vpack.c.b16 %v5219, %v5207
    %v5532 = vpack.c.b16 %v5220, %v5208
    %v5533 = vpack.c.b16 %v5233, %v5221
    %v5534 = vpack.c.b16 %v5234, %v5222
    %v5535 = vpack.c.b16 %v5235, %v5223
    %v5536 = vpack.c.b16 %v5236, %v5224
    %v5537 = vpack.c.b16 %v5237, %v5225
    %v5538 = vpack.c.b16 %v5238, %v5226
    %v5539 = vpack.c.b16 %v5239, %v5227
    %v5540 = vpack.c.b16 %v5240, %v5228
    %v5541 = vpack.c.b16 %v5241, %v5229
    %v5542 = vpack.c.b16 %v5242, %v5230
    %v5543 = vpack.c.b16 %v5243, %v5231
    %v5544 = vpack.c.b16 %v5244, %v5232
    %v5545 = vpack.c.b16 %v5257, %v5245
    %v5546 = vpack.c.b16 %v5258, %v5246
    %v5547 = vpack.c.b16 %v5259, %v5247
    %v5548 = vpack.c.b16 %v5260, %v5248
    %v5549 = vpack.c.b16 %v5261, %v5249
    %v5550 = vpack.c.b16 %v5262, %v5250
    %v5551 = vpack.c.b16 %v5263, %v5251
    %v5552 = vpack.c.b16 %v5264, %v5252
    %v5553 = vpack.c.b16 %v5265, %v5253
    %v5554 = vpack.c.b16 %v5266, %v5254
    %v5555 = vpack.c.b16 %v5267, %v5255
    %v5556 = vpack.c.b16 %v5268, %v5256
    %5845 = vmatprep.subr.bf16.mxu0 %v5354
    %5846 = vmatpush1.bf16.msra.mxu0 %v5353
    %5847 = vmatprep.subr.bf16.mxu0 %v5342
    %5848 = vmatpush1.bf16.msra.mxu0 %v5341
    %5849 = vmatprep.subr.bf16.mxu0 %v5330
    %5850 = vmatpush1.bf16.msra.mxu0 %v5329
    %5851 = vmatprep.subr.bf16.mxu0 %v5318
    %5852 = vmatpush1.bf16.msra.mxu0 %v5317
    %5853 = vmatprep.subr.bf16.mxu0 %v5306
    %5854 = vmatpush1.bf16.msra.mxu0 %v5305
    %5855 = vmatprep.subr.bf16.mxu0 %v5294
    %5856 = vmatpush1.bf16.msra.mxu0 %v5293
    %5857 = vmatprep.subr.bf16.mxu0 %v5282
    %5858 = vmatpush1.bf16.msra.mxu0 %v5281
    %5859 = vmatprep.subr.bf16.mxu0 %v5270
    %5860 = vmatpush1.bf16.msra.mxu0 %v5269
    %5861 = vmatprep.subr.bf16.mxu0 %v5450
    %5862 = vmatpush2.bf16.msra.mxu0 %v5449
    %5863 = vmatprep.subr.bf16.mxu0 %v5438
    %5864 = vmatpush2.bf16.msra.mxu0 %v5437
    %5865 = vmatprep.subr.bf16.mxu0 %v5426
    %5866 = vmatpush2.bf16.msra.mxu0 %v5425
    %5867 = vmatprep.subr.bf16.mxu0 %v5414
    %5868 = vmatpush2.bf16.msra.mxu0 %v5413
    %5869 = vmatprep.subr.bf16.mxu0 %v5402
    %5870 = vmatpush2.bf16.msra.mxu0 %v5401
    %5871 = vmatprep.subr.bf16.mxu0 %v5390
    %5872 = vmatpush2.bf16.msra.mxu0 %v5389
    %5873 = vmatprep.subr.bf16.mxu0 %v5378
    %5874 = vmatpush2.bf16.msra.mxu0 %v5377
    %5875 = vmatprep.subr.bf16.mxu0 %v5366
    %5876 = vmatpush2.bf16.msra.mxu0 %v5365
    %5877 = vmatprep.mubr.bf16.mxu0 %v4048
    %5878 = vmatmul.mubr.bf16.gmra.mxu0 %v4047
    %v5879 = vpop.f32.mrf.mxu0
    %v5880 = vadd.f32 %v4348, %v5879
    %v5881 = vpop.f32.mrf.mxu0
    %v5882 = vadd.f32 %v4352, %v5881
    %v5883 = vpop.f32.mrf.mxu0
    %v5884 = vadd.f32 %v4348, %v5883
    %v5885 = vpop.f32.mrf.mxu0
    %v5886 = vadd.f32 %v4352, %v5885
    %5887 = vmatprep.mubr.bf16.mxu0 %v4051
    %5888 = vmatmul.mubr.bf16.gmra.mxu0 %v4050
    %v5889 = vpop.f32.mrf.mxu0
    %v5890 = vadd.f32 %v4348, %v5889
    %v5891 = vpop.f32.mrf.mxu0
    %v5892 = vadd.f32 %v4352, %v5891
    %v5893 = vpop.f32.mrf.mxu0
    %v5894 = vadd.f32 %v4348, %v5893
    %v5895 = vpop.f32.mrf.mxu0
    %v5896 = vadd.f32 %v4352, %v5895
    %5897 = vdwg.mxu0
    %5898 = vmatprep.subr.bf16.mxu0 %v5546
    %5899 = vmatpush1.bf16.msra.mxu0 %v5545
    %5900 = vmatprep.subr.bf16.mxu0 %v5534
    %5901 = vmatpush1.bf16.msra.mxu0 %v5533
    %5902 = vmatprep.subr.bf16.mxu0 %v5522
    %5903 = vmatpush1.bf16.msra.mxu0 %v5521
    %5904 = vmatprep.subr.bf16.mxu0 %v5510
    %5905 = vmatpush1.bf16.msra.mxu0 %v5509
    %5906 = vmatprep.subr.bf16.mxu0 %v5498
    %5907 = vmatpush1.bf16.msra.mxu0 %v5497
    %5908 = vmatprep.subr.bf16.mxu0 %v5486
    %5909 = vmatpush1.bf16.msra.mxu0 %v5485
    %5910 = vmatprep.subr.bf16.mxu0 %v5474
    %5911 = vmatpush1.bf16.msra.mxu0 %v5473
    %5912 = vmatprep.subr.bf16.mxu0 %v5462
    %5913 = vmatpush1.bf16.msra.mxu0 %v5461
    %5914 = vmatprep.subr.bf16.mxu0 0
    %5915 = vmatpush2.bf16.msra.mxu0 0
    %5916 = vmatprep.subr.bf16.mxu0 0
    %5917 = vmatpush2.bf16.msra.mxu0 0
    %5918 = vmatprep.subr.bf16.mxu0 0
    %5919 = vmatpush2.bf16.msra.mxu0 0
    %5920 = vmatprep.subr.bf16.mxu0 0
    %5921 = vmatpush2.bf16.msra.mxu0 0
    %5922 = vmatprep.subr.bf16.mxu0 0
    %5923 = vmatpush2.bf16.msra.mxu0 0
    %5924 = vmatprep.subr.bf16.mxu0 0
    %5925 = vmatpush2.bf16.msra.mxu0 0
    %5926 = vmatprep.subr.bf16.mxu0 0
    %5927 = vmatpush2.bf16.msra.mxu0 0
    %5928 = vmatprep.subr.bf16.mxu0 0
    %5929 = vmatpush2.bf16.msra.mxu0 0
    %5930 = vmatprep.mubr.bf16.mxu0 0
    %5931 = vmatmul.mubr.bf16.gmra.mxu0 %v4049
    %v5932 = vpop.f32.mrf.mxu0
    %v5933 = vadd.f32 %v5880, %v5932
    %v5934 = vpop.f32.mrf.mxu0
    %v5935 = vadd.f32 %v5882, %v5934
    %v5936 = vpop.f32.mrf.mxu0
    %v5937 = vadd.f32 %v5884, %v5936
    %v5938 = vpop.f32.mrf.mxu0
    %v5939 = vadd.f32 %v5886, %v5938
    %5940 = vmatprep.mubr.bf16.mxu0 0
    %5941 = vmatmul.mubr.bf16.gmra.mxu0 %v4052
    %v5942 = vpop.f32.mrf.mxu0
    %v5943 = vadd.f32 %v5890, %v5942
    %v5944 = vpop.f32.mrf.mxu0
    %v5945 = vadd.f32 %v5892, %v5944
    %v5946 = vpop.f32.mrf.mxu0
    %v5947 = vadd.f32 %v5894, %v5946
    %v5948 = vpop.f32.mrf.mxu0
    %v5949 = vadd.f32 %v5896, %v5948
    %5950 = vdwg.mxu0
    %5951 = vmatprep.subr.bf16.mxu0 %v5356
    %5952 = vmatpush1.bf16.msra.mxu0 %v5355
    %5953 = vmatprep.subr.bf16.mxu0 %v5344
    %5954 = vmatpush1.bf16.msra.mxu0 %v5343
    %5955 = vmatprep.subr.bf16.mxu0 %v5332
    %5956 = vmatpush1.bf16.msra.mxu0 %v5331
    %5957 = vmatprep.subr.bf16.mxu0 %v5320
    %5958 = vmatpush1.bf16.msra.mxu0 %v5319
    %5959 = vmatprep.subr.bf16.mxu0 %v5308
    %5960 = vmatpush1.bf16.msra.mxu0 %v5307
    %5961 = vmatprep.subr.bf16.mxu0 %v5296
    %5962 = vmatpush1.bf16.msra.mxu0 %v5295
    %5963 = vmatprep.subr.bf16.mxu0 %v5284
    %5964 = vmatpush1.bf16.msra.mxu0 %v5283
    %5965 = vmatprep.subr.bf16.mxu0 %v5272
    %5966 = vmatpush1.bf16.msra.mxu0 %v5271
    %5967 = vmatprep.subr.bf16.mxu0 %v5452
    %5968 = vmatpush2.bf16.msra.mxu0 %v5451
    %5969 = vmatprep.subr.bf16.mxu0 %v5440
    %5970 = vmatpush2.bf16.msra.mxu0 %v5439
    %5971 = vmatprep.subr.bf16.mxu0 %v5428
    %5972 = vmatpush2.bf16.msra.mxu0 %v5427
    %5973 = vmatprep.subr.bf16.mxu0 %v5416
    %5974 = vmatpush2.bf16.msra.mxu0 %v5415
    %5975 = vmatprep.subr.bf16.mxu0 %v5404
    %5976 = vmatpush2.bf16.msra.mxu0 %v5403
    %5977 = vmatprep.subr.bf16.mxu0 %v5392
    %5978 = vmatpush2.bf16.msra.mxu0 %v5391
    %5979 = vmatprep.subr.bf16.mxu0 %v5380
    %5980 = vmatpush2.bf16.msra.mxu0 %v5379
    %5981 = vmatprep.subr.bf16.mxu0 %v5368
    %5982 = vmatpush2.bf16.msra.mxu0 %v5367
    %5983 = vmatprep.mubr.bf16.mxu0 %v4048
    %5984 = vmatmul.mubr.bf16.gmra.mxu0 %v4047
    %v5985 = vpop.f32.mrf.mxu0
    %v5986 = vadd.f32 %v4356, %v5985
    %v5987 = vpop.f32.mrf.mxu0
    %v5988 = vadd.f32 %v4360, %v5987
    %v5989 = vpop.f32.mrf.mxu0
    %v5990 = vadd.f32 %v4356, %v5989
    %v5991 = vpop.f32.mrf.mxu0
    %v5992 = vadd.f32 %v4360, %v5991
    %5993 = vmatprep.mubr.bf16.mxu0 %v4051
    %5994 = vmatmul.mubr.bf16.gmra.mxu0 %v4050
    %v5995 = vpop.f32.mrf.mxu0
    %v5996 = vadd.f32 %v4356, %v5995
    %v5997 = vpop.f32.mrf.mxu0
    %v5998 = vadd.f32 %v4360, %v5997
    %v5999 = vpop.f32.mrf.mxu0
    %v6000 = vadd.f32 %v4356, %v5999
    %v6001 = vpop.f32.mrf.mxu0
    %v6002 = vadd.f32 %v4360, %v6001
    %6003 = vdwg.mxu0
    %6004 = vmatprep.subr.bf16.mxu0 %v5548
    %6005 = vmatpush1.bf16.msra.mxu0 %v5547
    %6006 = vmatprep.subr.bf16.mxu0 %v5536
    %6007 = vmatpush1.bf16.msra.mxu0 %v5535
    %6008 = vmatprep.subr.bf16.mxu0 %v5524
    %6009 = vmatpush1.bf16.msra.mxu0 %v5523
    %6010 = vmatprep.subr.bf16.mxu0 %v5512
    %6011 = vmatpush1.bf16.msra.mxu0 %v5511
    %6012 = vmatprep.subr.bf16.mxu0 %v5500
    %6013 = vmatpush1.bf16.msra.mxu0 %v5499
    %6014 = vmatprep.subr.bf16.mxu0 %v5488
    %6015 = vmatpush1.bf16.msra.mxu0 %v5487
    %6016 = vmatprep.subr.bf16.mxu0 %v5476
    %6017 = vmatpush1.bf16.msra.mxu0 %v5475
    %6018 = vmatprep.subr.bf16.mxu0 %v5464
    %6019 = vmatpush1.bf16.msra.mxu0 %v5463
    %6020 = vmatprep.subr.bf16.mxu0 0
    %6021 = vmatpush2.bf16.msra.mxu0 0
    %6022 = vmatprep.subr.bf16.mxu0 0
    %6023 = vmatpush2.bf16.msra.mxu0 0
    %6024 = vmatprep.subr.bf16.mxu0 0
    %6025 = vmatpush2.bf16.msra.mxu0 0
    %6026 = vmatprep.subr.bf16.mxu0 0
    %6027 = vmatpush2.bf16.msra.mxu0 0
    %6028 = vmatprep.subr.bf16.mxu0 0
    %6029 = vmatpush2.bf16.msra.mxu0 0
    %6030 = vmatprep.subr.bf16.mxu0 0
    %6031 = vmatpush2.bf16.msra.mxu0 0
    %6032 = vmatprep.subr.bf16.mxu0 0
    %6033 = vmatpush2.bf16.msra.mxu0 0
    %6034 = vmatprep.subr.bf16.mxu0 0
    %6035 = vmatpush2.bf16.msra.mxu0 0
    %6036 = vmatprep.mubr.bf16.mxu0 0
    %6037 = vmatmul.mubr.bf16.gmra.mxu0 %v4049
    %v6038 = vpop.f32.mrf.mxu0
    %v6039 = vadd.f32 %v5986, %v6038
    %v6040 = vpop.f32.mrf.mxu0
    %v6041 = vadd.f32 %v5988, %v6040
    %v6042 = vpop.f32.mrf.mxu0
    %v6043 = vadd.f32 %v5990, %v6042
    %v6044 = vpop.f32.mrf.mxu0
    %v6045 = vadd.f32 %v5992, %v6044
    %6046 = vmatprep.mubr.bf16.mxu0 0
    %6047 = vmatmul.mubr.bf16.gmra.mxu0 %v4052
    %v6048 = vpop.f32.mrf.mxu0
    %v6049 = vadd.f32 %v5996, %v6048
    %v6050 = vpop.f32.mrf.mxu0
    %v6051 = vadd.f32 %v5998, %v6050
    %v6052 = vpop.f32.mrf.mxu0
    %v6053 = vadd.f32 %v6000, %v6052
    %v6054 = vpop.f32.mrf.mxu0
    %v6055 = vadd.f32 %v6002, %v6054
    %6056 = vdwg.mxu0
    %6057 = vmatprep.subr.bf16.mxu0 %v5358
    %6058 = vmatpush1.bf16.msra.mxu0 %v5357
    %6059 = vmatprep.subr.bf16.mxu0 %v5346
    %6060 = vmatpush1.bf16.msra.mxu0 %v5345
    %6061 = vmatprep.subr.bf16.mxu0 %v5334
    %6062 = vmatpush1.bf16.msra.mxu0 %v5333
    %6063 = vmatprep.subr.bf16.mxu0 %v5322
    %6064 = vmatpush1.bf16.msra.mxu0 %v5321
    %6065 = vmatprep.subr.bf16.mxu0 %v5310
    %6066 = vmatpush1.bf16.msra.mxu0 %v5309
    %6067 = vmatprep.subr.bf16.mxu0 %v5298
    %6068 = vmatpush1.bf16.msra.mxu0 %v5297
    %6069 = vmatprep.subr.bf16.mxu0 %v5286
    %6070 = vmatpush1.bf16.msra.mxu0 %v5285
    %6071 = vmatprep.subr.bf16.mxu0 %v5274
    %6072 = vmatpush1.bf16.msra.mxu0 %v5273
    %6073 = vmatprep.subr.bf16.mxu0 %v5454
    %6074 = vmatpush2.bf16.msra.mxu0 %v5453
    %6075 = vmatprep.subr.bf16.mxu0 %v5442
    %6076 = vmatpush2.bf16.msra.mxu0 %v5441
    %6077 = vmatprep.subr.bf16.mxu0 %v5430
    %6078 = vmatpush2.bf16.msra.mxu0 %v5429
    %6079 = vmatprep.subr.bf16.mxu0 %v5418
    %6080 = vmatpush2.bf16.msra.mxu0 %v5417
    %6081 = vmatprep.subr.bf16.mxu0 %v5406
    %6082 = vmatpush2.bf16.msra.mxu0 %v5405
    %6083 = vmatprep.subr.bf16.mxu0 %v5394
    %6084 = vmatpush2.bf16.msra.mxu0 %v5393
    %6085 = vmatprep.subr.bf16.mxu0 %v5382
    %6086 = vmatpush2.bf16.msra.mxu0 %v5381
    %6087 = vmatprep.subr.bf16.mxu0 %v5370
    %6088 = vmatpush2.bf16.msra.mxu0 %v5369
    %6089 = vmatprep.mubr.bf16.mxu0 %v4048
    %6090 = vmatmul.mubr.bf16.gmra.mxu0 %v4047
    %v6091 = vpop.f32.mrf.mxu0
    %v6092 = vadd.f32 %v4364, %v6091
    %v6093 = vpop.f32.mrf.mxu0
    %v6094 = vadd.f32 %v4368, %v6093
    %v6095 = vpop.f32.mrf.mxu0
    %v6096 = vadd.f32 %v4364, %v6095
    %v6097 = vpop.f32.mrf.mxu0
    %v6098 = vadd.f32 %v4368, %v6097
    %6099 = vmatprep.mubr.bf16.mxu0 %v4051
    %6100 = vmatmul.mubr.bf16.gmra.mxu0 %v4050
    %v6101 = vpop.f32.mrf.mxu0
    %v6102 = vadd.f32 %v4364, %v6101
    %v6103 = vpop.f32.mrf.mxu0
    %v6104 = vadd.f32 %v4368, %v6103
    %v6105 = vpop.f32.mrf.mxu0
    %v6106 = vadd.f32 %v4364, %v6105
    %v6107 = vpop.f32.mrf.mxu0
    %v6108 = vadd.f32 %v4368, %v6107
    %6109 = vdwg.mxu0
    %6110 = vmatprep.subr.bf16.mxu0 %v5550
    %6111 = vmatpush1.bf16.msra.mxu0 %v5549
    %6112 = vmatprep.subr.bf16.mxu0 %v5538
    %6113 = vmatpush1.bf16.msra.mxu0 %v5537
    %6114 = vmatprep.subr.bf16.mxu0 %v5526
    %6115 = vmatpush1.bf16.msra.mxu0 %v5525
    %6116 = vmatprep.subr.bf16.mxu0 %v5514
    %6117 = vmatpush1.bf16.msra.mxu0 %v5513
    %6118 = vmatprep.subr.bf16.mxu0 %v5502
    %6119 = vmatpush1.bf16.msra.mxu0 %v5501
    %6120 = vmatprep.subr.bf16.mxu0 %v5490
    %6121 = vmatpush1.bf16.msra.mxu0 %v5489
    %6122 = vmatprep.subr.bf16.mxu0 %v5478
    %6123 = vmatpush1.bf16.msra.mxu0 %v5477
    %6124 = vmatprep.subr.bf16.mxu0 %v5466
    %6125 = vmatpush1.bf16.msra.mxu0 %v5465
    %6126 = vmatprep.subr.bf16.mxu0 0
    %6127 = vmatpush2.bf16.msra.mxu0 0
    %6128 = vmatprep.subr.bf16.mxu0 0
    %6129 = vmatpush2.bf16.msra.mxu0 0
    %6130 = vmatprep.subr.bf16.mxu0 0
    %6131 = vmatpush2.bf16.msra.mxu0 0
    %6132 = vmatprep.subr.bf16.mxu0 0
    %6133 = vmatpush2.bf16.msra.mxu0 0
    %6134 = vmatprep.subr.bf16.mxu0 0
    %6135 = vmatpush2.bf16.msra.mxu0 0
    %6136 = vmatprep.subr.bf16.mxu0 0
    %6137 = vmatpush2.bf16.msra.mxu0 0
    %6138 = vmatprep.subr.bf16.mxu0 0
    %6139 = vmatpush2.bf16.msra.mxu0 0
    %6140 = vmatprep.subr.bf16.mxu0 0
    %6141 = vmatpush2.bf16.msra.mxu0 0
    %6142 = vmatprep.mubr.bf16.mxu0 0
    %6143 = vmatmul.mubr.bf16.gmra.mxu0 %v4049
    %v6144 = vpop.f32.mrf.mxu0
    %v6145 = vadd.f32 %v6092, %v6144
    %v6146 = vpop.f32.mrf.mxu0
    %v6147 = vadd.f32 %v6094, %v6146
    %v6148 = vpop.f32.mrf.mxu0
    %v6149 = vadd.f32 %v6096, %v6148
    %v6150 = vpop.f32.mrf.mxu0
    %v6151 = vadd.f32 %v6098, %v6150
    %6152 = vmatprep.mubr.bf16.mxu0 0
    %6153 = vmatmul.mubr.bf16.gmra.mxu0 %v4052
    %v6154 = vpop.f32.mrf.mxu0
    %v6155 = vadd.f32 %v6102, %v6154
    %v6156 = vpop.f32.mrf.mxu0
    %v6157 = vadd.f32 %v6104, %v6156
    %v6158 = vpop.f32.mrf.mxu0
    %v6159 = vadd.f32 %v6106, %v6158
    %v6160 = vpop.f32.mrf.mxu0
    %v6161 = vadd.f32 %v6108, %v6160
    %6162 = vdwg.mxu0
    %6163 = vmatprep.subr.bf16.mxu0 %v5360
    %6164 = vmatpush1.bf16.msra.mxu0 %v5359
    %6165 = vmatprep.subr.bf16.mxu0 %v5348
    %6166 = vmatpush1.bf16.msra.mxu0 %v5347
    %6167 = vmatprep.subr.bf16.mxu0 %v5336
    %6168 = vmatpush1.bf16.msra.mxu0 %v5335
    %6169 = vmatprep.subr.bf16.mxu0 %v5324
    %6170 = vmatpush1.bf16.msra.mxu0 %v5323
    %6171 = vmatprep.subr.bf16.mxu0 %v5312
    %6172 = vmatpush1.bf16.msra.mxu0 %v5311
    %6173 = vmatprep.subr.bf16.mxu0 %v5300
    %6174 = vmatpush1.bf16.msra.mxu0 %v5299
    %6175 = vmatprep.subr.bf16.mxu0 %v5288
    %6176 = vmatpush1.bf16.msra.mxu0 %v5287
    %6177 = vmatprep.subr.bf16.mxu0 %v5276
    %6178 = vmatpush1.bf16.msra.mxu0 %v5275
    %6179 = vmatprep.subr.bf16.mxu0 %v5456
    %6180 = vmatpush2.bf16.msra.mxu0 %v5455
    %6181 = vmatprep.subr.bf16.mxu0 %v5444
    %6182 = vmatpush2.bf16.msra.mxu0 %v5443
    %6183 = vmatprep.subr.bf16.mxu0 %v5432
    %6184 = vmatpush2.bf16.msra.mxu0 %v5431
    %6185 = vmatprep.subr.bf16.mxu0 %v5420
    %6186 = vmatpush2.bf16.msra.mxu0 %v5419
    %6187 = vmatprep.subr.bf16.mxu0 %v5408
    %6188 = vmatpush2.bf16.msra.mxu0 %v5407
    %6189 = vmatprep.subr.bf16.mxu0 %v5396
    %6190 = vmatpush2.bf16.msra.mxu0 %v5395
    %6191 = vmatprep.subr.bf16.mxu0 %v5384
    %6192 = vmatpush2.bf16.msra.mxu0 %v5383
    %6193 = vmatprep.subr.bf16.mxu0 %v5372
    %6194 = vmatpush2.bf16.msra.mxu0 %v5371
    %6195 = vmatprep.mubr.bf16.mxu0 %v4048
    %6196 = vmatmul.mubr.bf16.gmra.mxu0 %v4047
    %v6197 = vpop.f32.mrf.mxu0
    %v6198 = vadd.f32 %v4372, %v6197
    %v6199 = vpop.f32.mrf.mxu0
    %v6200 = vadd.f32 %v4376, %v6199
    %v6201 = vpop.f32.mrf.mxu0
    %v6202 = vadd.f32 %v4372, %v6201
    %v6203 = vpop.f32.mrf.mxu0
    %v6204 = vadd.f32 %v4376, %v6203
    %6205 = vmatprep.mubr.bf16.mxu0 %v4051
    %6206 = vmatmul.mubr.bf16.gmra.mxu0 %v4050
    %v6207 = vpop.f32.mrf.mxu0
    %v6208 = vadd.f32 %v4372, %v6207
    %v6209 = vpop.f32.mrf.mxu0
    %v6210 = vadd.f32 %v4376, %v6209
    %v6211 = vpop.f32.mrf.mxu0
    %v6212 = vadd.f32 %v4372, %v6211
    %v6213 = vpop.f32.mrf.mxu0
    %v6214 = vadd.f32 %v4376, %v6213
    %6215 = vdwg.mxu0
    %6216 = vmatprep.subr.bf16.mxu0 %v5552
    %6217 = vmatpush1.bf16.msra.mxu0 %v5551
    %6218 = vmatprep.subr.bf16.mxu0 %v5540
    %6219 = vmatpush1.bf16.msra.mxu0 %v5539
    %6220 = vmatprep.subr.bf16.mxu0 %v5528
    %6221 = vmatpush1.bf16.msra.mxu0 %v5527
    %6222 = vmatprep.subr.bf16.mxu0 %v5516
    %6223 = vmatpush1.bf16.msra.mxu0 %v5515
    %6224 = vmatprep.subr.bf16.mxu0 %v5504
    %6225 = vmatpush1.bf16.msra.mxu0 %v5503
    %6226 = vmatprep.subr.bf16.mxu0 %v5492
    %6227 = vmatpush1.bf16.msra.mxu0 %v5491
    %6228 = vmatprep.subr.bf16.mxu0 %v5480
    %6229 = vmatpush1.bf16.msra.mxu0 %v5479
    %6230 = vmatprep.subr.bf16.mxu0 %v5468
    %6231 = vmatpush1.bf16.msra.mxu0 %v5467
    %6232 = vmatprep.subr.bf16.mxu0 0
    %6233 = vmatpush2.bf16.msra.mxu0 0
    %6234 = vmatprep.subr.bf16.mxu0 0
    %6235 = vmatpush2.bf16.msra.mxu0 0
    %6236 = vmatprep.subr.bf16.mxu0 0
    %6237 = vmatpush2.bf16.msra.mxu0 0
    %6238 = vmatprep.subr.bf16.mxu0 0
    %6239 = vmatpush2.bf16.msra.mxu0 0
    %6240 = vmatprep.subr.bf16.mxu0 0
    %6241 = vmatpush2.bf16.msra.mxu0 0
    %6242 = vmatprep.subr.bf16.mxu0 0
    %6243 = vmatpush2.bf16.msra.mxu0 0
    %6244 = vmatprep.subr.bf16.mxu0 0
    %6245 = vmatpush2.bf16.msra.mxu0 0
    %6246 = vmatprep.subr.bf16.mxu0 0
    %6247 = vmatpush2.bf16.msra.mxu0 0
    %6248 = vmatprep.mubr.bf16.mxu0 0
    %6249 = vmatmul.mubr.bf16.gmra.mxu0 %v4049
    %v6250 = vpop.f32.mrf.mxu0
    %v6251 = vadd.f32 %v6198, %v6250
    %v6252 = vpop.f32.mrf.mxu0
    %v6253 = vadd.f32 %v6200, %v6252
    %v6254 = vpop.f32.mrf.mxu0
    %v6255 = vadd.f32 %v6202, %v6254
    %v6256 = vpop.f32.mrf.mxu0
    %v6257 = vadd.f32 %v6204, %v6256
    %6258 = vmatprep.mubr.bf16.mxu0 0
    %6259 = vmatmul.mubr.bf16.gmra.mxu0 %v4052
    %v6260 = vpop.f32.mrf.mxu0
    %v6261 = vadd.f32 %v6208, %v6260
    %v6262 = vpop.f32.mrf.mxu0
    %v6263 = vadd.f32 %v6210, %v6262
    %v6264 = vpop.f32.mrf.mxu0
    %v6265 = vadd.f32 %v6212, %v6264
    %v6266 = vpop.f32.mrf.mxu0
    %v6267 = vadd.f32 %v6214, %v6266
    %6268 = vdwg.mxu0
    %6269 = vmatprep.subr.bf16.mxu0 %v5362
    %6270 = vmatpush1.bf16.msra.mxu0 %v5361
    %6271 = vmatprep.subr.bf16.mxu0 %v5350
    %6272 = vmatpush1.bf16.msra.mxu0 %v5349
    %6273 = vmatprep.subr.bf16.mxu0 %v5338
    %6274 = vmatpush1.bf16.msra.mxu0 %v5337
    %6275 = vmatprep.subr.bf16.mxu0 %v5326
    %6276 = vmatpush1.bf16.msra.mxu0 %v5325
    %6277 = vmatprep.subr.bf16.mxu0 %v5314
    %6278 = vmatpush1.bf16.msra.mxu0 %v5313
    %6279 = vmatprep.subr.bf16.mxu0 %v5302
    %6280 = vmatpush1.bf16.msra.mxu0 %v5301
    %6281 = vmatprep.subr.bf16.mxu0 %v5290
    %6282 = vmatpush1.bf16.msra.mxu0 %v5289
    %6283 = vmatprep.subr.bf16.mxu0 %v5278
    %6284 = vmatpush1.bf16.msra.mxu0 %v5277
    %6285 = vmatprep.subr.bf16.mxu0 %v5458
    %6286 = vmatpush2.bf16.msra.mxu0 %v5457
    %6287 = vmatprep.subr.bf16.mxu0 %v5446
    %6288 = vmatpush2.bf16.msra.mxu0 %v5445
    %6289 = vmatprep.subr.bf16.mxu0 %v5434
    %6290 = vmatpush2.bf16.msra.mxu0 %v5433
    %6291 = vmatprep.subr.bf16.mxu0 %v5422
    %6292 = vmatpush2.bf16.msra.mxu0 %v5421
    %6293 = vmatprep.subr.bf16.mxu0 %v5410
    %6294 = vmatpush2.bf16.msra.mxu0 %v5409
    %6295 = vmatprep.subr.bf16.mxu0 %v5398
    %6296 = vmatpush2.bf16.msra.mxu0 %v5397
    %6297 = vmatprep.subr.bf16.mxu0 %v5386
    %6298 = vmatpush2.bf16.msra.mxu0 %v5385
    %6299 = vmatprep.subr.bf16.mxu0 %v5374
    %6300 = vmatpush2.bf16.msra.mxu0 %v5373
    %6301 = vmatprep.mubr.bf16.mxu0 %v4048
    %6302 = vmatmul.mubr.bf16.gmra.mxu0 %v4047
    %v6303 = vpop.f32.mrf.mxu0
    %v6304 = vadd.f32 %v4380, %v6303
    %v6305 = vpop.f32.mrf.mxu0
    %v6306 = vadd.f32 %v4384, %v6305
    %v6307 = vpop.f32.mrf.mxu0
    %v6308 = vadd.f32 %v4380, %v6307
    %v6309 = vpop.f32.mrf.mxu0
    %v6310 = vadd.f32 %v4384, %v6309
    %6311 = vmatprep.mubr.bf16.mxu0 %v4051
    %6312 = vmatmul.mubr.bf16.gmra.mxu0 %v4050
    %v6313 = vpop.f32.mrf.mxu0
    %v6314 = vadd.f32 %v4380, %v6313
    %v6315 = vpop.f32.mrf.mxu0
    %v6316 = vadd.f32 %v4384, %v6315
    %v6317 = vpop.f32.mrf.mxu0
    %v6318 = vadd.f32 %v4380, %v6317
    %v6319 = vpop.f32.mrf.mxu0
    %v6320 = vadd.f32 %v4384, %v6319
    %6321 = vdwg.mxu0
    %6322 = vmatprep.subr.bf16.mxu0 %v5554
    %6323 = vmatpush1.bf16.msra.mxu0 %v5553
    %6324 = vmatprep.subr.bf16.mxu0 %v5542
    %6325 = vmatpush1.bf16.msra.mxu0 %v5541
    %6326 = vmatprep.subr.bf16.mxu0 %v5530
    %6327 = vmatpush1.bf16.msra.mxu0 %v5529
    %6328 = vmatprep.subr.bf16.mxu0 %v5518
    %6329 = vmatpush1.bf16.msra.mxu0 %v5517
    %6330 = vmatprep.subr.bf16.mxu0 %v5506
    %6331 = vmatpush1.bf16.msra.mxu0 %v5505
    %6332 = vmatprep.subr.bf16.mxu0 %v5494
    %6333 = vmatpush1.bf16.msra.mxu0 %v5493
    %6334 = vmatprep.subr.bf16.mxu0 %v5482
    %6335 = vmatpush1.bf16.msra.mxu0 %v5481
    %6336 = vmatprep.subr.bf16.mxu0 %v5470
    %6337 = vmatpush1.bf16.msra.mxu0 %v5469
    %6338 = vmatprep.subr.bf16.mxu0 0
    %6339 = vmatpush2.bf16.msra.mxu0 0
    %6340 = vmatprep.subr.bf16.mxu0 0
    %6341 = vmatpush2.bf16.msra.mxu0 0
    %6342 = vmatprep.subr.bf16.mxu0 0
    %6343 = vmatpush2.bf16.msra.mxu0 0
    %6344 = vmatprep.subr.bf16.mxu0 0
    %6345 = vmatpush2.bf16.msra.mxu0 0
    %6346 = vmatprep.subr.bf16.mxu0 0
    %6347 = vmatpush2.bf16.msra.mxu0 0
    %6348 = vmatprep.subr.bf16.mxu0 0
    %6349 = vmatpush2.bf16.msra.mxu0 0
    %6350 = vmatprep.subr.bf16.mxu0 0
    %6351 = vmatpush2.bf16.msra.mxu0 0
    %6352 = vmatprep.subr.bf16.mxu0 0
    %6353 = vmatpush2.bf16.msra.mxu0 0
    %6354 = vmatprep.mubr.bf16.mxu0 0
    %6355 = vmatmul.mubr.bf16.gmra.mxu0 %v4049
    %v6356 = vpop.f32.mrf.mxu0
    %v6357 = vadd.f32 %v6304, %v6356
    %v6358 = vpop.f32.mrf.mxu0
    %v6359 = vadd.f32 %v6306, %v6358
    %v6360 = vpop.f32.mrf.mxu0
    %v6361 = vadd.f32 %v6308, %v6360
    %v6362 = vpop.f32.mrf.mxu0
    %v6363 = vadd.f32 %v6310, %v6362
    %6364 = vmatprep.mubr.bf16.mxu0 0
    %6365 = vmatmul.mubr.bf16.gmra.mxu0 %v4052
    %v6366 = vpop.f32.mrf.mxu0
    %v6367 = vadd.f32 %v6314, %v6366
    %v6368 = vpop.f32.mrf.mxu0
    %v6369 = vadd.f32 %v6316, %v6368
    %v6370 = vpop.f32.mrf.mxu0
    %v6371 = vadd.f32 %v6318, %v6370
    %v6372 = vpop.f32.mrf.mxu0
    %v6373 = vadd.f32 %v6320, %v6372
    %6374 = vdwg.mxu0
    %6375 = vmatprep.subr.bf16.mxu0 %v5364
    %6376 = vmatpush1.bf16.msra.mxu0 %v5363
    %6377 = vmatprep.subr.bf16.mxu0 %v5352
    %6378 = vmatpush1.bf16.msra.mxu0 %v5351
    %6379 = vmatprep.subr.bf16.mxu0 %v5340
    %6380 = vmatpush1.bf16.msra.mxu0 %v5339
    %6381 = vmatprep.subr.bf16.mxu0 %v5328
    %6382 = vmatpush1.bf16.msra.mxu0 %v5327
    %6383 = vmatprep.subr.bf16.mxu0 %v5316
    %6384 = vmatpush1.bf16.msra.mxu0 %v5315
    %6385 = vmatprep.subr.bf16.mxu0 %v5304
    %6386 = vmatpush1.bf16.msra.mxu0 %v5303
    %6387 = vmatprep.subr.bf16.mxu0 %v5292
    %6388 = vmatpush1.bf16.msra.mxu0 %v5291
    %6389 = vmatprep.subr.bf16.mxu0 %v5280
    %6390 = vmatpush1.bf16.msra.mxu0 %v5279
    %6391 = vmatprep.subr.bf16.mxu0 %v5460
    %6392 = vmatpush2.bf16.msra.mxu0 %v5459
    %6393 = vmatprep.subr.bf16.mxu0 %v5448
    %6394 = vmatpush2.bf16.msra.mxu0 %v5447
    %6395 = vmatprep.subr.bf16.mxu0 %v5436
    %6396 = vmatpush2.bf16.msra.mxu0 %v5435
    %6397 = vmatprep.subr.bf16.mxu0 %v5424
    %6398 = vmatpush2.bf16.msra.mxu0 %v5423
    %6399 = vmatprep.subr.bf16.mxu0 %v5412
    %6400 = vmatpush2.bf16.msra.mxu0 %v5411
    %6401 = vmatprep.subr.bf16.mxu0 %v5400
    %6402 = vmatpush2.bf16.msra.mxu0 %v5399
    %6403 = vmatprep.subr.bf16.mxu0 %v5388
    %6404 = vmatpush2.bf16.msra.mxu0 %v5387
    %6405 = vmatprep.subr.bf16.mxu0 %v5376
    %6406 = vmatpush2.bf16.msra.mxu0 %v5375
    %6407 = vmatprep.mubr.bf16.mxu0 %v4048
    %6408 = vmatmul.mubr.bf16.gmra.mxu0 %v4047
    %v6409 = vpop.f32.mrf.mxu0
    %v6410 = vadd.f32 %v4388, %v6409
    %v6411 = vpop.f32.mrf.mxu0
    %v6412 = vadd.f32 %v4392, %v6411
    %v6413 = vpop.f32.mrf.mxu0
    %v6414 = vadd.f32 %v4388, %v6413
    %v6415 = vpop.f32.mrf.mxu0
    %v6416 = vadd.f32 %v4392, %v6415
    %6417 = vmatprep.mubr.bf16.mxu0 %v4051
    %6418 = vmatmul.mubr.bf16.gmra.mxu0 %v4050
    %v6419 = vpop.f32.mrf.mxu0
    %v6420 = vadd.f32 %v4388, %v6419
    %v6421 = vpop.f32.mrf.mxu0
    %v6422 = vadd.f32 %v4392, %v6421
    %v6423 = vpop.f32.mrf.mxu0
    %v6424 = vadd.f32 %v4388, %v6423
    %v6425 = vpop.f32.mrf.mxu0
    %v6426 = vadd.f32 %v4392, %v6425
    %6427 = vdwg.mxu0
    %6428 = vmatprep.subr.bf16.mxu0 %v5556
    %6429 = vmatpush1.bf16.msra.mxu0 %v5555
    %6430 = vmatprep.subr.bf16.mxu0 %v5544
    %6431 = vmatpush1.bf16.msra.mxu0 %v5543
    %6432 = vmatprep.subr.bf16.mxu0 %v5532
    %6433 = vmatpush1.bf16.msra.mxu0 %v5531
    %6434 = vmatprep.subr.bf16.mxu0 %v5520
    %6435 = vmatpush1.bf16.msra.mxu0 %v5519
    %6436 = vmatprep.subr.bf16.mxu0 %v5508
    %6437 = vmatpush1.bf16.msra.mxu0 %v5507
    %6438 = vmatprep.subr.bf16.mxu0 %v5496
    %6439 = vmatpush1.bf16.msra.mxu0 %v5495
    %6440 = vmatprep.subr.bf16.mxu0 %v5484
    %6441 = vmatpush1.bf16.msra.mxu0 %v5483
    %6442 = vmatprep.subr.bf16.mxu0 %v5472
    %6443 = vmatpush1.bf16.msra.mxu0 %v5471
    %6444 = vmatprep.subr.bf16.mxu0 0
    %6445 = vmatpush2.bf16.msra.mxu0 0
    %6446 = vmatprep.subr.bf16.mxu0 0
    %6447 = vmatpush2.bf16.msra.mxu0 0
    %6448 = vmatprep.subr.bf16.mxu0 0
    %6449 = vmatpush2.bf16.msra.mxu0 0
    %6450 = vmatprep.subr.bf16.mxu0 0
    %6451 = vmatpush2.bf16.msra.mxu0 0
    %6452 = vmatprep.subr.bf16.mxu0 0
    %6453 = vmatpush2.bf16.msra.mxu0 0
    %6454 = vmatprep.subr.bf16.mxu0 0
    %6455 = vmatpush2.bf16.msra.mxu0 0
    %6456 = vmatprep.subr.bf16.mxu0 0
    %6457 = vmatpush2.bf16.msra.mxu0 0
    %6458 = vmatprep.subr.bf16.mxu0 0
    %6459 = vmatpush2.bf16.msra.mxu0 0
    %6460 = vmatprep.mubr.bf16.mxu0 0
    %6461 = vmatmul.mubr.bf16.gmra.mxu0 %v4049
    %v6462 = vpop.f32.mrf.mxu0
    %v6463 = vadd.f32 %v6410, %v6462
    %v6464 = vpop.f32.mrf.mxu0
    %v6465 = vadd.f32 %v6412, %v6464
    %v6466 = vpop.f32.mrf.mxu0
    %v6467 = vadd.f32 %v6414, %v6466
    %v6468 = vpop.f32.mrf.mxu0
    %v6469 = vadd.f32 %v6416, %v6468
    %6470 = vmatprep.mubr.bf16.mxu0 0
    %6471 = vmatmul.mubr.bf16.gmra.mxu0 %v4052
    %v6472 = vpop.f32.mrf.mxu0
    %v6473 = vadd.f32 %v6420, %v6472
    %v6474 = vpop.f32.mrf.mxu0
    %v6475 = vadd.f32 %v6422, %v6474
    %v6476 = vpop.f32.mrf.mxu0
    %v6477 = vadd.f32 %v6424, %v6476
    %v6478 = vpop.f32.mrf.mxu0
    %v6479 = vadd.f32 %v6426, %v6478
    %6480 = vdwg.mxu0
    %v6481 = vmax.f32 %v5933, 0.0
    %v6482 = vmax.f32 %v5935, 0.0
    %v6483 = vmax.f32 %v6039, 0.0
    %v6484 = vmax.f32 %v6041, 0.0
    %v6485 = vmax.f32 %v6145, 0.0
    %v6486 = vmax.f32 %v6147, 0.0
    %v6487 = vmax.f32 %v6251, 0.0
    %v6488 = vmax.f32 %v6253, 0.0
    %v6489 = vmax.f32 %v6357, 0.0
    %v6490 = vmax.f32 %v6359, 0.0
    %v6491 = vmax.f32 %v6463, 0.0
    %v6492 = vmax.f32 %v6465, 0.0
    %v6493 = vmax.f32 %v5937, 0.0
    %v6494 = vmax.f32 %v5939, 0.0
    %v6495 = vmax.f32 %v6043, 0.0
    %v6496 = vmax.f32 %v6045, 0.0
    %v6497 = vmax.f32 %v6149, 0.0
    %v6498 = vmax.f32 %v6151, 0.0
    %v6499 = vmax.f32 %v6255, 0.0
    %v6500 = vmax.f32 %v6257, 0.0
    %v6501 = vmax.f32 %v6361, 0.0
    %v6502 = vmax.f32 %v6363, 0.0
    %v6503 = vmax.f32 %v6467, 0.0
    %v6504 = vmax.f32 %v6469, 0.0
    %v6505 = vmax.f32 %v5943, 0.0
    %v6506 = vmax.f32 %v5945, 0.0
    %v6507 = vmax.f32 %v6049, 0.0
    %v6508 = vmax.f32 %v6051, 0.0
    %v6509 = vmax.f32 %v6155, 0.0
    %v6510 = vmax.f32 %v6157, 0.0
    %v6511 = vmax.f32 %v6261, 0.0
    %v6512 = vmax.f32 %v6263, 0.0
    %v6513 = vmax.f32 %v6367, 0.0
    %v6514 = vmax.f32 %v6369, 0.0
    %v6515 = vmax.f32 %v6473, 0.0
    %v6516 = vmax.f32 %v6475, 0.0
    %v6517 = vmax.f32 %v5947, 0.0
    %v6518 = vmax.f32 %v5949, 0.0
    %v6519 = vmax.f32 %v6053, 0.0
    %v6520 = vmax.f32 %v6055, 0.0
    %v6521 = vmax.f32 %v6159, 0.0
    %v6522 = vmax.f32 %v6161, 0.0
    %v6523 = vmax.f32 %v6265, 0.0
    %v6524 = vmax.f32 %v6267, 0.0
    %v6525 = vmax.f32 %v6371, 0.0
    %v6526 = vmax.f32 %v6373, 0.0
    %v6527 = vmax.f32 %v6477, 0.0
    %v6528 = vmax.f32 %v6479, 0.0
    %v6529 = vpack.c.bf16 %v6493, %v6481
    %v6530 = vpack.c.bf16 %v6494, %v6482
    %v6531 = vpack.c.bf16 %v6495, %v6483
    %v6532 = vpack.c.bf16 %v6496, %v6484
    %v6533 = vpack.c.bf16 %v6497, %v6485
    %v6534 = vpack.c.bf16 %v6498, %v6486
    %v6535 = vpack.c.bf16 %v6499, %v6487
    %v6536 = vpack.c.bf16 %v6500, %v6488
    %v6537 = vpack.c.bf16 %v6501, %v6489
    %v6538 = vpack.c.bf16 %v6502, %v6490
    %v6539 = vpack.c.bf16 %v6503, %v6491
    %v6540 = vpack.c.bf16 %v6504, %v6492
    %v6541 = vpack.c.bf16 %v6517, %v6505
    %v6542 = vpack.c.bf16 %v6518, %v6506
    %v6543 = vpack.c.bf16 %v6519, %v6507
    %v6544 = vpack.c.bf16 %v6520, %v6508
    %v6545 = vpack.c.bf16 %v6521, %v6509
    %v6546 = vpack.c.bf16 %v6522, %v6510
    %v6547 = vpack.c.bf16 %v6523, %v6511
    %v6548 = vpack.c.bf16 %v6524, %v6512
    %v6549 = vpack.c.bf16 %v6525, %v6513
    %v6550 = vpack.c.bf16 %v6526, %v6514
    %v6551 = vpack.c.bf16 %v6527, %v6515
    %v6552 = vpack.c.bf16 %v6528, %v6516
    %v6553 = vld [vmem:[#allocation20] sm:$0xff]
    %v6554 = vld [vmem:[#allocation20 + $0x8] sm:$0xf]
    %v6555 = vld [vmem:[#allocation20 + $0xc] sm:$0xff]
    %v6556 = vld [vmem:[#allocation20 + $0x14] sm:$0xf]
    %v6557 = vld [vmem:[#allocation20 + $0x18] sm:$0xff]
    %v6558 = vld [vmem:[#allocation20 + $0x20] sm:$0xf]
    %v6559 = vld [vmem:[#allocation20 + $0x24] sm:$0xff]
    %v6560 = vld [vmem:[#allocation20 + $0x2c] sm:$0xf]
    %v6561 = vld [vmem:[#allocation20 + $0x30] sm:$0xff]
    %v6562 = vld [vmem:[#allocation20 + $0x38] sm:$0xf]
    %v6563 = vld [vmem:[#allocation20 + $0x3c] sm:$0xff]
    %v6564 = vld [vmem:[#allocation20 + $0x44] sm:$0xf]
    %v6565 = vld [vmem:[#allocation20 + $0x48] sm:$0xff]
    %v6566 = vld [vmem:[#allocation20 + $0x50] sm:$0xf]
    %v6567 = vld [vmem:[#allocation20 + $0x54] sm:$0xff]
    %v6568 = vld [vmem:[#allocation20 + $0x5c] sm:$0xf]
    %v6569 = vld [vmem:[#allocation20 + $0x60] sm:$0xff]
    %v6570 = vld [vmem:[#allocation20 + $0x68] sm:$0xf]
    %v6571 = vld [vmem:[#allocation20 + $0x6c] sm:$0xff]
    %v6572 = vld [vmem:[#allocation20 + $0x74] sm:$0xf]
    %v6573 = vld [vmem:[#allocation20 + $0x78] sm:$0xff]
    %v6574 = vld [vmem:[#allocation20 + $0x80] sm:$0xf]
    %v6575 = vld [vmem:[#allocation20 + $0x84] sm:$0xff]
    %v6576 = vld [vmem:[#allocation20 + $0x8c] sm:$0xf]
    %v6577 = vld [vmem:[#allocation20 + $0x90] sm:$0xff]
    %v6578 = vld [vmem:[#allocation20 + $0x98] sm:$0xf]
    %v6579 = vld [vmem:[#allocation20 + $0x9c] sm:$0xff]
    %v6580 = vld [vmem:[#allocation20 + $0xa4] sm:$0xf]
    %v6581 = vld [vmem:[#allocation20 + $0xa8] sm:$0xff]
    %v6582 = vld [vmem:[#allocation20 + $0xb0] sm:$0xf]
    %v6583 = vld [vmem:[#allocation20 + $0xb4] sm:$0xff]
    %v6584 = vld [vmem:[#allocation20 + $0xbc] sm:$0xf]
    %v6585 = vld [vmem:[#allocation20 + $0xc0] sm:$0xff]
    %v6586 = vld [vmem:[#allocation20 + $0xc8] sm:$0xf]
    %v6587 = vld [vmem:[#allocation20 + $0xcc] sm:$0xff]
    %v6588 = vld [vmem:[#allocation20 + $0xd4] sm:$0xf]
    %v6589 = vld [vmem:[#allocation20 + $0xd8] sm:$0xff]
    %v6590 = vld [vmem:[#allocation20 + $0xe0] sm:$0xf]
    %v6591 = vld [vmem:[#allocation20 + $0xe4] sm:$0xff]
    %v6592 = vld [vmem:[#allocation20 + $0xec] sm:$0xf]
    %v6593 = vld [vmem:[#allocation20 + $0xf0] sm:$0xff]
    %v6594 = vld [vmem:[#allocation20 + $0xf8] sm:$0xf]
    %v6595 = vld [vmem:[#allocation20 + $0xfc] sm:$0xff]
    %v6596 = vld [vmem:[#allocation20 + $0x104] sm:$0xf]
    %v6597 = vld [vmem:[#allocation20 + $0x108] sm:$0xff]
    %v6598 = vld [vmem:[#allocation20 + $0x110] sm:$0xf]
    %v6599 = vld [vmem:[#allocation20 + $0x114] sm:$0xff]
    %v6600 = vld [vmem:[#allocation20 + $0x11c] sm:$0xf]
    %v6601 = vld [vmem:[#allocation20 + $0x120] sm:$0xff]
    %v6602 = vld [vmem:[#allocation20 + $0x128] sm:$0xf]
    %v6603 = vld [vmem:[#allocation20 + $0x12c] sm:$0xff]
    %v6604 = vld [vmem:[#allocation20 + $0x134] sm:$0xf]
    %v6605 = vld [vmem:[#allocation20 + $0x138] sm:$0xff]
    %v6606 = vld [vmem:[#allocation20 + $0x140] sm:$0xf]
    %v6607 = vld [vmem:[#allocation20 + $0x144] sm:$0xff]
    %v6608 = vld [vmem:[#allocation20 + $0x14c] sm:$0xf]
    %v6609 = vld [vmem:[#allocation20 + $0x150] sm:$0xff]
    %v6610 = vld [vmem:[#allocation20 + $0x158] sm:$0xf]
    %v6611 = vld [vmem:[#allocation20 + $0x15c] sm:$0xff]
    %v6612 = vld [vmem:[#allocation20 + $0x164] sm:$0xf]
    %v6613 = vld [vmem:[#allocation20 + $0x168] sm:$0xff]
    %v6614 = vld [vmem:[#allocation20 + $0x170] sm:$0xf]
    %v6615 = vld [vmem:[#allocation20 + $0x174] sm:$0xff]
    %v6616 = vld [vmem:[#allocation20 + $0x17c] sm:$0xf]
    %v6617 = vld [vmem:[#allocation20 + $0x180] sm:$0xff]
    %v6618 = vld [vmem:[#allocation20 + $0x188] sm:$0xf]
    %v6619 = vld [vmem:[#allocation20 + $0x18c] sm:$0xff]
    %v6620 = vld [vmem:[#allocation20 + $0x194] sm:$0xf]
    %v6621 = vld [vmem:[#allocation20 + $0x198] sm:$0xff]
    %v6622 = vld [vmem:[#allocation20 + $0x1a0] sm:$0xf]
    %v6623 = vld [vmem:[#allocation20 + $0x1a4] sm:$0xff]
    %v6624 = vld [vmem:[#allocation20 + $0x1ac] sm:$0xf]
    %v6625 = vld [vmem:[#allocation20 + $0x1b0] sm:$0xff]
    %v6626 = vld [vmem:[#allocation20 + $0x1b8] sm:$0xf]
    %v6627 = vld [vmem:[#allocation20 + $0x1bc] sm:$0xff]
    %v6628 = vld [vmem:[#allocation20 + $0x1c4] sm:$0xf]
    %v6629 = vld [vmem:[#allocation20 + $0x1c8] sm:$0xff]
    %v6630 = vld [vmem:[#allocation20 + $0x1d0] sm:$0xf]
    %v6631 = vld [vmem:[#allocation20 + $0x1d4] sm:$0xff]
    %v6632 = vld [vmem:[#allocation20 + $0x1dc] sm:$0xf]
    %v6633 = vld [vmem:[#allocation20 + $0x1e0] sm:$0xff]
    %v6634 = vld [vmem:[#allocation20 + $0x1e8] sm:$0xf]
    %v6635 = vld [vmem:[#allocation20 + $0x1ec] sm:$0xff]
    %v6636 = vld [vmem:[#allocation20 + $0x1f4] sm:$0xf]
    %v6637 = vld [vmem:[#allocation20 + $0x1f8] sm:$0xff]
    %v6638 = vld [vmem:[#allocation20 + $0x200] sm:$0xf]
    %v6639 = vld [vmem:[#allocation20 + $0x204] sm:$0xff]
    %v6640 = vld [vmem:[#allocation20 + $0x20c] sm:$0xf]
    %v6641 = vld [vmem:[#allocation20 + $0x210] sm:$0xff]
    %v6642 = vld [vmem:[#allocation20 + $0x218] sm:$0xf]
    %v6643 = vld [vmem:[#allocation20 + $0x21c] sm:$0xff]
    %v6644 = vld [vmem:[#allocation20 + $0x224] sm:$0xf]
    %v6645 = vld [vmem:[#allocation20 + $0x228] sm:$0xff]
    %v6646 = vld [vmem:[#allocation20 + $0x230] sm:$0xf]
    %v6647 = vld [vmem:[#allocation20 + $0x234] sm:$0xff]
    %v6648 = vld [vmem:[#allocation20 + $0x23c] sm:$0xf]
    %v6649 = vld [vmem:[#allocation20 + $0x240] sm:$0xff]
    %v6650 = vld [vmem:[#allocation20 + $0x248] sm:$0xf]
    %v6651 = vld [vmem:[#allocation20 + $0x24c] sm:$0xff]
    %v6652 = vld [vmem:[#allocation20 + $0x254] sm:$0xf]
    %v6653 = vld [vmem:[#allocation20 + $0x258] sm:$0xff]
    %v6654 = vld [vmem:[#allocation20 + $0x260] sm:$0xf]
    %v6655 = vld [vmem:[#allocation20 + $0x264] sm:$0xff]
    %v6656 = vld [vmem:[#allocation20 + $0x26c] sm:$0xf]
    %v6657 = vld [vmem:[#allocation20 + $0x270] sm:$0xff]
    %v6658 = vld [vmem:[#allocation20 + $0x278] sm:$0xf]
    %v6659 = vld [vmem:[#allocation20 + $0x27c] sm:$0xff]
    %v6660 = vld [vmem:[#allocation20 + $0x284] sm:$0xf]
    %v6661 = vld [vmem:[#allocation20 + $0x288] sm:$0xff]
    %v6662 = vld [vmem:[#allocation20 + $0x290] sm:$0xf]
    %v6663 = vld [vmem:[#allocation20 + $0x294] sm:$0xff]
    %v6664 = vld [vmem:[#allocation20 + $0x29c] sm:$0xf]
    %v6665 = vld [vmem:[#allocation20 + $0x2a0] sm:$0xff]
    %v6666 = vld [vmem:[#allocation20 + $0x2a8] sm:$0xf]
    %v6667 = vld [vmem:[#allocation20 + $0x2ac] sm:$0xff]
    %v6668 = vld [vmem:[#allocation20 + $0x2b4] sm:$0xf]
    %v6669 = vld [vmem:[#allocation20 + $0x2b8] sm:$0xff]
    %v6670 = vld [vmem:[#allocation20 + $0x2c0] sm:$0xf]
    %v6671 = vld [vmem:[#allocation20 + $0x2c4] sm:$0xff]
    %v6672 = vld [vmem:[#allocation20 + $0x2cc] sm:$0xf]
    %v6673 = vld [vmem:[#allocation20 + $0x2d0] sm:$0xff]
    %v6674 = vld [vmem:[#allocation20 + $0x2d8] sm:$0xf]
    %v6675 = vld [vmem:[#allocation20 + $0x2dc] sm:$0xff]
    %v6676 = vld [vmem:[#allocation20 + $0x2e4] sm:$0xf]
    %v6677 = vld [vmem:[#allocation20 + $0x2e8] sm:$0xff]
    %v6678 = vld [vmem:[#allocation20 + $0x2f0] sm:$0xf]
    %v6679 = vld [vmem:[#allocation20 + $0x2f4] sm:$0xff]
    %v6680 = vld [vmem:[#allocation20 + $0x2fc] sm:$0xf]
    %v6681 = vld [vmem:[#allocation20 + $0x300] sm:$0xff]
    %v6682 = vld [vmem:[#allocation20 + $0x308] sm:$0xf]
    %v6683 = vld [vmem:[#allocation20 + $0x30c] sm:$0xff]
    %v6684 = vld [vmem:[#allocation20 + $0x314] sm:$0xf]
    %v6685 = vld [vmem:[#allocation20 + $0x318] sm:$0xff]
    %v6686 = vld [vmem:[#allocation20 + $0x320] sm:$0xf]
    %v6687 = vld [vmem:[#allocation20 + $0x324] sm:$0xff]
    %v6688 = vld [vmem:[#allocation20 + $0x32c] sm:$0xf]
    %v6689 = vld [vmem:[#allocation20 + $0x330] sm:$0xff]
    %v6690 = vld [vmem:[#allocation20 + $0x338] sm:$0xf]
    %v6691 = vld [vmem:[#allocation20 + $0x33c] sm:$0xff]
    %v6692 = vld [vmem:[#allocation20 + $0x344] sm:$0xf]
    %v6693 = vld [vmem:[#allocation20 + $0x348] sm:$0xff]
    %v6694 = vld [vmem:[#allocation20 + $0x350] sm:$0xf]
    %v6695 = vld [vmem:[#allocation20 + $0x354] sm:$0xff]
    %v6696 = vld [vmem:[#allocation20 + $0x35c] sm:$0xf]
    %v6697 = vld [vmem:[#allocation20 + $0x360] sm:$0xff]
    %v6698 = vld [vmem:[#allocation20 + $0x368] sm:$0xf]
    %v6699 = vld [vmem:[#allocation20 + $0x36c] sm:$0xff]
    %v6700 = vld [vmem:[#allocation20 + $0x374] sm:$0xf]
    %v6701 = vld [vmem:[#allocation20 + $0x378] sm:$0xff]
    %v6702 = vld [vmem:[#allocation20 + $0x380] sm:$0xf]
    %v6703 = vld [vmem:[#allocation20 + $0x384] sm:$0xff]
    %v6704 = vld [vmem:[#allocation20 + $0x38c] sm:$0xf]
    %v6705 = vld [vmem:[#allocation20 + $0x390] sm:$0xff]
    %v6706 = vld [vmem:[#allocation20 + $0x398] sm:$0xf]
    %v6707 = vld [vmem:[#allocation20 + $0x39c] sm:$0xff]
    %v6708 = vld [vmem:[#allocation20 + $0x3a4] sm:$0xf]
    %v6709 = vld [vmem:[#allocation20 + $0x3a8] sm:$0xff]
    %v6710 = vld [vmem:[#allocation20 + $0x3b0] sm:$0xf]
    %v6711 = vld [vmem:[#allocation20 + $0x3b4] sm:$0xff]
    %v6712 = vld [vmem:[#allocation20 + $0x3bc] sm:$0xf]
    %v6713 = vld [vmem:[#allocation20 + $0x3c0] sm:$0xff]
    %v6714 = vld [vmem:[#allocation20 + $0x3c8] sm:$0xf]
    %v6715 = vld [vmem:[#allocation20 + $0x3cc] sm:$0xff]
    %v6716 = vld [vmem:[#allocation20 + $0x3d4] sm:$0xf]
    %v6717 = vld [vmem:[#allocation20 + $0x3d8] sm:$0xff]
    %v6718 = vld [vmem:[#allocation20 + $0x3e0] sm:$0xf]
    %v6719 = vld [vmem:[#allocation20 + $0x3e4] sm:$0xff]
    %v6720 = vld [vmem:[#allocation20 + $0x3ec] sm:$0xf]
    %v6721 = vld [vmem:[#allocation20 + $0x3f0] sm:$0xff]
    %v6722 = vld [vmem:[#allocation20 + $0x3f8] sm:$0xf]
    %v6723 = vld [vmem:[#allocation20 + $0x3fc] sm:$0xff]
    %v6724 = vld [vmem:[#allocation20 + $0x404] sm:$0xf]
    %v6725 = vld [vmem:[#allocation20 + $0x408] sm:$0xff]
    %v6726 = vld [vmem:[#allocation20 + $0x410] sm:$0xf]
    %v6727 = vld [vmem:[#allocation20 + $0x414] sm:$0xff]
    %v6728 = vld [vmem:[#allocation20 + $0x41c] sm:$0xf]
    %v6729 = vld [vmem:[#allocation20 + $0x420] sm:$0xff]
    %v6730 = vld [vmem:[#allocation20 + $0x428] sm:$0xf]
    %v6731 = vld [vmem:[#allocation20 + $0x42c] sm:$0xff]
    %v6732 = vld [vmem:[#allocation20 + $0x434] sm:$0xf]
    %v6733 = vld [vmem:[#allocation20 + $0x438] sm:$0xff]
    %v6734 = vld [vmem:[#allocation20 + $0x440] sm:$0xf]
    %v6735 = vld [vmem:[#allocation20 + $0x444] sm:$0xff]
    %v6736 = vld [vmem:[#allocation20 + $0x44c] sm:$0xf]
    %v6737 = vld [vmem:[#allocation20 + $0x450] sm:$0xff]
    %v6738 = vld [vmem:[#allocation20 + $0x458] sm:$0xf]
    %v6739 = vld [vmem:[#allocation20 + $0x45c] sm:$0xff]
    %v6740 = vld [vmem:[#allocation20 + $0x464] sm:$0xf]
    %v6741 = vld [vmem:[#allocation20 + $0x468] sm:$0xff]
    %v6742 = vld [vmem:[#allocation20 + $0x470] sm:$0xf]
    %v6743 = vld [vmem:[#allocation20 + $0x474] sm:$0xff]
    %v6744 = vld [vmem:[#allocation20 + $0x47c] sm:$0xf]
    %v6745 = vld [vmem:[#allocation20 + $0x480] sm:$0xff]
    %v6746 = vld [vmem:[#allocation20 + $0x488] sm:$0xf]
    %v6747 = vld [vmem:[#allocation20 + $0x48c] sm:$0xff]
    %v6748 = vld [vmem:[#allocation20 + $0x494] sm:$0xf]
    %v6749 = vld [vmem:[#allocation20 + $0x498] sm:$0xff]
    %v6750 = vld [vmem:[#allocation20 + $0x4a0] sm:$0xf]
    %v6751 = vld [vmem:[#allocation20 + $0x4a4] sm:$0xff]
    %v6752 = vld [vmem:[#allocation20 + $0x4ac] sm:$0xf]
    %v6753 = vld [vmem:[#allocation20 + $0x4b0] sm:$0xff]
    %v6754 = vld [vmem:[#allocation20 + $0x4b8] sm:$0xf]
    %v6755 = vld [vmem:[#allocation20 + $0x4bc] sm:$0xff]
    %v6756 = vld [vmem:[#allocation20 + $0x4c4] sm:$0xf]
    %v6757 = vld [vmem:[#allocation20 + $0x4c8] sm:$0xff]
    %v6758 = vld [vmem:[#allocation20 + $0x4d0] sm:$0xf]
    %v6759 = vld [vmem:[#allocation20 + $0x4d4] sm:$0xff]
    %v6760 = vld [vmem:[#allocation20 + $0x4dc] sm:$0xf]
    %v6761 = vld [vmem:[#allocation20 + $0x4e0] sm:$0xff]
    %v6762 = vld [vmem:[#allocation20 + $0x4e8] sm:$0xf]
    %v6763 = vld [vmem:[#allocation20 + $0x4ec] sm:$0xff]
    %v6764 = vld [vmem:[#allocation20 + $0x4f4] sm:$0xf]
    %v6765 = vld [vmem:[#allocation20 + $0x4f8] sm:$0xff]
    %v6766 = vld [vmem:[#allocation20 + $0x500] sm:$0xf]
    %v6767 = vld [vmem:[#allocation20 + $0x504] sm:$0xff]
    %v6768 = vld [vmem:[#allocation20 + $0x50c] sm:$0xf]
    %v6769 = vld [vmem:[#allocation20 + $0x510] sm:$0xff]
    %v6770 = vld [vmem:[#allocation20 + $0x518] sm:$0xf]
    %v6771 = vld [vmem:[#allocation20 + $0x51c] sm:$0xff]
    %v6772 = vld [vmem:[#allocation20 + $0x524] sm:$0xf]
    %v6773 = vld [vmem:[#allocation20 + $0x528] sm:$0xff]
    %v6774 = vld [vmem:[#allocation20 + $0x530] sm:$0xf]
    %v6775 = vld [vmem:[#allocation20 + $0x534] sm:$0xff]
    %v6776 = vld [vmem:[#allocation20 + $0x53c] sm:$0xf]
    %v6777 = vld [vmem:[#allocation20 + $0x540] sm:$0xff]
    %v6778 = vld [vmem:[#allocation20 + $0x548] sm:$0xf]
    %v6779 = vld [vmem:[#allocation20 + $0x54c] sm:$0xff]
    %v6780 = vld [vmem:[#allocation20 + $0x554] sm:$0xf]
    %v6781 = vld [vmem:[#allocation20 + $0x558] sm:$0xff]
    %v6782 = vld [vmem:[#allocation20 + $0x560] sm:$0xf]
    %v6783 = vld [vmem:[#allocation20 + $0x564] sm:$0xff]
    %v6784 = vld [vmem:[#allocation20 + $0x56c] sm:$0xf]
    %v6785 = vld [vmem:[#allocation20 + $0x570] sm:$0xff]
    %v6786 = vld [vmem:[#allocation20 + $0x578] sm:$0xf]
    %v6787 = vld [vmem:[#allocation20 + $0x57c] sm:$0xff]
    %v6788 = vld [vmem:[#allocation20 + $0x584] sm:$0xf]
    %v6789 = vld [vmem:[#allocation20 + $0x588] sm:$0xff]
    %v6790 = vld [vmem:[#allocation20 + $0x590] sm:$0xf]
    %v6791 = vld [vmem:[#allocation20 + $0x594] sm:$0xff]
    %v6792 = vld [vmem:[#allocation20 + $0x59c] sm:$0xf]
    %v6793 = vld [vmem:[#allocation20 + $0x5a0] sm:$0xff]
    %v6794 = vld [vmem:[#allocation20 + $0x5a8] sm:$0xf]
    %v6795 = vld [vmem:[#allocation20 + $0x5ac] sm:$0xff]
    %v6796 = vld [vmem:[#allocation20 + $0x5b4] sm:$0xf]
    %v6797 = vld [vmem:[#allocation20 + $0x5b8] sm:$0xff]
    %v6798 = vld [vmem:[#allocation20 + $0x5c0] sm:$0xf]
    %v6799 = vld [vmem:[#allocation20 + $0x5c4] sm:$0xff]
    %v6800 = vld [vmem:[#allocation20 + $0x5cc] sm:$0xf]
    %v6801 = vld [vmem:[#allocation20 + $0x5d0] sm:$0xff]
    %v6802 = vld [vmem:[#allocation20 + $0x5d8] sm:$0xf]
    %v6803 = vld [vmem:[#allocation20 + $0x5dc] sm:$0xff]
    %v6804 = vld [vmem:[#allocation20 + $0x5e4] sm:$0xf]
    %v6805 = vld [vmem:[#allocation20 + $0x5e8] sm:$0xff]
    %v6806 = vld [vmem:[#allocation20 + $0x5f0] sm:$0xf]
    %v6807 = vld [vmem:[#allocation20 + $0x5f4] sm:$0xff]
    %v6808 = vld [vmem:[#allocation20 + $0x5fc] sm:$0xf]
    %v6809 = vld [vmem:[#allocation20 + $0x600] sm:$0xff]
    %v6810 = vld [vmem:[#allocation20 + $0x608] sm:$0xf]
    %v6811 = vld [vmem:[#allocation20 + $0x60c] sm:$0xff]
    %v6812 = vld [vmem:[#allocation20 + $0x614] sm:$0xf]
    %v6813 = vld [vmem:[#allocation20 + $0x618] sm:$0xff]
    %v6814 = vld [vmem:[#allocation20 + $0x620] sm:$0xf]
    %v6815 = vld [vmem:[#allocation20 + $0x624] sm:$0xff]
    %v6816 = vld [vmem:[#allocation20 + $0x62c] sm:$0xf]
    %v6817 = vld [vmem:[#allocation20 + $0x630] sm:$0xff]
    %v6818 = vld [vmem:[#allocation20 + $0x638] sm:$0xf]
    %v6819 = vld [vmem:[#allocation20 + $0x63c] sm:$0xff]
    %v6820 = vld [vmem:[#allocation20 + $0x644] sm:$0xf]
    %v6821 = vld [vmem:[#allocation20 + $0x648] sm:$0xff]
    %v6822 = vld [vmem:[#allocation20 + $0x650] sm:$0xf]
    %v6823 = vld [vmem:[#allocation20 + $0x654] sm:$0xff]
    %v6824 = vld [vmem:[#allocation20 + $0x65c] sm:$0xf]
    %v6825 = vld [vmem:[#allocation20 + $0x660] sm:$0xff]
    %v6826 = vld [vmem:[#allocation20 + $0x668] sm:$0xf]
    %v6827 = vld [vmem:[#allocation20 + $0x66c] sm:$0xff]
    %v6828 = vld [vmem:[#allocation20 + $0x674] sm:$0xf]
    %v6829 = vld [vmem:[#allocation20 + $0x678] sm:$0xff]
    %v6830 = vld [vmem:[#allocation20 + $0x680] sm:$0xf]
    %v6831 = vld [vmem:[#allocation20 + $0x684] sm:$0xff]
    %v6832 = vld [vmem:[#allocation20 + $0x68c] sm:$0xf]
    %v6833 = vld [vmem:[#allocation20 + $0x690] sm:$0xff]
    %v6834 = vld [vmem:[#allocation20 + $0x698] sm:$0xf]
    %v6835 = vld [vmem:[#allocation20 + $0x69c] sm:$0xff]
    %v6836 = vld [vmem:[#allocation20 + $0x6a4] sm:$0xf]
    %v6837 = vld [vmem:[#allocation20 + $0x6a8] sm:$0xff]
    %v6838 = vld [vmem:[#allocation20 + $0x6b0] sm:$0xf]
    %v6839 = vld [vmem:[#allocation20 + $0x6b4] sm:$0xff]
    %v6840 = vld [vmem:[#allocation20 + $0x6bc] sm:$0xf]
    %v6841 = vld [vmem:[#allocation20 + $0x6c0] sm:$0xff]
    %v6842 = vld [vmem:[#allocation20 + $0x6c8] sm:$0xf]
    %v6843 = vld [vmem:[#allocation20 + $0x6cc] sm:$0xff]
    %v6844 = vld [vmem:[#allocation20 + $0x6d4] sm:$0xf]
    %v6845 = vld [vmem:[#allocation20 + $0x6d8] sm:$0xff]
    %v6846 = vld [vmem:[#allocation20 + $0x6e0] sm:$0xf]
    %v6847 = vld [vmem:[#allocation20 + $0x6e4] sm:$0xff]
    %v6848 = vld [vmem:[#allocation20 + $0x6ec] sm:$0xf]
    %v6849 = vld [vmem:[#allocation20 + $0x6f0] sm:$0xff]
    %v6850 = vld [vmem:[#allocation20 + $0x6f8] sm:$0xf]
    %v6851 = vld [vmem:[#allocation20 + $0x6fc] sm:$0xff]
    %v6852 = vld [vmem:[#allocation20 + $0x704] sm:$0xf]
    %v6853 = vld [vmem:[#allocation20 + $0x708] sm:$0xff]
    %v6854 = vld [vmem:[#allocation20 + $0x710] sm:$0xf]
    %v6855 = vld [vmem:[#allocation20 + $0x714] sm:$0xff]
    %v6856 = vld [vmem:[#allocation20 + $0x71c] sm:$0xf]
    %v6857 = vld [vmem:[#allocation20 + $0x720] sm:$0xff]
    %v6858 = vld [vmem:[#allocation20 + $0x728] sm:$0xf]
    %v6859 = vld [vmem:[#allocation20 + $0x72c] sm:$0xff]
    %v6860 = vld [vmem:[#allocation20 + $0x734] sm:$0xf]
    %v6861 = vld [vmem:[#allocation20 + $0x738] sm:$0xff]
    %v6862 = vld [vmem:[#allocation20 + $0x740] sm:$0xf]
    %v6863 = vld [vmem:[#allocation20 + $0x744] sm:$0xff]
    %v6864 = vld [vmem:[#allocation20 + $0x74c] sm:$0xf]
    %v6865 = vld [vmem:[#allocation20 + $0x750] sm:$0xff]
    %v6866 = vld [vmem:[#allocation20 + $0x758] sm:$0xf]
    %v6867 = vld [vmem:[#allocation20 + $0x75c] sm:$0xff]
    %v6868 = vld [vmem:[#allocation20 + $0x764] sm:$0xf]
    %v6869 = vld [vmem:[#allocation20 + $0x768] sm:$0xff]
    %v6870 = vld [vmem:[#allocation20 + $0x770] sm:$0xf]
    %v6871 = vld [vmem:[#allocation20 + $0x774] sm:$0xff]
    %v6872 = vld [vmem:[#allocation20 + $0x77c] sm:$0xf]
    %v6873 = vld [vmem:[#allocation20 + $0x780] sm:$0xff]
    %v6874 = vld [vmem:[#allocation20 + $0x788] sm:$0xf]
    %v6875 = vld [vmem:[#allocation20 + $0x78c] sm:$0xff]
    %v6876 = vld [vmem:[#allocation20 + $0x794] sm:$0xf]
    %v6877 = vld [vmem:[#allocation20 + $0x798] sm:$0xff]
    %v6878 = vld [vmem:[#allocation20 + $0x7a0] sm:$0xf]
    %v6879 = vld [vmem:[#allocation20 + $0x7a4] sm:$0xff]
    %v6880 = vld [vmem:[#allocation20 + $0x7ac] sm:$0xf]
    %v6881 = vld [vmem:[#allocation20 + $0x7b0] sm:$0xff]
    %v6882 = vld [vmem:[#allocation20 + $0x7b8] sm:$0xf]
    %v6883 = vld [vmem:[#allocation20 + $0x7bc] sm:$0xff]
    %v6884 = vld [vmem:[#allocation20 + $0x7c4] sm:$0xf]
    %v6885 = vld [vmem:[#allocation20 + $0x7c8] sm:$0xff]
    %v6886 = vld [vmem:[#allocation20 + $0x7d0] sm:$0xf]
    %v6887 = vld [vmem:[#allocation20 + $0x7d4] sm:$0xff]
    %v6888 = vld [vmem:[#allocation20 + $0x7dc] sm:$0xf]
    %v6889 = vld [vmem:[#allocation20 + $0x7e0] sm:$0xff]
    %v6890 = vld [vmem:[#allocation20 + $0x7e8] sm:$0xf]
    %v6891 = vld [vmem:[#allocation20 + $0x7ec] sm:$0xff]
    %v6892 = vld [vmem:[#allocation20 + $0x7f4] sm:$0xf]
    %v6893 = vld [vmem:[#allocation20 + $0x7f8] sm:$0xff]
    %v6894 = vld [vmem:[#allocation20 + $0x800] sm:$0xf]
    %v6895 = vld [vmem:[#allocation20 + $0x804] sm:$0xff]
    %v6896 = vld [vmem:[#allocation20 + $0x80c] sm:$0xf]
    %v6897 = vld [vmem:[#allocation20 + $0x810] sm:$0xff]
    %v6898 = vld [vmem:[#allocation20 + $0x818] sm:$0xf]
    %v6899 = vld [vmem:[#allocation20 + $0x81c] sm:$0xff]
    %v6900 = vld [vmem:[#allocation20 + $0x824] sm:$0xf]
    %v6901 = vld [vmem:[#allocation20 + $0x828] sm:$0xff]
    %v6902 = vld [vmem:[#allocation20 + $0x830] sm:$0xf]
    %v6903 = vld [vmem:[#allocation20 + $0x834] sm:$0xff]
    %v6904 = vld [vmem:[#allocation20 + $0x83c] sm:$0xf]
    %v6905 = vld [vmem:[#allocation20 + $0x840] sm:$0xff]
    %v6906 = vld [vmem:[#allocation20 + $0x848] sm:$0xf]
    %v6907 = vld [vmem:[#allocation20 + $0x84c] sm:$0xff]
    %v6908 = vld [vmem:[#allocation20 + $0x854] sm:$0xf]
    %v6909 = vld [vmem:[#allocation20 + $0x858] sm:$0xff]
    %v6910 = vld [vmem:[#allocation20 + $0x860] sm:$0xf]
    %v6911 = vld [vmem:[#allocation20 + $0x864] sm:$0xff]
    %v6912 = vld [vmem:[#allocation20 + $0x86c] sm:$0xf]
    %v6913 = vld [vmem:[#allocation20 + $0x870] sm:$0xff]
    %v6914 = vld [vmem:[#allocation20 + $0x878] sm:$0xf]
    %v6915 = vld [vmem:[#allocation20 + $0x87c] sm:$0xff]
    %v6916 = vld [vmem:[#allocation20 + $0x884] sm:$0xf]
    %v6917 = vld [vmem:[#allocation20 + $0x888] sm:$0xff]
    %v6918 = vld [vmem:[#allocation20 + $0x890] sm:$0xf]
    %v6919 = vld [vmem:[#allocation20 + $0x894] sm:$0xff]
    %v6920 = vld [vmem:[#allocation20 + $0x89c] sm:$0xf]
    %v6921 = vld [vmem:[#allocation20 + $0x8a0] sm:$0xff]
    %v6922 = vld [vmem:[#allocation20 + $0x8a8] sm:$0xf]
    %v6923 = vld [vmem:[#allocation20 + $0x8ac] sm:$0xff]
    %v6924 = vld [vmem:[#allocation20 + $0x8b4] sm:$0xf]
    %v6925 = vld [vmem:[#allocation20 + $0x8b8] sm:$0xff]
    %v6926 = vld [vmem:[#allocation20 + $0x8c0] sm:$0xf]
    %v6927 = vld [vmem:[#allocation20 + $0x8c4] sm:$0xff]
    %v6928 = vld [vmem:[#allocation20 + $0x8cc] sm:$0xf]
    %v6929 = vld [vmem:[#allocation20 + $0x8d0] sm:$0xff]
    %v6930 = vld [vmem:[#allocation20 + $0x8d8] sm:$0xf]
    %v6931 = vld [vmem:[#allocation20 + $0x8dc] sm:$0xff]
    %v6932 = vld [vmem:[#allocation20 + $0x8e4] sm:$0xf]
    %v6933 = vld [vmem:[#allocation20 + $0x8e8] sm:$0xff]
    %v6934 = vld [vmem:[#allocation20 + $0x8f0] sm:$0xf]
    %v6935 = vld [vmem:[#allocation20 + $0x8f4] sm:$0xff]
    %v6936 = vld [vmem:[#allocation20 + $0x8fc] sm:$0xf]
    %v6937 = vld [vmem:[#allocation22] sm:$0x7]
    %v6939 = vlaneseq
    %v6940 = vshrl.u32 %v6939, 7
    %v6941 = vsub.s32 0, %v6940
    %v6942 = vrot.slane %v6937, %v6941
    %v6943 = vlaneseq
    %v6944 = vshrl.u32 %v6943, 7
    %v6945 = vsub.s32 1, %v6944
    %v6946 = vrot.slane %v6937, %v6945
    %v6947 = vlaneseq
    %v6948 = vshrl.u32 %v6947, 7
    %v6949 = vsub.s32 2, %v6948
    %v6950 = vrot.slane %v6937, %v6949
    %v7338 = vunpack.c.l.b16 %v6553
    %v7339 = vunpack.c.h.b16 %v6553
    %v7340 = vunpack.c.l.b16 %v6554
    %v7341 = vunpack.c.l.b16 %v6555
    %v7342 = vunpack.c.h.b16 %v6555
    %v7343 = vunpack.c.l.b16 %v6556
    %v7344 = vunpack.c.l.b16 %v6557
    %v7345 = vunpack.c.h.b16 %v6557
    %v7346 = vunpack.c.l.b16 %v6558
    %v7347 = vunpack.c.l.b16 %v6559
    %v7348 = vunpack.c.h.b16 %v6559
    %v7349 = vunpack.c.l.b16 %v6560
    %v7350 = vunpack.c.l.b16 %v6561
    %v7351 = vunpack.c.h.b16 %v6561
    %v7352 = vunpack.c.l.b16 %v6562
    %v7353 = vunpack.c.l.b16 %v6563
    %v7354 = vunpack.c.h.b16 %v6563
    %v7355 = vunpack.c.l.b16 %v6564
    %v7356 = vunpack.c.l.b16 %v6565
    %v7357 = vunpack.c.h.b16 %v6565
    %v7358 = vunpack.c.l.b16 %v6566
    %v7359 = vunpack.c.l.b16 %v6567
    %v7360 = vunpack.c.h.b16 %v6567
    %v7361 = vunpack.c.l.b16 %v6568
    %v7362 = vunpack.c.l.b16 %v6569
    %v7363 = vunpack.c.h.b16 %v6569
    %v7364 = vunpack.c.l.b16 %v6570
    %v7365 = vunpack.c.l.b16 %v6571
    %v7366 = vunpack.c.h.b16 %v6571
    %v7367 = vunpack.c.l.b16 %v6572
    %v7368 = vunpack.c.l.b16 %v6573
    %v7369 = vunpack.c.h.b16 %v6573
    %v7370 = vunpack.c.l.b16 %v6574
    %v7371 = vunpack.c.l.b16 %v6575
    %v7372 = vunpack.c.h.b16 %v6575
    %v7373 = vunpack.c.l.b16 %v6576
    %v7374 = vunpack.c.l.b16 %v6577
    %v7375 = vunpack.c.h.b16 %v6577
    %v7376 = vunpack.c.l.b16 %v6578
    %v7377 = vunpack.c.l.b16 %v6579
    %v7378 = vunpack.c.h.b16 %v6579
    %v7379 = vunpack.c.l.b16 %v6580
    %v7380 = vunpack.c.l.b16 %v6581
    %v7381 = vunpack.c.h.b16 %v6581
    %v7382 = vunpack.c.l.b16 %v6582
    %v7383 = vunpack.c.l.b16 %v6583
    %v7384 = vunpack.c.h.b16 %v6583
    %v7385 = vunpack.c.l.b16 %v6584
    %v7386 = vunpack.c.l.b16 %v6585
    %v7387 = vunpack.c.h.b16 %v6585
    %v7388 = vunpack.c.l.b16 %v6586
    %v7389 = vunpack.c.l.b16 %v6587
    %v7390 = vunpack.c.h.b16 %v6587
    %v7391 = vunpack.c.l.b16 %v6588
    %v7392 = vunpack.c.l.b16 %v6589
    %v7393 = vunpack.c.h.b16 %v6589
    %v7394 = vunpack.c.l.b16 %v6590
    %v7395 = vunpack.c.l.b16 %v6591
    %v7396 = vunpack.c.h.b16 %v6591
    %v7397 = vunpack.c.l.b16 %v6592
    %v7398 = vunpack.c.l.b16 %v6593
    %v7399 = vunpack.c.h.b16 %v6593
    %v7400 = vunpack.c.l.b16 %v6594
    %v7401 = vunpack.c.l.b16 %v6595
    %v7402 = vunpack.c.h.b16 %v6595
    %v7403 = vunpack.c.l.b16 %v6596
    %v7404 = vunpack.c.l.b16 %v6597
    %v7405 = vunpack.c.h.b16 %v6597
    %v7406 = vunpack.c.l.b16 %v6598
    %v7407 = vunpack.c.l.b16 %v6599
    %v7408 = vunpack.c.h.b16 %v6599
    %v7409 = vunpack.c.l.b16 %v6600
    %v7410 = vunpack.c.l.b16 %v6601
    %v7411 = vunpack.c.h.b16 %v6601
    %v7412 = vunpack.c.l.b16 %v6602
    %v7413 = vunpack.c.l.b16 %v6603
    %v7414 = vunpack.c.h.b16 %v6603
    %v7415 = vunpack.c.l.b16 %v6604
    %v7416 = vunpack.c.l.b16 %v6605
    %v7417 = vunpack.c.h.b16 %v6605
    %v7418 = vunpack.c.l.b16 %v6606
    %v7419 = vunpack.c.l.b16 %v6607
    %v7420 = vunpack.c.h.b16 %v6607
    %v7421 = vunpack.c.l.b16 %v6608
    %v7422 = vunpack.c.l.b16 %v6609
    %v7423 = vunpack.c.h.b16 %v6609
    %v7424 = vunpack.c.l.b16 %v6610
    %v7425 = vunpack.c.l.b16 %v6611
    %v7426 = vunpack.c.h.b16 %v6611
    %v7427 = vunpack.c.l.b16 %v6612
    %v7428 = vunpack.c.l.b16 %v6613
    %v7429 = vunpack.c.h.b16 %v6613
    %v7430 = vunpack.c.l.b16 %v6614
    %v7431 = vunpack.c.l.b16 %v6615
    %v7432 = vunpack.c.h.b16 %v6615
    %v7433 = vunpack.c.l.b16 %v6616
    %v7434 = vunpack.c.l.b16 %v6617
    %v7435 = vunpack.c.h.b16 %v6617
    %v7436 = vunpack.c.l.b16 %v6618
    %v7437 = vunpack.c.l.b16 %v6619
    %v7438 = vunpack.c.h.b16 %v6619
    %v7439 = vunpack.c.l.b16 %v6620
    %v7440 = vunpack.c.l.b16 %v6621
    %v7441 = vunpack.c.h.b16 %v6621
    %v7442 = vunpack.c.l.b16 %v6622
    %v7443 = vunpack.c.l.b16 %v6623
    %v7444 = vunpack.c.h.b16 %v6623
    %v7445 = vunpack.c.l.b16 %v6624
    %v7446 = vunpack.c.l.b16 %v6625
    %v7447 = vunpack.c.h.b16 %v6625
    %v7448 = vunpack.c.l.b16 %v6626
    %v7449 = vunpack.c.l.b16 %v6627
    %v7450 = vunpack.c.h.b16 %v6627
    %v7451 = vunpack.c.l.b16 %v6628
    %v7452 = vunpack.c.l.b16 %v6629
    %v7453 = vunpack.c.h.b16 %v6629
    %v7454 = vunpack.c.l.b16 %v6630
    %v7455 = vunpack.c.l.b16 %v6631
    %v7456 = vunpack.c.h.b16 %v6631
    %v7457 = vunpack.c.l.b16 %v6632
    %v7458 = vunpack.c.l.b16 %v6633
    %v7459 = vunpack.c.h.b16 %v6633
    %v7460 = vunpack.c.l.b16 %v6634
    %v7461 = vunpack.c.l.b16 %v6635
    %v7462 = vunpack.c.h.b16 %v6635
    %v7463 = vunpack.c.l.b16 %v6636
    %v7464 = vunpack.c.l.b16 %v6637
    %v7465 = vunpack.c.h.b16 %v6637
    %v7466 = vunpack.c.l.b16 %v6638
    %v7467 = vunpack.c.l.b16 %v6639
    %v7468 = vunpack.c.h.b16 %v6639
    %v7469 = vunpack.c.l.b16 %v6640
    %v7470 = vunpack.c.l.b16 %v6641
    %v7471 = vunpack.c.h.b16 %v6641
    %v7472 = vunpack.c.l.b16 %v6642
    %v7473 = vunpack.c.l.b16 %v6643
    %v7474 = vunpack.c.h.b16 %v6643
    %v7475 = vunpack.c.l.b16 %v6644
    %v7476 = vunpack.c.l.b16 %v6645
    %v7477 = vunpack.c.h.b16 %v6645
    %v7478 = vunpack.c.l.b16 %v6646
    %v7479 = vunpack.c.l.b16 %v6647
    %v7480 = vunpack.c.h.b16 %v6647
    %v7481 = vunpack.c.l.b16 %v6648
    %v7482 = vunpack.c.l.b16 %v6649
    %v7483 = vunpack.c.h.b16 %v6649
    %v7484 = vunpack.c.l.b16 %v6650
    %v7485 = vunpack.c.l.b16 %v6651
    %v7486 = vunpack.c.h.b16 %v6651
    %v7487 = vunpack.c.l.b16 %v6652
    %v7488 = vunpack.c.l.b16 %v6653
    %v7489 = vunpack.c.h.b16 %v6653
    %v7490 = vunpack.c.l.b16 %v6654
    %v7491 = vunpack.c.l.b16 %v6655
    %v7492 = vunpack.c.h.b16 %v6655
    %v7493 = vunpack.c.l.b16 %v6656
    %v7494 = vunpack.c.l.b16 %v6657
    %v7495 = vunpack.c.h.b16 %v6657
    %v7496 = vunpack.c.l.b16 %v6658
    %v7497 = vunpack.c.l.b16 %v6659
    %v7498 = vunpack.c.h.b16 %v6659
    %v7499 = vunpack.c.l.b16 %v6660
    %v7500 = vunpack.c.l.b16 %v6661
    %v7501 = vunpack.c.h.b16 %v6661
    %v7502 = vunpack.c.l.b16 %v6662
    %v7503 = vunpack.c.l.b16 %v6663
    %v7504 = vunpack.c.h.b16 %v6663
    %v7505 = vunpack.c.l.b16 %v6664
    %v7506 = vunpack.c.l.b16 %v6665
    %v7507 = vunpack.c.h.b16 %v6665
    %v7508 = vunpack.c.l.b16 %v6666
    %v7509 = vunpack.c.l.b16 %v6667
    %v7510 = vunpack.c.h.b16 %v6667
    %v7511 = vunpack.c.l.b16 %v6668
    %v7512 = vunpack.c.l.b16 %v6669
    %v7513 = vunpack.c.h.b16 %v6669
    %v7514 = vunpack.c.l.b16 %v6670
    %v7515 = vunpack.c.l.b16 %v6671
    %v7516 = vunpack.c.h.b16 %v6671
    %v7517 = vunpack.c.l.b16 %v6672
    %v7518 = vunpack.c.l.b16 %v6673
    %v7519 = vunpack.c.h.b16 %v6673
    %v7520 = vunpack.c.l.b16 %v6674
    %v7521 = vunpack.c.l.b16 %v6675
    %v7522 = vunpack.c.h.b16 %v6675
    %v7523 = vunpack.c.l.b16 %v6676
    %v7524 = vunpack.c.l.b16 %v6677
    %v7525 = vunpack.c.h.b16 %v6677
    %v7526 = vunpack.c.l.b16 %v6678
    %v7527 = vunpack.c.l.b16 %v6679
    %v7528 = vunpack.c.h.b16 %v6679
    %v7529 = vunpack.c.l.b16 %v6680
    %v7530 = vunpack.c.l.b16 %v6681
    %v7531 = vunpack.c.h.b16 %v6681
    %v7532 = vunpack.c.l.b16 %v6682
    %v7533 = vunpack.c.l.b16 %v6683
    %v7534 = vunpack.c.h.b16 %v6683
    %v7535 = vunpack.c.l.b16 %v6684
    %v7536 = vunpack.c.l.b16 %v6685
    %v7537 = vunpack.c.h.b16 %v6685
    %v7538 = vunpack.c.l.b16 %v6686
    %v7539 = vunpack.c.l.b16 %v6687
    %v7540 = vunpack.c.h.b16 %v6687
    %v7541 = vunpack.c.l.b16 %v6688
    %v7542 = vunpack.c.l.b16 %v6689
    %v7543 = vunpack.c.h.b16 %v6689
    %v7544 = vunpack.c.l.b16 %v6690
    %v7545 = vunpack.c.l.b16 %v6691
    %v7546 = vunpack.c.h.b16 %v6691
    %v7547 = vunpack.c.l.b16 %v6692
    %v7548 = vunpack.c.l.b16 %v6693
    %v7549 = vunpack.c.h.b16 %v6693
    %v7550 = vunpack.c.l.b16 %v6694
    %v7551 = vunpack.c.l.b16 %v6695
    %v7552 = vunpack.c.h.b16 %v6695
    %v7553 = vunpack.c.l.b16 %v6696
    %v7554 = vunpack.c.l.b16 %v6697
    %v7555 = vunpack.c.h.b16 %v6697
    %v7556 = vunpack.c.l.b16 %v6698
    %v7557 = vunpack.c.l.b16 %v6699
    %v7558 = vunpack.c.h.b16 %v6699
    %v7559 = vunpack.c.l.b16 %v6700
    %v7560 = vunpack.c.l.b16 %v6701
    %v7561 = vunpack.c.h.b16 %v6701
    %v7562 = vunpack.c.l.b16 %v6702
    %v7563 = vunpack.c.l.b16 %v6703
    %v7564 = vunpack.c.h.b16 %v6703
    %v7565 = vunpack.c.l.b16 %v6704
    %v7566 = vunpack.c.l.b16 %v6705
    %v7567 = vunpack.c.h.b16 %v6705
    %v7568 = vunpack.c.l.b16 %v6706
    %v7569 = vunpack.c.l.b16 %v6707
    %v7570 = vunpack.c.h.b16 %v6707
    %v7571 = vunpack.c.l.b16 %v6708
    %v7572 = vunpack.c.l.b16 %v6709
    %v7573 = vunpack.c.h.b16 %v6709
    %v7574 = vunpack.c.l.b16 %v6710
    %v7575 = vunpack.c.l.b16 %v6711
    %v7576 = vunpack.c.h.b16 %v6711
    %v7577 = vunpack.c.l.b16 %v6712
    %v7578 = vunpack.c.l.b16 %v6713
    %v7579 = vunpack.c.h.b16 %v6713
    %v7580 = vunpack.c.l.b16 %v6714
    %v7581 = vunpack.c.l.b16 %v6715
    %v7582 = vunpack.c.h.b16 %v6715
    %v7583 = vunpack.c.l.b16 %v6716
    %v7584 = vunpack.c.l.b16 %v6717
    %v7585 = vunpack.c.h.b16 %v6717
    %v7586 = vunpack.c.l.b16 %v6718
    %v7587 = vunpack.c.l.b16 %v6719
    %v7588 = vunpack.c.h.b16 %v6719
    %v7589 = vunpack.c.l.b16 %v6720
    %v7590 = vunpack.c.l.b16 %v6721
    %v7591 = vunpack.c.h.b16 %v6721
    %v7592 = vunpack.c.l.b16 %v6722
    %v7593 = vunpack.c.l.b16 %v6723
    %v7594 = vunpack.c.h.b16 %v6723
    %v7595 = vunpack.c.l.b16 %v6724
    %v7596 = vunpack.c.l.b16 %v6725
    %v7597 = vunpack.c.h.b16 %v6725
    %v7598 = vunpack.c.l.b16 %v6726
    %v7599 = vunpack.c.l.b16 %v6727
    %v7600 = vunpack.c.h.b16 %v6727
    %v7601 = vunpack.c.l.b16 %v6728
    %v7602 = vunpack.c.l.b16 %v6729
    %v7603 = vunpack.c.h.b16 %v6729
    %v7604 = vunpack.c.l.b16 %v6730
    %v7605 = vunpack.c.l.b16 %v6731
    %v7606 = vunpack.c.h.b16 %v6731
    %v7607 = vunpack.c.l.b16 %v6732
    %v7608 = vunpack.c.l.b16 %v6733
    %v7609 = vunpack.c.h.b16 %v6733
    %v7610 = vunpack.c.l.b16 %v6734
    %v7611 = vunpack.c.l.b16 %v6735
    %v7612 = vunpack.c.h.b16 %v6735
    %v7613 = vunpack.c.l.b16 %v6736
    %v7614 = vunpack.c.l.b16 %v6737
    %v7615 = vunpack.c.h.b16 %v6737
    %v7616 = vunpack.c.l.b16 %v6738
    %v7617 = vunpack.c.l.b16 %v6739
    %v7618 = vunpack.c.h.b16 %v6739
    %v7619 = vunpack.c.l.b16 %v6740
    %v7620 = vunpack.c.l.b16 %v6741
    %v7621 = vunpack.c.h.b16 %v6741
    %v7622 = vunpack.c.l.b16 %v6742
    %v7623 = vunpack.c.l.b16 %v6743
    %v7624 = vunpack.c.h.b16 %v6743
    %v7625 = vunpack.c.l.b16 %v6744
    %v7626 = vunpack.c.l.b16 %v6745
    %v7627 = vunpack.c.h.b16 %v6745
    %v7628 = vunpack.c.l.b16 %v6746
    %v7629 = vunpack.c.l.b16 %v6747
    %v7630 = vunpack.c.h.b16 %v6747
    %v7631 = vunpack.c.l.b16 %v6748
    %v7632 = vunpack.c.l.b16 %v6749
    %v7633 = vunpack.c.h.b16 %v6749
    %v7634 = vunpack.c.l.b16 %v6750
    %v7635 = vunpack.c.l.b16 %v6751
    %v7636 = vunpack.c.h.b16 %v6751
    %v7637 = vunpack.c.l.b16 %v6752
    %v7638 = vunpack.c.l.b16 %v6753
    %v7639 = vunpack.c.h.b16 %v6753
    %v7640 = vunpack.c.l.b16 %v6754
    %v7641 = vunpack.c.l.b16 %v6755
    %v7642 = vunpack.c.h.b16 %v6755
    %v7643 = vunpack.c.l.b16 %v6756
    %v7644 = vunpack.c.l.b16 %v6757
    %v7645 = vunpack.c.h.b16 %v6757
    %v7646 = vunpack.c.l.b16 %v6758
    %v7647 = vunpack.c.l.b16 %v6759
    %v7648 = vunpack.c.h.b16 %v6759
    %v7649 = vunpack.c.l.b16 %v6760
    %v7650 = vunpack.c.l.b16 %v6761
    %v7651 = vunpack.c.h.b16 %v6761
    %v7652 = vunpack.c.l.b16 %v6762
    %v7653 = vunpack.c.l.b16 %v6763
    %v7654 = vunpack.c.h.b16 %v6763
    %v7655 = vunpack.c.l.b16 %v6764
    %v7656 = vunpack.c.l.b16 %v6765
    %v7657 = vunpack.c.h.b16 %v6765
    %v7658 = vunpack.c.l.b16 %v6766
    %v7659 = vunpack.c.l.b16 %v6767
    %v7660 = vunpack.c.h.b16 %v6767
    %v7661 = vunpack.c.l.b16 %v6768
    %v7662 = vunpack.c.l.b16 %v6769
    %v7663 = vunpack.c.h.b16 %v6769
    %v7664 = vunpack.c.l.b16 %v6770
    %v7665 = vunpack.c.l.b16 %v6771
    %v7666 = vunpack.c.h.b16 %v6771
    %v7667 = vunpack.c.l.b16 %v6772
    %v7668 = vunpack.c.l.b16 %v6773
    %v7669 = vunpack.c.h.b16 %v6773
    %v7670 = vunpack.c.l.b16 %v6774
    %v7671 = vunpack.c.l.b16 %v6775
    %v7672 = vunpack.c.h.b16 %v6775
    %v7673 = vunpack.c.l.b16 %v6776
    %v7674 = vunpack.c.l.b16 %v6777
    %v7675 = vunpack.c.h.b16 %v6777
    %v7676 = vunpack.c.l.b16 %v6778
    %v7677 = vunpack.c.l.b16 %v6779
    %v7678 = vunpack.c.h.b16 %v6779
    %v7679 = vunpack.c.l.b16 %v6780
    %v7680 = vunpack.c.l.b16 %v6781
    %v7681 = vunpack.c.h.b16 %v6781
    %v7682 = vunpack.c.l.b16 %v6782
    %v7683 = vunpack.c.l.b16 %v6783
    %v7684 = vunpack.c.h.b16 %v6783
    %v7685 = vunpack.c.l.b16 %v6784
    %v7686 = vunpack.c.l.b16 %v6785
    %v7687 = vunpack.c.h.b16 %v6785
    %v7688 = vunpack.c.l.b16 %v6786
    %v7689 = vunpack.c.l.b16 %v6787
    %v7690 = vunpack.c.h.b16 %v6787
    %v7691 = vunpack.c.l.b16 %v6788
    %v7692 = vunpack.c.l.b16 %v6789
    %v7693 = vunpack.c.h.b16 %v6789
    %v7694 = vunpack.c.l.b16 %v6790
    %v7695 = vunpack.c.l.b16 %v6791
    %v7696 = vunpack.c.h.b16 %v6791
    %v7697 = vunpack.c.l.b16 %v6792
    %v7698 = vunpack.c.l.b16 %v6793
    %v7699 = vunpack.c.h.b16 %v6793
    %v7700 = vunpack.c.l.b16 %v6794
    %v7701 = vunpack.c.l.b16 %v6795
    %v7702 = vunpack.c.h.b16 %v6795
    %v7703 = vunpack.c.l.b16 %v6796
    %v7704 = vunpack.c.l.b16 %v6797
    %v7705 = vunpack.c.h.b16 %v6797
    %v7706 = vunpack.c.l.b16 %v6798
    %v7707 = vunpack.c.l.b16 %v6799
    %v7708 = vunpack.c.h.b16 %v6799
    %v7709 = vunpack.c.l.b16 %v6800
    %v7710 = vunpack.c.l.b16 %v6801
    %v7711 = vunpack.c.h.b16 %v6801
    %v7712 = vunpack.c.l.b16 %v6802
    %v7713 = vunpack.c.l.b16 %v6803
    %v7714 = vunpack.c.h.b16 %v6803
    %v7715 = vunpack.c.l.b16 %v6804
    %v7716 = vunpack.c.l.b16 %v6805
    %v7717 = vunpack.c.h.b16 %v6805
    %v7718 = vunpack.c.l.b16 %v6806
    %v7719 = vunpack.c.l.b16 %v6807
    %v7720 = vunpack.c.h.b16 %v6807
    %v7721 = vunpack.c.l.b16 %v6808
    %v7722 = vunpack.c.l.b16 %v6809
    %v7723 = vunpack.c.h.b16 %v6809
    %v7724 = vunpack.c.l.b16 %v6810
    %v7725 = vunpack.c.l.b16 %v6811
    %v7726 = vunpack.c.h.b16 %v6811
    %v7727 = vunpack.c.l.b16 %v6812
    %v7728 = vunpack.c.l.b16 %v6813
    %v7729 = vunpack.c.h.b16 %v6813
    %v7730 = vunpack.c.l.b16 %v6814
    %v7731 = vunpack.c.l.b16 %v6815
    %v7732 = vunpack.c.h.b16 %v6815
    %v7733 = vunpack.c.l.b16 %v6816
    %v7734 = vunpack.c.l.b16 %v6817
    %v7735 = vunpack.c.h.b16 %v6817
    %v7736 = vunpack.c.l.b16 %v6818
    %v7737 = vunpack.c.l.b16 %v6819
    %v7738 = vunpack.c.h.b16 %v6819
    %v7739 = vunpack.c.l.b16 %v6820
    %v7740 = vunpack.c.l.b16 %v6821
    %v7741 = vunpack.c.h.b16 %v6821
    %v7742 = vunpack.c.l.b16 %v6822
    %v7743 = vunpack.c.l.b16 %v6823
    %v7744 = vunpack.c.h.b16 %v6823
    %v7745 = vunpack.c.l.b16 %v6824
    %v7746 = vunpack.c.l.b16 %v6825
    %v7747 = vunpack.c.h.b16 %v6825
    %v7748 = vunpack.c.l.b16 %v6826
    %v7749 = vunpack.c.l.b16 %v6827
    %v7750 = vunpack.c.h.b16 %v6827
    %v7751 = vunpack.c.l.b16 %v6828
    %v7752 = vunpack.c.l.b16 %v6829
    %v7753 = vunpack.c.h.b16 %v6829
    %v7754 = vunpack.c.l.b16 %v6830
    %v7755 = vunpack.c.l.b16 %v6831
    %v7756 = vunpack.c.h.b16 %v6831
    %v7757 = vunpack.c.l.b16 %v6832
    %v7758 = vunpack.c.l.b16 %v6833
    %v7759 = vunpack.c.h.b16 %v6833
    %v7760 = vunpack.c.l.b16 %v6834
    %v7761 = vunpack.c.l.b16 %v6835
    %v7762 = vunpack.c.h.b16 %v6835
    %v7763 = vunpack.c.l.b16 %v6836
    %v7764 = vunpack.c.l.b16 %v6837
    %v7765 = vunpack.c.h.b16 %v6837
    %v7766 = vunpack.c.l.b16 %v6838
    %v7767 = vunpack.c.l.b16 %v6839
    %v7768 = vunpack.c.h.b16 %v6839
    %v7769 = vunpack.c.l.b16 %v6840
    %v7770 = vunpack.c.l.b16 %v6841
    %v7771 = vunpack.c.h.b16 %v6841
    %v7772 = vunpack.c.l.b16 %v6842
    %v7773 = vunpack.c.l.b16 %v6843
    %v7774 = vunpack.c.h.b16 %v6843
    %v7775 = vunpack.c.l.b16 %v6844
    %v7776 = vunpack.c.l.b16 %v6845
    %v7777 = vunpack.c.h.b16 %v6845
    %v7778 = vunpack.c.l.b16 %v6846
    %v7779 = vunpack.c.l.b16 %v6847
    %v7780 = vunpack.c.h.b16 %v6847
    %v7781 = vunpack.c.l.b16 %v6848
    %v7782 = vunpack.c.l.b16 %v6849
    %v7783 = vunpack.c.h.b16 %v6849
    %v7784 = vunpack.c.l.b16 %v6850
    %v7785 = vunpack.c.l.b16 %v6851
    %v7786 = vunpack.c.h.b16 %v6851
    %v7787 = vunpack.c.l.b16 %v6852
    %v7788 = vunpack.c.l.b16 %v6853
    %v7789 = vunpack.c.h.b16 %v6853
    %v7790 = vunpack.c.l.b16 %v6854
    %v7791 = vunpack.c.l.b16 %v6855
    %v7792 = vunpack.c.h.b16 %v6855
    %v7793 = vunpack.c.l.b16 %v6856
    %v7794 = vunpack.c.l.b16 %v6857
    %v7795 = vunpack.c.h.b16 %v6857
    %v7796 = vunpack.c.l.b16 %v6858
    %v7797 = vunpack.c.l.b16 %v6859
    %v7798 = vunpack.c.h.b16 %v6859
    %v7799 = vunpack.c.l.b16 %v6860
    %v7800 = vunpack.c.l.b16 %v6861
    %v7801 = vunpack.c.h.b16 %v6861
    %v7802 = vunpack.c.l.b16 %v6862
    %v7803 = vunpack.c.l.b16 %v6863
    %v7804 = vunpack.c.h.b16 %v6863
    %v7805 = vunpack.c.l.b16 %v6864
    %v7806 = vunpack.c.l.b16 %v6865
    %v7807 = vunpack.c.h.b16 %v6865
    %v7808 = vunpack.c.l.b16 %v6866
    %v7809 = vunpack.c.l.b16 %v6867
    %v7810 = vunpack.c.h.b16 %v6867
    %v7811 = vunpack.c.l.b16 %v6868
    %v7812 = vunpack.c.l.b16 %v6869
    %v7813 = vunpack.c.h.b16 %v6869
    %v7814 = vunpack.c.l.b16 %v6870
    %v7815 = vunpack.c.l.b16 %v6871
    %v7816 = vunpack.c.h.b16 %v6871
    %v7817 = vunpack.c.l.b16 %v6872
    %v7818 = vunpack.c.l.b16 %v6873
    %v7819 = vunpack.c.h.b16 %v6873
    %v7820 = vunpack.c.l.b16 %v6874
    %v7821 = vunpack.c.l.b16 %v6875
    %v7822 = vunpack.c.h.b16 %v6875
    %v7823 = vunpack.c.l.b16 %v6876
    %v7824 = vunpack.c.l.b16 %v6877
    %v7825 = vunpack.c.h.b16 %v6877
    %v7826 = vunpack.c.l.b16 %v6878
    %v7827 = vunpack.c.l.b16 %v6879
    %v7828 = vunpack.c.h.b16 %v6879
    %v7829 = vunpack.c.l.b16 %v6880
    %v7830 = vunpack.c.l.b16 %v6881
    %v7831 = vunpack.c.h.b16 %v6881
    %v7832 = vunpack.c.l.b16 %v6882
    %v7833 = vunpack.c.l.b16 %v6883
    %v7834 = vunpack.c.h.b16 %v6883
    %v7835 = vunpack.c.l.b16 %v6884
    %v7836 = vunpack.c.l.b16 %v6885
    %v7837 = vunpack.c.h.b16 %v6885
    %v7838 = vunpack.c.l.b16 %v6886
    %v7839 = vunpack.c.l.b16 %v6887
    %v7840 = vunpack.c.h.b16 %v6887
    %v7841 = vunpack.c.l.b16 %v6888
    %v7842 = vunpack.c.l.b16 %v6889
    %v7843 = vunpack.c.h.b16 %v6889
    %v7844 = vunpack.c.l.b16 %v6890
    %v7845 = vunpack.c.l.b16 %v6891
    %v7846 = vunpack.c.h.b16 %v6891
    %v7847 = vunpack.c.l.b16 %v6892
    %v7848 = vunpack.c.l.b16 %v6893
    %v7849 = vunpack.c.h.b16 %v6893
    %v7850 = vunpack.c.l.b16 %v6894
    %v7851 = vunpack.c.l.b16 %v6895
    %v7852 = vunpack.c.h.b16 %v6895
    %v7853 = vunpack.c.l.b16 %v6896
    %v7854 = vunpack.c.l.b16 %v6897
    %v7855 = vunpack.c.h.b16 %v6897
    %v7856 = vunpack.c.l.b16 %v6898
    %v7857 = vunpack.c.l.b16 %v6899
    %v7858 = vunpack.c.h.b16 %v6899
    %v7859 = vunpack.c.l.b16 %v6900
    %v7860 = vunpack.c.l.b16 %v6901
    %v7861 = vunpack.c.h.b16 %v6901
    %v7862 = vunpack.c.l.b16 %v6902
    %v7863 = vunpack.c.l.b16 %v6903
    %v7864 = vunpack.c.h.b16 %v6903
    %v7865 = vunpack.c.l.b16 %v6904
    %v7866 = vunpack.c.l.b16 %v6905
    %v7867 = vunpack.c.h.b16 %v6905
    %v7868 = vunpack.c.l.b16 %v6906
    %v7869 = vunpack.c.l.b16 %v6907
    %v7870 = vunpack.c.h.b16 %v6907
    %v7871 = vunpack.c.l.b16 %v6908
    %v7872 = vunpack.c.l.b16 %v6909
    %v7873 = vunpack.c.h.b16 %v6909
    %v7874 = vunpack.c.l.b16 %v6910
    %v7875 = vunpack.c.l.b16 %v6911
    %v7876 = vunpack.c.h.b16 %v6911
    %v7877 = vunpack.c.l.b16 %v6912
    %v7878 = vunpack.c.l.b16 %v6913
    %v7879 = vunpack.c.h.b16 %v6913
    %v7880 = vunpack.c.l.b16 %v6914
    %v7881 = vunpack.c.l.b16 %v6915
    %v7882 = vunpack.c.h.b16 %v6915
    %v7883 = vunpack.c.l.b16 %v6916
    %v7884 = vunpack.c.l.b16 %v6917
    %v7885 = vunpack.c.h.b16 %v6917
    %v7886 = vunpack.c.l.b16 %v6918
    %v7887 = vunpack.c.l.b16 %v6919
    %v7888 = vunpack.c.h.b16 %v6919
    %v7889 = vunpack.c.l.b16 %v6920
    %v7890 = vunpack.c.l.b16 %v6921
    %v7891 = vunpack.c.h.b16 %v6921
    %v7892 = vunpack.c.l.b16 %v6922
    %v7893 = vunpack.c.l.b16 %v6923
    %v7894 = vunpack.c.h.b16 %v6923
    %v7895 = vunpack.c.l.b16 %v6924
    %v7896 = vunpack.c.l.b16 %v6925
    %v7897 = vunpack.c.h.b16 %v6925
    %v7898 = vunpack.c.l.b16 %v6926
    %v7899 = vunpack.c.l.b16 %v6927
    %v7900 = vunpack.c.h.b16 %v6927
    %v7901 = vunpack.c.l.b16 %v6928
    %v7902 = vunpack.c.l.b16 %v6929
    %v7903 = vunpack.c.h.b16 %v6929
    %v7904 = vunpack.c.l.b16 %v6930
    %v7905 = vunpack.c.l.b16 %v6931
    %v7906 = vunpack.c.h.b16 %v6931
    %v7907 = vunpack.c.l.b16 %v6932
    %v7908 = vunpack.c.l.b16 %v6933
    %v7909 = vunpack.c.h.b16 %v6933
    %v7910 = vunpack.c.l.b16 %v6934
    %v7911 = vunpack.c.l.b16 %v6935
    %v7912 = vunpack.c.h.b16 %v6935
    %v7913 = vunpack.c.l.b16 %v6936
    %v7914 = vpack.c.b16 %v7341, %v7338
    %v7915 = vpack.c.b16 %v7342, %v7339
    %v7916 = vpack.c.b16 %v7343, %v7340
    %v7917 = vpack.c.b16 %v7347, %v7344
    %v7918 = vpack.c.b16 %v7348, %v7345
    %v7919 = vpack.c.b16 %v7349, %v7346
    %v7920 = vpack.c.b16 %v7353, %v7350
    %v7921 = vpack.c.b16 %v7354, %v7351
    %v7922 = vpack.c.b16 %v7355, %v7352
    %v7923 = vpack.c.b16 %v7359, %v7356
    %v7924 = vpack.c.b16 %v7360, %v7357
    %v7925 = vpack.c.b16 %v7361, %v7358
    %v7926 = vpack.c.b16 %v7365, %v7362
    %v7927 = vpack.c.b16 %v7366, %v7363
    %v7928 = vpack.c.b16 %v7367, %v7364
    %v7929 = vpack.c.b16 %v7371, %v7368
    %v7930 = vpack.c.b16 %v7372, %v7369
    %v7931 = vpack.c.b16 %v7373, %v7370
    %v7932 = vpack.c.b16 %v7377, %v7374
    %v7933 = vpack.c.b16 %v7378, %v7375
    %v7934 = vpack.c.b16 %v7379, %v7376
    %v7935 = vpack.c.b16 %v7383, %v7380
    %v7936 = vpack.c.b16 %v7384, %v7381
    %v7937 = vpack.c.b16 %v7385, %v7382
    %v7938 = vpack.c.b16 %v7389, %v7386
    %v7939 = vpack.c.b16 %v7390, %v7387
    %v7940 = vpack.c.b16 %v7391, %v7388
    %v7941 = vpack.c.b16 %v7395, %v7392
    %v7942 = vpack.c.b16 %v7396, %v7393
    %v7943 = vpack.c.b16 %v7397, %v7394
    %v7944 = vpack.c.b16 %v7401, %v7398
    %v7945 = vpack.c.b16 %v7402, %v7399
    %v7946 = vpack.c.b16 %v7403, %v7400
    %v7947 = vpack.c.b16 %v7407, %v7404
    %v7948 = vpack.c.b16 %v7408, %v7405
    %v7949 = vpack.c.b16 %v7409, %v7406
    %v7950 = vpack.c.b16 %v7413, %v7410
    %v7951 = vpack.c.b16 %v7414, %v7411
    %v7952 = vpack.c.b16 %v7415, %v7412
    %v7953 = vpack.c.b16 %v7419, %v7416
    %v7954 = vpack.c.b16 %v7420, %v7417
    %v7955 = vpack.c.b16 %v7421, %v7418
    %v7956 = vpack.c.b16 %v7425, %v7422
    %v7957 = vpack.c.b16 %v7426, %v7423
    %v7958 = vpack.c.b16 %v7427, %v7424
    %v7959 = vpack.c.b16 %v7431, %v7428
    %v7960 = vpack.c.b16 %v7432, %v7429
    %v7961 = vpack.c.b16 %v7433, %v7430
    %v7962 = vpack.c.b16 %v7437, %v7434
    %v7963 = vpack.c.b16 %v7438, %v7435
    %v7964 = vpack.c.b16 %v7439, %v7436
    %v7965 = vpack.c.b16 %v7443, %v7440
    %v7966 = vpack.c.b16 %v7444, %v7441
    %v7967 = vpack.c.b16 %v7445, %v7442
    %v7968 = vpack.c.b16 %v7449, %v7446
    %v7969 = vpack.c.b16 %v7450, %v7447
    %v7970 = vpack.c.b16 %v7451, %v7448
    %v7971 = vpack.c.b16 %v7455, %v7452
    %v7972 = vpack.c.b16 %v7456, %v7453
    %v7973 = vpack.c.b16 %v7457, %v7454
    %v7974 = vpack.c.b16 %v7461, %v7458
    %v7975 = vpack.c.b16 %v7462, %v7459
    %v7976 = vpack.c.b16 %v7463, %v7460
    %v7977 = vpack.c.b16 %v7467, %v7464
    %v7978 = vpack.c.b16 %v7468, %v7465
    %v7979 = vpack.c.b16 %v7469, %v7466
    %v7980 = vpack.c.b16 %v7473, %v7470
    %v7981 = vpack.c.b16 %v7474, %v7471
    %v7982 = vpack.c.b16 %v7475, %v7472
    %v7983 = vpack.c.b16 %v7479, %v7476
    %v7984 = vpack.c.b16 %v7480, %v7477
    %v7985 = vpack.c.b16 %v7481, %v7478
    %v7986 = vpack.c.b16 %v7485, %v7482
    %v7987 = vpack.c.b16 %v7486, %v7483
    %v7988 = vpack.c.b16 %v7487, %v7484
    %v7989 = vpack.c.b16 %v7491, %v7488
    %v7990 = vpack.c.b16 %v7492, %v7489
    %v7991 = vpack.c.b16 %v7493, %v7490
    %v7992 = vpack.c.b16 %v7497, %v7494
    %v7993 = vpack.c.b16 %v7498, %v7495
    %v7994 = vpack.c.b16 %v7499, %v7496
    %v7995 = vpack.c.b16 %v7503, %v7500
    %v7996 = vpack.c.b16 %v7504, %v7501
    %v7997 = vpack.c.b16 %v7505, %v7502
    %v7998 = vpack.c.b16 %v7509, %v7506
    %v7999 = vpack.c.b16 %v7510, %v7507
    %v8000 = vpack.c.b16 %v7511, %v7508
    %v8001 = vpack.c.b16 %v7515, %v7512
    %v8002 = vpack.c.b16 %v7516, %v7513
    %v8003 = vpack.c.b16 %v7517, %v7514
    %v8004 = vpack.c.b16 %v7521, %v7518
    %v8005 = vpack.c.b16 %v7522, %v7519
    %v8006 = vpack.c.b16 %v7523, %v7520
    %v8007 = vpack.c.b16 %v7527, %v7524
    %v8008 = vpack.c.b16 %v7528, %v7525
    %v8009 = vpack.c.b16 %v7529, %v7526
    %v8010 = vpack.c.b16 %v7533, %v7530
    %v8011 = vpack.c.b16 %v7534, %v7531
    %v8012 = vpack.c.b16 %v7535, %v7532
    %v8013 = vpack.c.b16 %v7539, %v7536
    %v8014 = vpack.c.b16 %v7540, %v7537
    %v8015 = vpack.c.b16 %v7541, %v7538
    %v8016 = vpack.c.b16 %v7545, %v7542
    %v8017 = vpack.c.b16 %v7546, %v7543
    %v8018 = vpack.c.b16 %v7547, %v7544
    %v8019 = vpack.c.b16 %v7551, %v7548
    %v8020 = vpack.c.b16 %v7552, %v7549
    %v8021 = vpack.c.b16 %v7553, %v7550
    %v8022 = vpack.c.b16 %v7557, %v7554
    %v8023 = vpack.c.b16 %v7558, %v7555
    %v8024 = vpack.c.b16 %v7559, %v7556
    %v8025 = vpack.c.b16 %v7563, %v7560
    %v8026 = vpack.c.b16 %v7564, %v7561
    %v8027 = vpack.c.b16 %v7565, %v7562
    %v8028 = vpack.c.b16 %v7569, %v7566
    %v8029 = vpack.c.b16 %v7570, %v7567
    %v8030 = vpack.c.b16 %v7571, %v7568
    %v8031 = vpack.c.b16 %v7575, %v7572
    %v8032 = vpack.c.b16 %v7576, %v7573
    %v8033 = vpack.c.b16 %v7577, %v7574
    %v8034 = vpack.c.b16 %v7581, %v7578
    %v8035 = vpack.c.b16 %v7582, %v7579
    %v8036 = vpack.c.b16 %v7583, %v7580
    %v8037 = vpack.c.b16 %v7587, %v7584
    %v8038 = vpack.c.b16 %v7588, %v7585
    %v8039 = vpack.c.b16 %v7589, %v7586
    %v8040 = vpack.c.b16 %v7593, %v7590
    %v8041 = vpack.c.b16 %v7594, %v7591
    %v8042 = vpack.c.b16 %v7595, %v7592
    %v8043 = vpack.c.b16 %v7599, %v7596
    %v8044 = vpack.c.b16 %v7600, %v7597
    %v8045 = vpack.c.b16 %v7601, %v7598
    %v8046 = vpack.c.b16 %v7605, %v7602
    %v8047 = vpack.c.b16 %v7606, %v7603
    %v8048 = vpack.c.b16 %v7607, %v7604
    %v8049 = vpack.c.b16 %v7611, %v7608
    %v8050 = vpack.c.b16 %v7612, %v7609
    %v8051 = vpack.c.b16 %v7613, %v7610
    %v8052 = vpack.c.b16 %v7617, %v7614
    %v8053 = vpack.c.b16 %v7618, %v7615
    %v8054 = vpack.c.b16 %v7619, %v7616
    %v8055 = vpack.c.b16 %v7623, %v7620
    %v8056 = vpack.c.b16 %v7624, %v7621
    %v8057 = vpack.c.b16 %v7625, %v7622
    %v8058 = vpack.c.b16 %v7629, %v7626
    %v8059 = vpack.c.b16 %v7630, %v7627
    %v8060 = vpack.c.b16 %v7631, %v7628
    %v8061 = vpack.c.b16 %v7635, %v7632
    %v8062 = vpack.c.b16 %v7636, %v7633
    %v8063 = vpack.c.b16 %v7637, %v7634
    %v8064 = vpack.c.b16 %v7641, %v7638
    %v8065 = vpack.c.b16 %v7642, %v7639
    %v8066 = vpack.c.b16 %v7643, %v7640
    %v8067 = vpack.c.b16 %v7647, %v7644
    %v8068 = vpack.c.b16 %v7648, %v7645
    %v8069 = vpack.c.b16 %v7649, %v7646
    %v8070 = vpack.c.b16 %v7653, %v7650
    %v8071 = vpack.c.b16 %v7654, %v7651
    %v8072 = vpack.c.b16 %v7655, %v7652
    %v8073 = vpack.c.b16 %v7659, %v7656
    %v8074 = vpack.c.b16 %v7660, %v7657
    %v8075 = vpack.c.b16 %v7661, %v7658
    %v8076 = vpack.c.b16 %v7665, %v7662
    %v8077 = vpack.c.b16 %v7666, %v7663
    %v8078 = vpack.c.b16 %v7667, %v7664
    %v8079 = vpack.c.b16 %v7671, %v7668
    %v8080 = vpack.c.b16 %v7672, %v7669
    %v8081 = vpack.c.b16 %v7673, %v7670
    %v8082 = vpack.c.b16 %v7677, %v7674
    %v8083 = vpack.c.b16 %v7678, %v7675
    %v8084 = vpack.c.b16 %v7679, %v7676
    %v8085 = vpack.c.b16 %v7683, %v7680
    %v8086 = vpack.c.b16 %v7684, %v7681
    %v8087 = vpack.c.b16 %v7685, %v7682
    %v8088 = vpack.c.b16 %v7689, %v7686
    %v8089 = vpack.c.b16 %v7690, %v7687
    %v8090 = vpack.c.b16 %v7691, %v7688
    %v8091 = vpack.c.b16 %v7695, %v7692
    %v8092 = vpack.c.b16 %v7696, %v7693
    %v8093 = vpack.c.b16 %v7697, %v7694
    %v8094 = vpack.c.b16 %v7701, %v7698
    %v8095 = vpack.c.b16 %v7702, %v7699
    %v8096 = vpack.c.b16 %v7703, %v7700
    %v8097 = vpack.c.b16 %v7707, %v7704
    %v8098 = vpack.c.b16 %v7708, %v7705
    %v8099 = vpack.c.b16 %v7709, %v7706
    %v8100 = vpack.c.b16 %v7713, %v7710
    %v8101 = vpack.c.b16 %v7714, %v7711
    %v8102 = vpack.c.b16 %v7715, %v7712
    %v8103 = vpack.c.b16 %v7719, %v7716
    %v8104 = vpack.c.b16 %v7720, %v7717
    %v8105 = vpack.c.b16 %v7721, %v7718
    %v8106 = vpack.c.b16 %v7725, %v7722
    %v8107 = vpack.c.b16 %v7726, %v7723
    %v8108 = vpack.c.b16 %v7727, %v7724
    %v8109 = vpack.c.b16 %v7731, %v7728
    %v8110 = vpack.c.b16 %v7732, %v7729
    %v8111 = vpack.c.b16 %v7733, %v7730
    %v8112 = vpack.c.b16 %v7737, %v7734
    %v8113 = vpack.c.b16 %v7738, %v7735
    %v8114 = vpack.c.b16 %v7739, %v7736
    %v8115 = vpack.c.b16 %v7743, %v7740
    %v8116 = vpack.c.b16 %v7744, %v7741
    %v8117 = vpack.c.b16 %v7745, %v7742
    %v8118 = vpack.c.b16 %v7749, %v7746
    %v8119 = vpack.c.b16 %v7750, %v7747
    %v8120 = vpack.c.b16 %v7751, %v7748
    %v8121 = vpack.c.b16 %v7755, %v7752
    %v8122 = vpack.c.b16 %v7756, %v7753
    %v8123 = vpack.c.b16 %v7757, %v7754
    %v8124 = vpack.c.b16 %v7761, %v7758
    %v8125 = vpack.c.b16 %v7762, %v7759
    %v8126 = vpack.c.b16 %v7763, %v7760
    %v8127 = vpack.c.b16 %v7767, %v7764
    %v8128 = vpack.c.b16 %v7768, %v7765
    %v8129 = vpack.c.b16 %v7769, %v7766
    %v8130 = vpack.c.b16 %v7773, %v7770
    %v8131 = vpack.c.b16 %v7774, %v7771
    %v8132 = vpack.c.b16 %v7775, %v7772
    %v8133 = vpack.c.b16 %v7779, %v7776
    %v8134 = vpack.c.b16 %v7780, %v7777
    %v8135 = vpack.c.b16 %v7781, %v7778
    %v8136 = vpack.c.b16 %v7785, %v7782
    %v8137 = vpack.c.b16 %v7786, %v7783
    %v8138 = vpack.c.b16 %v7787, %v7784
    %v8139 = vpack.c.b16 %v7791, %v7788
    %v8140 = vpack.c.b16 %v7792, %v7789
    %v8141 = vpack.c.b16 %v7793, %v7790
    %v8142 = vpack.c.b16 %v7797, %v7794
    %v8143 = vpack.c.b16 %v7798, %v7795
    %v8144 = vpack.c.b16 %v7799, %v7796
    %v8145 = vpack.c.b16 %v7803, %v7800
    %v8146 = vpack.c.b16 %v7804, %v7801
    %v8147 = vpack.c.b16 %v7805, %v7802
    %v8148 = vpack.c.b16 %v7809, %v7806
    %v8149 = vpack.c.b16 %v7810, %v7807
    %v8150 = vpack.c.b16 %v7811, %v7808
    %v8151 = vpack.c.b16 %v7815, %v7812
    %v8152 = vpack.c.b16 %v7816, %v7813
    %v8153 = vpack.c.b16 %v7817, %v7814
    %v8154 = vpack.c.b16 %v7821, %v7818
    %v8155 = vpack.c.b16 %v7822, %v7819
    %v8156 = vpack.c.b16 %v7823, %v7820
    %v8157 = vpack.c.b16 %v7827, %v7824
    %v8158 = vpack.c.b16 %v7828, %v7825
    %v8159 = vpack.c.b16 %v7829, %v7826
    %v8160 = vpack.c.b16 %v7833, %v7830
    %v8161 = vpack.c.b16 %v7834, %v7831
    %v8162 = vpack.c.b16 %v7835, %v7832
    %v8163 = vpack.c.b16 %v7839, %v7836
    %v8164 = vpack.c.b16 %v7840, %v7837
    %v8165 = vpack.c.b16 %v7841, %v7838
    %v8166 = vpack.c.b16 %v7845, %v7842
    %v8167 = vpack.c.b16 %v7846, %v7843
    %v8168 = vpack.c.b16 %v7847, %v7844
    %v8169 = vpack.c.b16 %v7851, %v7848
    %v8170 = vpack.c.b16 %v7852, %v7849
    %v8171 = vpack.c.b16 %v7853, %v7850
    %v8172 = vpack.c.b16 %v7857, %v7854
    %v8173 = vpack.c.b16 %v7858, %v7855
    %v8174 = vpack.c.b16 %v7859, %v7856
    %v8175 = vpack.c.b16 %v7863, %v7860
    %v8176 = vpack.c.b16 %v7864, %v7861
    %v8177 = vpack.c.b16 %v7865, %v7862
    %v8178 = vpack.c.b16 %v7869, %v7866
    %v8179 = vpack.c.b16 %v7870, %v7867
    %v8180 = vpack.c.b16 %v7871, %v7868
    %v8181 = vpack.c.b16 %v7875, %v7872
    %v8182 = vpack.c.b16 %v7876, %v7873
    %v8183 = vpack.c.b16 %v7877, %v7874
    %v8184 = vpack.c.b16 %v7881, %v7878
    %v8185 = vpack.c.b16 %v7882, %v7879
    %v8186 = vpack.c.b16 %v7883, %v7880
    %v8187 = vpack.c.b16 %v7887, %v7884
    %v8188 = vpack.c.b16 %v7888, %v7885
    %v8189 = vpack.c.b16 %v7889, %v7886
    %v8190 = vpack.c.b16 %v7893, %v7890
    %v8191 = vpack.c.b16 %v7894, %v7891
    %v8192 = vpack.c.b16 %v7895, %v7892
    %v8193 = vpack.c.b16 %v7899, %v7896
    %v8194 = vpack.c.b16 %v7900, %v7897
    %v8195 = vpack.c.b16 %v7901, %v7898
    %v8196 = vpack.c.b16 %v7905, %v7902
    %v8197 = vpack.c.b16 %v7906, %v7903
    %v8198 = vpack.c.b16 %v7907, %v7904
    %v8199 = vpack.c.b16 %v7911, %v7908
    %v8200 = vpack.c.b16 %v7912, %v7909
    %v8201 = vpack.c.b16 %v7913, %v7910
    %8490 = vmatprep.subr.bf16.mxu0 %v7936
    %8491 = vmatpush1.bf16.msra.mxu0 %v7935
    %8492 = vmatprep.subr.bf16.mxu0 %v7933
    %8493 = vmatpush1.bf16.msra.mxu0 %v7932
    %8494 = vmatprep.subr.bf16.mxu0 %v7930
    %8495 = vmatpush1.bf16.msra.mxu0 %v7929
    %8496 = vmatprep.subr.bf16.mxu0 %v7927
    %8497 = vmatpush1.bf16.msra.mxu0 %v7926
    %8498 = vmatprep.subr.bf16.mxu0 %v7924
    %8499 = vmatpush1.bf16.msra.mxu0 %v7923
    %8500 = vmatprep.subr.bf16.mxu0 %v7921
    %8501 = vmatpush1.bf16.msra.mxu0 %v7920
    %8502 = vmatprep.subr.bf16.mxu0 %v7918
    %8503 = vmatpush1.bf16.msra.mxu0 %v7917
    %8504 = vmatprep.subr.bf16.mxu0 %v7915
    %8505 = vmatpush1.bf16.msra.mxu0 %v7914
    %8506 = vmatprep.subr.bf16.mxu0 %v7960
    %8507 = vmatpush2.bf16.msra.mxu0 %v7959
    %8508 = vmatprep.subr.bf16.mxu0 %v7957
    %8509 = vmatpush2.bf16.msra.mxu0 %v7956
    %8510 = vmatprep.subr.bf16.mxu0 %v7954
    %8511 = vmatpush2.bf16.msra.mxu0 %v7953
    %8512 = vmatprep.subr.bf16.mxu0 %v7951
    %8513 = vmatpush2.bf16.msra.mxu0 %v7950
    %8514 = vmatprep.subr.bf16.mxu0 %v7948
    %8515 = vmatpush2.bf16.msra.mxu0 %v7947
    %8516 = vmatprep.subr.bf16.mxu0 %v7945
    %8517 = vmatpush2.bf16.msra.mxu0 %v7944
    %8518 = vmatprep.subr.bf16.mxu0 %v7942
    %8519 = vmatpush2.bf16.msra.mxu0 %v7941
    %8520 = vmatprep.subr.bf16.mxu0 %v7939
    %8521 = vmatpush2.bf16.msra.mxu0 %v7938
    %8522 = vmatprep.mubr.bf16.mxu0 %v6530
    %8523 = vmatmul.mubr.bf16.gmra.mxu0 %v6529
    %v8524 = vpop.f32.mrf.mxu0
    %v8525 = vadd.f32 %v6942, %v8524
    %v8526 = vpop.f32.mrf.mxu0
    %v8527 = vadd.f32 %v6946, %v8526
    %v8528 = vpop.f32.mrf.mxu0
    %v8529 = vadd.f32 %v6942, %v8528
    %v8530 = vpop.f32.mrf.mxu0
    %v8531 = vadd.f32 %v6946, %v8530
    %8532 = vmatprep.mubr.bf16.mxu0 %v6542
    %8533 = vmatmul.mubr.bf16.gmra.mxu0 %v6541
    %v8534 = vpop.f32.mrf.mxu0
    %v8535 = vadd.f32 %v6942, %v8534
    %v8536 = vpop.f32.mrf.mxu0
    %v8537 = vadd.f32 %v6946, %v8536
    %v8538 = vpop.f32.mrf.mxu0
    %v8539 = vadd.f32 %v6942, %v8538
    %v8540 = vpop.f32.mrf.mxu0
    %v8541 = vadd.f32 %v6946, %v8540
    %8542 = vdwg.mxu0
    %8543 = vmatprep.subr.bf16.mxu0 %v7984
    %8544 = vmatpush1.bf16.msra.mxu0 %v7983
    %8545 = vmatprep.subr.bf16.mxu0 %v7981
    %8546 = vmatpush1.bf16.msra.mxu0 %v7980
    %8547 = vmatprep.subr.bf16.mxu0 %v7978
    %8548 = vmatpush1.bf16.msra.mxu0 %v7977
    %8549 = vmatprep.subr.bf16.mxu0 %v7975
    %8550 = vmatpush1.bf16.msra.mxu0 %v7974
    %8551 = vmatprep.subr.bf16.mxu0 %v7972
    %8552 = vmatpush1.bf16.msra.mxu0 %v7971
    %8553 = vmatprep.subr.bf16.mxu0 %v7969
    %8554 = vmatpush1.bf16.msra.mxu0 %v7968
    %8555 = vmatprep.subr.bf16.mxu0 %v7966
    %8556 = vmatpush1.bf16.msra.mxu0 %v7965
    %8557 = vmatprep.subr.bf16.mxu0 %v7963
    %8558 = vmatpush1.bf16.msra.mxu0 %v7962
    %8559 = vmatprep.subr.bf16.mxu0 %v8008
    %8560 = vmatpush2.bf16.msra.mxu0 %v8007
    %8561 = vmatprep.subr.bf16.mxu0 %v8005
    %8562 = vmatpush2.bf16.msra.mxu0 %v8004
    %8563 = vmatprep.subr.bf16.mxu0 %v8002
    %8564 = vmatpush2.bf16.msra.mxu0 %v8001
    %8565 = vmatprep.subr.bf16.mxu0 %v7999
    %8566 = vmatpush2.bf16.msra.mxu0 %v7998
    %8567 = vmatprep.subr.bf16.mxu0 %v7996
    %8568 = vmatpush2.bf16.msra.mxu0 %v7995
    %8569 = vmatprep.subr.bf16.mxu0 %v7993
    %8570 = vmatpush2.bf16.msra.mxu0 %v7992
    %8571 = vmatprep.subr.bf16.mxu0 %v7990
    %8572 = vmatpush2.bf16.msra.mxu0 %v7989
    %8573 = vmatprep.subr.bf16.mxu0 %v7987
    %8574 = vmatpush2.bf16.msra.mxu0 %v7986
    %8575 = vmatprep.mubr.bf16.mxu0 %v6532
    %8576 = vmatmul.mubr.bf16.gmra.mxu0 %v6531
    %v8577 = vpop.f32.mrf.mxu0
    %v8578 = vadd.f32 %v8525, %v8577
    %v8579 = vpop.f32.mrf.mxu0
    %v8580 = vadd.f32 %v8527, %v8579
    %v8581 = vpop.f32.mrf.mxu0
    %v8582 = vadd.f32 %v8529, %v8581
    %v8583 = vpop.f32.mrf.mxu0
    %v8584 = vadd.f32 %v8531, %v8583
    %8585 = vmatprep.mubr.bf16.mxu0 %v6544
    %8586 = vmatmul.mubr.bf16.gmra.mxu0 %v6543
    %v8587 = vpop.f32.mrf.mxu0
    %v8588 = vadd.f32 %v8535, %v8587
    %v8589 = vpop.f32.mrf.mxu0
    %v8590 = vadd.f32 %v8537, %v8589
    %v8591 = vpop.f32.mrf.mxu0
    %v8592 = vadd.f32 %v8539, %v8591
    %v8593 = vpop.f32.mrf.mxu0
    %v8594 = vadd.f32 %v8541, %v8593
    %8595 = vdwg.mxu0
    %8596 = vmatprep.subr.bf16.mxu0 %v8032
    %8597 = vmatpush1.bf16.msra.mxu0 %v8031
    %8598 = vmatprep.subr.bf16.mxu0 %v8029
    %8599 = vmatpush1.bf16.msra.mxu0 %v8028
    %8600 = vmatprep.subr.bf16.mxu0 %v8026
    %8601 = vmatpush1.bf16.msra.mxu0 %v8025
    %8602 = vmatprep.subr.bf16.mxu0 %v8023
    %8603 = vmatpush1.bf16.msra.mxu0 %v8022
    %8604 = vmatprep.subr.bf16.mxu0 %v8020
    %8605 = vmatpush1.bf16.msra.mxu0 %v8019
    %8606 = vmatprep.subr.bf16.mxu0 %v8017
    %8607 = vmatpush1.bf16.msra.mxu0 %v8016
    %8608 = vmatprep.subr.bf16.mxu0 %v8014
    %8609 = vmatpush1.bf16.msra.mxu0 %v8013
    %8610 = vmatprep.subr.bf16.mxu0 %v8011
    %8611 = vmatpush1.bf16.msra.mxu0 %v8010
    %8612 = vmatprep.subr.bf16.mxu0 %v8056
    %8613 = vmatpush2.bf16.msra.mxu0 %v8055
    %8614 = vmatprep.subr.bf16.mxu0 %v8053
    %8615 = vmatpush2.bf16.msra.mxu0 %v8052
    %8616 = vmatprep.subr.bf16.mxu0 %v8050
    %8617 = vmatpush2.bf16.msra.mxu0 %v8049
    %8618 = vmatprep.subr.bf16.mxu0 %v8047
    %8619 = vmatpush2.bf16.msra.mxu0 %v8046
    %8620 = vmatprep.subr.bf16.mxu0 %v8044
    %8621 = vmatpush2.bf16.msra.mxu0 %v8043
    %8622 = vmatprep.subr.bf16.mxu0 %v8041
    %8623 = vmatpush2.bf16.msra.mxu0 %v8040
    %8624 = vmatprep.subr.bf16.mxu0 %v8038
    %8625 = vmatpush2.bf16.msra.mxu0 %v8037
    %8626 = vmatprep.subr.bf16.mxu0 %v8035
    %8627 = vmatpush2.bf16.msra.mxu0 %v8034
    %8628 = vmatprep.mubr.bf16.mxu0 %v6534
    %8629 = vmatmul.mubr.bf16.gmra.mxu0 %v6533
    %v8630 = vpop.f32.mrf.mxu0
    %v8631 = vadd.f32 %v8578, %v8630
    %v8632 = vpop.f32.mrf.mxu0
    %v8633 = vadd.f32 %v8580, %v8632
    %v8634 = vpop.f32.mrf.mxu0
    %v8635 = vadd.f32 %v8582, %v8634
    %v8636 = vpop.f32.mrf.mxu0
    %v8637 = vadd.f32 %v8584, %v8636
    %8638 = vmatprep.mubr.bf16.mxu0 %v6546
    %8639 = vmatmul.mubr.bf16.gmra.mxu0 %v6545
    %v8640 = vpop.f32.mrf.mxu0
    %v8641 = vadd.f32 %v8588, %v8640
    %v8642 = vpop.f32.mrf.mxu0
    %v8643 = vadd.f32 %v8590, %v8642
    %v8644 = vpop.f32.mrf.mxu0
    %v8645 = vadd.f32 %v8592, %v8644
    %v8646 = vpop.f32.mrf.mxu0
    %v8647 = vadd.f32 %v8594, %v8646
    %8648 = vdwg.mxu0
    %8649 = vmatprep.subr.bf16.mxu0 %v8080
    %8650 = vmatpush1.bf16.msra.mxu0 %v8079
    %8651 = vmatprep.subr.bf16.mxu0 %v8077
    %8652 = vmatpush1.bf16.msra.mxu0 %v8076
    %8653 = vmatprep.subr.bf16.mxu0 %v8074
    %8654 = vmatpush1.bf16.msra.mxu0 %v8073
    %8655 = vmatprep.subr.bf16.mxu0 %v8071
    %8656 = vmatpush1.bf16.msra.mxu0 %v8070
    %8657 = vmatprep.subr.bf16.mxu0 %v8068
    %8658 = vmatpush1.bf16.msra.mxu0 %v8067
    %8659 = vmatprep.subr.bf16.mxu0 %v8065
    %8660 = vmatpush1.bf16.msra.mxu0 %v8064
    %8661 = vmatprep.subr.bf16.mxu0 %v8062
    %8662 = vmatpush1.bf16.msra.mxu0 %v8061
    %8663 = vmatprep.subr.bf16.mxu0 %v8059
    %8664 = vmatpush1.bf16.msra.mxu0 %v8058
    %8665 = vmatprep.subr.bf16.mxu0 %v8104
    %8666 = vmatpush2.bf16.msra.mxu0 %v8103
    %8667 = vmatprep.subr.bf16.mxu0 %v8101
    %8668 = vmatpush2.bf16.msra.mxu0 %v8100
    %8669 = vmatprep.subr.bf16.mxu0 %v8098
    %8670 = vmatpush2.bf16.msra.mxu0 %v8097
    %8671 = vmatprep.subr.bf16.mxu0 %v8095
    %8672 = vmatpush2.bf16.msra.mxu0 %v8094
    %8673 = vmatprep.subr.bf16.mxu0 %v8092
    %8674 = vmatpush2.bf16.msra.mxu0 %v8091
    %8675 = vmatprep.subr.bf16.mxu0 %v8089
    %8676 = vmatpush2.bf16.msra.mxu0 %v8088
    %8677 = vmatprep.subr.bf16.mxu0 %v8086
    %8678 = vmatpush2.bf16.msra.mxu0 %v8085
    %8679 = vmatprep.subr.bf16.mxu0 %v8083
    %8680 = vmatpush2.bf16.msra.mxu0 %v8082
    %8681 = vmatprep.mubr.bf16.mxu0 %v6536
    %8682 = vmatmul.mubr.bf16.gmra.mxu0 %v6535
    %v8683 = vpop.f32.mrf.mxu0
    %v8684 = vadd.f32 %v8631, %v8683
    %v8685 = vpop.f32.mrf.mxu0
    %v8686 = vadd.f32 %v8633, %v8685
    %v8687 = vpop.f32.mrf.mxu0
    %v8688 = vadd.f32 %v8635, %v8687
    %v8689 = vpop.f32.mrf.mxu0
    %v8690 = vadd.f32 %v8637, %v8689
    %8691 = vmatprep.mubr.bf16.mxu0 %v6548
    %8692 = vmatmul.mubr.bf16.gmra.mxu0 %v6547
    %v8693 = vpop.f32.mrf.mxu0
    %v8694 = vadd.f32 %v8641, %v8693
    %v8695 = vpop.f32.mrf.mxu0
    %v8696 = vadd.f32 %v8643, %v8695
    %v8697 = vpop.f32.mrf.mxu0
    %v8698 = vadd.f32 %v8645, %v8697
    %v8699 = vpop.f32.mrf.mxu0
    %v8700 = vadd.f32 %v8647, %v8699
    %8701 = vdwg.mxu0
    %8702 = vmatprep.subr.bf16.mxu0 %v8128
    %8703 = vmatpush1.bf16.msra.mxu0 %v8127
    %8704 = vmatprep.subr.bf16.mxu0 %v8125
    %8705 = vmatpush1.bf16.msra.mxu0 %v8124
    %8706 = vmatprep.subr.bf16.mxu0 %v8122
    %8707 = vmatpush1.bf16.msra.mxu0 %v8121
    %8708 = vmatprep.subr.bf16.mxu0 %v8119
    %8709 = vmatpush1.bf16.msra.mxu0 %v8118
    %8710 = vmatprep.subr.bf16.mxu0 %v8116
    %8711 = vmatpush1.bf16.msra.mxu0 %v8115
    %8712 = vmatprep.subr.bf16.mxu0 %v8113
    %8713 = vmatpush1.bf16.msra.mxu0 %v8112
    %8714 = vmatprep.subr.bf16.mxu0 %v8110
    %8715 = vmatpush1.bf16.msra.mxu0 %v8109
    %8716 = vmatprep.subr.bf16.mxu0 %v8107
    %8717 = vmatpush1.bf16.msra.mxu0 %v8106
    %8718 = vmatprep.subr.bf16.mxu0 %v8152
    %8719 = vmatpush2.bf16.msra.mxu0 %v8151
    %8720 = vmatprep.subr.bf16.mxu0 %v8149
    %8721 = vmatpush2.bf16.msra.mxu0 %v8148
    %8722 = vmatprep.subr.bf16.mxu0 %v8146
    %8723 = vmatpush2.bf16.msra.mxu0 %v8145
    %8724 = vmatprep.subr.bf16.mxu0 %v8143
    %8725 = vmatpush2.bf16.msra.mxu0 %v8142
    %8726 = vmatprep.subr.bf16.mxu0 %v8140
    %8727 = vmatpush2.bf16.msra.mxu0 %v8139
    %8728 = vmatprep.subr.bf16.mxu0 %v8137
    %8729 = vmatpush2.bf16.msra.mxu0 %v8136
    %8730 = vmatprep.subr.bf16.mxu0 %v8134
    %8731 = vmatpush2.bf16.msra.mxu0 %v8133
    %8732 = vmatprep.subr.bf16.mxu0 %v8131
    %8733 = vmatpush2.bf16.msra.mxu0 %v8130
    %8734 = vmatprep.mubr.bf16.mxu0 %v6538
    %8735 = vmatmul.mubr.bf16.gmra.mxu0 %v6537
    %v8736 = vpop.f32.mrf.mxu0
    %v8737 = vadd.f32 %v8684, %v8736
    %v8738 = vpop.f32.mrf.mxu0
    %v8739 = vadd.f32 %v8686, %v8738
    %v8740 = vpop.f32.mrf.mxu0
    %v8741 = vadd.f32 %v8688, %v8740
    %v8742 = vpop.f32.mrf.mxu0
    %v8743 = vadd.f32 %v8690, %v8742
    %8744 = vmatprep.mubr.bf16.mxu0 %v6550
    %8745 = vmatmul.mubr.bf16.gmra.mxu0 %v6549
    %v8746 = vpop.f32.mrf.mxu0
    %v8747 = vadd.f32 %v8694, %v8746
    %v8748 = vpop.f32.mrf.mxu0
    %v8749 = vadd.f32 %v8696, %v8748
    %v8750 = vpop.f32.mrf.mxu0
    %v8751 = vadd.f32 %v8698, %v8750
    %v8752 = vpop.f32.mrf.mxu0
    %v8753 = vadd.f32 %v8700, %v8752
    %8754 = vdwg.mxu0
    %8755 = vmatprep.subr.bf16.mxu0 %v8176
    %8756 = vmatpush1.bf16.msra.mxu0 %v8175
    %8757 = vmatprep.subr.bf16.mxu0 %v8173
    %8758 = vmatpush1.bf16.msra.mxu0 %v8172
    %8759 = vmatprep.subr.bf16.mxu0 %v8170
    %8760 = vmatpush1.bf16.msra.mxu0 %v8169
    %8761 = vmatprep.subr.bf16.mxu0 %v8167
    %8762 = vmatpush1.bf16.msra.mxu0 %v8166
    %8763 = vmatprep.subr.bf16.mxu0 %v8164
    %8764 = vmatpush1.bf16.msra.mxu0 %v8163
    %8765 = vmatprep.subr.bf16.mxu0 %v8161
    %8766 = vmatpush1.bf16.msra.mxu0 %v8160
    %8767 = vmatprep.subr.bf16.mxu0 %v8158
    %8768 = vmatpush1.bf16.msra.mxu0 %v8157
    %8769 = vmatprep.subr.bf16.mxu0 %v8155
    %8770 = vmatpush1.bf16.msra.mxu0 %v8154
    %8771 = vmatprep.subr.bf16.mxu0 %v8200
    %8772 = vmatpush2.bf16.msra.mxu0 %v8199
    %8773 = vmatprep.subr.bf16.mxu0 %v8197
    %8774 = vmatpush2.bf16.msra.mxu0 %v8196
    %8775 = vmatprep.subr.bf16.mxu0 %v8194
    %8776 = vmatpush2.bf16.msra.mxu0 %v8193
    %8777 = vmatprep.subr.bf16.mxu0 %v8191
    %8778 = vmatpush2.bf16.msra.mxu0 %v8190
    %8779 = vmatprep.subr.bf16.mxu0 %v8188
    %8780 = vmatpush2.bf16.msra.mxu0 %v8187
    %8781 = vmatprep.subr.bf16.mxu0 %v8185
    %8782 = vmatpush2.bf16.msra.mxu0 %v8184
    %8783 = vmatprep.subr.bf16.mxu0 %v8182
    %8784 = vmatpush2.bf16.msra.mxu0 %v8181
    %8785 = vmatprep.subr.bf16.mxu0 %v8179
    %8786 = vmatpush2.bf16.msra.mxu0 %v8178
    %8787 = vmatprep.mubr.bf16.mxu0 %v6540
    %8788 = vmatmul.mubr.bf16.gmra.mxu0 %v6539
    %v8789 = vpop.f32.mrf.mxu0
    %v8790 = vadd.f32 %v8737, %v8789
    %v8791 = vpop.f32.mrf.mxu0
    %v8792 = vadd.f32 %v8739, %v8791
    %v8793 = vpop.f32.mrf.mxu0
    %v8794 = vadd.f32 %v8741, %v8793
    %v8795 = vpop.f32.mrf.mxu0
    %v8796 = vadd.f32 %v8743, %v8795
    %8797 = vmatprep.mubr.bf16.mxu0 %v6552
    %8798 = vmatmul.mubr.bf16.gmra.mxu0 %v6551
    %v8799 = vpop.f32.mrf.mxu0
    %v8800 = vadd.f32 %v8747, %v8799
    %v8801 = vpop.f32.mrf.mxu0
    %v8802 = vadd.f32 %v8749, %v8801
    %v8803 = vpop.f32.mrf.mxu0
    %v8804 = vadd.f32 %v8751, %v8803
    %v8805 = vpop.f32.mrf.mxu0
    %v8806 = vadd.f32 %v8753, %v8805
    %8807 = vdwg.mxu0
    %8808 = vmatprep.subr.bf16.mxu0 0
    %8809 = vmatpush1.bf16.msra.mxu0 %v7937
    %8810 = vmatprep.subr.bf16.mxu0 0
    %8811 = vmatpush1.bf16.msra.mxu0 %v7934
    %8812 = vmatprep.subr.bf16.mxu0 0
    %8813 = vmatpush1.bf16.msra.mxu0 %v7931
    %8814 = vmatprep.subr.bf16.mxu0 0
    %8815 = vmatpush1.bf16.msra.mxu0 %v7928
    %8816 = vmatprep.subr.bf16.mxu0 0
    %8817 = vmatpush1.bf16.msra.mxu0 %v7925
    %8818 = vmatprep.subr.bf16.mxu0 0
    %8819 = vmatpush1.bf16.msra.mxu0 %v7922
    %8820 = vmatprep.subr.bf16.mxu0 0
    %8821 = vmatpush1.bf16.msra.mxu0 %v7919
    %8822 = vmatprep.subr.bf16.mxu0 0
    %8823 = vmatpush1.bf16.msra.mxu0 %v7916
    %8824 = vmatprep.subr.bf16.mxu0 0
    %8825 = vmatpush2.bf16.msra.mxu0 %v7961
    %8826 = vmatprep.subr.bf16.mxu0 0
    %8827 = vmatpush2.bf16.msra.mxu0 %v7958
    %8828 = vmatprep.subr.bf16.mxu0 0
    %8829 = vmatpush2.bf16.msra.mxu0 %v7955
    %8830 = vmatprep.subr.bf16.mxu0 0
    %8831 = vmatpush2.bf16.msra.mxu0 %v7952
    %8832 = vmatprep.subr.bf16.mxu0 0
    %8833 = vmatpush2.bf16.msra.mxu0 %v7949
    %8834 = vmatprep.subr.bf16.mxu0 0
    %8835 = vmatpush2.bf16.msra.mxu0 %v7946
    %8836 = vmatprep.subr.bf16.mxu0 0
    %8837 = vmatpush2.bf16.msra.mxu0 %v7943
    %8838 = vmatprep.subr.bf16.mxu0 0
    %8839 = vmatpush2.bf16.msra.mxu0 %v7940
    %8840 = vmatprep.mubr.bf16.mxu0 %v6530
    %8841 = vmatmul.mubr.bf16.gmra.mxu0 %v6529
    %v8842 = vpop.f32.mrf.mxu0
    %v8843 = vadd.f32 %v6950, %v8842
    %v8844 = vpop.f32.mrf.mxu0
    %v8845 = vpop.f32.mrf.mxu0
    %v8846 = vadd.f32 %v6950, %v8845
    %v8847 = vpop.f32.mrf.mxu0
    %8848 = vmatprep.mubr.bf16.mxu0 %v6542
    %8849 = vmatmul.mubr.bf16.gmra.mxu0 %v6541
    %v8850 = vpop.f32.mrf.mxu0
    %v8851 = vadd.f32 %v6950, %v8850
    %v8852 = vpop.f32.mrf.mxu0
    %v8853 = vpop.f32.mrf.mxu0
    %v8854 = vadd.f32 %v6950, %v8853
    %v8855 = vpop.f32.mrf.mxu0
    %8856 = vdwg.mxu0
    %8857 = vmatprep.subr.bf16.mxu0 0
    %8858 = vmatpush1.bf16.msra.mxu0 %v7985
    %8859 = vmatprep.subr.bf16.mxu0 0
    %8860 = vmatpush1.bf16.msra.mxu0 %v7982
    %8861 = vmatprep.subr.bf16.mxu0 0
    %8862 = vmatpush1.bf16.msra.mxu0 %v7979
    %8863 = vmatprep.subr.bf16.mxu0 0
    %8864 = vmatpush1.bf16.msra.mxu0 %v7976
    %8865 = vmatprep.subr.bf16.mxu0 0
    %8866 = vmatpush1.bf16.msra.mxu0 %v7973
    %8867 = vmatprep.subr.bf16.mxu0 0
    %8868 = vmatpush1.bf16.msra.mxu0 %v7970
    %8869 = vmatprep.subr.bf16.mxu0 0
    %8870 = vmatpush1.bf16.msra.mxu0 %v7967
    %8871 = vmatprep.subr.bf16.mxu0 0
    %8872 = vmatpush1.bf16.msra.mxu0 %v7964
    %8873 = vmatprep.subr.bf16.mxu0 0
    %8874 = vmatpush2.bf16.msra.mxu0 %v8009
    %8875 = vmatprep.subr.bf16.mxu0 0
    %8876 = vmatpush2.bf16.msra.mxu0 %v8006
    %8877 = vmatprep.subr.bf16.mxu0 0
    %8878 = vmatpush2.bf16.msra.mxu0 %v8003
    %8879 = vmatprep.subr.bf16.mxu0 0
    %8880 = vmatpush2.bf16.msra.mxu0 %v8000
    %8881 = vmatprep.subr.bf16.mxu0 0
    %8882 = vmatpush2.bf16.msra.mxu0 %v7997
    %8883 = vmatprep.subr.bf16.mxu0 0
    %8884 = vmatpush2.bf16.msra.mxu0 %v7994
    %8885 = vmatprep.subr.bf16.mxu0 0
    %8886 = vmatpush2.bf16.msra.mxu0 %v7991
    %8887 = vmatprep.subr.bf16.mxu0 0
    %8888 = vmatpush2.bf16.msra.mxu0 %v7988
    %8889 = vmatprep.mubr.bf16.mxu0 %v6532
    %8890 = vmatmul.mubr.bf16.gmra.mxu0 %v6531
    %v8891 = vpop.f32.mrf.mxu0
    %v8892 = vadd.f32 %v8843, %v8891
    %v8893 = vpop.f32.mrf.mxu0
    %v8894 = vpop.f32.mrf.mxu0
    %v8895 = vadd.f32 %v8846, %v8894
    %v8896 = vpop.f32.mrf.mxu0
    %8897 = vmatprep.mubr.bf16.mxu0 %v6544
    %8898 = vmatmul.mubr.bf16.gmra.mxu0 %v6543
    %v8899 = vpop.f32.mrf.mxu0
    %v8900 = vadd.f32 %v8851, %v8899
    %v8901 = vpop.f32.mrf.mxu0
    %v8902 = vpop.f32.mrf.mxu0
    %v8903 = vadd.f32 %v8854, %v8902
    %v8904 = vpop.f32.mrf.mxu0
    %8905 = vdwg.mxu0
    %8906 = vmatprep.subr.bf16.mxu0 0
    %8907 = vmatpush1.bf16.msra.mxu0 %v8033
    %8908 = vmatprep.subr.bf16.mxu0 0
    %8909 = vmatpush1.bf16.msra.mxu0 %v8030
    %8910 = vmatprep.subr.bf16.mxu0 0
    %8911 = vmatpush1.bf16.msra.mxu0 %v8027
    %8912 = vmatprep.subr.bf16.mxu0 0
    %8913 = vmatpush1.bf16.msra.mxu0 %v8024
    %8914 = vmatprep.subr.bf16.mxu0 0
    %8915 = vmatpush1.bf16.msra.mxu0 %v8021
    %8916 = vmatprep.subr.bf16.mxu0 0
    %8917 = vmatpush1.bf16.msra.mxu0 %v8018
    %8918 = vmatprep.subr.bf16.mxu0 0
    %8919 = vmatpush1.bf16.msra.mxu0 %v8015
    %8920 = vmatprep.subr.bf16.mxu0 0
    %8921 = vmatpush1.bf16.msra.mxu0 %v8012
    %8922 = vmatprep.subr.bf16.mxu0 0
    %8923 = vmatpush2.bf16.msra.mxu0 %v8057
    %8924 = vmatprep.subr.bf16.mxu0 0
    %8925 = vmatpush2.bf16.msra.mxu0 %v8054
    %8926 = vmatprep.subr.bf16.mxu0 0
    %8927 = vmatpush2.bf16.msra.mxu0 %v8051
    %8928 = vmatprep.subr.bf16.mxu0 0
    %8929 = vmatpush2.bf16.msra.mxu0 %v8048
    %8930 = vmatprep.subr.bf16.mxu0 0
    %8931 = vmatpush2.bf16.msra.mxu0 %v8045
    %8932 = vmatprep.subr.bf16.mxu0 0
    %8933 = vmatpush2.bf16.msra.mxu0 %v8042
    %8934 = vmatprep.subr.bf16.mxu0 0
    %8935 = vmatpush2.bf16.msra.mxu0 %v8039
    %8936 = vmatprep.subr.bf16.mxu0 0
    %8937 = vmatpush2.bf16.msra.mxu0 %v8036
    %8938 = vmatprep.mubr.bf16.mxu0 %v6534
    %8939 = vmatmul.mubr.bf16.gmra.mxu0 %v6533
    %v8940 = vpop.f32.mrf.mxu0
    %v8941 = vadd.f32 %v8892, %v8940
    %v8942 = vpop.f32.mrf.mxu0
    %v8943 = vpop.f32.mrf.mxu0
    %v8944 = vadd.f32 %v8895, %v8943
    %v8945 = vpop.f32.mrf.mxu0
    %8946 = vmatprep.mubr.bf16.mxu0 %v6546
    %8947 = vmatmul.mubr.bf16.gmra.mxu0 %v6545
    %v8948 = vpop.f32.mrf.mxu0
    %v8949 = vadd.f32 %v8900, %v8948
    %v8950 = vpop.f32.mrf.mxu0
    %v8951 = vpop.f32.mrf.mxu0
    %v8952 = vadd.f32 %v8903, %v8951
    %v8953 = vpop.f32.mrf.mxu0
    %8954 = vdwg.mxu0
    %8955 = vmatprep.subr.bf16.mxu0 0
    %8956 = vmatpush1.bf16.msra.mxu0 %v8081
    %8957 = vmatprep.subr.bf16.mxu0 0
    %8958 = vmatpush1.bf16.msra.mxu0 %v8078
    %8959 = vmatprep.subr.bf16.mxu0 0
    %8960 = vmatpush1.bf16.msra.mxu0 %v8075
    %8961 = vmatprep.subr.bf16.mxu0 0
    %8962 = vmatpush1.bf16.msra.mxu0 %v8072
    %8963 = vmatprep.subr.bf16.mxu0 0
    %8964 = vmatpush1.bf16.msra.mxu0 %v8069
    %8965 = vmatprep.subr.bf16.mxu0 0
    %8966 = vmatpush1.bf16.msra.mxu0 %v8066
    %8967 = vmatprep.subr.bf16.mxu0 0
    %8968 = vmatpush1.bf16.msra.mxu0 %v8063
    %8969 = vmatprep.subr.bf16.mxu0 0
    %8970 = vmatpush1.bf16.msra.mxu0 %v8060
    %8971 = vmatprep.subr.bf16.mxu0 0
    %8972 = vmatpush2.bf16.msra.mxu0 %v8105
    %8973 = vmatprep.subr.bf16.mxu0 0
    %8974 = vmatpush2.bf16.msra.mxu0 %v8102
    %8975 = vmatprep.subr.bf16.mxu0 0
    %8976 = vmatpush2.bf16.msra.mxu0 %v8099
    %8977 = vmatprep.subr.bf16.mxu0 0
    %8978 = vmatpush2.bf16.msra.mxu0 %v8096
    %8979 = vmatprep.subr.bf16.mxu0 0
    %8980 = vmatpush2.bf16.msra.mxu0 %v8093
    %8981 = vmatprep.subr.bf16.mxu0 0
    %8982 = vmatpush2.bf16.msra.mxu0 %v8090
    %8983 = vmatprep.subr.bf16.mxu0 0
    %8984 = vmatpush2.bf16.msra.mxu0 %v8087
    %8985 = vmatprep.subr.bf16.mxu0 0
    %8986 = vmatpush2.bf16.msra.mxu0 %v8084
    %8987 = vmatprep.mubr.bf16.mxu0 %v6536
    %8988 = vmatmul.mubr.bf16.gmra.mxu0 %v6535
    %v8989 = vpop.f32.mrf.mxu0
    %v8990 = vadd.f32 %v8941, %v8989
    %v8991 = vpop.f32.mrf.mxu0
    %v8992 = vpop.f32.mrf.mxu0
    %v8993 = vadd.f32 %v8944, %v8992
    %v8994 = vpop.f32.mrf.mxu0
    %8995 = vmatprep.mubr.bf16.mxu0 %v6548
    %8996 = vmatmul.mubr.bf16.gmra.mxu0 %v6547
    %v8997 = vpop.f32.mrf.mxu0
    %v8998 = vadd.f32 %v8949, %v8997
    %v8999 = vpop.f32.mrf.mxu0
    %v9000 = vpop.f32.mrf.mxu0
    %v9001 = vadd.f32 %v8952, %v9000
    %v9002 = vpop.f32.mrf.mxu0
    %9003 = vdwg.mxu0
    %9004 = vmatprep.subr.bf16.mxu0 0
    %9005 = vmatpush1.bf16.msra.mxu0 %v8129
    %9006 = vmatprep.subr.bf16.mxu0 0
    %9007 = vmatpush1.bf16.msra.mxu0 %v8126
    %9008 = vmatprep.subr.bf16.mxu0 0
    %9009 = vmatpush1.bf16.msra.mxu0 %v8123
    %9010 = vmatprep.subr.bf16.mxu0 0
    %9011 = vmatpush1.bf16.msra.mxu0 %v8120
    %9012 = vmatprep.subr.bf16.mxu0 0
    %9013 = vmatpush1.bf16.msra.mxu0 %v8117
    %9014 = vmatprep.subr.bf16.mxu0 0
    %9015 = vmatpush1.bf16.msra.mxu0 %v8114
    %9016 = vmatprep.subr.bf16.mxu0 0
    %9017 = vmatpush1.bf16.msra.mxu0 %v8111
    %9018 = vmatprep.subr.bf16.mxu0 0
    %9019 = vmatpush1.bf16.msra.mxu0 %v8108
    %9020 = vmatprep.subr.bf16.mxu0 0
    %9021 = vmatpush2.bf16.msra.mxu0 %v8153
    %9022 = vmatprep.subr.bf16.mxu0 0
    %9023 = vmatpush2.bf16.msra.mxu0 %v8150
    %9024 = vmatprep.subr.bf16.mxu0 0
    %9025 = vmatpush2.bf16.msra.mxu0 %v8147
    %9026 = vmatprep.subr.bf16.mxu0 0
    %9027 = vmatpush2.bf16.msra.mxu0 %v8144
    %9028 = vmatprep.subr.bf16.mxu0 0
    %9029 = vmatpush2.bf16.msra.mxu0 %v8141
    %9030 = vmatprep.subr.bf16.mxu0 0
    %9031 = vmatpush2.bf16.msra.mxu0 %v8138
    %9032 = vmatprep.subr.bf16.mxu0 0
    %9033 = vmatpush2.bf16.msra.mxu0 %v8135
    %9034 = vmatprep.subr.bf16.mxu0 0
    %9035 = vmatpush2.bf16.msra.mxu0 %v8132
    %9036 = vmatprep.mubr.bf16.mxu0 %v6538
    %9037 = vmatmul.mubr.bf16.gmra.mxu0 %v6537
    %v9038 = vpop.f32.mrf.mxu0
    %v9039 = vadd.f32 %v8990, %v9038
    %v9040 = vpop.f32.mrf.mxu0
    %v9041 = vpop.f32.mrf.mxu0
    %v9042 = vadd.f32 %v8993, %v9041
    %v9043 = vpop.f32.mrf.mxu0
    %9044 = vmatprep.mubr.bf16.mxu0 %v6550
    %9045 = vmatmul.mubr.bf16.gmra.mxu0 %v6549
    %v9046 = vpop.f32.mrf.mxu0
    %v9047 = vadd.f32 %v8998, %v9046
    %v9048 = vpop.f32.mrf.mxu0
    %v9049 = vpop.f32.mrf.mxu0
    %v9050 = vadd.f32 %v9001, %v9049
    %v9051 = vpop.f32.mrf.mxu0
    %9052 = vdwg.mxu0
    %9053 = vmatprep.subr.bf16.mxu0 0
    %9054 = vmatpush1.bf16.msra.mxu0 %v8177
    %9055 = vmatprep.subr.bf16.mxu0 0
    %9056 = vmatpush1.bf16.msra.mxu0 %v8174
    %9057 = vmatprep.subr.bf16.mxu0 0
    %9058 = vmatpush1.bf16.msra.mxu0 %v8171
    %9059 = vmatprep.subr.bf16.mxu0 0
    %9060 = vmatpush1.bf16.msra.mxu0 %v8168
    %9061 = vmatprep.subr.bf16.mxu0 0
    %9062 = vmatpush1.bf16.msra.mxu0 %v8165
    %9063 = vmatprep.subr.bf16.mxu0 0
    %9064 = vmatpush1.bf16.msra.mxu0 %v8162
    %9065 = vmatprep.subr.bf16.mxu0 0
    %9066 = vmatpush1.bf16.msra.mxu0 %v8159
    %9067 = vmatprep.subr.bf16.mxu0 0
    %9068 = vmatpush1.bf16.msra.mxu0 %v8156
    %9069 = vmatprep.subr.bf16.mxu0 0
    %9070 = vmatpush2.bf16.msra.mxu0 %v8201
    %9071 = vmatprep.subr.bf16.mxu0 0
    %9072 = vmatpush2.bf16.msra.mxu0 %v8198
    %9073 = vmatprep.subr.bf16.mxu0 0
    %9074 = vmatpush2.bf16.msra.mxu0 %v8195
    %9075 = vmatprep.subr.bf16.mxu0 0
    %9076 = vmatpush2.bf16.msra.mxu0 %v8192
    %9077 = vmatprep.subr.bf16.mxu0 0
    %9078 = vmatpush2.bf16.msra.mxu0 %v8189
    %9079 = vmatprep.subr.bf16.mxu0 0
    %9080 = vmatpush2.bf16.msra.mxu0 %v8186
    %9081 = vmatprep.subr.bf16.mxu0 0
    %9082 = vmatpush2.bf16.msra.mxu0 %v8183
    %9083 = vmatprep.subr.bf16.mxu0 0
    %9084 = vmatpush2.bf16.msra.mxu0 %v8180
    %9085 = vmatprep.mubr.bf16.mxu0 %v6540
    %9086 = vmatmul.mubr.bf16.gmra.mxu0 %v6539
    %v9087 = vpop.f32.mrf.mxu0
    %v9088 = vadd.f32 %v9039, %v9087
    %v9089 = vpop.f32.mrf.mxu0
    %v9090 = vpop.f32.mrf.mxu0
    %v9091 = vadd.f32 %v9042, %v9090
    %v9092 = vpop.f32.mrf.mxu0
    %9093 = vmatprep.mubr.bf16.mxu0 %v6552
    %9094 = vmatmul.mubr.bf16.gmra.mxu0 %v6551
    %v9095 = vpop.f32.mrf.mxu0
    %v9096 = vadd.f32 %v9047, %v9095
    %v9097 = vpop.f32.mrf.mxu0
    %v9098 = vpop.f32.mrf.mxu0
    %v9099 = vadd.f32 %v9050, %v9098
    %v9100 = vpop.f32.mrf.mxu0
    %9101 = vdwg.mxu0
    %v9102 = vadd.f32 %v3893, %v8790
    %v9103 = vadd.f32 %v3894, %v8792
    %v9104 = vadd.f32 %v3895, %v9088
    %v9105 = vadd.f32 %v3896, %v8794
    %v9106 = vadd.f32 %v3897, %v8796
    %v9107 = vadd.f32 %v3898, %v9091
    %v9108 = vadd.f32 %v3899, %v8800
    %v9109 = vadd.f32 %v3900, %v8802
    %v9110 = vadd.f32 %v3901, %v9096
    %v9111 = vadd.f32 %v3902, %v8804
    %v9112 = vadd.f32 %v3903, %v8806
    %v9113 = vadd.f32 %v3904, %v9099
    %9114 = vst [vmem:[#allocation23] sm:$0xff] %v9102
    %9115 = vst [vmem:[#allocation23 + $0x8] sm:$0xff] %v9103
    %9116 = vst [vmem:[#allocation23 + $0x10] sm:$0xff] %v9104
    %9117 = vst [vmem:[#allocation23 + $0x18] sm:$0xff] %v9105
    %9118 = vst [vmem:[#allocation23 + $0x20] sm:$0xff] %v9106
    %9119 = vst [vmem:[#allocation23 + $0x28] sm:$0xff] %v9107
    %9120 = vst [vmem:[#allocation23 + $0x30] sm:$0xff] %v9108
    %9121 = vst [vmem:[#allocation23 + $0x38] sm:$0xff] %v9109
    %9122 = vst [vmem:[#allocation23 + $0x40] sm:$0xff] %v9110
    %9123 = vst [vmem:[#allocation23 + $0x48] sm:$0xff] %v9111
    %9124 = vst [vmem:[#allocation23 + $0x50] sm:$0xff] %v9112
    %9125 = vst [vmem:[#allocation23 + $0x58] sm:$0xff] %v9113
    // Predicated region
    $region106: #{tpu_custom_call.1} parent=1 // pred_check
      _
    $region107: #{tpu_custom_call.1} parent=1 // pred_check_branch
      %9127 = sbr.rel (0) target = $region109
    $region108: #{tpu_custom_call.1} parent=1 // pred_region
      %s9129 = ssub.s32 1536, 1536
      %9130 = vsyncadd [#allocation4], %s9129
      %s9131 = sshll.u32 [#allocation23], 4
      %s9132 = int_to_ptr.vmem [resolvable:$true] %s9131
      %9137 = dma.vmem_to_hbm [thread:$0]  %s9132, 1536, %s13, [#allocation4], 384, 384, 24
    $region109: #{tpu_custom_call.1} parent=1 // pred_fallthru
      _
    // Predicated region
    $region110: #{tpu_custom_call.1} parent=1 // pred_check
      _
    $region111: #{tpu_custom_call.1} parent=1 // pred_check_branch
      %9139 = sbr.rel (0) target = $region113
    $region112: #{tpu_custom_call.1} parent=1 // pred_region
      %9140 = dma.done [#allocation4], 1536
    $region113: #{tpu_custom_call.1} parent=1 // pred_fallthru
      _
    %9141 = vsyncpa [#allocation3], 1
    %9142 = vsyncpa [#allocation6], 1
    %9143 = vsyncpa [#allocation9], 1
    %9144 = vsyncpa [#allocation12], 1
    %9145 = vsyncpa [#allocation15], 1
    %9146 = vsyncpa [#allocation18], 1
    %9147 = vsyncpa [#allocation21], 1
    %9148 = vsyncpa [#allocation4], 1

</llo_original>
